<compile_context>
chip_gen: v7x
topology: tpu7x:2x2x1
jax: 0.10.0
libtpu: 0.0.40
codegen_flags: <defaults>
</compile_context>

<pallas_src>
import functools

import jax
import jax.numpy as jnp
from jax.experimental import pallas as pl
from jax.experimental.pallas import tpu as pltpu


# ------------------------------- config -------------------------------------

class CFG:
    patch = 4
    img_size = 16
    in_ch = 3
    d_vis = 32
    vis_heads = 4
    n_query = 8
    d_q = 32
    q_heads = 4
    d_lm = 32
    lm_heads = 4
    d_ff = 64
    vocab = 128
    text_len = 8
    max_new_tokens = 4
    bos_id = 0
    dec_cache_len = 8          # KV-cache length (>= 1 + max_new_tokens)


# ------------------------- in-kernel math helpers ----------------------------

def _layernorm(x, g, b, eps=1e-6):
    """x: (S, D) f32; g, b: (1, D) f32.  LayerNorm kept in f32."""
    mean = jnp.mean(x, axis=-1, keepdims=True)
    var = jnp.mean(jnp.square(x - mean), axis=-1, keepdims=True)
    return (x - mean) * jax.lax.rsqrt(var + eps) * g + b


def _split_heads(x2, num_heads):
    """(S, H*Dh) -> (H, S, Dh) via static lane slices + leading-dim concat."""
    s, hd = x2.shape
    dh = hd // num_heads
    return jnp.concatenate(
        [x2[:, h * dh:(h + 1) * dh].reshape(1, s, dh) for h in range(num_heads)],
        axis=0)


def _merge_heads(x3):
    """(H, S, Dh) -> (S, H*Dh) via lane-dim concat."""
    h = x3.shape[0]
    return jnp.concatenate([x3[i] for i in range(h)], axis=1)


def _attend_heads(q3, k3, v3, wo, bo, mask=None):
    """q3: (H, Sq, Dh) bf16 (pre-scaled), k3/v3: (H, Skv, Dh) bf16,
    wo: (H*Dh, D) bf16, bo: (1, D) f32.  Softmax in f32; merged out-projection
    (one MXU push, no per-head sum).  Returns (Sq, D) f32."""
    s = jax.lax.dot_general(q3, k3, (((2,), (2,)), ((0,), (0,))),
                            preferred_element_type=jnp.float32)     # (H,Sq,Skv)
    if mask is not None:
        s = jnp.where(mask, s, -1e30)
    m = jnp.max(s, axis=-1, keepdims=True)
    p = jnp.exp(s - m)
    l = jnp.sum(p, axis=-1, keepdims=True)
    o = jax.lax.dot_general(p.astype(jnp.bfloat16), v3,
                            (((2,), (1,)), ((0,), (0,))),
                            preferred_element_type=jnp.float32)     # (H,Sq,Dh)
    o = o * pl.reciprocal(l, approx=True)
    o2 = _merge_heads(o)                                            # (Sq, H*Dh)
    return jnp.dot(o2.astype(jnp.bfloat16), wo,
                   preferred_element_type=jnp.float32) + bo


def _mha_merged(q2, k2, v2, wo, bo, num_heads, mask=None):
    """All-heads attention from merged (S, H*Dh) activations."""
    dh = q2.shape[-1] // num_heads
    scale = 1.0 / (dh ** 0.5)
    q3 = _split_heads(q2 * scale, num_heads).astype(jnp.bfloat16)
    k3 = _split_heads(k2, num_heads).astype(jnp.bfloat16)
    v3 = _split_heads(v2, num_heads).astype(jnp.bfloat16)
    return _attend_heads(q3, k3, v3, wo, bo, mask=mask)


def _ffn(x, g, b, w1, b1, w2, b2):
    """Fused LN + (w1, GELU, w2); returns FFN branch output (S, D) f32."""
    h = _layernorm(x, g, b)
    hid = jnp.dot(h.astype(jnp.bfloat16), w1,
                  preferred_element_type=jnp.float32) + b1
    hid = jax.nn.gelu(hid, approximate=True)
    return jnp.dot(hid.astype(jnp.bfloat16), w2,
                   preferred_element_type=jnp.float32) + b2


def _self_block(x, g1, b1, wqkv, bqkv, wo, bo, g2, b2, w1, fb1, w2, fb2,
                num_heads):
    """Pre-LN transformer block body, merged QKV projection."""
    d = x.shape[-1]
    h = _layernorm(x, g1, b1)
    qkv = jnp.dot(h.astype(jnp.bfloat16), wqkv,
                  preferred_element_type=jnp.float32) + bqkv        # (S, 3D)
    x = x + _mha_merged(qkv[:, :d], qkv[:, d:2 * d], qkv[:, 2 * d:],
                        wo, bo, num_heads)
    x = x + _ffn(x, g2, b2, w1, fb1, w2, fb2)
    return x


# ------------------------------- kernels -------------------------------------

def _vit_block_kernel(p_ref, pos_ref, patch_w, wqkv, wo, w1, w2,
                      ln_ref, bias_ref, o_ref, *, num_heads):
    """Patch embedding + positional add + one full pre-LN ViT block, fused."""
    d = patch_w.shape[1]
    f = w1.shape[1]
    ln = ln_ref[...]
    bias = bias_ref[...]
    patch_b = bias[0:1, :d]
    bqkv = bias[1:2, :3 * d]
    bo = bias[2:3, :d]
    fb1 = bias[3:4, :f]
    fb2 = bias[4:5, :d]
    x = jnp.dot(p_ref[0].astype(jnp.bfloat16), patch_w[...],
                preferred_element_type=jnp.float32) + patch_b + pos_ref[0]
    x = _self_block(x, ln[0:1], ln[1:2], wqkv[...], bqkv, wo[...], bo,
                    ln[2:3], ln[3:4], w1[...], fb1, w2[...], fb2, num_heads)
    o_ref[0] = x.astype(o_ref.dtype)


def _qformer_kernel(q_ref, kv_ref, sa_wqkv, sa_wo, c_wq, c_wkv, c_wo,
                    w1, w2, proj_w, ln_ref, bias_ref, o_ref, *, num_heads):
    """Whole Q-Former block (self-attn + cross-attn to vision + FFN) with the
    vision final LayerNorm and the language projection fused in."""
    d = sa_wo.shape[1]
    f = w1.shape[1]
    d_out = proj_w.shape[1]
    ln = ln_ref[...]
    bias = bias_ref[...]
    kv_g, kv_b = ln[0:1], ln[1:2]
    sa_g, sa_b = ln[2:3], ln[3:4]
    ca_g, ca_b = ln[4:5], ln[5:6]
    ff_g, ff_b = ln[6:7], ln[7:8]
    sa_bqkv = bias[0:1, :3 * d]
    sa_bo = bias[1:2, :d]
    c_bq = bias[2:3, :d]
    c_bkv = bias[3:4, :2 * d]
    c_bo = bias[4:5, :d]
    f_b1 = bias[5:6, :f]
    f_b2 = bias[6:7, :d]
    p_b = bias[7:8, :d_out]

    x = q_ref[0].astype(jnp.float32)                               # (Nq, Dq)
    # self-attention over the learned queries
    h = _layernorm(x, sa_g, sa_b)
    qkv = jnp.dot(h.astype(jnp.bfloat16), sa_wqkv[...],
                  preferred_element_type=jnp.float32) + sa_bqkv
    x = x + _mha_merged(qkv[:, :d], qkv[:, d:2 * d], qkv[:, 2 * d:],
                        sa_wo[...], sa_bo, num_heads)
    # cross-attention to the (final-LN'd) vision tokens; merged K/V projection
    kvx = _layernorm(kv_ref[0].astype(jnp.float32), kv_g, kv_b)
    h = _layernorm(x, ca_g, ca_b)
    qc = jnp.dot(h.astype(jnp.bfloat16), c_wq[...],
                 preferred_element_type=jnp.float32) + c_bq        # (Nq, D)
    kvc = jnp.dot(kvx.astype(jnp.bfloat16), c_wkv[...],
                  preferred_element_type=jnp.float32) + c_bkv      # (Sv, 2D)
    x = x + _mha_merged(qc, kvc[:, :d], kvc[:, d:], c_wo[...], c_bo, num_heads)
    # FFN
    x = x + _ffn(x, ff_g, ff_b, w1[...], f_b1, w2[...], f_b2)
    # language projection fused here (was a separate pallas_linear)
    y = jnp.dot(x.astype(jnp.bfloat16), proj_w[...],
                preferred_element_type=jnp.float32) + p_b
    o_ref[0] = y.astype(o_ref.dtype)


def _lm_encoder_kernel(e_ref, wqkv, wo, w1, w2, c_wkv, ln_ref, bias_ref,
                       o_ref, *, num_heads):
    """T5-style encoder block + final LN + decoder cross-attention K/V
    projection, fused; output is the lane-dense (Senc, 2*H*Dh) K/V slab."""
    d = wo.shape[1]
    f = w1.shape[1]
    ln = ln_ref[...]
    bias = bias_ref[...]
    x = e_ref[0].astype(jnp.float32)
    x = _self_block(x, ln[0:1], ln[1:2], wqkv[...], bias[0:1, :3 * d],
                    wo[...], bias[1:2, :d], ln[2:3], ln[3:4],
                    w1[...], bias[2:3, :f], w2[...], bias[3:4, :d], num_heads)
    h = _layernorm(x, ln[4:5], ln[5:6])                            # enc final LN
    kv = jnp.dot(h.astype(jnp.bfloat16), c_wkv[...],
                 preferred_element_type=jnp.float32) + bias[4:5, :2 * d]
    o_ref[0] = kv.astype(o_ref.dtype)                              # (Senc, 2D)


def _decode_kernel(enckv_ref, embed_ref, wqkv, wo, c_wq, c_wo, w1, w2, lm_w,
                   ln_ref, bias_ref, tok_ref, *, num_heads, n_new, bos_id,
                   cache_len):
    """ALL greedy-decode steps fused into one kernel per batch element:
    in-kernel embedding lookup (one-hot matmul), causal self-attn over a
    vreg-resident KV cache, cross-attn to precomputed encoder K/V, FFN,
    final LN, LM head, argmax -- looped with lax.fori_loop."""
    nh = num_heads
    d = wo.shape[1]
    dh = d // nh
    f = w1.shape[1]
    v = lm_w.shape[1]
    l_cache = cache_len
    t_out = n_new + 1
    scale = 1.0 / (dh ** 0.5)

    ln = ln_ref[...]
    bias = bias_ref[...]
    g1, b1 = ln[0:1], ln[1:2]
    g2, b2 = ln[2:3], ln[3:4]
    g3, b3 = ln[4:5], ln[5:6]
    gf, bf = ln[6:7], ln[7:8]
    s_bqkv = bias[0:1, :3 * d]
    s_bo = bias[1:2, :d]
    c_bq = bias[2:3, :d]
    c_bo = bias[3:4, :d]
    f_b1 = bias[4:5, :f]
    f_b2 = bias[5:6, :d]
    lm_b = bias[6:7, :v]

    # hoisted, loop-invariant values (weights / encoder K/V / iotas)
    wqkv_b = wqkv[...]
    wo_b = wo[...]
    c_wq_b = c_wq[...]
    c_wo_b = c_wo[...]
    w1_b = w1[...]
    w2_b = w2[...]
    lm_w_b = lm_w[...]
    embed_b = embed_ref[...].astype(jnp.bfloat16)                  # (V, D)
    ekv = enckv_ref[0].astype(jnp.float32)                         # (Senc, 2D)
    ek3 = _split_heads(ekv[:, :d], nh).astype(jnp.bfloat16)        # (H,Se,Dh)
    ev3 = _split_heads(ekv[:, d:], nh).astype(jnp.bfloat16)

    lane_v = jax.lax.broadcasted_iota(jnp.int32, (1, v), 1)
    lane_vf = lane_v.astype(jnp.float32)
    lane_t = jax.lax.broadcasted_iota(jnp.int32, (1, t_out), 1)
    row_l = jax.lax.broadcasted_iota(jnp.int32, (l_cache, 1), 0)
    kv_pos = jax.lax.broadcasted_iota(jnp.int32, (1, 1, l_cache), 2)

    def step(i, carry):
        tok, toks, kc, vc = carry
        # embedding lookup as a one-hot matmul (1, V) x (V, D)
        onehot = jnp.where(lane_v == tok, 1.0, 0.0).astype(jnp.bfloat16)
        x = jnp.dot(onehot, embed_b, preferred_element_type=jnp.float32)
        # --- self-attention with an in-register KV cache ---
        h = _layernorm(x, g1, b1)
        qkv = jnp.dot(h.astype(jnp.bfloat16), wqkv_b,
                      preferred_element_type=jnp.float32) + s_bqkv  # (1, 3D)
        q2, k_new, v_new = qkv[:, :d], qkv[:, d:2 * d], qkv[:, 2 * d:]
        kc = jnp.where(row_l == i, k_new, kc)                       # (L, D)
        vc = jnp.where(row_l == i, v_new, vc)
        q3 = _split_heads(q2 * scale, nh).astype(jnp.bfloat16)
        k3 = _split_heads(kc, nh).astype(jnp.bfloat16)
        v3 = _split_heads(vc, nh).astype(jnp.bfloat16)
        x = x + _attend_heads(q3, k3, v3, wo_b, s_bo, mask=(kv_pos <= i))
        # --- cross-attention; encoder K/V precomputed and hoisted ---
        h = _layernorm(x, g2, b2)
        qc = jnp.dot(h.astype(jnp.bfloat16), c_wq_b,
                     preferred_element_type=jnp.float32) + c_bq
        qc3 = _split_heads(qc * scale, nh).astype(jnp.bfloat16)
        x = x + _attend_heads(qc3, ek3, ev3, c_wo_b, c_bo)
        # --- FFN + final LN + LM head ---
        x = x + _ffn(x, g3, b3, w1_b, f_b1, w2_b, f_b2)
        hf = _layernorm(x, gf, bf)
        logits = jnp.dot(hf.astype(jnp.bfloat16), lm_w_b,
                         preferred_element_type=jnp.float32) + lm_b  # (1, V)
        # argmax (first max index) via max + masked min over a float iota
        mx = jnp.max(logits, axis=-1, keepdims=True)
        cand = jnp.where(logits >= mx, lane_vf, float(v))
        nxt = jnp.min(cand, axis=-1, keepdims=True).astype(jnp.int32)  # (1,1)
        toks = jnp.where(lane_t == i + 1, nxt, toks)
        return nxt, toks, kc, vc

    tok0 = jnp.full((1, 1), bos_id, jnp.int32)
    toks0 = jnp.full((1, t_out), bos_id, jnp.int32)
    kc0 = jnp.zeros((l_cache, d), jnp.float32)
    vc0 = jnp.zeros((l_cache, d), jnp.float32)
    _, toks, _, _ = jax.lax.fori_loop(0, n_new, step, (tok0, toks0, kc0, vc0))
    tok_ref[0] = toks


# ----------------------------- call wrappers ---------------------------------

def _rep_spec(a):
    return pl.BlockSpec(a.shape, lambda b: (0,) * a.ndim)


def _batched_spec(shape):
    return pl.BlockSpec((1,) + tuple(shape[1:]),
                        lambda b: (b,) + (0,) * (len(shape) - 1))


def _pack_rows(arrs, width=None):
    """Pack small (1, n) f32 params into one (n_rows, width) slab."""
    arrs = [a.reshape(1, -1).astype(jnp.float32) for a in arrs]
    if width is None:
        width = max(a.shape[1] for a in arrs)
    rows = [jnp.pad(a, ((0, 0), (0, width - a.shape[1]))) for a in arrs]
    return jnp.concatenate(rows, axis=0)


def pallas_vit_block(patches, vis, num_heads):
    B, Np, _ = patches.shape
    D = vis["patch_w"].shape[1]
    attn, ffn_p = vis["attn"], vis["ffn"]
    ln_slab = _pack_rows([vis["ln1"]["g"], vis["ln1"]["b"],
                          vis["ln2"]["g"], vis["ln2"]["b"]])
    bias_slab = _pack_rows([vis["patch_b"], attn["bqkv"], attn["bo"],
                            ffn_p["b1"], ffn_p["b2"]])
    args = (patches, vis["pos"], vis["patch_w"], attn["wqkv"], attn["wo"],
            ffn_p["w1"], ffn_p["w2"], ln_slab, bias_slab)
    return pl.pallas_call(
        functools.partial(_vit_block_kernel, num_heads=num_heads),
        out_shape=jax.ShapeDtypeStruct((B, Np, D), jnp.bfloat16),
        grid=(B,),
        in_specs=[_batched_spec(patches.shape)] + [_rep_spec(a) for a in args[1:]],
        out_specs=_batched_spec((B, Np, D)),
        compiler_params=pltpu.CompilerParams(dimension_semantics=("parallel",)),
    )(*args)


def pallas_qformer_block(query, kv, kv_ln, qf, proj_w, proj_b, num_heads, d_out):
    B = kv.shape[0]
    Nq = query.shape[1]
    sa, ca, ff = qf["self_attn"], qf["cross_attn"], qf["ffn"]
    ln_slab = _pack_rows([kv_ln["g"], kv_ln["b"],
                          qf["ln_sa"]["g"], qf["ln_sa"]["b"],
                          qf["ln_ca"]["g"], qf["ln_ca"]["b"],
                          qf["ln_ff"]["g"], qf["ln_ff"]["b"]])
    bias_slab = _pack_rows([sa["bqkv"], sa["bo"], ca["bq"], ca["bkv"],
                            ca["bo"], ff["b1"], ff["b2"], proj_b])
    args = (query, kv, sa["wqkv"], sa["wo"], ca["wq"], ca["wkv"], ca["wo"],
            ff["w1"], ff["w2"], proj_w, ln_slab, bias_slab)
    return pl.pallas_call(
        functools.partial(_qformer_kernel, num_heads=num_heads),
        out_shape=jax.ShapeDtypeStruct((B, Nq, d_out), jnp.bfloat16),
        grid=(B,),
        in_specs=[_rep_spec(query), _batched_spec(kv.shape)]
                 + [_rep_spec(a) for a in args[2:]],
        out_specs=_batched_spec((B, Nq, d_out)),
        compiler_params=pltpu.CompilerParams(dimension_semantics=("parallel",)),
    )(*args)


def pallas_lm_encoder(e, lm, num_heads):
    B, Senc, D = e.shape
    attn, ffn_p, ca = lm["enc_attn"], lm["enc_ffn"], lm["dec_cross_attn"]
    ln_slab = _pack_rows([lm["enc_ln1"]["g"], lm["enc_ln1"]["b"],
                          lm["enc_ln2"]["g"], lm["enc_ln2"]["b"],
                          lm["enc_ln_f"]["g"], lm["enc_ln_f"]["b"]])
    bias_slab = _pack_rows([attn["bqkv"], attn["bo"], ffn_p["b1"],
                            ffn_p["b2"], ca["bkv"]])
    args = (e, attn["wqkv"], attn["wo"], ffn_p["w1"], ffn_p["w2"], ca["wkv"],
            ln_slab, bias_slab)
    return pl.pallas_call(
        functools.partial(_lm_encoder_kernel, num_heads=num_heads),
        out_shape=jax.ShapeDtypeStruct((B, Senc, 2 * D), jnp.bfloat16),
        grid=(B,),
        in_specs=[_batched_spec(e.shape)] + [_rep_spec(a) for a in args[1:]],
        out_specs=_batched_spec((B, Senc, 2 * D)),
        compiler_params=pltpu.CompilerParams(dimension_semantics=("parallel",)),
    )(*args)


def pallas_greedy_decode(enc_kv, lm, *, num_heads, n_new, bos_id, cache_len):
    B = enc_kv.shape[0]
    sa, ca, ff = lm["dec_self_attn"], lm["dec_cross_attn"], lm["dec_ffn"]
    ln_slab = _pack_rows([lm["dec_ln1"]["g"], lm["dec_ln1"]["b"],
                          lm["dec_ln2"]["g"], lm["dec_ln2"]["b"],
                          lm["dec_ln3"]["g"], lm["dec_ln3"]["b"],
                          lm["dec_ln_f"]["g"], lm["dec_ln_f"]["b"]])
    bias_slab = _pack_rows([sa["bqkv"], sa["bo"], ca["bq"], ca["bo"],
                            ff["b1"], ff["b2"], lm["lm_head_b"]])
    args = (enc_kv, lm["embed"], sa["wqkv"], sa["wo"], ca["wq"], ca["wo"],
            ff["w1"], ff["w2"], lm["lm_head_w"], ln_slab, bias_slab)
    t_out = n_new + 1
    out = pl.pallas_call(
        functools.partial(_decode_kernel, num_heads=num_heads, n_new=n_new,
                          bos_id=bos_id, cache_len=cache_len),
        out_shape=jax.ShapeDtypeStruct((B, 1, t_out), jnp.int32),
        grid=(B,),
        in_specs=[_batched_spec(enc_kv.shape)] + [_rep_spec(a) for a in args[1:]],
        out_specs=_batched_spec((B, 1, t_out)),
        compiler_params=pltpu.CompilerParams(dimension_semantics=("parallel",)),
    )(*args)
    return out[:, 0, :]


# ------------------------------- parameters ----------------------------------

def _dense(key, d_in, d_out):
    # matmul weights stored in bf16 (MXU bf16 path, f32 accumulation in-kernel)
    return (jax.random.normal(key, (d_in, d_out), jnp.float32) * 0.02
            ).astype(jnp.bfloat16)


def _bias(n):
    return jnp.zeros((1, n), jnp.float32)


def _init_ln(d):
    return {"g": jnp.ones((1, d), jnp.float32),
            "b": jnp.zeros((1, d), jnp.float32)}


def _init_self_attn(key, d, num_heads):
    del num_heads  # heads are split in-kernel from the merged projection
    k1, k2 = jax.random.split(key)
    return {"wqkv": _dense(k1, d, 3 * d), "bqkv": _bias(3 * d),
            "wo": _dense(k2, d, d), "bo": _bias(d)}


def _init_cross_attn(key, d, d_kv, num_heads):
    del num_heads
    k1, k2, k3 = jax.random.split(key, 3)
    return {"wq": _dense(k1, d, d), "bq": _bias(d),
            "wkv": _dense(k2, d_kv, 2 * d), "bkv": _bias(2 * d),
            "wo": _dense(k3, d, d), "bo": _bias(d)}


def _init_ffn(key, d, f):
    k1, k2 = jax.random.split(key)
    return {"w1": _dense(k1, d, f), "b1": _bias(f),
            "w2": _dense(k2, f, d), "b2": _bias(d)}


def init_params(key):
    c = CFG
    n_patches = (c.img_size // c.patch) ** 2
    patch_dim = c.in_ch * c.patch * c.patch
    ks = jax.random.split(key, 16)
    return {
        "vis": {
            "patch_w": _dense(ks[0], patch_dim, c.d_vis), "patch_b": _bias(c.d_vis),
            "pos": jax.random.normal(ks[1], (1, n_patches, c.d_vis), jnp.float32) * 0.02,
            "ln1": _init_ln(c.d_vis), "attn": _init_self_attn(ks[2], c.d_vis, c.vis_heads),
            "ln2": _init_ln(c.d_vis), "ffn": _init_ffn(ks[3], c.d_vis, c.d_ff),
            "ln_f": _init_ln(c.d_vis),
        },
        "qf": {
            "query": jax.random.normal(ks[4], (1, c.n_query, c.d_q), jnp.float32) * 0.02,
            "ln_sa": _init_ln(c.d_q), "self_attn": _init_self_attn(ks[5], c.d_q, c.q_heads),
            "ln_ca": _init_ln(c.d_q),
            "cross_attn": _init_cross_attn(ks[6], c.d_q, c.d_vis, c.q_heads),
            "ln_ff": _init_ln(c.d_q), "ffn": _init_ffn(ks[7], c.d_q, c.d_ff),
        },
        "proj_w": _dense(ks[8], c.d_q, c.d_lm), "proj_b": _bias(c.d_lm),
        "lm": {
            "embed": jax.random.normal(ks[9], (c.vocab, c.d_lm), jnp.float32) * 0.02,
            "enc_ln1": _init_ln(c.d_lm), "enc_attn": _init_self_attn(ks[10], c.d_lm, c.lm_heads),
            "enc_ln2": _init_ln(c.d_lm), "enc_ffn": _init_ffn(ks[11], c.d_lm, c.d_ff),
            "enc_ln_f": _init_ln(c.d_lm),
            "dec_ln1": _init_ln(c.d_lm),
            "dec_self_attn": _init_self_attn(ks[12], c.d_lm, c.lm_heads),
            "dec_ln2": _init_ln(c.d_lm),
            "dec_cross_attn": _init_cross_attn(ks[13], c.d_lm, c.d_lm, c.lm_heads),
            "dec_ln3": _init_ln(c.d_lm), "dec_ffn": _init_ffn(ks[14], c.d_lm, c.d_ff),
            "dec_ln_f": _init_ln(c.d_lm),
            "lm_head_w": _dense(ks[15], c.d_lm, c.vocab), "lm_head_b": _bias(c.vocab),
        },
    }


# ------------------------------ forward pass ---------------------------------

def flan_xl_vqa_forward(params, image, text_ids):
    """image: (B, C, H, W) f32 NCHW; text_ids: (B, T) int32.
    Returns generated token ids (B, 1 + max_new_tokens) -- the `model.generate`
    equivalent before tokenizer decoding."""
    c = CFG
    assert c.dec_cache_len >= 1 + c.max_new_tokens
    B, C, H, W = image.shape
    P = c.patch

    # ---- vision encoder: patch extraction (JAX glue) + fused ViT block ----
    patches = image.reshape(B, C, H // P, P, W // P, P)
    patches = patches.transpose(0, 2, 4, 1, 3, 5).reshape(
        B, (H // P) * (W // P), C * P * P)
    vis = params["vis"]
    x = pallas_vit_block(patches, vis, c.vis_heads)           # (B, Np, Dv) bf16

    # ---- Q-Former (vision final LN + language projection fused in) ----
    qf = params["qf"]
    lm_q = pallas_qformer_block(qf["query"], x, vis["ln_f"], qf,
                                params["proj_w"], params["proj_b"],
                                c.q_heads, c.d_lm)             # (B, Nq, D) bf16

    # ---- text embedding + T5-style encoder (+ fused decoder cross K/V) ----
    lm = params["lm"]
    txt_emb = jnp.take(lm["embed"], text_ids, axis=0).astype(jnp.bfloat16)
    e = jnp.concatenate([lm_q, txt_emb], axis=1)               # (B, Senc, D)
    enc_kv = pallas_lm_encoder(e, lm, c.lm_heads)              # (B, Senc, 2D) bf16

    # ---- greedy decode: the whole token loop inside ONE fused kernel ----
    tokens = pallas_greedy_decode(enc_kv, lm, num_heads=c.lm_heads,
                                  n_new=c.max_new_tokens, bos_id=c.bos_id,
                                  cache_len=c.dec_cache_len)   # (B, 1+n_new)
    return tokens


# ----------------------------------- main ------------------------------------

if __name__ == "__main__":
    key = jax.random.PRNGKey(0)
    k_param, k_img, k_txt = jax.random.split(key, 3)

    params = init_params(k_param)

    B = 2
    image = jax.random.normal(k_img, (B, CFG.in_ch, CFG.img_size, CFG.img_size),
                              jnp.float32)                     # NCHW like PyTorch
    text_ids = jax.random.randint(k_txt, (B, CFG.text_len), 2, CFG.vocab,
                                  dtype=jnp.int32)

    fwd = jax.jit(flan_xl_vqa_forward)
    out_tokens = jax.block_until_ready(fwd(params, image, text_ids))

    # equivalent of `processor.decode(outputs[0], skip_special_tokens=True)`
    # would map these ids back to text; no tokenizer here.
    _ = list(map(int, out_tokens[0]))
    print("KERNEL_OK")
</pallas_src>

<mosaic_0001>
module attributes {stable_mosaic.version = 11 : i64} {
  func.func @_qformer_kernel(%arg0: i32, %arg1: memref<1x8x32xf32, #tpu.memory_space<vmem>>, %arg2: memref<1x16x32xbf16, #tpu.memory_space<vmem>>, %arg3: memref<32x96xbf16, #tpu.memory_space<vmem>>, %arg4: memref<32x32xbf16, #tpu.memory_space<vmem>>, %arg5: memref<32x32xbf16, #tpu.memory_space<vmem>>, %arg6: memref<32x64xbf16, #tpu.memory_space<vmem>>, %arg7: memref<32x32xbf16, #tpu.memory_space<vmem>>, %arg8: memref<32x64xbf16, #tpu.memory_space<vmem>>, %arg9: memref<64x32xbf16, #tpu.memory_space<vmem>>, %arg10: memref<32x32xbf16, #tpu.memory_space<vmem>>, %arg11: memref<8x32xf32, #tpu.memory_space<vmem>>, %arg12: memref<8x96xf32, #tpu.memory_space<vmem>>, %arg13: memref<1x8x32xbf16, #tpu.memory_space<vmem>>) attributes {dimension_semantics = [#tpu.dimension_semantics<parallel>], iteration_bounds = array<i64: 2>, scalar_prefetch = 0 : i64, scratch_operands = 0 : i64, tpu.core_type = #tpu.core_type<tc>, window_params = [{pipeline_mode = #tpu.pipeline_mode<synchronous>, transform_indices = @transform_0, window_bounds = array<i64: 1, 8, 32>}, {transform_indices = @transform_1, window_bounds = array<i64: 1, 16, 32>}, {pipeline_mode = #tpu.pipeline_mode<synchronous>, transform_indices = @transform_2, window_bounds = array<i64: 32, 96>}, {pipeline_mode = #tpu.pipeline_mode<synchronous>, transform_indices = @transform_3, window_bounds = array<i64: 32, 32>}, {pipeline_mode = #tpu.pipeline_mode<synchronous>, transform_indices = @transform_4, window_bounds = array<i64: 32, 32>}, {pipeline_mode = #tpu.pipeline_mode<synchronous>, transform_indices = @transform_5, window_bounds = array<i64: 32, 64>}, {pipeline_mode = #tpu.pipeline_mode<synchronous>, transform_indices = @transform_6, window_bounds = array<i64: 32, 32>}, {pipeline_mode = #tpu.pipeline_mode<synchronous>, transform_indices = @transform_7, window_bounds = array<i64: 32, 64>}, {pipeline_mode = #tpu.pipeline_mode<synchronous>, transform_indices = @transform_8, window_bounds = array<i64: 64, 32>}, {pipeline_mode = #tpu.pipeline_mode<synchronous>, transform_indices = @transform_9, window_bounds = array<i64: 32, 32>}, {pipeline_mode = #tpu.pipeline_mode<synchronous>, transform_indices = @transform_10, window_bounds = array<i64: 8, 32>}, {pipeline_mode = #tpu.pipeline_mode<synchronous>, transform_indices = @transform_11, window_bounds = array<i64: 8, 96>}, {transform_indices = @transform_12, window_bounds = array<i64: 1, 8, 32>}]} {
    %c0 = arith.constant 0 : index
    %c0_0 = arith.constant 0 : index
    %0 = vector.load %arg11[%c0, %c0_0] : memref<8x32xf32, #tpu.memory_space<vmem>>, vector<8x32xf32>
    %c0_1 = arith.constant 0 : index
    %c0_2 = arith.constant 0 : index
    %1 = vector.load %arg12[%c0_1, %c0_2] : memref<8x96xf32, #tpu.memory_space<vmem>>, vector<8x96xf32>
    %2 = vector.extract_strided_slice %0 {offsets = [0, 0], sizes = [1, 32], strides = [1, 1]} : vector<8x32xf32> to vector<1x32xf32>
    %3 = vector.extract_strided_slice %0 {offsets = [1, 0], sizes = [1, 32], strides = [1, 1]} : vector<8x32xf32> to vector<1x32xf32>
    %4 = vector.extract_strided_slice %0 {offsets = [2, 0], sizes = [1, 32], strides = [1, 1]} : vector<8x32xf32> to vector<1x32xf32>
    %5 = vector.extract_strided_slice %0 {offsets = [3, 0], sizes = [1, 32], strides = [1, 1]} : vector<8x32xf32> to vector<1x32xf32>
    %6 = vector.extract_strided_slice %0 {offsets = [4, 0], sizes = [1, 32], strides = [1, 1]} : vector<8x32xf32> to vector<1x32xf32>
    %7 = vector.extract_strided_slice %0 {offsets = [5, 0], sizes = [1, 32], strides = [1, 1]} : vector<8x32xf32> to vector<1x32xf32>
    %8 = vector.extract_strided_slice %0 {offsets = [6, 0], sizes = [1, 32], strides = [1, 1]} : vector<8x32xf32> to vector<1x32xf32>
    %9 = vector.extract_strided_slice %0 {offsets = [7, 0], sizes = [1, 32], strides = [1, 1]} : vector<8x32xf32> to vector<1x32xf32>
    %10 = vector.extract_strided_slice %1 {offsets = [0, 0], sizes = [1, 96], strides = [1, 1]} : vector<8x96xf32> to vector<1x96xf32>
    %11 = vector.extract_strided_slice %1 {offsets = [1, 0], sizes = [1, 32], strides = [1, 1]} : vector<8x96xf32> to vector<1x32xf32>
    %12 = vector.extract_strided_slice %1 {offsets = [2, 0], sizes = [1, 32], strides = [1, 1]} : vector<8x96xf32> to vector<1x32xf32>
    %13 = vector.extract_strided_slice %1 {offsets = [3, 0], sizes = [1, 64], strides = [1, 1]} : vector<8x96xf32> to vector<1x64xf32>
    %14 = vector.extract_strided_slice %1 {offsets = [4, 0], sizes = [1, 32], strides = [1, 1]} : vector<8x96xf32> to vector<1x32xf32>
    %15 = vector.extract_strided_slice %1 {offsets = [5, 0], sizes = [1, 64], strides = [1, 1]} : vector<8x96xf32> to vector<1x64xf32>
    %16 = vector.extract_strided_slice %1 {offsets = [6, 0], sizes = [1, 32], strides = [1, 1]} : vector<8x96xf32> to vector<1x32xf32>
    %17 = vector.extract_strided_slice %1 {offsets = [7, 0], sizes = [1, 32], strides = [1, 1]} : vector<8x96xf32> to vector<1x32xf32>
    %c0_3 = arith.constant 0 : index
    %c0_4 = arith.constant 0 : index
    %c0_5 = arith.constant 0 : index
    %18 = vector.load %arg1[%c0_3, %c0_4, %c0_5] : memref<1x8x32xf32, #tpu.memory_space<vmem>>, vector<1x8x32xf32>
    %19 = vector.shape_cast %18 : vector<1x8x32xf32> to vector<8x32xf32>
    %cst = arith.constant dense<0.000000e+00> : vector<8xf32>
    %20 = vector.multi_reduction <add>, %19, %cst [1] : vector<8x32xf32> to vector<8xf32>
    %21 = vector.shape_cast %20 : vector<8xf32> to vector<8x1xf32>
    %cst_6 = arith.constant 3.200000e+01 : f32
    %22 = vector.broadcast %cst_6 : f32 to vector<8x1xf32>
    %23 = arith.divf %21, %22 : vector<8x1xf32>
    %24 = vector.broadcast %23 : vector<8x1xf32> to vector<8x32xf32>
    %25 = arith.subf %19, %24 : vector<8x32xf32>
    %26 = arith.mulf %25, %25 : vector<8x32xf32>
    %cst_7 = arith.constant dense<0.000000e+00> : vector<8xf32>
    %27 = vector.multi_reduction <add>, %26, %cst_7 [1] : vector<8x32xf32> to vector<8xf32>
    %28 = vector.shape_cast %27 : vector<8xf32> to vector<8x1xf32>
    %cst_8 = arith.constant 3.200000e+01 : f32
    %29 = vector.broadcast %cst_8 : f32 to vector<8x1xf32>
    %30 = arith.divf %28, %29 : vector<8x1xf32>
    %31 = vector.broadcast %23 : vector<8x1xf32> to vector<8x32xf32>
    %32 = arith.subf %19, %31 : vector<8x32xf32>
    %cst_9 = arith.constant 9.99999997E-7 : f32
    %33 = vector.broadcast %cst_9 : f32 to vector<8x1xf32>
    %34 = arith.addf %30, %33 : vector<8x1xf32>
    %35 = math.rsqrt %34 : vector<8x1xf32>
    %36 = vector.broadcast %35 : vector<8x1xf32> to vector<8x32xf32>
    %37 = arith.mulf %32, %36 : vector<8x32xf32>
    %38 = vector.broadcast %4 : vector<1x32xf32> to vector<8x32xf32>
    %39 = arith.mulf %37, %38 : vector<8x32xf32>
    %40 = vector.broadcast %5 : vector<1x32xf32> to vector<8x32xf32>
    %41 = arith.addf %39, %40 : vector<8x32xf32>
    %42 = arith.truncf %41 : vector<8x32xf32> to vector<8x32xbf16>
    %c0_10 = arith.constant 0 : index
    %c0_11 = arith.constant 0 : index
    %43 = vector.load %arg3[%c0_10, %c0_11] : memref<32x96xbf16, #tpu.memory_space<vmem>>, vector<32x96xbf16>
    %cst_12 = arith.constant dense<0.000000e+00> : vector<8x96xf32>
    %44 = tpu.matmul %42, %43, %cst_12 {dimension_numbers = #tpu.dot_dimension_numbers<[1], [0], [0], [1], [0, 0, 1, 1], [], []>} : vector<8x32xbf16>, vector<32x96xbf16>, vector<8x96xf32> -> vector<8x96xf32>
    %45 = vector.broadcast %10 : vector<1x96xf32> to vector<8x96xf32>
    %46 = arith.addf %44, %45 : vector<8x96xf32>
    %47 = vector.extract_strided_slice %46 {offsets = [0, 0], sizes = [8, 32], strides = [1, 1]} : vector<8x96xf32> to vector<8x32xf32>
    %48 = vector.extract_strided_slice %46 {offsets = [0, 32], sizes = [8, 32], strides = [1, 1]} : vector<8x96xf32> to vector<8x32xf32>
    %49 = vector.extract_strided_slice %46 {offsets = [0, 64], sizes = [8, 32], strides = [1, 1]} : vector<8x96xf32> to vector<8x32xf32>
    %c0_13 = arith.constant 0 : index
    %c0_14 = arith.constant 0 : index
    %50 = vector.load %arg4[%c0_13, %c0_14] : memref<32x32xbf16, #tpu.memory_space<vmem>>, vector<32x32xbf16>
    %cst_15 = arith.constant 0.353553385 : f32
    %51 = vector.broadcast %cst_15 : f32 to vector<8x32xf32>
    %52 = arith.mulf %47, %51 : vector<8x32xf32>
    %53 = vector.extract_strided_slice %52 {offsets = [0, 0], sizes = [8, 8], strides = [1, 1]} : vector<8x32xf32> to vector<8x8xf32>
    %54 = vector.shape_cast %53 : vector<8x8xf32> to vector<1x8x8xf32>
    %55 = vector.extract_strided_slice %52 {offsets = [0, 8], sizes = [8, 8], strides = [1, 1]} : vector<8x32xf32> to vector<8x8xf32>
    %56 = vector.shape_cast %55 : vector<8x8xf32> to vector<1x8x8xf32>
    %57 = vector.extract_strided_slice %52 {offsets = [0, 16], sizes = [8, 8], strides = [1, 1]} : vector<8x32xf32> to vector<8x8xf32>
    %58 = vector.shape_cast %57 : vector<8x8xf32> to vector<1x8x8xf32>
    %59 = vector.extract_strided_slice %52 {offsets = [0, 24], sizes = [8, 8], strides = [1, 1]} : vector<8x32xf32> to vector<8x8xf32>
    %60 = vector.shape_cast %59 : vector<8x8xf32> to vector<1x8x8xf32>
    %61 = tpu.concatenate %54, %56, %58, %60 in 0 : vector<1x8x8xf32>, vector<1x8x8xf32>, vector<1x8x8xf32>, vector<1x8x8xf32> -> vector<4x8x8xf32>
    %62 = arith.truncf %61 : vector<4x8x8xf32> to vector<4x8x8xbf16>
    %63 = vector.extract_strided_slice %48 {offsets = [0, 0], sizes = [8, 8], strides = [1, 1]} : vector<8x32xf32> to vector<8x8xf32>
    %64 = vector.shape_cast %63 : vector<8x8xf32> to vector<1x8x8xf32>
    %65 = vector.extract_strided_slice %48 {offsets = [0, 8], sizes = [8, 8], strides = [1, 1]} : vector<8x32xf32> to vector<8x8xf32>
    %66 = vector.shape_cast %65 : vector<8x8xf32> to vector<1x8x8xf32>
    %67 = vector.extract_strided_slice %48 {offsets = [0, 16], sizes = [8, 8], strides = [1, 1]} : vector<8x32xf32> to vector<8x8xf32>
    %68 = vector.shape_cast %67 : vector<8x8xf32> to vector<1x8x8xf32>
    %69 = vector.extract_strided_slice %48 {offsets = [0, 24], sizes = [8, 8], strides = [1, 1]} : vector<8x32xf32> to vector<8x8xf32>
    %70 = vector.shape_cast %69 : vector<8x8xf32> to vector<1x8x8xf32>
    %71 = tpu.concatenate %64, %66, %68, %70 in 0 : vector<1x8x8xf32>, vector<1x8x8xf32>, vector<1x8x8xf32>, vector<1x8x8xf32> -> vector<4x8x8xf32>
    %72 = arith.truncf %71 : vector<4x8x8xf32> to vector<4x8x8xbf16>
    %73 = vector.extract_strided_slice %49 {offsets = [0, 0], sizes = [8, 8], strides = [1, 1]} : vector<8x32xf32> to vector<8x8xf32>
    %74 = vector.shape_cast %73 : vector<8x8xf32> to vector<1x8x8xf32>
    %75 = vector.extract_strided_slice %49 {offsets = [0, 8], sizes = [8, 8], strides = [1, 1]} : vector<8x32xf32> to vector<8x8xf32>
    %76 = vector.shape_cast %75 : vector<8x8xf32> to vector<1x8x8xf32>
    %77 = vector.extract_strided_slice %49 {offsets = [0, 16], sizes = [8, 8], strides = [1, 1]} : vector<8x32xf32> to vector<8x8xf32>
    %78 = vector.shape_cast %77 : vector<8x8xf32> to vector<1x8x8xf32>
    %79 = vector.extract_strided_slice %49 {offsets = [0, 24], sizes = [8, 8], strides = [1, 1]} : vector<8x32xf32> to vector<8x8xf32>
    %80 = vector.shape_cast %79 : vector<8x8xf32> to vector<1x8x8xf32>
    %81 = tpu.concatenate %74, %76, %78, %80 in 0 : vector<1x8x8xf32>, vector<1x8x8xf32>, vector<1x8x8xf32>, vector<1x8x8xf32> -> vector<4x8x8xf32>
    %82 = arith.truncf %81 : vector<4x8x8xf32> to vector<4x8x8xbf16>
    %cst_16 = arith.constant dense<0.000000e+00> : vector<4x8x8xf32>
    %83 = tpu.matmul %62, %72, %cst_16 {dimension_numbers = #tpu.dot_dimension_numbers<[2], [2], [1], [1], [0, 0, 0, 1, 1, 1], [0], [0]>} : vector<4x8x8xbf16>, vector<4x8x8xbf16>, vector<4x8x8xf32> -> vector<4x8x8xf32>
    %cst_17 = arith.constant dense<0xFF800000> : vector<4x8xf32>
    %84 = vector.multi_reduction <maximumf>, %83, %cst_17 [2] : vector<4x8x8xf32> to vector<4x8xf32>
    %85 = vector.shape_cast %84 : vector<4x8xf32> to vector<4x8x1xf32>
    %86 = vector.broadcast %85 : vector<4x8x1xf32> to vector<4x8x8xf32>
    %87 = arith.subf %83, %86 : vector<4x8x8xf32>
    %88 = math.exp %87 : vector<4x8x8xf32>
    %cst_18 = arith.constant dense<0.000000e+00> : vector<4x8xf32>
    %89 = vector.multi_reduction <add>, %88, %cst_18 [2] : vector<4x8x8xf32> to vector<4x8xf32>
    %90 = vector.shape_cast %89 : vector<4x8xf32> to vector<4x8x1xf32>
    %91 = arith.truncf %88 : vector<4x8x8xf32> to vector<4x8x8xbf16>
    %cst_19 = arith.constant dense<0.000000e+00> : vector<4x8x8xf32>
    %92 = tpu.matmul %91, %82, %cst_19 {dimension_numbers = #tpu.dot_dimension_numbers<[2], [1], [1], [2], [0, 0, 0, 1, 1, 2], [0], [0]>} : vector<4x8x8xbf16>, vector<4x8x8xbf16>, vector<4x8x8xf32> -> vector<4x8x8xf32>
    %93 = tpu.reciprocal %90 {approx = true} : vector<4x8x1xf32> -> vector<4x8x1xf32>
    %94 = vector.broadcast %93 : vector<4x8x1xf32> to vector<4x8x8xf32>
    %95 = arith.mulf %92, %94 : vector<4x8x8xf32>
    %96 = vector.extract_strided_slice %95 {offsets = [0, 0, 0], sizes = [1, 8, 8], strides = [1, 1, 1]} : vector<4x8x8xf32> to vector<1x8x8xf32>
    %97 = vector.shape_cast %96 : vector<1x8x8xf32> to vector<8x8xf32>
    %98 = vector.extract_strided_slice %95 {offsets = [1, 0, 0], sizes = [1, 8, 8], strides = [1, 1, 1]} : vector<4x8x8xf32> to vector<1x8x8xf32>
    %99 = vector.shape_cast %98 : vector<1x8x8xf32> to vector<8x8xf32>
    %100 = vector.extract_strided_slice %95 {offsets = [2, 0, 0], sizes = [1, 8, 8], strides = [1, 1, 1]} : vector<4x8x8xf32> to vector<1x8x8xf32>
    %101 = vector.shape_cast %100 : vector<1x8x8xf32> to vector<8x8xf32>
    %102 = vector.extract_strided_slice %95 {offsets = [3, 0, 0], sizes = [1, 8, 8], strides = [1, 1, 1]} : vector<4x8x8xf32> to vector<1x8x8xf32>
    %103 = vector.shape_cast %102 : vector<1x8x8xf32> to vector<8x8xf32>
    %104 = tpu.concatenate %97, %99, %101, %103 in 1 : vector<8x8xf32>, vector<8x8xf32>, vector<8x8xf32>, vector<8x8xf32> -> vector<8x32xf32>
    %105 = arith.truncf %104 : vector<8x32xf32> to vector<8x32xbf16>
    %cst_20 = arith.constant dense<0.000000e+00> : vector<8x32xf32>
    %106 = tpu.matmul %105, %50, %cst_20 {dimension_numbers = #tpu.dot_dimension_numbers<[1], [0], [0], [1], [0, 0, 1, 1], [], []>} : vector<8x32xbf16>, vector<32x32xbf16>, vector<8x32xf32> -> vector<8x32xf32>
    %107 = vector.broadcast %11 : vector<1x32xf32> to vector<8x32xf32>
    %108 = arith.addf %106, %107 : vector<8x32xf32>
    %109 = arith.addf %19, %108 : vector<8x32xf32>
    %c0_21 = arith.constant 0 : index
    %c0_22 = arith.constant 0 : index
    %c0_23 = arith.constant 0 : index
    %110 = vector.load %arg2[%c0_21, %c0_22, %c0_23] : memref<1x16x32xbf16, #tpu.memory_space<vmem>>, vector<1x16x32xbf16>
    %111 = vector.shape_cast %110 : vector<1x16x32xbf16> to vector<16x32xbf16>
    %112 = arith.extf %111 : vector<16x32xbf16> to vector<16x32xf32>
    %cst_24 = arith.constant dense<0.000000e+00> : vector<16xf32>
    %113 = vector.multi_reduction <add>, %112, %cst_24 [1] : vector<16x32xf32> to vector<16xf32>
    %114 = vector.shape_cast %113 : vector<16xf32> to vector<16x1xf32>
    %cst_25 = arith.constant 3.200000e+01 : f32
    %115 = vector.broadcast %cst_25 : f32 to vector<16x1xf32>
    %116 = arith.divf %114, %115 : vector<16x1xf32>
    %117 = vector.broadcast %116 : vector<16x1xf32> to vector<16x32xf32>
    %118 = arith.subf %112, %117 : vector<16x32xf32>
    %119 = arith.mulf %118, %118 : vector<16x32xf32>
    %cst_26 = arith.constant dense<0.000000e+00> : vector<16xf32>
    %120 = vector.multi_reduction <add>, %119, %cst_26 [1] : vector<16x32xf32> to vector<16xf32>
    %121 = vector.shape_cast %120 : vector<16xf32> to vector<16x1xf32>
    %cst_27 = arith.constant 3.200000e+01 : f32
    %122 = vector.broadcast %cst_27 : f32 to vector<16x1xf32>
    %123 = arith.divf %121, %122 : vector<16x1xf32>
    %124 = vector.broadcast %116 : vector<16x1xf32> to vector<16x32xf32>
    %125 = arith.subf %112, %124 : vector<16x32xf32>
    %cst_28 = arith.constant 9.99999997E-7 : f32
    %126 = vector.broadcast %cst_28 : f32 to vector<16x1xf32>
    %127 = arith.addf %123, %126 : vector<16x1xf32>
    %128 = math.rsqrt %127 : vector<16x1xf32>
    %129 = vector.broadcast %128 : vector<16x1xf32> to vector<16x32xf32>
    %130 = arith.mulf %125, %129 : vector<16x32xf32>
    %131 = vector.broadcast %2 : vector<1x32xf32> to vector<16x32xf32>
    %132 = arith.mulf %130, %131 : vector<16x32xf32>
    %133 = vector.broadcast %3 : vector<1x32xf32> to vector<16x32xf32>
    %134 = arith.addf %132, %133 : vector<16x32xf32>
    %cst_29 = arith.constant dense<0.000000e+00> : vector<8xf32>
    %135 = vector.multi_reduction <add>, %109, %cst_29 [1] : vector<8x32xf32> to vector<8xf32>
    %136 = vector.shape_cast %135 : vector<8xf32> to vector<8x1xf32>
    %cst_30 = arith.constant 3.200000e+01 : f32
    %137 = vector.broadcast %cst_30 : f32 to vector<8x1xf32>
    %138 = arith.divf %136, %137 : vector<8x1xf32>
    %139 = vector.broadcast %138 : vector<8x1xf32> to vector<8x32xf32>
    %140 = arith.subf %109, %139 : vector<8x32xf32>
    %141 = arith.mulf %140, %140 : vector<8x32xf32>
    %cst_31 = arith.constant dense<0.000000e+00> : vector<8xf32>
    %142 = vector.multi_reduction <add>, %141, %cst_31 [1] : vector<8x32xf32> to vector<8xf32>
    %143 = vector.shape_cast %142 : vector<8xf32> to vector<8x1xf32>
    %cst_32 = arith.constant 3.200000e+01 : f32
    %144 = vector.broadcast %cst_32 : f32 to vector<8x1xf32>
    %145 = arith.divf %143, %144 : vector<8x1xf32>
    %146 = vector.broadcast %138 : vector<8x1xf32> to vector<8x32xf32>
    %147 = arith.subf %109, %146 : vector<8x32xf32>
    %cst_33 = arith.constant 9.99999997E-7 : f32
    %148 = vector.broadcast %cst_33 : f32 to vector<8x1xf32>
    %149 = arith.addf %145, %148 : vector<8x1xf32>
    %150 = math.rsqrt %149 : vector<8x1xf32>
    %151 = vector.broadcast %150 : vector<8x1xf32> to vector<8x32xf32>
    %152 = arith.mulf %147, %151 : vector<8x32xf32>
    %153 = vector.broadcast %6 : vector<1x32xf32> to vector<8x32xf32>
    %154 = arith.mulf %152, %153 : vector<8x32xf32>
    %155 = vector.broadcast %7 : vector<1x32xf32> to vector<8x32xf32>
    %156 = arith.addf %154, %155 : vector<8x32xf32>
    %157 = arith.truncf %156 : vector<8x32xf32> to vector<8x32xbf16>
    %c0_34 = arith.constant 0 : index
    %c0_35 = arith.constant 0 : index
    %158 = vector.load %arg5[%c0_34, %c0_35] : memref<32x32xbf16, #tpu.memory_space<vmem>>, vector<32x32xbf16>
    %cst_36 = arith.constant dense<0.000000e+00> : vector<8x32xf32>
    %159 = tpu.matmul %157, %158, %cst_36 {dimension_numbers = #tpu.dot_dimension_numbers<[1], [0], [0], [1], [0, 0, 1, 1], [], []>} : vector<8x32xbf16>, vector<32x32xbf16>, vector<8x32xf32> -> vector<8x32xf32>
    %160 = vector.broadcast %12 : vector<1x32xf32> to vector<8x32xf32>
    %161 = arith.addf %159, %160 : vector<8x32xf32>
    %162 = arith.truncf %134 : vector<16x32xf32> to vector<16x32xbf16>
    %c0_37 = arith.constant 0 : index
    %c0_38 = arith.constant 0 : index
    %163 = vector.load %arg6[%c0_37, %c0_38] : memref<32x64xbf16, #tpu.memory_space<vmem>>, vector<32x64xbf16>
    %cst_39 = arith.constant dense<0.000000e+00> : vector<16x64xf32>
    %164 = tpu.matmul %162, %163, %cst_39 {dimension_numbers = #tpu.dot_dimension_numbers<[1], [0], [0], [1], [0, 0, 1, 1], [], []>} : vector<16x32xbf16>, vector<32x64xbf16>, vector<16x64xf32> -> vector<16x64xf32>
    %165 = vector.broadcast %13 : vector<1x64xf32> to vector<16x64xf32>
    %166 = arith.addf %164, %165 : vector<16x64xf32>
    %167 = vector.extract_strided_slice %166 {offsets = [0, 0], sizes = [16, 32], strides = [1, 1]} : vector<16x64xf32> to vector<16x32xf32>
    %168 = vector.extract_strided_slice %166 {offsets = [0, 32], sizes = [16, 32], strides = [1, 1]} : vector<16x64xf32> to vector<16x32xf32>
    %c0_40 = arith.constant 0 : index
    %c0_41 = arith.constant 0 : index
    %169 = vector.load %arg7[%c0_40, %c0_41] : memref<32x32xbf16, #tpu.memory_space<vmem>>, vector<32x32xbf16>
    %cst_42 = arith.constant 0.353553385 : f32
    %170 = vector.broadcast %cst_42 : f32 to vector<8x32xf32>
    %171 = arith.mulf %161, %170 : vector<8x32xf32>
    %172 = vector.extract_strided_slice %171 {offsets = [0, 0], sizes = [8, 8], strides = [1, 1]} : vector<8x32xf32> to vector<8x8xf32>
    %173 = vector.shape_cast %172 : vector<8x8xf32> to vector<1x8x8xf32>
    %174 = vector.extract_strided_slice %171 {offsets = [0, 8], sizes = [8, 8], strides = [1, 1]} : vector<8x32xf32> to vector<8x8xf32>
    %175 = vector.shape_cast %174 : vector<8x8xf32> to vector<1x8x8xf32>
    %176 = vector.extract_strided_slice %171 {offsets = [0, 16], sizes = [8, 8], strides = [1, 1]} : vector<8x32xf32> to vector<8x8xf32>
    %177 = vector.shape_cast %176 : vector<8x8xf32> to vector<1x8x8xf32>
    %178 = vector.extract_strided_slice %171 {offsets = [0, 24], sizes = [8, 8], strides = [1, 1]} : vector<8x32xf32> to vector<8x8xf32>
    %179 = vector.shape_cast %178 : vector<8x8xf32> to vector<1x8x8xf32>
    %180 = tpu.concatenate %173, %175, %177, %179 in 0 : vector<1x8x8xf32>, vector<1x8x8xf32>, vector<1x8x8xf32>, vector<1x8x8xf32> -> vector<4x8x8xf32>
    %181 = arith.truncf %180 : vector<4x8x8xf32> to vector<4x8x8xbf16>
    %182 = vector.extract_strided_slice %167 {offsets = [0, 0], sizes = [16, 8], strides = [1, 1]} : vector<16x32xf32> to vector<16x8xf32>
    %183 = vector.shape_cast %182 : vector<16x8xf32> to vector<1x16x8xf32>
    %184 = vector.extract_strided_slice %167 {offsets = [0, 8], sizes = [16, 8], strides = [1, 1]} : vector<16x32xf32> to vector<16x8xf32>
    %185 = vector.shape_cast %184 : vector<16x8xf32> to vector<1x16x8xf32>
    %186 = vector.extract_strided_slice %167 {offsets = [0, 16], sizes = [16, 8], strides = [1, 1]} : vector<16x32xf32> to vector<16x8xf32>
    %187 = vector.shape_cast %186 : vector<16x8xf32> to vector<1x16x8xf32>
    %188 = vector.extract_strided_slice %167 {offsets = [0, 24], sizes = [16, 8], strides = [1, 1]} : vector<16x32xf32> to vector<16x8xf32>
    %189 = vector.shape_cast %188 : vector<16x8xf32> to vector<1x16x8xf32>
    %190 = tpu.concatenate %183, %185, %187, %189 in 0 : vector<1x16x8xf32>, vector<1x16x8xf32>, vector<1x16x8xf32>, vector<1x16x8xf32> -> vector<4x16x8xf32>
    %191 = arith.truncf %190 : vector<4x16x8xf32> to vector<4x16x8xbf16>
    %192 = vector.extract_strided_slice %168 {offsets = [0, 0], sizes = [16, 8], strides = [1, 1]} : vector<16x32xf32> to vector<16x8xf32>
    %193 = vector.shape_cast %192 : vector<16x8xf32> to vector<1x16x8xf32>
    %194 = vector.extract_strided_slice %168 {offsets = [0, 8], sizes = [16, 8], strides = [1, 1]} : vector<16x32xf32> to vector<16x8xf32>
    %195 = vector.shape_cast %194 : vector<16x8xf32> to vector<1x16x8xf32>
    %196 = vector.extract_strided_slice %168 {offsets = [0, 16], sizes = [16, 8], strides = [1, 1]} : vector<16x32xf32> to vector<16x8xf32>
    %197 = vector.shape_cast %196 : vector<16x8xf32> to vector<1x16x8xf32>
    %198 = vector.extract_strided_slice %168 {offsets = [0, 24], sizes = [16, 8], strides = [1, 1]} : vector<16x32xf32> to vector<16x8xf32>
    %199 = vector.shape_cast %198 : vector<16x8xf32> to vector<1x16x8xf32>
    %200 = tpu.concatenate %193, %195, %197, %199 in 0 : vector<1x16x8xf32>, vector<1x16x8xf32>, vector<1x16x8xf32>, vector<1x16x8xf32> -> vector<4x16x8xf32>
    %201 = arith.truncf %200 : vector<4x16x8xf32> to vector<4x16x8xbf16>
    %cst_43 = arith.constant dense<0.000000e+00> : vector<4x8x16xf32>
    %202 = tpu.matmul %181, %191, %cst_43 {dimension_numbers = #tpu.dot_dimension_numbers<[2], [2], [1], [1], [0, 0, 0, 1, 1, 1], [0], [0]>} : vector<4x8x8xbf16>, vector<4x16x8xbf16>, vector<4x8x16xf32> -> vector<4x8x16xf32>
    %cst_44 = arith.constant dense<0xFF800000> : vector<4x8xf32>
    %203 = vector.multi_reduction <maximumf>, %202, %cst_44 [2] : vector<4x8x16xf32> to vector<4x8xf32>
    %204 = vector.shape_cast %203 : vector<4x8xf32> to vector<4x8x1xf32>
    %205 = vector.broadcast %204 : vector<4x8x1xf32> to vector<4x8x16xf32>
    %206 = arith.subf %202, %205 : vector<4x8x16xf32>
    %207 = math.exp %206 : vector<4x8x16xf32>
    %cst_45 = arith.constant dense<0.000000e+00> : vector<4x8xf32>
    %208 = vector.multi_reduction <add>, %207, %cst_45 [2] : vector<4x8x16xf32> to vector<4x8xf32>
    %209 = vector.shape_cast %208 : vector<4x8xf32> to vector<4x8x1xf32>
    %210 = arith.truncf %207 : vector<4x8x16xf32> to vector<4x8x16xbf16>
    %cst_46 = arith.constant dense<0.000000e+00> : vector<4x8x8xf32>
    %211 = tpu.matmul %210, %201, %cst_46 {dimension_numbers = #tpu.dot_dimension_numbers<[2], [1], [1], [2], [0, 0, 0, 1, 1, 2], [0], [0]>} : vector<4x8x16xbf16>, vector<4x16x8xbf16>, vector<4x8x8xf32> -> vector<4x8x8xf32>
    %212 = tpu.reciprocal %209 {approx = true} : vector<4x8x1xf32> -> vector<4x8x1xf32>
    %213 = vector.broadcast %212 : vector<4x8x1xf32> to vector<4x8x8xf32>
    %214 = arith.mulf %211, %213 : vector<4x8x8xf32>
    %215 = vector.extract_strided_slice %214 {offsets = [0, 0, 0], sizes = [1, 8, 8], strides = [1, 1, 1]} : vector<4x8x8xf32> to vector<1x8x8xf32>
    %216 = vector.shape_cast %215 : vector<1x8x8xf32> to vector<8x8xf32>
    %217 = vector.extract_strided_slice %214 {offsets = [1, 0, 0], sizes = [1, 8, 8], strides = [1, 1, 1]} : vector<4x8x8xf32> to vector<1x8x8xf32>
    %218 = vector.shape_cast %217 : vector<1x8x8xf32> to vector<8x8xf32>
    %219 = vector.extract_strided_slice %214 {offsets = [2, 0, 0], sizes = [1, 8, 8], strides = [1, 1, 1]} : vector<4x8x8xf32> to vector<1x8x8xf32>
    %220 = vector.shape_cast %219 : vector<1x8x8xf32> to vector<8x8xf32>
    %221 = vector.extract_strided_slice %214 {offsets = [3, 0, 0], sizes = [1, 8, 8], strides = [1, 1, 1]} : vector<4x8x8xf32> to vector<1x8x8xf32>
    %222 = vector.shape_cast %221 : vector<1x8x8xf32> to vector<8x8xf32>
    %223 = tpu.concatenate %216, %218, %220, %222 in 1 : vector<8x8xf32>, vector<8x8xf32>, vector<8x8xf32>, vector<8x8xf32> -> vector<8x32xf32>
    %224 = arith.truncf %223 : vector<8x32xf32> to vector<8x32xbf16>
    %cst_47 = arith.constant dense<0.000000e+00> : vector<8x32xf32>
    %225 = tpu.matmul %224, %169, %cst_47 {dimension_numbers = #tpu.dot_dimension_numbers<[1], [0], [0], [1], [0, 0, 1, 1], [], []>} : vector<8x32xbf16>, vector<32x32xbf16>, vector<8x32xf32> -> vector<8x32xf32>
    %226 = vector.broadcast %14 : vector<1x32xf32> to vector<8x32xf32>
    %227 = arith.addf %225, %226 : vector<8x32xf32>
    %228 = arith.addf %109, %227 : vector<8x32xf32>
    %c0_48 = arith.constant 0 : index
    %c0_49 = arith.constant 0 : index
    %229 = vector.load %arg8[%c0_48, %c0_49] : memref<32x64xbf16, #tpu.memory_space<vmem>>, vector<32x64xbf16>
    %c0_50 = arith.constant 0 : index
    %c0_51 = arith.constant 0 : index
    %230 = vector.load %arg9[%c0_50, %c0_51] : memref<64x32xbf16, #tpu.memory_space<vmem>>, vector<64x32xbf16>
    %cst_52 = arith.constant dense<0.000000e+00> : vector<8xf32>
    %231 = vector.multi_reduction <add>, %228, %cst_52 [1] : vector<8x32xf32> to vector<8xf32>
    %232 = vector.shape_cast %231 : vector<8xf32> to vector<8x1xf32>
    %cst_53 = arith.constant 3.200000e+01 : f32
    %233 = vector.broadcast %cst_53 : f32 to vector<8x1xf32>
    %234 = arith.divf %232, %233 : vector<8x1xf32>
    %235 = vector.broadcast %234 : vector<8x1xf32> to vector<8x32xf32>
    %236 = arith.subf %228, %235 : vector<8x32xf32>
    %237 = arith.mulf %236, %236 : vector<8x32xf32>
    %cst_54 = arith.constant dense<0.000000e+00> : vector<8xf32>
    %238 = vector.multi_reduction <add>, %237, %cst_54 [1] : vector<8x32xf32> to vector<8xf32>
    %239 = vector.shape_cast %238 : vector<8xf32> to vector<8x1xf32>
    %cst_55 = arith.constant 3.200000e+01 : f32
    %240 = vector.broadcast %cst_55 : f32 to vector<8x1xf32>
    %241 = arith.divf %239, %240 : vector<8x1xf32>
    %242 = vector.broadcast %234 : vector<8x1xf32> to vector<8x32xf32>
    %243 = arith.subf %228, %242 : vector<8x32xf32>
    %cst_56 = arith.constant 9.99999997E-7 : f32
    %244 = vector.broadcast %cst_56 : f32 to vector<8x1xf32>
    %245 = arith.addf %241, %244 : vector<8x1xf32>
    %246 = math.rsqrt %245 : vector<8x1xf32>
    %247 = vector.broadcast %246 : vector<8x1xf32> to vector<8x32xf32>
    %248 = arith.mulf %243, %247 : vector<8x32xf32>
    %249 = vector.broadcast %8 : vector<1x32xf32> to vector<8x32xf32>
    %250 = arith.mulf %248, %249 : vector<8x32xf32>
    %251 = vector.broadcast %9 : vector<1x32xf32> to vector<8x32xf32>
    %252 = arith.addf %250, %251 : vector<8x32xf32>
    %253 = arith.truncf %252 : vector<8x32xf32> to vector<8x32xbf16>
    %cst_57 = arith.constant dense<0.000000e+00> : vector<8x64xf32>
    %254 = tpu.matmul %253, %229, %cst_57 {dimension_numbers = #tpu.dot_dimension_numbers<[1], [0], [0], [1], [0, 0, 1, 1], [], []>} : vector<8x32xbf16>, vector<32x64xbf16>, vector<8x64xf32> -> vector<8x64xf32>
    %255 = vector.broadcast %15 : vector<1x64xf32> to vector<8x64xf32>
    %256 = arith.addf %254, %255 : vector<8x64xf32>
    %257 = arith.mulf %256, %256 : vector<8x64xf32>
    %258 = arith.mulf %256, %257 : vector<8x64xf32>
    %cst_58 = arith.constant 4.471500e-02 : f32
    %259 = vector.broadcast %cst_58 : f32 to vector<8x64xf32>
    %260 = arith.mulf %259, %258 : vector<8x64xf32>
    %261 = arith.addf %256, %260 : vector<8x64xf32>
    %cst_59 = arith.constant 0.797884583 : f32
    %262 = vector.broadcast %cst_59 : f32 to vector<8x64xf32>
    %263 = arith.mulf %262, %261 : vector<8x64xf32>
    %264 = math.tanh %263 : vector<8x64xf32>
    %cst_60 = arith.constant 1.000000e+00 : f32
    %265 = vector.broadcast %cst_60 : f32 to vector<8x64xf32>
    %266 = arith.addf %265, %264 : vector<8x64xf32>
    %cst_61 = arith.constant 5.000000e-01 : f32
    %267 = vector.broadcast %cst_61 : f32 to vector<8x64xf32>
    %268 = arith.mulf %267, %266 : vector<8x64xf32>
    %269 = arith.mulf %256, %268 : vector<8x64xf32>
    %270 = arith.truncf %269 : vector<8x64xf32> to vector<8x64xbf16>
    %cst_62 = arith.constant dense<0.000000e+00> : vector<8x32xf32>
    %271 = tpu.matmul %270, %230, %cst_62 {dimension_numbers = #tpu.dot_dimension_numbers<[1], [0], [0], [1], [0, 0, 1, 1], [], []>} : vector<8x64xbf16>, vector<64x32xbf16>, vector<8x32xf32> -> vector<8x32xf32>
    %272 = vector.broadcast %16 : vector<1x32xf32> to vector<8x32xf32>
    %273 = arith.addf %271, %272 : vector<8x32xf32>
    %274 = arith.addf %228, %273 : vector<8x32xf32>
    %275 = arith.truncf %274 : vector<8x32xf32> to vector<8x32xbf16>
    %c0_63 = arith.constant 0 : index
    %c0_64 = arith.constant 0 : index
    %276 = vector.load %arg10[%c0_63, %c0_64] : memref<32x32xbf16, #tpu.memory_space<vmem>>, vector<32x32xbf16>
    %cst_65 = arith.constant dense<0.000000e+00> : vector<8x32xf32>
    %277 = tpu.matmul %275, %276, %cst_65 {dimension_numbers = #tpu.dot_dimension_numbers<[1], [0], [0], [1], [0, 0, 1, 1], [], []>} : vector<8x32xbf16>, vector<32x32xbf16>, vector<8x32xf32> -> vector<8x32xf32>
    %278 = vector.broadcast %17 : vector<1x32xf32> to vector<8x32xf32>
    %279 = arith.addf %277, %278 : vector<8x32xf32>
    %280 = arith.truncf %279 : vector<8x32xf32> to vector<8x32xbf16>
    %c0_66 = arith.constant 0 : index
    %c0_67 = arith.constant 0 : index
    %c0_68 = arith.constant 0 : index
    %281 = vector.load %arg13[%c0_66, %c0_67, %c0_68] : memref<1x8x32xbf16, #tpu.memory_space<vmem>>, vector<1x8x32xbf16>
    %282 = vector.shape_cast %281 : vector<1x8x32xbf16> to vector<8x32xbf16>
    %283 = vector.shape_cast %280 : vector<8x32xbf16> to vector<1x8x32xbf16>
    tpu.vector_store %arg13[%c0_66, %c0_67, %c0_68], %283 {strides = array<i32>} : memref<1x8x32xbf16, #tpu.memory_space<vmem>>, vector<1x8x32xbf16>,
    return
  }
  func.func @transform_0(%arg0: i32) -> (i32, i32, i32) {
    %c0_i32 = arith.constant 0 : i32
    %c0_i32_0 = arith.constant 0 : i32
    %c0_i32_1 = arith.constant 0 : i32
    %c0_i32_2 = arith.constant 0 : i32
    return %c0_i32, %c0_i32_0, %c0_i32_1 : i32, i32, i32
  }
  func.func @transform_1(%arg0: i32) -> (i32, i32, i32) {
    %c0_i32 = arith.constant 0 : i32
    %c0_i32_0 = arith.constant 0 : i32
    %c0_i32_1 = arith.constant 0 : i32
    return %arg0, %c0_i32, %c0_i32_0 : i32, i32, i32
  }
  func.func @transform_2(%arg0: i32) -> (i32, i32) {
    %c0_i32 = arith.constant 0 : i32
    %c0_i32_0 = arith.constant 0 : i32
    %c0_i32_1 = arith.constant 0 : i32
    return %c0_i32, %c0_i32_0 : i32, i32
  }
  func.func @transform_3(%arg0: i32) -> (i32, i32) {
    %c0_i32 = arith.constant 0 : i32
    %c0_i32_0 = arith.constant 0 : i32
    %c0_i32_1 = arith.constant 0 : i32
    return %c0_i32, %c0_i32_0 : i32, i32
  }
  func.func @transform_4(%arg0: i32) -> (i32, i32) {
    %c0_i32 = arith.constant 0 : i32
    %c0_i32_0 = arith.constant 0 : i32
    %c0_i32_1 = arith.constant 0 : i32
    return %c0_i32, %c0_i32_0 : i32, i32
  }
  func.func @transform_5(%arg0: i32) -> (i32, i32) {
    %c0_i32 = arith.constant 0 : i32
    %c0_i32_0 = arith.constant 0 : i32
    %c0_i32_1 = arith.constant 0 : i32
    return %c0_i32, %c0_i32_0 : i32, i32
  }
  func.func @transform_6(%arg0: i32) -> (i32, i32) {
    %c0_i32 = arith.constant 0 : i32
    %c0_i32_0 = arith.constant 0 : i32
    %c0_i32_1 = arith.constant 0 : i32
    return %c0_i32, %c0_i32_0 : i32, i32
  }
  func.func @transform_7(%arg0: i32) -> (i32, i32) {
    %c0_i32 = arith.constant 0 : i32
    %c0_i32_0 = arith.constant 0 : i32
    %c0_i32_1 = arith.constant 0 : i32
    return %c0_i32, %c0_i32_0 : i32, i32
  }
  func.func @transform_8(%arg0: i32) -> (i32, i32) {
    %c0_i32 = arith.constant 0 : i32
    %c0_i32_0 = arith.constant 0 : i32
    %c0_i32_1 = arith.constant 0 : i32
    return %c0_i32, %c0_i32_0 : i32, i32
  }
  func.func @transform_9(%arg0: i32) -> (i32, i32) {
    %c0_i32 = arith.constant 0 : i32
    %c0_i32_0 = arith.constant 0 : i32
    %c0_i32_1 = arith.constant 0 : i32
    return %c0_i32, %c0_i32_0 : i32, i32
  }
  func.func @transform_10(%arg0: i32) -> (i32, i32) {
    %c0_i32 = arith.constant 0 : i32
    %c0_i32_0 = arith.constant 0 : i32
    %c0_i32_1 = arith.constant 0 : i32
    return %c0_i32, %c0_i32_0 : i32, i32
  }
  func.func @transform_11(%arg0: i32) -> (i32, i32) {
    %c0_i32 = arith.constant 0 : i32
    %c0_i32_0 = arith.constant 0 : i32
    %c0_i32_1 = arith.constant 0 : i32
    return %c0_i32, %c0_i32_0 : i32, i32
  }
  func.func @transform_12(%arg0: i32) -> (i32, i32, i32) {
    %c0_i32 = arith.constant 0 : i32
    %c0_i32_0 = arith.constant 0 : i32
    %c0_i32_1 = arith.constant 0 : i32
    return %arg0, %c0_i32, %c0_i32_0 : i32, i32, i32
  }
}

module attributes {stable_mosaic.version = 11 : i64} {
  func.func @_vit_block_kernel(%arg0: i32, %arg1: memref<1x16x48xf32, #tpu.memory_space<vmem>>, %arg2: memref<1x16x32xf32, #tpu.memory_space<vmem>>, %arg3: memref<48x32xbf16, #tpu.memory_space<vmem>>, %arg4: memref<32x96xbf16, #tpu.memory_space<vmem>>, %arg5: memref<32x32xbf16, #tpu.memory_space<vmem>>, %arg6: memref<32x64xbf16, #tpu.memory_space<vmem>>, %arg7: memref<64x32xbf16, #tpu.memory_space<vmem>>, %arg8: memref<4x32xf32, #tpu.memory_space<vmem>>, %arg9: memref<5x96xf32, #tpu.memory_space<vmem>>, %arg10: memref<1x16x32xbf16, #tpu.memory_space<vmem>>) attributes {dimension_semantics = [#tpu.dimension_semantics<parallel>], iteration_bounds = array<i64: 2>, scalar_prefetch = 0 : i64, scratch_operands = 0 : i64, tpu.core_type = #tpu.core_type<tc>, window_params = [{transform_indices = @transform_0, window_bounds = array<i64: 1, 16, 48>}, {pipeline_mode = #tpu.pipeline_mode<synchronous>, transform_indices = @transform_1, window_bounds = array<i64: 1, 16, 32>}, {pipeline_mode = #tpu.pipeline_mode<synchronous>, transform_indices = @transform_2, window_bounds = array<i64: 48, 32>}, {pipeline_mode = #tpu.pipeline_mode<synchronous>, transform_indices = @transform_3, window_bounds = array<i64: 32, 96>}, {pipeline_mode = #tpu.pipeline_mode<synchronous>, transform_indices = @transform_4, window_bounds = array<i64: 32, 32>}, {pipeline_mode = #tpu.pipeline_mode<synchronous>, transform_indices = @transform_5, window_bounds = array<i64: 32, 64>}, {pipeline_mode = #tpu.pipeline_mode<synchronous>, transform_indices = @transform_6, window_bounds = array<i64: 64, 32>}, {pipeline_mode = #tpu.pipeline_mode<synchronous>, transform_indices = @transform_7, window_bounds = array<i64: 4, 32>}, {pipeline_mode = #tpu.pipeline_mode<synchronous>, transform_indices = @transform_8, window_bounds = array<i64: 5, 96>}, {transform_indices = @transform_9, window_bounds = array<i64: 1, 16, 32>}]} {
    %c0 = arith.constant 0 : index
    %c0_0 = arith.constant 0 : index
    %0 = vector.load %arg8[%c0, %c0_0] : memref<4x32xf32, #tpu.memory_space<vmem>>, vector<4x32xf32>
    %c0_1 = arith.constant 0 : index
    %c0_2 = arith.constant 0 : index
    %1 = vector.load %arg9[%c0_1, %c0_2] : memref<5x96xf32, #tpu.memory_space<vmem>>, vector<5x96xf32>
    %2 = vector.extract_strided_slice %1 {offsets = [0, 0], sizes = [1, 32], strides = [1, 1]} : vector<5x96xf32> to vector<1x32xf32>
    %3 = vector.extract_strided_slice %1 {offsets = [1, 0], sizes = [1, 96], strides = [1, 1]} : vector<5x96xf32> to vector<1x96xf32>
    %4 = vector.extract_strided_slice %1 {offsets = [2, 0], sizes = [1, 32], strides = [1, 1]} : vector<5x96xf32> to vector<1x32xf32>
    %5 = vector.extract_strided_slice %1 {offsets = [3, 0], sizes = [1, 64], strides = [1, 1]} : vector<5x96xf32> to vector<1x64xf32>
    %6 = vector.extract_strided_slice %1 {offsets = [4, 0], sizes = [1, 32], strides = [1, 1]} : vector<5x96xf32> to vector<1x32xf32>
    %c0_3 = arith.constant 0 : index
    %c0_4 = arith.constant 0 : index
    %c0_5 = arith.constant 0 : index
    %7 = vector.load %arg1[%c0_3, %c0_4, %c0_5] : memref<1x16x48xf32, #tpu.memory_space<vmem>>, vector<1x16x48xf32>
    %8 = vector.shape_cast %7 : vector<1x16x48xf32> to vector<16x48xf32>
    %9 = arith.truncf %8 : vector<16x48xf32> to vector<16x48xbf16>
    %c0_6 = arith.constant 0 : index
    %c0_7 = arith.constant 0 : index
    %10 = vector.load %arg3[%c0_6, %c0_7] : memref<48x32xbf16, #tpu.memory_space<vmem>>, vector<48x32xbf16>
    %cst = arith.constant dense<0.000000e+00> : vector<16x32xf32>
    %11 = tpu.matmul %9, %10, %cst {dimension_numbers = #tpu.dot_dimension_numbers<[1], [0], [0], [1], [0, 0, 1, 1], [], []>} : vector<16x48xbf16>, vector<48x32xbf16>, vector<16x32xf32> -> vector<16x32xf32>
    %12 = vector.broadcast %2 : vector<1x32xf32> to vector<16x32xf32>
    %13 = arith.addf %11, %12 : vector<16x32xf32>
    %c0_8 = arith.constant 0 : index
    %c0_9 = arith.constant 0 : index
    %c0_10 = arith.constant 0 : index
    %14 = vector.load %arg2[%c0_8, %c0_9, %c0_10] : memref<1x16x32xf32, #tpu.memory_space<vmem>>, vector<1x16x32xf32>
    %15 = vector.shape_cast %14 : vector<1x16x32xf32> to vector<16x32xf32>
    %16 = arith.addf %13, %15 : vector<16x32xf32>
    %17 = vector.extract_strided_slice %0 {offsets = [0, 0], sizes = [1, 32], strides = [1, 1]} : vector<4x32xf32> to vector<1x32xf32>
    %18 = vector.extract_strided_slice %0 {offsets = [1, 0], sizes = [1, 32], strides = [1, 1]} : vector<4x32xf32> to vector<1x32xf32>
    %c0_11 = arith.constant 0 : index
    %c0_12 = arith.constant 0 : index
    %19 = vector.load %arg4[%c0_11, %c0_12] : memref<32x96xbf16, #tpu.memory_space<vmem>>, vector<32x96xbf16>
    %c0_13 = arith.constant 0 : index
    %c0_14 = arith.constant 0 : index
    %20 = vector.load %arg5[%c0_13, %c0_14] : memref<32x32xbf16, #tpu.memory_space<vmem>>, vector<32x32xbf16>
    %21 = vector.extract_strided_slice %0 {offsets = [2, 0], sizes = [1, 32], strides = [1, 1]} : vector<4x32xf32> to vector<1x32xf32>
    %22 = vector.extract_strided_slice %0 {offsets = [3, 0], sizes = [1, 32], strides = [1, 1]} : vector<4x32xf32> to vector<1x32xf32>
    %c0_15 = arith.constant 0 : index
    %c0_16 = arith.constant 0 : index
    %23 = vector.load %arg6[%c0_15, %c0_16] : memref<32x64xbf16, #tpu.memory_space<vmem>>, vector<32x64xbf16>
    %c0_17 = arith.constant 0 : index
    %c0_18 = arith.constant 0 : index
    %24 = vector.load %arg7[%c0_17, %c0_18] : memref<64x32xbf16, #tpu.memory_space<vmem>>, vector<64x32xbf16>
    %cst_19 = arith.constant dense<0.000000e+00> : vector<16xf32>
    %25 = vector.multi_reduction <add>, %16, %cst_19 [1] : vector<16x32xf32> to vector<16xf32>
    %26 = vector.shape_cast %25 : vector<16xf32> to vector<16x1xf32>
    %cst_20 = arith.constant 3.200000e+01 : f32
    %27 = vector.broadcast %cst_20 : f32 to vector<16x1xf32>
    %28 = arith.divf %26, %27 : vector<16x1xf32>
    %29 = vector.broadcast %28 : vector<16x1xf32> to vector<16x32xf32>
    %30 = arith.subf %16, %29 : vector<16x32xf32>
    %31 = arith.mulf %30, %30 : vector<16x32xf32>
    %cst_21 = arith.constant dense<0.000000e+00> : vector<16xf32>
    %32 = vector.multi_reduction <add>, %31, %cst_21 [1] : vector<16x32xf32> to vector<16xf32>
    %33 = vector.shape_cast %32 : vector<16xf32> to vector<16x1xf32>
    %cst_22 = arith.constant 3.200000e+01 : f32
    %34 = vector.broadcast %cst_22 : f32 to vector<16x1xf32>
    %35 = arith.divf %33, %34 : vector<16x1xf32>
    %36 = vector.broadcast %28 : vector<16x1xf32> to vector<16x32xf32>
    %37 = arith.subf %16, %36 : vector<16x32xf32>
    %cst_23 = arith.constant 9.99999997E-7 : f32
    %38 = vector.broadcast %cst_23 : f32 to vector<16x1xf32>
    %39 = arith.addf %35, %38 : vector<16x1xf32>
    %40 = math.rsqrt %39 : vector<16x1xf32>
    %41 = vector.broadcast %40 : vector<16x1xf32> to vector<16x32xf32>
    %42 = arith.mulf %37, %41 : vector<16x32xf32>
    %43 = vector.broadcast %17 : vector<1x32xf32> to vector<16x32xf32>
    %44 = arith.mulf %42, %43 : vector<16x32xf32>
    %45 = vector.broadcast %18 : vector<1x32xf32> to vector<16x32xf32>
    %46 = arith.addf %44, %45 : vector<16x32xf32>
    %47 = arith.truncf %46 : vector<16x32xf32> to vector<16x32xbf16>
    %cst_24 = arith.constant dense<0.000000e+00> : vector<16x96xf32>
    %48 = tpu.matmul %47, %19, %cst_24 {dimension_numbers = #tpu.dot_dimension_numbers<[1], [0], [0], [1], [0, 0, 1, 1], [], []>} : vector<16x32xbf16>, vector<32x96xbf16>, vector<16x96xf32> -> vector<16x96xf32>
    %49 = vector.broadcast %3 : vector<1x96xf32> to vector<16x96xf32>
    %50 = arith.addf %48, %49 : vector<16x96xf32>
    %51 = vector.extract_strided_slice %50 {offsets = [0, 0], sizes = [16, 32], strides = [1, 1]} : vector<16x96xf32> to vector<16x32xf32>
    %52 = vector.extract_strided_slice %50 {offsets = [0, 32], sizes = [16, 32], strides = [1, 1]} : vector<16x96xf32> to vector<16x32xf32>
    %53 = vector.extract_strided_slice %50 {offsets = [0, 64], sizes = [16, 32], strides = [1, 1]} : vector<16x96xf32> to vector<16x32xf32>
    %cst_25 = arith.constant 0.353553385 : f32
    %54 = vector.broadcast %cst_25 : f32 to vector<16x32xf32>
    %55 = arith.mulf %51, %54 : vector<16x32xf32>
    %56 = vector.extract_strided_slice %55 {offsets = [0, 0], sizes = [16, 8], strides = [1, 1]} : vector<16x32xf32> to vector<16x8xf32>
    %57 = vector.shape_cast %56 : vector<16x8xf32> to vector<1x16x8xf32>
    %58 = vector.extract_strided_slice %55 {offsets = [0, 8], sizes = [16, 8], strides = [1, 1]} : vector<16x32xf32> to vector<16x8xf32>
    %59 = vector.shape_cast %58 : vector<16x8xf32> to vector<1x16x8xf32>
    %60 = vector.extract_strided_slice %55 {offsets = [0, 16], sizes = [16, 8], strides = [1, 1]} : vector<16x32xf32> to vector<16x8xf32>
    %61 = vector.shape_cast %60 : vector<16x8xf32> to vector<1x16x8xf32>
    %62 = vector.extract_strided_slice %55 {offsets = [0, 24], sizes = [16, 8], strides = [1, 1]} : vector<16x32xf32> to vector<16x8xf32>
    %63 = vector.shape_cast %62 : vector<16x8xf32> to vector<1x16x8xf32>
    %64 = tpu.concatenate %57, %59, %61, %63 in 0 : vector<1x16x8xf32>, vector<1x16x8xf32>, vector<1x16x8xf32>, vector<1x16x8xf32> -> vector<4x16x8xf32>
    %65 = arith.truncf %64 : vector<4x16x8xf32> to vector<4x16x8xbf16>
    %66 = vector.extract_strided_slice %52 {offsets = [0, 0], sizes = [16, 8], strides = [1, 1]} : vector<16x32xf32> to vector<16x8xf32>
    %67 = vector.shape_cast %66 : vector<16x8xf32> to vector<1x16x8xf32>
    %68 = vector.extract_strided_slice %52 {offsets = [0, 8], sizes = [16, 8], strides = [1, 1]} : vector<16x32xf32> to vector<16x8xf32>
    %69 = vector.shape_cast %68 : vector<16x8xf32> to vector<1x16x8xf32>
    %70 = vector.extract_strided_slice %52 {offsets = [0, 16], sizes = [16, 8], strides = [1, 1]} : vector<16x32xf32> to vector<16x8xf32>
    %71 = vector.shape_cast %70 : vector<16x8xf32> to vector<1x16x8xf32>
    %72 = vector.extract_strided_slice %52 {offsets = [0, 24], sizes = [16, 8], strides = [1, 1]} : vector<16x32xf32> to vector<16x8xf32>
    %73 = vector.shape_cast %72 : vector<16x8xf32> to vector<1x16x8xf32>
    %74 = tpu.concatenate %67, %69, %71, %73 in 0 : vector<1x16x8xf32>, vector<1x16x8xf32>, vector<1x16x8xf32>, vector<1x16x8xf32> -> vector<4x16x8xf32>
    %75 = arith.truncf %74 : vector<4x16x8xf32> to vector<4x16x8xbf16>
    %76 = vector.extract_strided_slice %53 {offsets = [0, 0], sizes = [16, 8], strides = [1, 1]} : vector<16x32xf32> to vector<16x8xf32>
    %77 = vector.shape_cast %76 : vector<16x8xf32> to vector<1x16x8xf32>
    %78 = vector.extract_strided_slice %53 {offsets = [0, 8], sizes = [16, 8], strides = [1, 1]} : vector<16x32xf32> to vector<16x8xf32>
    %79 = vector.shape_cast %78 : vector<16x8xf32> to vector<1x16x8xf32>
    %80 = vector.extract_strided_slice %53 {offsets = [0, 16], sizes = [16, 8], strides = [1, 1]} : vector<16x32xf32> to vector<16x8xf32>
    %81 = vector.shape_cast %80 : vector<16x8xf32> to vector<1x16x8xf32>
    %82 = vector.extract_strided_slice %53 {offsets = [0, 24], sizes = [16, 8], strides = [1, 1]} : vector<16x32xf32> to vector<16x8xf32>
    %83 = vector.shape_cast %82 : vector<16x8xf32> to vector<1x16x8xf32>
    %84 = tpu.concatenate %77, %79, %81, %83 in 0 : vector<1x16x8xf32>, vector<1x16x8xf32>, vector<1x16x8xf32>, vector<1x16x8xf32> -> vector<4x16x8xf32>
    %85 = arith.truncf %84 : vector<4x16x8xf32> to vector<4x16x8xbf16>
    %cst_26 = arith.constant dense<0.000000e+00> : vector<4x16x16xf32>
    %86 = tpu.matmul %65, %75, %cst_26 {dimension_numbers = #tpu.dot_dimension_numbers<[2], [2], [1], [1], [0, 0, 0, 1, 1, 1], [0], [0]>} : vector<4x16x8xbf16>, vector<4x16x8xbf16>, vector<4x16x16xf32> -> vector<4x16x16xf32>
    %cst_27 = arith.constant dense<0xFF800000> : vector<4x16xf32>
    %87 = vector.multi_reduction <maximumf>, %86, %cst_27 [2] : vector<4x16x16xf32> to vector<4x16xf32>
    %88 = vector.shape_cast %87 : vector<4x16xf32> to vector<4x16x1xf32>
    %89 = vector.broadcast %88 : vector<4x16x1xf32> to vector<4x16x16xf32>
    %90 = arith.subf %86, %89 : vector<4x16x16xf32>
    %91 = math.exp %90 : vector<4x16x16xf32>
    %cst_28 = arith.constant dense<0.000000e+00> : vector<4x16xf32>
    %92 = vector.multi_reduction <add>, %91, %cst_28 [2] : vector<4x16x16xf32> to vector<4x16xf32>
    %93 = vector.shape_cast %92 : vector<4x16xf32> to vector<4x16x1xf32>
    %94 = arith.truncf %91 : vector<4x16x16xf32> to vector<4x16x16xbf16>
    %cst_29 = arith.constant dense<0.000000e+00> : vector<4x16x8xf32>
    %95 = tpu.matmul %94, %85, %cst_29 {dimension_numbers = #tpu.dot_dimension_numbers<[2], [1], [1], [2], [0, 0, 0, 1, 1, 2], [0], [0]>} : vector<4x16x16xbf16>, vector<4x16x8xbf16>, vector<4x16x8xf32> -> vector<4x16x8xf32>
    %96 = tpu.reciprocal %93 {approx = true} : vector<4x16x1xf32> -> vector<4x16x1xf32>
    %97 = vector.broadcast %96 : vector<4x16x1xf32> to vector<4x16x8xf32>
    %98 = arith.mulf %95, %97 : vector<4x16x8xf32>
    %99 = vector.extract_strided_slice %98 {offsets = [0, 0, 0], sizes = [1, 16, 8], strides = [1, 1, 1]} : vector<4x16x8xf32> to vector<1x16x8xf32>
    %100 = vector.shape_cast %99 : vector<1x16x8xf32> to vector<16x8xf32>
    %101 = vector.extract_strided_slice %98 {offsets = [1, 0, 0], sizes = [1, 16, 8], strides = [1, 1, 1]} : vector<4x16x8xf32> to vector<1x16x8xf32>
    %102 = vector.shape_cast %101 : vector<1x16x8xf32> to vector<16x8xf32>
    %103 = vector.extract_strided_slice %98 {offsets = [2, 0, 0], sizes = [1, 16, 8], strides = [1, 1, 1]} : vector<4x16x8xf32> to vector<1x16x8xf32>
    %104 = vector.shape_cast %103 : vector<1x16x8xf32> to vector<16x8xf32>
    %105 = vector.extract_strided_slice %98 {offsets = [3, 0, 0], sizes = [1, 16, 8], strides = [1, 1, 1]} : vector<4x16x8xf32> to vector<1x16x8xf32>
    %106 = vector.shape_cast %105 : vector<1x16x8xf32> to vector<16x8xf32>
    %107 = tpu.concatenate %100, %102, %104, %106 in 1 : vector<16x8xf32>, vector<16x8xf32>, vector<16x8xf32>, vector<16x8xf32> -> vector<16x32xf32>
    %108 = arith.truncf %107 : vector<16x32xf32> to vector<16x32xbf16>
    %cst_30 = arith.constant dense<0.000000e+00> : vector<16x32xf32>
    %109 = tpu.matmul %108, %20, %cst_30 {dimension_numbers = #tpu.dot_dimension_numbers<[1], [0], [0], [1], [0, 0, 1, 1], [], []>} : vector<16x32xbf16>, vector<32x32xbf16>, vector<16x32xf32> -> vector<16x32xf32>
    %110 = vector.broadcast %4 : vector<1x32xf32> to vector<16x32xf32>
    %111 = arith.addf %109, %110 : vector<16x32xf32>
    %112 = arith.addf %16, %111 : vector<16x32xf32>
    %cst_31 = arith.constant dense<0.000000e+00> : vector<16xf32>
    %113 = vector.multi_reduction <add>, %112, %cst_31 [1] : vector<16x32xf32> to vector<16xf32>
    %114 = vector.shape_cast %113 : vector<16xf32> to vector<16x1xf32>
    %cst_32 = arith.constant 3.200000e+01 : f32
    %115 = vector.broadcast %cst_32 : f32 to vector<16x1xf32>
    %116 = arith.divf %114, %115 : vector<16x1xf32>
    %117 = vector.broadcast %116 : vector<16x1xf32> to vector<16x32xf32>
    %118 = arith.subf %112, %117 : vector<16x32xf32>
    %119 = arith.mulf %118, %118 : vector<16x32xf32>
    %cst_33 = arith.constant dense<0.000000e+00> : vector<16xf32>
    %120 = vector.multi_reduction <add>, %119, %cst_33 [1] : vector<16x32xf32> to vector<16xf32>
    %121 = vector.shape_cast %120 : vector<16xf32> to vector<16x1xf32>
    %cst_34 = arith.constant 3.200000e+01 : f32
    %122 = vector.broadcast %cst_34 : f32 to vector<16x1xf32>
    %123 = arith.divf %121, %122 : vector<16x1xf32>
    %124 = vector.broadcast %116 : vector<16x1xf32> to vector<16x32xf32>
    %125 = arith.subf %112, %124 : vector<16x32xf32>
    %cst_35 = arith.constant 9.99999997E-7 : f32
    %126 = vector.broadcast %cst_35 : f32 to vector<16x1xf32>
    %127 = arith.addf %123, %126 : vector<16x1xf32>
    %128 = math.rsqrt %127 : vector<16x1xf32>
    %129 = vector.broadcast %128 : vector<16x1xf32> to vector<16x32xf32>
    %130 = arith.mulf %125, %129 : vector<16x32xf32>
    %131 = vector.broadcast %21 : vector<1x32xf32> to vector<16x32xf32>
    %132 = arith.mulf %130, %131 : vector<16x32xf32>
    %133 = vector.broadcast %22 : vector<1x32xf32> to vector<16x32xf32>
    %134 = arith.addf %132, %133 : vector<16x32xf32>
    %135 = arith.truncf %134 : vector<16x32xf32> to vector<16x32xbf16>
    %cst_36 = arith.constant dense<0.000000e+00> : vector<16x64xf32>
    %136 = tpu.matmul %135, %23, %cst_36 {dimension_numbers = #tpu.dot_dimension_numbers<[1], [0], [0], [1], [0, 0, 1, 1], [], []>} : vector<16x32xbf16>, vector<32x64xbf16>, vector<16x64xf32> -> vector<16x64xf32>
    %137 = vector.broadcast %5 : vector<1x64xf32> to vector<16x64xf32>
    %138 = arith.addf %136, %137 : vector<16x64xf32>
    %139 = arith.mulf %138, %138 : vector<16x64xf32>
    %140 = arith.mulf %138, %139 : vector<16x64xf32>
    %cst_37 = arith.constant 4.471500e-02 : f32
    %141 = vector.broadcast %cst_37 : f32 to vector<16x64xf32>
    %142 = arith.mulf %141, %140 : vector<16x64xf32>
    %143 = arith.addf %138, %142 : vector<16x64xf32>
    %cst_38 = arith.constant 0.797884583 : f32
    %144 = vector.broadcast %cst_38 : f32 to vector<16x64xf32>
    %145 = arith.mulf %144, %143 : vector<16x64xf32>
    %146 = math.tanh %145 : vector<16x64xf32>
    %cst_39 = arith.constant 1.000000e+00 : f32
    %147 = vector.broadcast %cst_39 : f32 to vector<16x64xf32>
    %148 = arith.addf %147, %146 : vector<16x64xf32>
    %cst_40 = arith.constant 5.000000e-01 : f32
    %149 = vector.broadcast %cst_40 : f32 to vector<16x64xf32>
    %150 = arith.mulf %149, %148 : vector<16x64xf32>
    %151 = arith.mulf %138, %150 : vector<16x64xf32>
    %152 = arith.truncf %151 : vector<16x64xf32> to vector<16x64xbf16>
    %cst_41 = arith.constant dense<0.000000e+00> : vector<16x32xf32>
    %153 = tpu.matmul %152, %24, %cst_41 {dimension_numbers = #tpu.dot_dimension_numbers<[1], [0], [0], [1], [0, 0, 1, 1], [], []>} : vector<16x64xbf16>, vector<64x32xbf16>, vector<16x32xf32> -> vector<16x32xf32>
    %154 = vector.broadcast %6 : vector<1x32xf32> to vector<16x32xf32>
    %155 = arith.addf %153, %154 : vector<16x32xf32>
    %156 = arith.addf %112, %155 : vector<16x32xf32>
    %157 = arith.truncf %156 : vector<16x32xf32> to vector<16x32xbf16>
    %c0_42 = arith.constant 0 : index
    %c0_43 = arith.constant 0 : index
    %c0_44 = arith.constant 0 : index
    %158 = vector.load %arg10[%c0_42, %c0_43, %c0_44] : memref<1x16x32xbf16, #tpu.memory_space<vmem>>, vector<1x16x32xbf16>
    %159 = vector.shape_cast %158 : vector<1x16x32xbf16> to vector<16x32xbf16>
    %160 = vector.shape_cast %157 : vector<16x32xbf16> to vector<1x16x32xbf16>
    tpu.vector_store %arg10[%c0_42, %c0_43, %c0_44], %160 {strides = array<i32>} : memref<1x16x32xbf16, #tpu.memory_space<vmem>>, vector<1x16x32xbf16>,
    return
  }
  func.func @transform_0(%arg0: i32) -> (i32, i32, i32) {
    %c0_i32 = arith.constant 0 : i32
    %c0_i32_0 = arith.constant 0 : i32
    %c0_i32_1 = arith.constant 0 : i32
    return %arg0, %c0_i32, %c0_i32_0 : i32, i32, i32
  }
  func.func @transform_1(%arg0: i32) -> (i32, i32, i32) {
    %c0_i32 = arith.constant 0 : i32
    %c0_i32_0 = arith.constant 0 : i32
    %c0_i32_1 = arith.constant 0 : i32
    %c0_i32_2 = arith.constant 0 : i32
    return %c0_i32, %c0_i32_0, %c0_i32_1 : i32, i32, i32
  }
  func.func @transform_2(%arg0: i32) -> (i32, i32) {
    %c0_i32 = arith.constant 0 : i32
    %c0_i32_0 = arith.constant 0 : i32
    %c0_i32_1 = arith.constant 0 : i32
    return %c0_i32, %c0_i32_0 : i32, i32
  }
  func.func @transform_3(%arg0: i32) -> (i32, i32) {
    %c0_i32 = arith.constant 0 : i32
    %c0_i32_0 = arith.constant 0 : i32
    %c0_i32_1 = arith.constant 0 : i32
    return %c0_i32, %c0_i32_0 : i32, i32
  }
  func.func @transform_4(%arg0: i32) -> (i32, i32) {
    %c0_i32 = arith.constant 0 : i32
    %c0_i32_0 = arith.constant 0 : i32
    %c0_i32_1 = arith.constant 0 : i32
    return %c0_i32, %c0_i32_0 : i32, i32
  }
  func.func @transform_5(%arg0: i32) -> (i32, i32) {
    %c0_i32 = arith.constant 0 : i32
    %c0_i32_0 = arith.constant 0 : i32
    %c0_i32_1 = arith.constant 0 : i32
    return %c0_i32, %c0_i32_0 : i32, i32
  }
  func.func @transform_6(%arg0: i32) -> (i32, i32) {
    %c0_i32 = arith.constant 0 : i32
    %c0_i32_0 = arith.constant 0 : i32
    %c0_i32_1 = arith.constant 0 : i32
    return %c0_i32, %c0_i32_0 : i32, i32
  }
  func.func @transform_7(%arg0: i32) -> (i32, i32) {
    %c0_i32 = arith.constant 0 : i32
    %c0_i32_0 = arith.constant 0 : i32
    %c0_i32_1 = arith.constant 0 : i32
    return %c0_i32, %c0_i32_0 : i32, i32
  }
  func.func @transform_8(%arg0: i32) -> (i32, i32) {
    %c0_i32 = arith.constant 0 : i32
    %c0_i32_0 = arith.constant 0 : i32
    %c0_i32_1 = arith.constant 0 : i32
    return %c0_i32, %c0_i32_0 : i32, i32
  }
  func.func @transform_9(%arg0: i32) -> (i32, i32, i32) {
    %c0_i32 = arith.constant 0 : i32
    %c0_i32_0 = arith.constant 0 : i32
    %c0_i32_1 = arith.constant 0 : i32
    return %arg0, %c0_i32, %c0_i32_0 : i32, i32, i32
  }
}

module attributes {stable_mosaic.version = 11 : i64} {
  func.func @_lm_encoder_kernel(%arg0: i32, %arg1: memref<1x16x32xbf16, #tpu.memory_space<vmem>>, %arg2: memref<32x96xbf16, #tpu.memory_space<vmem>>, %arg3: memref<32x32xbf16, #tpu.memory_space<vmem>>, %arg4: memref<32x64xbf16, #tpu.memory_space<vmem>>, %arg5: memref<64x32xbf16, #tpu.memory_space<vmem>>, %arg6: memref<32x64xbf16, #tpu.memory_space<vmem>>, %arg7: memref<6x32xf32, #tpu.memory_space<vmem>>, %arg8: memref<5x96xf32, #tpu.memory_space<vmem>>, %arg9: memref<1x16x64xbf16, #tpu.memory_space<vmem>>) attributes {dimension_semantics = [#tpu.dimension_semantics<parallel>], iteration_bounds = array<i64: 2>, scalar_prefetch = 0 : i64, scratch_operands = 0 : i64, tpu.core_type = #tpu.core_type<tc>, window_params = [{transform_indices = @transform_0, window_bounds = array<i64: 1, 16, 32>}, {pipeline_mode = #tpu.pipeline_mode<synchronous>, transform_indices = @transform_1, window_bounds = array<i64: 32, 96>}, {pipeline_mode = #tpu.pipeline_mode<synchronous>, transform_indices = @transform_2, window_bounds = array<i64: 32, 32>}, {pipeline_mode = #tpu.pipeline_mode<synchronous>, transform_indices = @transform_3, window_bounds = array<i64: 32, 64>}, {pipeline_mode = #tpu.pipeline_mode<synchronous>, transform_indices = @transform_4, window_bounds = array<i64: 64, 32>}, {pipeline_mode = #tpu.pipeline_mode<synchronous>, transform_indices = @transform_5, window_bounds = array<i64: 32, 64>}, {pipeline_mode = #tpu.pipeline_mode<synchronous>, transform_indices = @transform_6, window_bounds = array<i64: 6, 32>}, {pipeline_mode = #tpu.pipeline_mode<synchronous>, transform_indices = @transform_7, window_bounds = array<i64: 5, 96>}, {transform_indices = @transform_8, window_bounds = array<i64: 1, 16, 64>}]} {
    %c0 = arith.constant 0 : index
    %c0_0 = arith.constant 0 : index
    %0 = vector.load %arg7[%c0, %c0_0] : memref<6x32xf32, #tpu.memory_space<vmem>>, vector<6x32xf32>
    %c0_1 = arith.constant 0 : index
    %c0_2 = arith.constant 0 : index
    %1 = vector.load %arg8[%c0_1, %c0_2] : memref<5x96xf32, #tpu.memory_space<vmem>>, vector<5x96xf32>
    %c0_3 = arith.constant 0 : index
    %c0_4 = arith.constant 0 : index
    %c0_5 = arith.constant 0 : index
    %2 = vector.load %arg1[%c0_3, %c0_4, %c0_5] : memref<1x16x32xbf16, #tpu.memory_space<vmem>>, vector<1x16x32xbf16>
    %3 = vector.shape_cast %2 : vector<1x16x32xbf16> to vector<16x32xbf16>
    %4 = arith.extf %3 : vector<16x32xbf16> to vector<16x32xf32>
    %5 = vector.extract_strided_slice %0 {offsets = [0, 0], sizes = [1, 32], strides = [1, 1]} : vector<6x32xf32> to vector<1x32xf32>
    %6 = vector.extract_strided_slice %0 {offsets = [1, 0], sizes = [1, 32], strides = [1, 1]} : vector<6x32xf32> to vector<1x32xf32>
    %c0_6 = arith.constant 0 : index
    %c0_7 = arith.constant 0 : index
    %7 = vector.load %arg2[%c0_6, %c0_7] : memref<32x96xbf16, #tpu.memory_space<vmem>>, vector<32x96xbf16>
    %8 = vector.extract_strided_slice %1 {offsets = [0, 0], sizes = [1, 96], strides = [1, 1]} : vector<5x96xf32> to vector<1x96xf32>
    %c0_8 = arith.constant 0 : index
    %c0_9 = arith.constant 0 : index
    %9 = vector.load %arg3[%c0_8, %c0_9] : memref<32x32xbf16, #tpu.memory_space<vmem>>, vector<32x32xbf16>
    %10 = vector.extract_strided_slice %1 {offsets = [1, 0], sizes = [1, 32], strides = [1, 1]} : vector<5x96xf32> to vector<1x32xf32>
    %11 = vector.extract_strided_slice %0 {offsets = [2, 0], sizes = [1, 32], strides = [1, 1]} : vector<6x32xf32> to vector<1x32xf32>
    %12 = vector.extract_strided_slice %0 {offsets = [3, 0], sizes = [1, 32], strides = [1, 1]} : vector<6x32xf32> to vector<1x32xf32>
    %c0_10 = arith.constant 0 : index
    %c0_11 = arith.constant 0 : index
    %13 = vector.load %arg4[%c0_10, %c0_11] : memref<32x64xbf16, #tpu.memory_space<vmem>>, vector<32x64xbf16>
    %14 = vector.extract_strided_slice %1 {offsets = [2, 0], sizes = [1, 64], strides = [1, 1]} : vector<5x96xf32> to vector<1x64xf32>
    %c0_12 = arith.constant 0 : index
    %c0_13 = arith.constant 0 : index
    %15 = vector.load %arg5[%c0_12, %c0_13] : memref<64x32xbf16, #tpu.memory_space<vmem>>, vector<64x32xbf16>
    %16 = vector.extract_strided_slice %1 {offsets = [3, 0], sizes = [1, 32], strides = [1, 1]} : vector<5x96xf32> to vector<1x32xf32>
    %cst = arith.constant dense<0.000000e+00> : vector<16xf32>
    %17 = vector.multi_reduction <add>, %4, %cst [1] : vector<16x32xf32> to vector<16xf32>
    %18 = vector.shape_cast %17 : vector<16xf32> to vector<16x1xf32>
    %cst_14 = arith.constant 3.200000e+01 : f32
    %19 = vector.broadcast %cst_14 : f32 to vector<16x1xf32>
    %20 = arith.divf %18, %19 : vector<16x1xf32>
    %21 = vector.broadcast %20 : vector<16x1xf32> to vector<16x32xf32>
    %22 = arith.subf %4, %21 : vector<16x32xf32>
    %23 = arith.mulf %22, %22 : vector<16x32xf32>
    %cst_15 = arith.constant dense<0.000000e+00> : vector<16xf32>
    %24 = vector.multi_reduction <add>, %23, %cst_15 [1] : vector<16x32xf32> to vector<16xf32>
    %25 = vector.shape_cast %24 : vector<16xf32> to vector<16x1xf32>
    %cst_16 = arith.constant 3.200000e+01 : f32
    %26 = vector.broadcast %cst_16 : f32 to vector<16x1xf32>
    %27 = arith.divf %25, %26 : vector<16x1xf32>
    %28 = vector.broadcast %20 : vector<16x1xf32> to vector<16x32xf32>
    %29 = arith.subf %4, %28 : vector<16x32xf32>
    %cst_17 = arith.constant 9.99999997E-7 : f32
    %30 = vector.broadcast %cst_17 : f32 to vector<16x1xf32>
    %31 = arith.addf %27, %30 : vector<16x1xf32>
    %32 = math.rsqrt %31 : vector<16x1xf32>
    %33 = vector.broadcast %32 : vector<16x1xf32> to vector<16x32xf32>
    %34 = arith.mulf %29, %33 : vector<16x32xf32>
    %35 = vector.broadcast %5 : vector<1x32xf32> to vector<16x32xf32>
    %36 = arith.mulf %34, %35 : vector<16x32xf32>
    %37 = vector.broadcast %6 : vector<1x32xf32> to vector<16x32xf32>
    %38 = arith.addf %36, %37 : vector<16x32xf32>
    %39 = arith.truncf %38 : vector<16x32xf32> to vector<16x32xbf16>
    %cst_18 = arith.constant dense<0.000000e+00> : vector<16x96xf32>
    %40 = tpu.matmul %39, %7, %cst_18 {dimension_numbers = #tpu.dot_dimension_numbers<[1], [0], [0], [1], [0, 0, 1, 1], [], []>} : vector<16x32xbf16>, vector<32x96xbf16>, vector<16x96xf32> -> vector<16x96xf32>
    %41 = vector.broadcast %8 : vector<1x96xf32> to vector<16x96xf32>
    %42 = arith.addf %40, %41 : vector<16x96xf32>
    %43 = vector.extract_strided_slice %42 {offsets = [0, 0], sizes = [16, 32], strides = [1, 1]} : vector<16x96xf32> to vector<16x32xf32>
    %44 = vector.extract_strided_slice %42 {offsets = [0, 32], sizes = [16, 32], strides = [1, 1]} : vector<16x96xf32> to vector<16x32xf32>
    %45 = vector.extract_strided_slice %42 {offsets = [0, 64], sizes = [16, 32], strides = [1, 1]} : vector<16x96xf32> to vector<16x32xf32>
    %cst_19 = arith.constant 0.353553385 : f32
    %46 = vector.broadcast %cst_19 : f32 to vector<16x32xf32>
    %47 = arith.mulf %43, %46 : vector<16x32xf32>
    %48 = vector.extract_strided_slice %47 {offsets = [0, 0], sizes = [16, 8], strides = [1, 1]} : vector<16x32xf32> to vector<16x8xf32>
    %49 = vector.shape_cast %48 : vector<16x8xf32> to vector<1x16x8xf32>
    %50 = vector.extract_strided_slice %47 {offsets = [0, 8], sizes = [16, 8], strides = [1, 1]} : vector<16x32xf32> to vector<16x8xf32>
    %51 = vector.shape_cast %50 : vector<16x8xf32> to vector<1x16x8xf32>
    %52 = vector.extract_strided_slice %47 {offsets = [0, 16], sizes = [16, 8], strides = [1, 1]} : vector<16x32xf32> to vector<16x8xf32>
    %53 = vector.shape_cast %52 : vector<16x8xf32> to vector<1x16x8xf32>
    %54 = vector.extract_strided_slice %47 {offsets = [0, 24], sizes = [16, 8], strides = [1, 1]} : vector<16x32xf32> to vector<16x8xf32>
    %55 = vector.shape_cast %54 : vector<16x8xf32> to vector<1x16x8xf32>
    %56 = tpu.concatenate %49, %51, %53, %55 in 0 : vector<1x16x8xf32>, vector<1x16x8xf32>, vector<1x16x8xf32>, vector<1x16x8xf32> -> vector<4x16x8xf32>
    %57 = arith.truncf %56 : vector<4x16x8xf32> to vector<4x16x8xbf16>
    %58 = vector.extract_strided_slice %44 {offsets = [0, 0], sizes = [16, 8], strides = [1, 1]} : vector<16x32xf32> to vector<16x8xf32>
    %59 = vector.shape_cast %58 : vector<16x8xf32> to vector<1x16x8xf32>
    %60 = vector.extract_strided_slice %44 {offsets = [0, 8], sizes = [16, 8], strides = [1, 1]} : vector<16x32xf32> to vector<16x8xf32>
    %61 = vector.shape_cast %60 : vector<16x8xf32> to vector<1x16x8xf32>
    %62 = vector.extract_strided_slice %44 {offsets = [0, 16], sizes = [16, 8], strides = [1, 1]} : vector<16x32xf32> to vector<16x8xf32>
    %63 = vector.shape_cast %62 : vector<16x8xf32> to vector<1x16x8xf32>
    %64 = vector.extract_strided_slice %44 {offsets = [0, 24], sizes = [16, 8], strides = [1, 1]} : vector<16x32xf32> to vector<16x8xf32>
    %65 = vector.shape_cast %64 : vector<16x8xf32> to vector<1x16x8xf32>
    %66 = tpu.concatenate %59, %61, %63, %65 in 0 : vector<1x16x8xf32>, vector<1x16x8xf32>, vector<1x16x8xf32>, vector<1x16x8xf32> -> vector<4x16x8xf32>
    %67 = arith.truncf %66 : vector<4x16x8xf32> to vector<4x16x8xbf16>
    %68 = vector.extract_strided_slice %45 {offsets = [0, 0], sizes = [16, 8], strides = [1, 1]} : vector<16x32xf32> to vector<16x8xf32>
    %69 = vector.shape_cast %68 : vector<16x8xf32> to vector<1x16x8xf32>
    %70 = vector.extract_strided_slice %45 {offsets = [0, 8], sizes = [16, 8], strides = [1, 1]} : vector<16x32xf32> to vector<16x8xf32>
    %71 = vector.shape_cast %70 : vector<16x8xf32> to vector<1x16x8xf32>
    %72 = vector.extract_strided_slice %45 {offsets = [0, 16], sizes = [16, 8], strides = [1, 1]} : vector<16x32xf32> to vector<16x8xf32>
    %73 = vector.shape_cast %72 : vector<16x8xf32> to vector<1x16x8xf32>
    %74 = vector.extract_strided_slice %45 {offsets = [0, 24], sizes = [16, 8], strides = [1, 1]} : vector<16x32xf32> to vector<16x8xf32>
    %75 = vector.shape_cast %74 : vector<16x8xf32> to vector<1x16x8xf32>
    %76 = tpu.concatenate %69, %71, %73, %75 in 0 : vector<1x16x8xf32>, vector<1x16x8xf32>, vector<1x16x8xf32>, vector<1x16x8xf32> -> vector<4x16x8xf32>
    %77 = arith.truncf %76 : vector<4x16x8xf32> to vector<4x16x8xbf16>
    %cst_20 = arith.constant dense<0.000000e+00> : vector<4x16x16xf32>
    %78 = tpu.matmul %57, %67, %cst_20 {dimension_numbers = #tpu.dot_dimension_numbers<[2], [2], [1], [1], [0, 0, 0, 1, 1, 1], [0], [0]>} : vector<4x16x8xbf16>, vector<4x16x8xbf16>, vector<4x16x16xf32> -> vector<4x16x16xf32>
    %cst_21 = arith.constant dense<0xFF800000> : vector<4x16xf32>
    %79 = vector.multi_reduction <maximumf>, %78, %cst_21 [2] : vector<4x16x16xf32> to vector<4x16xf32>
    %80 = vector.shape_cast %79 : vector<4x16xf32> to vector<4x16x1xf32>
    %81 = vector.broadcast %80 : vector<4x16x1xf32> to vector<4x16x16xf32>
    %82 = arith.subf %78, %81 : vector<4x16x16xf32>
    %83 = math.exp %82 : vector<4x16x16xf32>
    %cst_22 = arith.constant dense<0.000000e+00> : vector<4x16xf32>
    %84 = vector.multi_reduction <add>, %83, %cst_22 [2] : vector<4x16x16xf32> to vector<4x16xf32>
    %85 = vector.shape_cast %84 : vector<4x16xf32> to vector<4x16x1xf32>
    %86 = arith.truncf %83 : vector<4x16x16xf32> to vector<4x16x16xbf16>
    %cst_23 = arith.constant dense<0.000000e+00> : vector<4x16x8xf32>
    %87 = tpu.matmul %86, %77, %cst_23 {dimension_numbers = #tpu.dot_dimension_numbers<[2], [1], [1], [2], [0, 0, 0, 1, 1, 2], [0], [0]>} : vector<4x16x16xbf16>, vector<4x16x8xbf16>, vector<4x16x8xf32> -> vector<4x16x8xf32>
    %88 = tpu.reciprocal %85 {approx = true} : vector<4x16x1xf32> -> vector<4x16x1xf32>
    %89 = vector.broadcast %88 : vector<4x16x1xf32> to vector<4x16x8xf32>
    %90 = arith.mulf %87, %89 : vector<4x16x8xf32>
    %91 = vector.extract_strided_slice %90 {offsets = [0, 0, 0], sizes = [1, 16, 8], strides = [1, 1, 1]} : vector<4x16x8xf32> to vector<1x16x8xf32>
    %92 = vector.shape_cast %91 : vector<1x16x8xf32> to vector<16x8xf32>
    %93 = vector.extract_strided_slice %90 {offsets = [1, 0, 0], sizes = [1, 16, 8], strides = [1, 1, 1]} : vector<4x16x8xf32> to vector<1x16x8xf32>
    %94 = vector.shape_cast %93 : vector<1x16x8xf32> to vector<16x8xf32>
    %95 = vector.extract_strided_slice %90 {offsets = [2, 0, 0], sizes = [1, 16, 8], strides = [1, 1, 1]} : vector<4x16x8xf32> to vector<1x16x8xf32>
    %96 = vector.shape_cast %95 : vector<1x16x8xf32> to vector<16x8xf32>
    %97 = vector.extract_strided_slice %90 {offsets = [3, 0, 0], sizes = [1, 16, 8], strides = [1, 1, 1]} : vector<4x16x8xf32> to vector<1x16x8xf32>
    %98 = vector.shape_cast %97 : vector<1x16x8xf32> to vector<16x8xf32>
    %99 = tpu.concatenate %92, %94, %96, %98 in 1 : vector<16x8xf32>, vector<16x8xf32>, vector<16x8xf32>, vector<16x8xf32> -> vector<16x32xf32>
    %100 = arith.truncf %99 : vector<16x32xf32> to vector<16x32xbf16>
    %cst_24 = arith.constant dense<0.000000e+00> : vector<16x32xf32>
    %101 = tpu.matmul %100, %9, %cst_24 {dimension_numbers = #tpu.dot_dimension_numbers<[1], [0], [0], [1], [0, 0, 1, 1], [], []>} : vector<16x32xbf16>, vector<32x32xbf16>, vector<16x32xf32> -> vector<16x32xf32>
    %102 = vector.broadcast %10 : vector<1x32xf32> to vector<16x32xf32>
    %103 = arith.addf %101, %102 : vector<16x32xf32>
    %104 = arith.addf %4, %103 : vector<16x32xf32>
    %cst_25 = arith.constant dense<0.000000e+00> : vector<16xf32>
    %105 = vector.multi_reduction <add>, %104, %cst_25 [1] : vector<16x32xf32> to vector<16xf32>
    %106 = vector.shape_cast %105 : vector<16xf32> to vector<16x1xf32>
    %cst_26 = arith.constant 3.200000e+01 : f32
    %107 = vector.broadcast %cst_26 : f32 to vector<16x1xf32>
    %108 = arith.divf %106, %107 : vector<16x1xf32>
    %109 = vector.broadcast %108 : vector<16x1xf32> to vector<16x32xf32>
    %110 = arith.subf %104, %109 : vector<16x32xf32>
    %111 = arith.mulf %110, %110 : vector<16x32xf32>
    %cst_27 = arith.constant dense<0.000000e+00> : vector<16xf32>
    %112 = vector.multi_reduction <add>, %111, %cst_27 [1] : vector<16x32xf32> to vector<16xf32>
    %113 = vector.shape_cast %112 : vector<16xf32> to vector<16x1xf32>
    %cst_28 = arith.constant 3.200000e+01 : f32
    %114 = vector.broadcast %cst_28 : f32 to vector<16x1xf32>
    %115 = arith.divf %113, %114 : vector<16x1xf32>
    %116 = vector.broadcast %108 : vector<16x1xf32> to vector<16x32xf32>
    %117 = arith.subf %104, %116 : vector<16x32xf32>
    %cst_29 = arith.constant 9.99999997E-7 : f32
    %118 = vector.broadcast %cst_29 : f32 to vector<16x1xf32>
    %119 = arith.addf %115, %118 : vector<16x1xf32>
    %120 = math.rsqrt %119 : vector<16x1xf32>
    %121 = vector.broadcast %120 : vector<16x1xf32> to vector<16x32xf32>
    %122 = arith.mulf %117, %121 : vector<16x32xf32>
    %123 = vector.broadcast %11 : vector<1x32xf32> to vector<16x32xf32>
    %124 = arith.mulf %122, %123 : vector<16x32xf32>
    %125 = vector.broadcast %12 : vector<1x32xf32> to vector<16x32xf32>
    %126 = arith.addf %124, %125 : vector<16x32xf32>
    %127 = arith.truncf %126 : vector<16x32xf32> to vector<16x32xbf16>
    %cst_30 = arith.constant dense<0.000000e+00> : vector<16x64xf32>
    %128 = tpu.matmul %127, %13, %cst_30 {dimension_numbers = #tpu.dot_dimension_numbers<[1], [0], [0], [1], [0, 0, 1, 1], [], []>} : vector<16x32xbf16>, vector<32x64xbf16>, vector<16x64xf32> -> vector<16x64xf32>
    %129 = vector.broadcast %14 : vector<1x64xf32> to vector<16x64xf32>
    %130 = arith.addf %128, %129 : vector<16x64xf32>
    %131 = arith.mulf %130, %130 : vector<16x64xf32>
    %132 = arith.mulf %130, %131 : vector<16x64xf32>
    %cst_31 = arith.constant 4.471500e-02 : f32
    %133 = vector.broadcast %cst_31 : f32 to vector<16x64xf32>
    %134 = arith.mulf %133, %132 : vector<16x64xf32>
    %135 = arith.addf %130, %134 : vector<16x64xf32>
    %cst_32 = arith.constant 0.797884583 : f32
    %136 = vector.broadcast %cst_32 : f32 to vector<16x64xf32>
    %137 = arith.mulf %136, %135 : vector<16x64xf32>
    %138 = math.tanh %137 : vector<16x64xf32>
    %cst_33 = arith.constant 1.000000e+00 : f32
    %139 = vector.broadcast %cst_33 : f32 to vector<16x64xf32>
    %140 = arith.addf %139, %138 : vector<16x64xf32>
    %cst_34 = arith.constant 5.000000e-01 : f32
    %141 = vector.broadcast %cst_34 : f32 to vector<16x64xf32>
    %142 = arith.mulf %141, %140 : vector<16x64xf32>
    %143 = arith.mulf %130, %142 : vector<16x64xf32>
    %144 = arith.truncf %143 : vector<16x64xf32> to vector<16x64xbf16>
    %cst_35 = arith.constant dense<0.000000e+00> : vector<16x32xf32>
    %145 = tpu.matmul %144, %15, %cst_35 {dimension_numbers = #tpu.dot_dimension_numbers<[1], [0], [0], [1], [0, 0, 1, 1], [], []>} : vector<16x64xbf16>, vector<64x32xbf16>, vector<16x32xf32> -> vector<16x32xf32>
    %146 = vector.broadcast %16 : vector<1x32xf32> to vector<16x32xf32>
    %147 = arith.addf %145, %146 : vector<16x32xf32>
    %148 = arith.addf %104, %147 : vector<16x32xf32>
    %149 = vector.extract_strided_slice %0 {offsets = [4, 0], sizes = [1, 32], strides = [1, 1]} : vector<6x32xf32> to vector<1x32xf32>
    %150 = vector.extract_strided_slice %0 {offsets = [5, 0], sizes = [1, 32], strides = [1, 1]} : vector<6x32xf32> to vector<1x32xf32>
    %cst_36 = arith.constant dense<0.000000e+00> : vector<16xf32>
    %151 = vector.multi_reduction <add>, %148, %cst_36 [1] : vector<16x32xf32> to vector<16xf32>
    %152 = vector.shape_cast %151 : vector<16xf32> to vector<16x1xf32>
    %cst_37 = arith.constant 3.200000e+01 : f32
    %153 = vector.broadcast %cst_37 : f32 to vector<16x1xf32>
    %154 = arith.divf %152, %153 : vector<16x1xf32>
    %155 = vector.broadcast %154 : vector<16x1xf32> to vector<16x32xf32>
    %156 = arith.subf %148, %155 : vector<16x32xf32>
    %157 = arith.mulf %156, %156 : vector<16x32xf32>
    %cst_38 = arith.constant dense<0.000000e+00> : vector<16xf32>
    %158 = vector.multi_reduction <add>, %157, %cst_38 [1] : vector<16x32xf32> to vector<16xf32>
    %159 = vector.shape_cast %158 : vector<16xf32> to vector<16x1xf32>
    %cst_39 = arith.constant 3.200000e+01 : f32
    %160 = vector.broadcast %cst_39 : f32 to vector<16x1xf32>
    %161 = arith.divf %159, %160 : vector<16x1xf32>
    %162 = vector.broadcast %154 : vector<16x1xf32> to vector<16x32xf32>
    %163 = arith.subf %148, %162 : vector<16x32xf32>
    %cst_40 = arith.constant 9.99999997E-7 : f32
    %164 = vector.broadcast %cst_40 : f32 to vector<16x1xf32>
    %165 = arith.addf %161, %164 : vector<16x1xf32>
    %166 = math.rsqrt %165 : vector<16x1xf32>
    %167 = vector.broadcast %166 : vector<16x1xf32> to vector<16x32xf32>
    %168 = arith.mulf %163, %167 : vector<16x32xf32>
    %169 = vector.broadcast %149 : vector<1x32xf32> to vector<16x32xf32>
    %170 = arith.mulf %168, %169 : vector<16x32xf32>
    %171 = vector.broadcast %150 : vector<1x32xf32> to vector<16x32xf32>
    %172 = arith.addf %170, %171 : vector<16x32xf32>
    %173 = arith.truncf %172 : vector<16x32xf32> to vector<16x32xbf16>
    %c0_41 = arith.constant 0 : index
    %c0_42 = arith.constant 0 : index
    %174 = vector.load %arg6[%c0_41, %c0_42] : memref<32x64xbf16, #tpu.memory_space<vmem>>, vector<32x64xbf16>
    %cst_43 = arith.constant dense<0.000000e+00> : vector<16x64xf32>
    %175 = tpu.matmul %173, %174, %cst_43 {dimension_numbers = #tpu.dot_dimension_numbers<[1], [0], [0], [1], [0, 0, 1, 1], [], []>} : vector<16x32xbf16>, vector<32x64xbf16>, vector<16x64xf32> -> vector<16x64xf32>
    %176 = vector.extract_strided_slice %1 {offsets = [4, 0], sizes = [1, 64], strides = [1, 1]} : vector<5x96xf32> to vector<1x64xf32>
    %177 = vector.broadcast %176 : vector<1x64xf32> to vector<16x64xf32>
    %178 = arith.addf %175, %177 : vector<16x64xf32>
    %179 = arith.truncf %178 : vector<16x64xf32> to vector<16x64xbf16>
    %c0_44 = arith.constant 0 : index
    %c0_45 = arith.constant 0 : index
    %c0_46 = arith.constant 0 : index
    %180 = vector.load %arg9[%c0_44, %c0_45, %c0_46] : memref<1x16x64xbf16, #tpu.memory_space<vmem>>, vector<1x16x64xbf16>
    %181 = vector.shape_cast %180 : vector<1x16x64xbf16> to vector<16x64xbf16>
    %182 = vector.shape_cast %179 : vector<16x64xbf16> to vector<1x16x64xbf16>
    tpu.vector_store %arg9[%c0_44, %c0_45, %c0_46], %182 {strides = array<i32>} : memref<1x16x64xbf16, #tpu.memory_space<vmem>>, vector<1x16x64xbf16>,
    return
  }
  func.func @transform_0(%arg0: i32) -> (i32, i32, i32) {
    %c0_i32 = arith.constant 0 : i32
    %c0_i32_0 = arith.constant 0 : i32
    %c0_i32_1 = arith.constant 0 : i32
    return %arg0, %c0_i32, %c0_i32_0 : i32, i32, i32
  }
  func.func @transform_1(%arg0: i32) -> (i32, i32) {
    %c0_i32 = arith.constant 0 : i32
    %c0_i32_0 = arith.constant 0 : i32
    %c0_i32_1 = arith.constant 0 : i32
    return %c0_i32, %c0_i32_0 : i32, i32
  }
  func.func @transform_2(%arg0: i32) -> (i32, i32) {
    %c0_i32 = arith.constant 0 : i32
    %c0_i32_0 = arith.constant 0 : i32
    %c0_i32_1 = arith.constant 0 : i32
    return %c0_i32, %c0_i32_0 : i32, i32
  }
  func.func @transform_3(%arg0: i32) -> (i32, i32) {
    %c0_i32 = arith.constant 0 : i32
    %c0_i32_0 = arith.constant 0 : i32
    %c0_i32_1 = arith.constant 0 : i32
    return %c0_i32, %c0_i32_0 : i32, i32
  }
  func.func @transform_4(%arg0: i32) -> (i32, i32) {
    %c0_i32 = arith.constant 0 : i32
    %c0_i32_0 = arith.constant 0 : i32
    %c0_i32_1 = arith.constant 0 : i32
    return %c0_i32, %c0_i32_0 : i32, i32
  }
  func.func @transform_5(%arg0: i32) -> (i32, i32) {
    %c0_i32 = arith.constant 0 : i32
    %c0_i32_0 = arith.constant 0 : i32
    %c0_i32_1 = arith.constant 0 : i32
    return %c0_i32, %c0_i32_0 : i32, i32
  }
  func.func @transform_6(%arg0: i32) -> (i32, i32) {
    %c0_i32 = arith.constant 0 : i32
    %c0_i32_0 = arith.constant 0 : i32
    %c0_i32_1 = arith.constant 0 : i32
    return %c0_i32, %c0_i32_0 : i32, i32
  }
  func.func @transform_7(%arg0: i32) -> (i32, i32) {
    %c0_i32 = arith.constant 0 : i32
    %c0_i32_0 = arith.constant 0 : i32
    %c0_i32_1 = arith.constant 0 : i32
    return %c0_i32, %c0_i32_0 : i32, i32
  }
  func.func @transform_8(%arg0: i32) -> (i32, i32, i32) {
    %c0_i32 = arith.constant 0 : i32
    %c0_i32_0 = arith.constant 0 : i32
    %c0_i32_1 = arith.constant 0 : i32
    return %arg0, %c0_i32, %c0_i32_0 : i32, i32, i32
  }
}

module attributes {stable_mosaic.version = 11 : i64} {
  func.func @_decode_kernel(%arg0: i32, %arg1: memref<1x16x64xbf16, #tpu.memory_space<vmem>>, %arg2: memref<128x32xf32, #tpu.memory_space<vmem>>, %arg3: memref<32x96xbf16, #tpu.memory_space<vmem>>, %arg4: memref<32x32xbf16, #tpu.memory_space<vmem>>, %arg5: memref<32x32xbf16, #tpu.memory_space<vmem>>, %arg6: memref<32x32xbf16, #tpu.memory_space<vmem>>, %arg7: memref<32x64xbf16, #tpu.memory_space<vmem>>, %arg8: memref<64x32xbf16, #tpu.memory_space<vmem>>, %arg9: memref<32x128xbf16, #tpu.memory_space<vmem>>, %arg10: memref<8x32xf32, #tpu.memory_space<vmem>>, %arg11: memref<7x128xf32, #tpu.memory_space<vmem>>, %arg12: memref<1x1x5xi32, #tpu.memory_space<vmem>>) attributes {dimension_semantics = [#tpu.dimension_semantics<parallel>], iteration_bounds = array<i64: 2>, scalar_prefetch = 0 : i64, scratch_operands = 0 : i64, tpu.core_type = #tpu.core_type<tc>, window_params = [{transform_indices = @transform_0, window_bounds = array<i64: 1, 16, 64>}, {pipeline_mode = #tpu.pipeline_mode<synchronous>, transform_indices = @transform_1, window_bounds = array<i64: 128, 32>}, {pipeline_mode = #tpu.pipeline_mode<synchronous>, transform_indices = @transform_2, window_bounds = array<i64: 32, 96>}, {pipeline_mode = #tpu.pipeline_mode<synchronous>, transform_indices = @transform_3, window_bounds = array<i64: 32, 32>}, {pipeline_mode = #tpu.pipeline_mode<synchronous>, transform_indices = @transform_4, window_bounds = array<i64: 32, 32>}, {pipeline_mode = #tpu.pipeline_mode<synchronous>, transform_indices = @transform_5, window_bounds = array<i64: 32, 32>}, {pipeline_mode = #tpu.pipeline_mode<synchronous>, transform_indices = @transform_6, window_bounds = array<i64: 32, 64>}, {pipeline_mode = #tpu.pipeline_mode<synchronous>, transform_indices = @transform_7, window_bounds = array<i64: 64, 32>}, {pipeline_mode = #tpu.pipeline_mode<synchronous>, transform_indices = @transform_8, window_bounds = array<i64: 32, 128>}, {pipeline_mode = #tpu.pipeline_mode<synchronous>, transform_indices = @transform_9, window_bounds = array<i64: 8, 32>}, {pipeline_mode = #tpu.pipeline_mode<synchronous>, transform_indices = @transform_10, window_bounds = array<i64: 7, 128>}, {transform_indices = @transform_11, window_bounds = array<i64: 1, 1, 5>}]} {
    %c0 = arith.constant 0 : index
    %c0_0 = arith.constant 0 : index
    %0 = vector.load %arg10[%c0, %c0_0] : memref<8x32xf32, #tpu.memory_space<vmem>>, vector<8x32xf32>
    %c0_1 = arith.constant 0 : index
    %c0_2 = arith.constant 0 : index
    %1 = vector.load %arg11[%c0_1, %c0_2] : memref<7x128xf32, #tpu.memory_space<vmem>>, vector<7x128xf32>
    %2 = vector.extract_strided_slice %0 {offsets = [0, 0], sizes = [1, 32], strides = [1, 1]} : vector<8x32xf32> to vector<1x32xf32>
    %3 = vector.extract_strided_slice %0 {offsets = [1, 0], sizes = [1, 32], strides = [1, 1]} : vector<8x32xf32> to vector<1x32xf32>
    %4 = vector.extract_strided_slice %0 {offsets = [2, 0], sizes = [1, 32], strides = [1, 1]} : vector<8x32xf32> to vector<1x32xf32>
    %5 = vector.extract_strided_slice %0 {offsets = [3, 0], sizes = [1, 32], strides = [1, 1]} : vector<8x32xf32> to vector<1x32xf32>
    %6 = vector.extract_strided_slice %0 {offsets = [4, 0], sizes = [1, 32], strides = [1, 1]} : vector<8x32xf32> to vector<1x32xf32>
    %7 = vector.extract_strided_slice %0 {offsets = [5, 0], sizes = [1, 32], strides = [1, 1]} : vector<8x32xf32> to vector<1x32xf32>
    %8 = vector.extract_strided_slice %0 {offsets = [6, 0], sizes = [1, 32], strides = [1, 1]} : vector<8x32xf32> to vector<1x32xf32>
    %9 = vector.extract_strided_slice %0 {offsets = [7, 0], sizes = [1, 32], strides = [1, 1]} : vector<8x32xf32> to vector<1x32xf32>
    %10 = vector.extract_strided_slice %1 {offsets = [0, 0], sizes = [1, 96], strides = [1, 1]} : vector<7x128xf32> to vector<1x96xf32>
    %11 = vector.extract_strided_slice %1 {offsets = [1, 0], sizes = [1, 32], strides = [1, 1]} : vector<7x128xf32> to vector<1x32xf32>
    %12 = vector.extract_strided_slice %1 {offsets = [2, 0], sizes = [1, 32], strides = [1, 1]} : vector<7x128xf32> to vector<1x32xf32>
    %13 = vector.extract_strided_slice %1 {offsets = [3, 0], sizes = [1, 32], strides = [1, 1]} : vector<7x128xf32> to vector<1x32xf32>
    %14 = vector.extract_strided_slice %1 {offsets = [4, 0], sizes = [1, 64], strides = [1, 1]} : vector<7x128xf32> to vector<1x64xf32>
    %15 = vector.extract_strided_slice %1 {offsets = [5, 0], sizes = [1, 32], strides = [1, 1]} : vector<7x128xf32> to vector<1x32xf32>
    %16 = vector.extract_strided_slice %1 {offsets = [6, 0], sizes = [1, 128], strides = [1, 1]} : vector<7x128xf32> to vector<1x128xf32>
    %c0_3 = arith.constant 0 : index
    %c0_4 = arith.constant 0 : index
    %17 = vector.load %arg3[%c0_3, %c0_4] : memref<32x96xbf16, #tpu.memory_space<vmem>>, vector<32x96xbf16>
    %c0_5 = arith.constant 0 : index
    %c0_6 = arith.constant 0 : index
    %18 = vector.load %arg4[%c0_5, %c0_6] : memref<32x32xbf16, #tpu.memory_space<vmem>>, vector<32x32xbf16>
    %c0_7 = arith.constant 0 : index
    %c0_8 = arith.constant 0 : index
    %19 = vector.load %arg5[%c0_7, %c0_8] : memref<32x32xbf16, #tpu.memory_space<vmem>>, vector<32x32xbf16>
    %c0_9 = arith.constant 0 : index
    %c0_10 = arith.constant 0 : index
    %20 = vector.load %arg6[%c0_9, %c0_10] : memref<32x32xbf16, #tpu.memory_space<vmem>>, vector<32x32xbf16>
    %c0_11 = arith.constant 0 : index
    %c0_12 = arith.constant 0 : index
    %21 = vector.load %arg7[%c0_11, %c0_12] : memref<32x64xbf16, #tpu.memory_space<vmem>>, vector<32x64xbf16>
    %c0_13 = arith.constant 0 : index
    %c0_14 = arith.constant 0 : index
    %22 = vector.load %arg8[%c0_13, %c0_14] : memref<64x32xbf16, #tpu.memory_space<vmem>>, vector<64x32xbf16>
    %c0_15 = arith.constant 0 : index
    %c0_16 = arith.constant 0 : index
    %23 = vector.load %arg9[%c0_15, %c0_16] : memref<32x128xbf16, #tpu.memory_space<vmem>>, vector<32x128xbf16>
    %c0_17 = arith.constant 0 : index
    %c0_18 = arith.constant 0 : index
    %24 = vector.load %arg2[%c0_17, %c0_18] : memref<128x32xf32, #tpu.memory_space<vmem>>, vector<128x32xf32>
    %25 = arith.truncf %24 : vector<128x32xf32> to vector<128x32xbf16>
    %c0_19 = arith.constant 0 : index
    %c0_20 = arith.constant 0 : index
    %c0_21 = arith.constant 0 : index
    %26 = vector.load %arg1[%c0_19, %c0_20, %c0_21] : memref<1x16x64xbf16, #tpu.memory_space<vmem>>, vector<1x16x64xbf16>
    %27 = vector.shape_cast %26 : vector<1x16x64xbf16> to vector<16x64xbf16>
    %28 = arith.extf %27 : vector<16x64xbf16> to vector<16x64xf32>
    %29 = vector.extract_strided_slice %28 {offsets = [0, 0], sizes = [16, 32], strides = [1, 1]} : vector<16x64xf32> to vector<16x32xf32>
    %30 = vector.extract_strided_slice %29 {offsets = [0, 0], sizes = [16, 8], strides = [1, 1]} : vector<16x32xf32> to vector<16x8xf32>
    %31 = vector.shape_cast %30 : vector<16x8xf32> to vector<1x16x8xf32>
    %32 = vector.extract_strided_slice %29 {offsets = [0, 8], sizes = [16, 8], strides = [1, 1]} : vector<16x32xf32> to vector<16x8xf32>
    %33 = vector.shape_cast %32 : vector<16x8xf32> to vector<1x16x8xf32>
    %34 = vector.extract_strided_slice %29 {offsets = [0, 16], sizes = [16, 8], strides = [1, 1]} : vector<16x32xf32> to vector<16x8xf32>
    %35 = vector.shape_cast %34 : vector<16x8xf32> to vector<1x16x8xf32>
    %36 = vector.extract_strided_slice %29 {offsets = [0, 24], sizes = [16, 8], strides = [1, 1]} : vector<16x32xf32> to vector<16x8xf32>
    %37 = vector.shape_cast %36 : vector<16x8xf32> to vector<1x16x8xf32>
    %38 = tpu.concatenate %31, %33, %35, %37 in 0 : vector<1x16x8xf32>, vector<1x16x8xf32>, vector<1x16x8xf32>, vector<1x16x8xf32> -> vector<4x16x8xf32>
    %39 = arith.truncf %38 : vector<4x16x8xf32> to vector<4x16x8xbf16>
    %40 = vector.extract_strided_slice %28 {offsets = [0, 32], sizes = [16, 32], strides = [1, 1]} : vector<16x64xf32> to vector<16x32xf32>
    %41 = vector.extract_strided_slice %40 {offsets = [0, 0], sizes = [16, 8], strides = [1, 1]} : vector<16x32xf32> to vector<16x8xf32>
    %42 = vector.shape_cast %41 : vector<16x8xf32> to vector<1x16x8xf32>
    %43 = vector.extract_strided_slice %40 {offsets = [0, 8], sizes = [16, 8], strides = [1, 1]} : vector<16x32xf32> to vector<16x8xf32>
    %44 = vector.shape_cast %43 : vector<16x8xf32> to vector<1x16x8xf32>
    %45 = vector.extract_strided_slice %40 {offsets = [0, 16], sizes = [16, 8], strides = [1, 1]} : vector<16x32xf32> to vector<16x8xf32>
    %46 = vector.shape_cast %45 : vector<16x8xf32> to vector<1x16x8xf32>
    %47 = vector.extract_strided_slice %40 {offsets = [0, 24], sizes = [16, 8], strides = [1, 1]} : vector<16x32xf32> to vector<16x8xf32>
    %48 = vector.shape_cast %47 : vector<16x8xf32> to vector<1x16x8xf32>
    %49 = tpu.concatenate %42, %44, %46, %48 in 0 : vector<1x16x8xf32>, vector<1x16x8xf32>, vector<1x16x8xf32>, vector<1x16x8xf32> -> vector<4x16x8xf32>
    %50 = arith.truncf %49 : vector<4x16x8xf32> to vector<4x16x8xbf16>
    %51 = tpu.iota {dimensions = array<i32: 1>} : vector<1x128xi32>
    %52 = arith.sitofp %51 : vector<1x128xi32> to vector<1x128xf32>
    %53 = tpu.iota {dimensions = array<i32: 1>} : vector<1x5xi32>
    %54 = tpu.iota {dimensions = array<i32: 0>} : vector<8x1xi32>
    %55 = tpu.iota {dimensions = array<i32: 2>} : vector<1x1x8xi32>
    %c0_i32 = arith.constant 0 : i32
    %56 = vector.broadcast %c0_i32 : i32 to vector<1x1xi32>
    %c0_i32_22 = arith.constant 0 : i32
    %57 = vector.broadcast %c0_i32_22 : i32 to vector<1x5xi32>
    %cst = arith.constant 0.000000e+00 : f32
    %58 = vector.broadcast %cst : f32 to vector<8x32xf32>
    %cst_23 = arith.constant 0.000000e+00 : f32
    %59 = vector.broadcast %cst_23 : f32 to vector<8x32xf32>
    %c0_i32_24 = arith.constant 0 : i32
    %c4_i32 = arith.constant 4 : i32
    %60 = arith.addi %c0_i32_24, %c4_i32 : i32
    %c1_i32 = arith.constant 1 : i32
    %61:4 = scf.for %arg13 = %c0_i32_24 to %60 step %c1_i32 iter_args(%arg14 = %56, %arg15 = %57, %arg16 = %58, %arg17 = %59) -> (vector<1x1xi32>, vector<1x5xi32>, vector<8x32xf32>, vector<8x32xf32>)  : i32 {
      %65 = vector.broadcast %arg14 : vector<1x1xi32> to vector<1x128xi32>
      %66 = arith.cmpi eq, %51, %65 : vector<1x128xi32>
      %cst_29 = arith.constant 1.000000e+00 : f32
      %cst_30 = arith.constant 0.000000e+00 : f32
      %67 = vector.broadcast %cst_29 : f32 to vector<1x128xf32>
      %68 = vector.broadcast %cst_30 : f32 to vector<1x128xf32>
      %69 = arith.select %66, %67, %68 : vector<1x128xi1>, vector<1x128xf32>
      %70 = arith.truncf %69 : vector<1x128xf32> to vector<1x128xbf16>
      %cst_31 = arith.constant dense<0.000000e+00> : vector<1x32xf32>
      %71 = tpu.matmul %70, %25, %cst_31 {dimension_numbers = #tpu.dot_dimension_numbers<[1], [0], [0], [1], [0, 0, 1, 1], [], []>} : vector<1x128xbf16>, vector<128x32xbf16>, vector<1x32xf32> -> vector<1x32xf32>
      %cst_32 = arith.constant dense<0.000000e+00> : vector<1xf32>
      %72 = vector.multi_reduction <add>, %71, %cst_32 [1] : vector<1x32xf32> to vector<1xf32>
      %73 = vector.shape_cast %72 : vector<1xf32> to vector<1x1xf32>
      %cst_33 = arith.constant 3.200000e+01 : f32
      %74 = vector.broadcast %cst_33 : f32 to vector<1x1xf32>
      %75 = arith.divf %73, %74 : vector<1x1xf32>
      %76 = vector.broadcast %75 : vector<1x1xf32> to vector<1x32xf32>
      %77 = arith.subf %71, %76 : vector<1x32xf32>
      %78 = arith.mulf %77, %77 : vector<1x32xf32>
      %cst_34 = arith.constant dense<0.000000e+00> : vector<1xf32>
      %79 = vector.multi_reduction <add>, %78, %cst_34 [1] : vector<1x32xf32> to vector<1xf32>
      %80 = vector.shape_cast %79 : vector<1xf32> to vector<1x1xf32>
      %cst_35 = arith.constant 3.200000e+01 : f32
      %81 = vector.broadcast %cst_35 : f32 to vector<1x1xf32>
      %82 = arith.divf %80, %81 : vector<1x1xf32>
      %83 = vector.broadcast %75 : vector<1x1xf32> to vector<1x32xf32>
      %84 = arith.subf %71, %83 : vector<1x32xf32>
      %cst_36 = arith.constant 9.99999997E-7 : f32
      %85 = vector.broadcast %cst_36 : f32 to vector<1x1xf32>
      %86 = arith.addf %82, %85 : vector<1x1xf32>
      %87 = math.rsqrt %86 : vector<1x1xf32>
      %88 = vector.broadcast %87 : vector<1x1xf32> to vector<1x32xf32>
      %89 = arith.mulf %84, %88 : vector<1x32xf32>
      %90 = arith.mulf %89, %2 : vector<1x32xf32>
      %91 = arith.addf %90, %3 : vector<1x32xf32>
      %92 = arith.truncf %91 : vector<1x32xf32> to vector<1x32xbf16>
      %cst_37 = arith.constant dense<0.000000e+00> : vector<1x96xf32>
      %93 = tpu.matmul %92, %17, %cst_37 {dimension_numbers = #tpu.dot_dimension_numbers<[1], [0], [0], [1], [0, 0, 1, 1], [], []>} : vector<1x32xbf16>, vector<32x96xbf16>, vector<1x96xf32> -> vector<1x96xf32>
      %94 = arith.addf %93, %10 : vector<1x96xf32>
      %95 = vector.extract_strided_slice %94 {offsets = [0, 0], sizes = [1, 32], strides = [1, 1]} : vector<1x96xf32> to vector<1x32xf32>
      %96 = vector.extract_strided_slice %94 {offsets = [0, 32], sizes = [1, 32], strides = [1, 1]} : vector<1x96xf32> to vector<1x32xf32>
      %97 = vector.extract_strided_slice %94 {offsets = [0, 64], sizes = [1, 32], strides = [1, 1]} : vector<1x96xf32> to vector<1x32xf32>
      %98 = vector.broadcast %arg13 : i32 to vector<8x1xi32>
      %99 = arith.cmpi eq, %54, %98 : vector<8x1xi32>
      %100 = vector.shape_cast %99 : vector<8x1xi1> to vector<8x1xi1>
      %101 = vector.broadcast %100 : vector<8x1xi1> to vector<8x32xi1>
      %102 = vector.shape_cast %96 : vector<1x32xf32> to vector<1x32xf32>
      %103 = vector.broadcast %102 : vector<1x32xf32> to vector<8x32xf32>
      %104 = arith.select %101, %103, %arg16 : vector<8x32xi1>, vector<8x32xf32>
      %105 = vector.broadcast %arg13 : i32 to vector<8x1xi32>
      %106 = arith.cmpi eq, %54, %105 : vector<8x1xi32>
      %107 = vector.shape_cast %106 : vector<8x1xi1> to vector<8x1xi1>
      %108 = vector.broadcast %107 : vector<8x1xi1> to vector<8x32xi1>
      %109 = vector.shape_cast %97 : vector<1x32xf32> to vector<1x32xf32>
      %110 = vector.broadcast %109 : vector<1x32xf32> to vector<8x32xf32>
      %111 = arith.select %108, %110, %arg17 : vector<8x32xi1>, vector<8x32xf32>
      %cst_38 = arith.constant 0.353553385 : f32
      %112 = vector.broadcast %cst_38 : f32 to vector<1x32xf32>
      %113 = arith.mulf %95, %112 : vector<1x32xf32>
      %114 = vector.extract_strided_slice %113 {offsets = [0, 0], sizes = [1, 8], strides = [1, 1]} : vector<1x32xf32> to vector<1x8xf32>
      %115 = vector.shape_cast %114 : vector<1x8xf32> to vector<1x1x8xf32>
      %116 = vector.extract_strided_slice %113 {offsets = [0, 8], sizes = [1, 8], strides = [1, 1]} : vector<1x32xf32> to vector<1x8xf32>
      %117 = vector.shape_cast %116 : vector<1x8xf32> to vector<1x1x8xf32>
      %118 = vector.extract_strided_slice %113 {offsets = [0, 16], sizes = [1, 8], strides = [1, 1]} : vector<1x32xf32> to vector<1x8xf32>
      %119 = vector.shape_cast %118 : vector<1x8xf32> to vector<1x1x8xf32>
      %120 = vector.extract_strided_slice %113 {offsets = [0, 24], sizes = [1, 8], strides = [1, 1]} : vector<1x32xf32> to vector<1x8xf32>
      %121 = vector.shape_cast %120 : vector<1x8xf32> to vector<1x1x8xf32>
      %122 = tpu.concatenate %115, %117, %119, %121 in 0 : vector<1x1x8xf32>, vector<1x1x8xf32>, vector<1x1x8xf32>, vector<1x1x8xf32> -> vector<4x1x8xf32>
      %123 = arith.truncf %122 : vector<4x1x8xf32> to vector<4x1x8xbf16>
      %124 = vector.extract_strided_slice %104 {offsets = [0, 0], sizes = [8, 8], strides = [1, 1]} : vector<8x32xf32> to vector<8x8xf32>
      %125 = vector.shape_cast %124 : vector<8x8xf32> to vector<1x8x8xf32>
      %126 = vector.extract_strided_slice %104 {offsets = [0, 8], sizes = [8, 8], strides = [1, 1]} : vector<8x32xf32> to vector<8x8xf32>
      %127 = vector.shape_cast %126 : vector<8x8xf32> to vector<1x8x8xf32>
      %128 = vector.extract_strided_slice %104 {offsets = [0, 16], sizes = [8, 8], strides = [1, 1]} : vector<8x32xf32> to vector<8x8xf32>
      %129 = vector.shape_cast %128 : vector<8x8xf32> to vector<1x8x8xf32>
      %130 = vector.extract_strided_slice %104 {offsets = [0, 24], sizes = [8, 8], strides = [1, 1]} : vector<8x32xf32> to vector<8x8xf32>
      %131 = vector.shape_cast %130 : vector<8x8xf32> to vector<1x8x8xf32>
      %132 = tpu.concatenate %125, %127, %129, %131 in 0 : vector<1x8x8xf32>, vector<1x8x8xf32>, vector<1x8x8xf32>, vector<1x8x8xf32> -> vector<4x8x8xf32>
      %133 = arith.truncf %132 : vector<4x8x8xf32> to vector<4x8x8xbf16>
      %134 = vector.extract_strided_slice %111 {offsets = [0, 0], sizes = [8, 8], strides = [1, 1]} : vector<8x32xf32> to vector<8x8xf32>
      %135 = vector.shape_cast %134 : vector<8x8xf32> to vector<1x8x8xf32>
      %136 = vector.extract_strided_slice %111 {offsets = [0, 8], sizes = [8, 8], strides = [1, 1]} : vector<8x32xf32> to vector<8x8xf32>
      %137 = vector.shape_cast %136 : vector<8x8xf32> to vector<1x8x8xf32>
      %138 = vector.extract_strided_slice %111 {offsets = [0, 16], sizes = [8, 8], strides = [1, 1]} : vector<8x32xf32> to vector<8x8xf32>
      %139 = vector.shape_cast %138 : vector<8x8xf32> to vector<1x8x8xf32>
      %140 = vector.extract_strided_slice %111 {offsets = [0, 24], sizes = [8, 8], strides = [1, 1]} : vector<8x32xf32> to vector<8x8xf32>
      %141 = vector.shape_cast %140 : vector<8x8xf32> to vector<1x8x8xf32>
      %142 = tpu.concatenate %135, %137, %139, %141 in 0 : vector<1x8x8xf32>, vector<1x8x8xf32>, vector<1x8x8xf32>, vector<1x8x8xf32> -> vector<4x8x8xf32>
      %143 = arith.truncf %142 : vector<4x8x8xf32> to vector<4x8x8xbf16>
      %144 = vector.broadcast %arg13 : i32 to vector<1x1x8xi32>
      %145 = arith.cmpi sle, %55, %144 : vector<1x1x8xi32>
      %cst_39 = arith.constant dense<0.000000e+00> : vector<4x1x8xf32>
      %146 = tpu.matmul %123, %133, %cst_39 {dimension_numbers = #tpu.dot_dimension_numbers<[2], [2], [1], [1], [0, 0, 0, 1, 1, 1], [0], [0]>} : vector<4x1x8xbf16>, vector<4x8x8xbf16>, vector<4x1x8xf32> -> vector<4x1x8xf32>
      %cst_40 = arith.constant -1.000000e+30 : f32
      %147 = vector.shape_cast %145 : vector<1x1x8xi1> to vector<1x1x8xi1>
      %148 = vector.broadcast %147 : vector<1x1x8xi1> to vector<4x1x8xi1>
      %149 = vector.broadcast %cst_40 : f32 to vector<4x1x8xf32>
      %150 = arith.select %148, %146, %149 : vector<4x1x8xi1>, vector<4x1x8xf32>
      %cst_41 = arith.constant dense<0xFF800000> : vector<4x1xf32>
      %151 = vector.multi_reduction <maximumf>, %150, %cst_41 [2] : vector<4x1x8xf32> to vector<4x1xf32>
      %152 = vector.shape_cast %151 : vector<4x1xf32> to vector<4x1x1xf32>
      %153 = vector.broadcast %152 : vector<4x1x1xf32> to vector<4x1x8xf32>
      %154 = arith.subf %150, %153 : vector<4x1x8xf32>
      %155 = math.exp %154 : vector<4x1x8xf32>
      %cst_42 = arith.constant dense<0.000000e+00> : vector<4x1xf32>
      %156 = vector.multi_reduction <add>, %155, %cst_42 [2] : vector<4x1x8xf32> to vector<4x1xf32>
      %157 = vector.shape_cast %156 : vector<4x1xf32> to vector<4x1x1xf32>
      %158 = arith.truncf %155 : vector<4x1x8xf32> to vector<4x1x8xbf16>
      %cst_43 = arith.constant dense<0.000000e+00> : vector<4x1x8xf32>
      %159 = tpu.matmul %158, %143, %cst_43 {dimension_numbers = #tpu.dot_dimension_numbers<[2], [1], [1], [2], [0, 0, 0, 1, 1, 2], [0], [0]>} : vector<4x1x8xbf16>, vector<4x8x8xbf16>, vector<4x1x8xf32> -> vector<4x1x8xf32>
      %160 = tpu.reciprocal %157 {approx = true} : vector<4x1x1xf32> -> vector<4x1x1xf32>
      %161 = vector.broadcast %160 : vector<4x1x1xf32> to vector<4x1x8xf32>
      %162 = arith.mulf %159, %161 : vector<4x1x8xf32>
      %163 = vector.extract_strided_slice %162 {offsets = [0, 0, 0], sizes = [1, 1, 8], strides = [1, 1, 1]} : vector<4x1x8xf32> to vector<1x1x8xf32>
      %164 = vector.shape_cast %163 : vector<1x1x8xf32> to vector<1x8xf32>
      %165 = vector.extract_strided_slice %162 {offsets = [1, 0, 0], sizes = [1, 1, 8], strides = [1, 1, 1]} : vector<4x1x8xf32> to vector<1x1x8xf32>
      %166 = vector.shape_cast %165 : vector<1x1x8xf32> to vector<1x8xf32>
      %167 = vector.extract_strided_slice %162 {offsets = [2, 0, 0], sizes = [1, 1, 8], strides = [1, 1, 1]} : vector<4x1x8xf32> to vector<1x1x8xf32>
      %168 = vector.shape_cast %167 : vector<1x1x8xf32> to vector<1x8xf32>
      %169 = vector.extract_strided_slice %162 {offsets = [3, 0, 0], sizes = [1, 1, 8], strides = [1, 1, 1]} : vector<4x1x8xf32> to vector<1x1x8xf32>
      %170 = vector.shape_cast %169 : vector<1x1x8xf32> to vector<1x8xf32>
      %171 = tpu.concatenate %164, %166, %168, %170 in 1 : vector<1x8xf32>, vector<1x8xf32>, vector<1x8xf32>, vector<1x8xf32> -> vector<1x32xf32>
      %172 = arith.truncf %171 : vector<1x32xf32> to vector<1x32xbf16>
      %cst_44 = arith.constant dense<0.000000e+00> : vector<1x32xf32>
      %173 = tpu.matmul %172, %18, %cst_44 {dimension_numbers = #tpu.dot_dimension_numbers<[1], [0], [0], [1], [0, 0, 1, 1], [], []>} : vector<1x32xbf16>, vector<32x32xbf16>, vector<1x32xf32> -> vector<1x32xf32>
      %174 = arith.addf %173, %11 : vector<1x32xf32>
      %175 = arith.addf %71, %174 : vector<1x32xf32>
      %cst_45 = arith.constant dense<0.000000e+00> : vector<1xf32>
      %176 = vector.multi_reduction <add>, %175, %cst_45 [1] : vector<1x32xf32> to vector<1xf32>
      %177 = vector.shape_cast %176 : vector<1xf32> to vector<1x1xf32>
      %cst_46 = arith.constant 3.200000e+01 : f32
      %178 = vector.broadcast %cst_46 : f32 to vector<1x1xf32>
      %179 = arith.divf %177, %178 : vector<1x1xf32>
      %180 = vector.broadcast %179 : vector<1x1xf32> to vector<1x32xf32>
      %181 = arith.subf %175, %180 : vector<1x32xf32>
      %182 = arith.mulf %181, %181 : vector<1x32xf32>
      %cst_47 = arith.constant dense<0.000000e+00> : vector<1xf32>
      %183 = vector.multi_reduction <add>, %182, %cst_47 [1] : vector<1x32xf32> to vector<1xf32>
      %184 = vector.shape_cast %183 : vector<1xf32> to vector<1x1xf32>
      %cst_48 = arith.constant 3.200000e+01 : f32
      %185 = vector.broadcast %cst_48 : f32 to vector<1x1xf32>
      %186 = arith.divf %184, %185 : vector<1x1xf32>
      %187 = vector.broadcast %179 : vector<1x1xf32> to vector<1x32xf32>
      %188 = arith.subf %175, %187 : vector<1x32xf32>
      %cst_49 = arith.constant 9.99999997E-7 : f32
      %189 = vector.broadcast %cst_49 : f32 to vector<1x1xf32>
      %190 = arith.addf %186, %189 : vector<1x1xf32>
      %191 = math.rsqrt %190 : vector<1x1xf32>
      %192 = vector.broadcast %191 : vector<1x1xf32> to vector<1x32xf32>
      %193 = arith.mulf %188, %192 : vector<1x32xf32>
      %194 = arith.mulf %193, %4 : vector<1x32xf32>
      %195 = arith.addf %194, %5 : vector<1x32xf32>
      %196 = arith.truncf %195 : vector<1x32xf32> to vector<1x32xbf16>
      %cst_50 = arith.constant dense<0.000000e+00> : vector<1x32xf32>
      %197 = tpu.matmul %196, %19, %cst_50 {dimension_numbers = #tpu.dot_dimension_numbers<[1], [0], [0], [1], [0, 0, 1, 1], [], []>} : vector<1x32xbf16>, vector<32x32xbf16>, vector<1x32xf32> -> vector<1x32xf32>
      %198 = arith.addf %197, %12 : vector<1x32xf32>
      %cst_51 = arith.constant 0.353553385 : f32
      %199 = vector.broadcast %cst_51 : f32 to vector<1x32xf32>
      %200 = arith.mulf %198, %199 : vector<1x32xf32>
      %201 = vector.extract_strided_slice %200 {offsets = [0, 0], sizes = [1, 8], strides = [1, 1]} : vector<1x32xf32> to vector<1x8xf32>
      %202 = vector.shape_cast %201 : vector<1x8xf32> to vector<1x1x8xf32>
      %203 = vector.extract_strided_slice %200 {offsets = [0, 8], sizes = [1, 8], strides = [1, 1]} : vector<1x32xf32> to vector<1x8xf32>
      %204 = vector.shape_cast %203 : vector<1x8xf32> to vector<1x1x8xf32>
      %205 = vector.extract_strided_slice %200 {offsets = [0, 16], sizes = [1, 8], strides = [1, 1]} : vector<1x32xf32> to vector<1x8xf32>
      %206 = vector.shape_cast %205 : vector<1x8xf32> to vector<1x1x8xf32>
      %207 = vector.extract_strided_slice %200 {offsets = [0, 24], sizes = [1, 8], strides = [1, 1]} : vector<1x32xf32> to vector<1x8xf32>
      %208 = vector.shape_cast %207 : vector<1x8xf32> to vector<1x1x8xf32>
      %209 = tpu.concatenate %202, %204, %206, %208 in 0 : vector<1x1x8xf32>, vector<1x1x8xf32>, vector<1x1x8xf32>, vector<1x1x8xf32> -> vector<4x1x8xf32>
      %210 = arith.truncf %209 : vector<4x1x8xf32> to vector<4x1x8xbf16>
      %cst_52 = arith.constant dense<0.000000e+00> : vector<4x1x16xf32>
      %211 = tpu.matmul %210, %39, %cst_52 {dimension_numbers = #tpu.dot_dimension_numbers<[2], [2], [1], [1], [0, 0, 0, 1, 1, 1], [0], [0]>} : vector<4x1x8xbf16>, vector<4x16x8xbf16>, vector<4x1x16xf32> -> vector<4x1x16xf32>
      %cst_53 = arith.constant dense<0xFF800000> : vector<4x1xf32>
      %212 = vector.multi_reduction <maximumf>, %211, %cst_53 [2] : vector<4x1x16xf32> to vector<4x1xf32>
      %213 = vector.shape_cast %212 : vector<4x1xf32> to vector<4x1x1xf32>
      %214 = vector.broadcast %213 : vector<4x1x1xf32> to vector<4x1x16xf32>
      %215 = arith.subf %211, %214 : vector<4x1x16xf32>
      %216 = math.exp %215 : vector<4x1x16xf32>
      %cst_54 = arith.constant dense<0.000000e+00> : vector<4x1xf32>
      %217 = vector.multi_reduction <add>, %216, %cst_54 [2] : vector<4x1x16xf32> to vector<4x1xf32>
      %218 = vector.shape_cast %217 : vector<4x1xf32> to vector<4x1x1xf32>
      %219 = arith.truncf %216 : vector<4x1x16xf32> to vector<4x1x16xbf16>
      %cst_55 = arith.constant dense<0.000000e+00> : vector<4x1x8xf32>
      %220 = tpu.matmul %219, %50, %cst_55 {dimension_numbers = #tpu.dot_dimension_numbers<[2], [1], [1], [2], [0, 0, 0, 1, 1, 2], [0], [0]>} : vector<4x1x16xbf16>, vector<4x16x8xbf16>, vector<4x1x8xf32> -> vector<4x1x8xf32>
      %221 = tpu.reciprocal %218 {approx = true} : vector<4x1x1xf32> -> vector<4x1x1xf32>
      %222 = vector.broadcast %221 : vector<4x1x1xf32> to vector<4x1x8xf32>
      %223 = arith.mulf %220, %222 : vector<4x1x8xf32>
      %224 = vector.extract_strided_slice %223 {offsets = [0, 0, 0], sizes = [1, 1, 8], strides = [1, 1, 1]} : vector<4x1x8xf32> to vector<1x1x8xf32>
      %225 = vector.shape_cast %224 : vector<1x1x8xf32> to vector<1x8xf32>
      %226 = vector.extract_strided_slice %223 {offsets = [1, 0, 0], sizes = [1, 1, 8], strides = [1, 1, 1]} : vector<4x1x8xf32> to vector<1x1x8xf32>
      %227 = vector.shape_cast %226 : vector<1x1x8xf32> to vector<1x8xf32>
      %228 = vector.extract_strided_slice %223 {offsets = [2, 0, 0], sizes = [1, 1, 8], strides = [1, 1, 1]} : vector<4x1x8xf32> to vector<1x1x8xf32>
      %229 = vector.shape_cast %228 : vector<1x1x8xf32> to vector<1x8xf32>
      %230 = vector.extract_strided_slice %223 {offsets = [3, 0, 0], sizes = [1, 1, 8], strides = [1, 1, 1]} : vector<4x1x8xf32> to vector<1x1x8xf32>
      %231 = vector.shape_cast %230 : vector<1x1x8xf32> to vector<1x8xf32>
      %232 = tpu.concatenate %225, %227, %229, %231 in 1 : vector<1x8xf32>, vector<1x8xf32>, vector<1x8xf32>, vector<1x8xf32> -> vector<1x32xf32>
      %233 = arith.truncf %232 : vector<1x32xf32> to vector<1x32xbf16>
      %cst_56 = arith.constant dense<0.000000e+00> : vector<1x32xf32>
      %234 = tpu.matmul %233, %20, %cst_56 {dimension_numbers = #tpu.dot_dimension_numbers<[1], [0], [0], [1], [0, 0, 1, 1], [], []>} : vector<1x32xbf16>, vector<32x32xbf16>, vector<1x32xf32> -> vector<1x32xf32>
      %235 = arith.addf %234, %13 : vector<1x32xf32>
      %236 = arith.addf %175, %235 : vector<1x32xf32>
      %cst_57 = arith.constant dense<0.000000e+00> : vector<1xf32>
      %237 = vector.multi_reduction <add>, %236, %cst_57 [1] : vector<1x32xf32> to vector<1xf32>
      %238 = vector.shape_cast %237 : vector<1xf32> to vector<1x1xf32>
      %cst_58 = arith.constant 3.200000e+01 : f32
      %239 = vector.broadcast %cst_58 : f32 to vector<1x1xf32>
      %240 = arith.divf %238, %239 : vector<1x1xf32>
      %241 = vector.broadcast %240 : vector<1x1xf32> to vector<1x32xf32>
      %242 = arith.subf %236, %241 : vector<1x32xf32>
      %243 = arith.mulf %242, %242 : vector<1x32xf32>
      %cst_59 = arith.constant dense<0.000000e+00> : vector<1xf32>
      %244 = vector.multi_reduction <add>, %243, %cst_59 [1] : vector<1x32xf32> to vector<1xf32>
      %245 = vector.shape_cast %244 : vector<1xf32> to vector<1x1xf32>
      %cst_60 = arith.constant 3.200000e+01 : f32
      %246 = vector.broadcast %cst_60 : f32 to vector<1x1xf32>
      %247 = arith.divf %245, %246 : vector<1x1xf32>
      %248 = vector.broadcast %240 : vector<1x1xf32> to vector<1x32xf32>
      %249 = arith.subf %236, %248 : vector<1x32xf32>
      %cst_61 = arith.constant 9.99999997E-7 : f32
      %250 = vector.broadcast %cst_61 : f32 to vector<1x1xf32>
      %251 = arith.addf %247, %250 : vector<1x1xf32>
      %252 = math.rsqrt %251 : vector<1x1xf32>
      %253 = vector.broadcast %252 : vector<1x1xf32> to vector<1x32xf32>
      %254 = arith.mulf %249, %253 : vector<1x32xf32>
      %255 = arith.mulf %254, %6 : vector<1x32xf32>
      %256 = arith.addf %255, %7 : vector<1x32xf32>
      %257 = arith.truncf %256 : vector<1x32xf32> to vector<1x32xbf16>
      %cst_62 = arith.constant dense<0.000000e+00> : vector<1x64xf32>
      %258 = tpu.matmul %257, %21, %cst_62 {dimension_numbers = #tpu.dot_dimension_numbers<[1], [0], [0], [1], [0, 0, 1, 1], [], []>} : vector<1x32xbf16>, vector<32x64xbf16>, vector<1x64xf32> -> vector<1x64xf32>
      %259 = arith.addf %258, %14 : vector<1x64xf32>
      %260 = arith.mulf %259, %259 : vector<1x64xf32>
      %261 = arith.mulf %259, %260 : vector<1x64xf32>
      %cst_63 = arith.constant 4.471500e-02 : f32
      %262 = vector.broadcast %cst_63 : f32 to vector<1x64xf32>
      %263 = arith.mulf %262, %261 : vector<1x64xf32>
      %264 = arith.addf %259, %263 : vector<1x64xf32>
      %cst_64 = arith.constant 0.797884583 : f32
      %265 = vector.broadcast %cst_64 : f32 to vector<1x64xf32>
      %266 = arith.mulf %265, %264 : vector<1x64xf32>
      %267 = math.tanh %266 : vector<1x64xf32>
      %cst_65 = arith.constant 1.000000e+00 : f32
      %268 = vector.broadcast %cst_65 : f32 to vector<1x64xf32>
      %269 = arith.addf %268, %267 : vector<1x64xf32>
      %cst_66 = arith.constant 5.000000e-01 : f32
      %270 = vector.broadcast %cst_66 : f32 to vector<1x64xf32>
      %271 = arith.mulf %270, %269 : vector<1x64xf32>
      %272 = arith.mulf %259, %271 : vector<1x64xf32>
      %273 = arith.truncf %272 : vector<1x64xf32> to vector<1x64xbf16>
      %cst_67 = arith.constant dense<0.000000e+00> : vector<1x32xf32>
      %274 = tpu.matmul %273, %22, %cst_67 {dimension_numbers = #tpu.dot_dimension_numbers<[1], [0], [0], [1], [0, 0, 1, 1], [], []>} : vector<1x64xbf16>, vector<64x32xbf16>, vector<1x32xf32> -> vector<1x32xf32>
      %275 = arith.addf %274, %15 : vector<1x32xf32>
      %276 = arith.addf %236, %275 : vector<1x32xf32>
      %cst_68 = arith.constant dense<0.000000e+00> : vector<1xf32>
      %277 = vector.multi_reduction <add>, %276, %cst_68 [1] : vector<1x32xf32> to vector<1xf32>
      %278 = vector.shape_cast %277 : vector<1xf32> to vector<1x1xf32>
      %cst_69 = arith.constant 3.200000e+01 : f32
      %279 = vector.broadcast %cst_69 : f32 to vector<1x1xf32>
      %280 = arith.divf %278, %279 : vector<1x1xf32>
      %281 = vector.broadcast %280 : vector<1x1xf32> to vector<1x32xf32>
      %282 = arith.subf %276, %281 : vector<1x32xf32>
      %283 = arith.mulf %282, %282 : vector<1x32xf32>
      %cst_70 = arith.constant dense<0.000000e+00> : vector<1xf32>
      %284 = vector.multi_reduction <add>, %283, %cst_70 [1] : vector<1x32xf32> to vector<1xf32>
      %285 = vector.shape_cast %284 : vector<1xf32> to vector<1x1xf32>
      %cst_71 = arith.constant 3.200000e+01 : f32
      %286 = vector.broadcast %cst_71 : f32 to vector<1x1xf32>
      %287 = arith.divf %285, %286 : vector<1x1xf32>
      %288 = vector.broadcast %280 : vector<1x1xf32> to vector<1x32xf32>
      %289 = arith.subf %276, %288 : vector<1x32xf32>
      %cst_72 = arith.constant 9.99999997E-7 : f32
      %290 = vector.broadcast %cst_72 : f32 to vector<1x1xf32>
      %291 = arith.addf %287, %290 : vector<1x1xf32>
      %292 = math.rsqrt %291 : vector<1x1xf32>
      %293 = vector.broadcast %292 : vector<1x1xf32> to vector<1x32xf32>
      %294 = arith.mulf %289, %293 : vector<1x32xf32>
      %295 = arith.mulf %294, %8 : vector<1x32xf32>
      %296 = arith.addf %295, %9 : vector<1x32xf32>
      %297 = arith.truncf %296 : vector<1x32xf32> to vector<1x32xbf16>
      %cst_73 = arith.constant dense<0.000000e+00> : vector<1x128xf32>
      %298 = tpu.matmul %297, %23, %cst_73 {dimension_numbers = #tpu.dot_dimension_numbers<[1], [0], [0], [1], [0, 0, 1, 1], [], []>} : vector<1x32xbf16>, vector<32x128xbf16>, vector<1x128xf32> -> vector<1x128xf32>
      %299 = arith.addf %298, %16 : vector<1x128xf32>
      %cst_74 = arith.constant dense<0xFF800000> : vector<1xf32>
      %300 = vector.multi_reduction <maximumf>, %299, %cst_74 [1] : vector<1x128xf32> to vector<1xf32>
      %301 = vector.shape_cast %300 : vector<1xf32> to vector<1x1xf32>
      %302 = vector.broadcast %301 : vector<1x1xf32> to vector<1x128xf32>
      %303 = arith.cmpf oge, %299, %302 : vector<1x128xf32>
      %cst_75 = arith.constant 1.280000e+02 : f32
      %304 = vector.broadcast %cst_75 : f32 to vector<1x128xf32>
      %305 = arith.select %303, %52, %304 : vector<1x128xi1>, vector<1x128xf32>
      %cst_76 = arith.constant dense<0x7F800000> : vector<1xf32>
      %306 = vector.multi_reduction <minimumf>, %305, %cst_76 [1] : vector<1x128xf32> to vector<1xf32>
      %307 = vector.shape_cast %306 : vector<1xf32> to vector<1x1xf32>
      %308 = arith.fptosi %307 : vector<1x1xf32> to vector<1x1xi32>
      %c1_i32_77 = arith.constant 1 : i32
      %309 = arith.addi %arg13, %c1_i32_77 : i32
      %310 = vector.broadcast %309 : i32 to vector<1x5xi32>
      %311 = arith.cmpi eq, %53, %310 : vector<1x5xi32>
      %312 = vector.shape_cast %308 : vector<1x1xi32> to vector<1x1xi32>
      %313 = vector.broadcast %312 : vector<1x1xi32> to vector<1x5xi32>
      %314 = arith.select %311, %313, %arg15 : vector<1x5xi1>, vector<1x5xi32>
      scf.yield %308, %314, %104, %111 : vector<1x1xi32>, vector<1x5xi32>, vector<8x32xf32>, vector<8x32xf32>
    }
    %c4_i32_25 = arith.constant 4 : i32
    %c0_26 = arith.constant 0 : index
    %c0_27 = arith.constant 0 : index
    %c0_28 = arith.constant 0 : index
    %62 = vector.load %arg12[%c0_26, %c0_27, %c0_28] : memref<1x1x5xi32, #tpu.memory_space<vmem>>, vector<1x1x5xi32>
    %63 = vector.shape_cast %62 : vector<1x1x5xi32> to vector<1x5xi32>
    %64 = vector.shape_cast %61#1 : vector<1x5xi32> to vector<1x1x5xi32>
    tpu.vector_store %arg12[%c0_26, %c0_27, %c0_28], %64 {strides = array<i32>} : memref<1x1x5xi32, #tpu.memory_space<vmem>>, vector<1x1x5xi32>,
    return
  }
  func.func @transform_0(%arg0: i32) -> (i32, i32, i32) {
    %c0_i32 = arith.constant 0 : i32
    %c0_i32_0 = arith.constant 0 : i32
    %c0_i32_1 = arith.constant 0 : i32
    return %arg0, %c0_i32, %c0_i32_0 : i32, i32, i32
  }
  func.func @transform_1(%arg0: i32) -> (i32, i32) {
    %c0_i32 = arith.constant 0 : i32
    %c0_i32_0 = arith.constant 0 : i32
    %c0_i32_1 = arith.constant 0 : i32
    return %c0_i32, %c0_i32_0 : i32, i32
  }
  func.func @transform_2(%arg0: i32) -> (i32, i32) {
    %c0_i32 = arith.constant 0 : i32
    %c0_i32_0 = arith.constant 0 : i32
    %c0_i32_1 = arith.constant 0 : i32
    return %c0_i32, %c0_i32_0 : i32, i32
  }
  func.func @transform_3(%arg0: i32) -> (i32, i32) {
    %c0_i32 = arith.constant 0 : i32
    %c0_i32_0 = arith.constant 0 : i32
    %c0_i32_1 = arith.constant 0 : i32
    return %c0_i32, %c0_i32_0 : i32, i32
  }
  func.func @transform_4(%arg0: i32) -> (i32, i32) {
    %c0_i32 = arith.constant 0 : i32
    %c0_i32_0 = arith.constant 0 : i32
    %c0_i32_1 = arith.constant 0 : i32
    return %c0_i32, %c0_i32_0 : i32, i32
  }
  func.func @transform_5(%arg0: i32) -> (i32, i32) {
    %c0_i32 = arith.constant 0 : i32
    %c0_i32_0 = arith.constant 0 : i32
    %c0_i32_1 = arith.constant 0 : i32
    return %c0_i32, %c0_i32_0 : i32, i32
  }
  func.func @transform_6(%arg0: i32) -> (i32, i32) {
    %c0_i32 = arith.constant 0 : i32
    %c0_i32_0 = arith.constant 0 : i32
    %c0_i32_1 = arith.constant 0 : i32
    return %c0_i32, %c0_i32_0 : i32, i32
  }
  func.func @transform_7(%arg0: i32) -> (i32, i32) {
    %c0_i32 = arith.constant 0 : i32
    %c0_i32_0 = arith.constant 0 : i32
    %c0_i32_1 = arith.constant 0 : i32
    return %c0_i32, %c0_i32_0 : i32, i32
  }
  func.func @transform_8(%arg0: i32) -> (i32, i32) {
    %c0_i32 = arith.constant 0 : i32
    %c0_i32_0 = arith.constant 0 : i32
    %c0_i32_1 = arith.constant 0 : i32
    return %c0_i32, %c0_i32_0 : i32, i32
  }
  func.func @transform_9(%arg0: i32) -> (i32, i32) {
    %c0_i32 = arith.constant 0 : i32
    %c0_i32_0 = arith.constant 0 : i32
    %c0_i32_1 = arith.constant 0 : i32
    return %c0_i32, %c0_i32_0 : i32, i32
  }
  func.func @transform_10(%arg0: i32) -> (i32, i32) {
    %c0_i32 = arith.constant 0 : i32
    %c0_i32_0 = arith.constant 0 : i32
    %c0_i32_1 = arith.constant 0 : i32
    return %c0_i32, %c0_i32_0 : i32, i32
  }
  func.func @transform_11(%arg0: i32) -> (i32, i32, i32) {
    %c0_i32 = arith.constant 0 : i32
    %c0_i32_0 = arith.constant 0 : i32
    %c0_i32_1 = arith.constant 0 : i32
    return %arg0, %c0_i32, %c0_i32_0 : i32, i32, i32
  }
}

</mosaic_0001>

<llo_original>
// kernel: flan_xl_vqa_forward.6
$region0: #{flan_xl_vqa_forward.6}
  #allocation0 [shape = 'u32[]', space=smem, size = 0x4, offset = 0x4, fixed_abs, tag = 'smem constant byte address 0x4 - core index']
  #allocation1 [shape = 'u32[144,128]{1,0:T(1,128)}', space=vmem, size = 0x12000, scoped, tag = 'internal scratch']
  %s0 = inlined_call_operand.vmem [shape: bf16[2,16,32], index: 0, kind: input, shape index: {}]
  %s1 = inlined_call_operand.vmem [shape: bf16[32,96], index: 1, kind: input, shape index: {}]
  %s2 = inlined_call_operand.vmem [shape: bf16[32,32], index: 2, kind: input, shape index: {}]
  %s3 = inlined_call_operand.vmem [shape: bf16[32,64], index: 3, kind: input, shape index: {}]
  %s4 = inlined_call_operand.vmem [shape: bf16[64,32], index: 4, kind: input, shape index: {}]
  %s5 = inlined_call_operand.vmem [shape: bf16[32,64], index: 5, kind: input, shape index: {}]
  %s6 = inlined_call_operand.vmem [shape: f32[6,32], index: 6, kind: input, shape index: {}]
  %s7 = inlined_call_operand.vmem [shape: f32[5,96], index: 7, kind: input, shape index: {}]
  %s8 = inlined_call_operand.vmem [shape: bf16[2,16,64], index: 8, kind: output, shape index: {}]
  %s9 = sld [smem:[#allocation0]]
  $region65: #{flan_xl_vqa_forward.6} parent=0
    _
  %s11 = ssub.s32 1, %s9
  %s12 = scalar_select 0, %s11, %s9
  loop: start=0, step=1, limit=4
  $region2: #{flan_xl_vqa_forward.6} parent=0 // loop_pre_header
    _
  $region3: #{flan_xl_vqa_forward.6} parent=0 // loop_header
    %s14 = sphi 0, %s18
    %p15 = scmp.ge.s32.totalorder %s14, 4
    %s24 = sphi 0, %s26
    %s27 = sphi 0, %s24
    %s28 = sphi 0, %s27
    %s44 = sphi 0, %s28
    %s48 = sphi 0, %s48
    %s50 = sphi 0, %s48
    %s51 = sphi 0, %s50
    %s65 = sphi 0, %s51
    %s69 = sphi 0, %s69
    %s71 = sphi 0, %s69
    %s72 = sphi 0, %s71
    %s86 = sphi 0, %s72
    %s90 = sphi 0, %s90
    %s92 = sphi 0, %s90
    %s93 = sphi 0, %s92
    %s107 = sphi 0, %s93
    %s111 = sphi 0, %s111
    %s113 = sphi 0, %s111
    %s114 = sphi 0, %s113
    %s128 = sphi 0, %s114
    %s132 = sphi 0, %s132
    %s134 = sphi 0, %s132
    %s135 = sphi 0, %s134
    %s149 = sphi 0, %s135
    %s153 = sphi 0, %s153
    %s155 = sphi 0, %s153
    %s156 = sphi 0, %s155
    %s170 = sphi 0, %s156
    %s174 = sphi 0, %s174
    %s176 = sphi 0, %s174
    %s177 = sphi 0, %s176
    %s191 = sphi 0, %s177
    %s197 = sphi 0, %s199
    %s200 = sphi 0, %s197
    %s201 = sphi 0, %s200
    %s217 = sphi 0, %s201
  $region4: #{flan_xl_vqa_forward.6} parent=0 // loop_header_branch
    %17 = sbr.rel (%p15) target = $region8
  $region5: #{flan_xl_vqa_forward.6} parent=0 // loop_body
    %s19 = ssub.s32 %s14, 1
    %s20 = ssub.s32 %s14, 2
    %s21 = sadd.s32 %s14, 1
    %s22 = ssub.s32 %s14, %s21
    %p23 = scmp.eq.s32.totalorder %s22, 0
    %s25 = sadd.s32 %s24, 1
    %s26 = scalar_select %p23, %s24, %s25
    %p29 = pneg %p23
    %p30 = scmp.eq.s32.totalorder %s14, 1
    %p31 = por %p29, %p30
    %p32 = scmp.ne.s32.totalorder %s24, %s27
    %p33 = scmp.eq.s32.totalorder %s14, 0
    %p34 = por %p32, %p33
    %p35 = scmp.ne.s32.totalorder %s24, %s27
    %p36 = scmp.eq.s32.totalorder %s19, 1
    %p37 = por %p35, %p36
    %p38 = scmp.ne.s32.totalorder %s27, %s28
    %p39 = scmp.eq.s32.totalorder %s19, 0
    %p40 = por %p38, %p39
    %p41 = scmp.ne.s32.totalorder %s27, %s28
    %p42 = scmp.eq.s32.totalorder %s20, 1
    %p43 = por %p41, %p42
    %p45 = scmp.ne.s32.totalorder %s28, %s44
    %p46 = scmp.eq.s32.totalorder %s20, 0
    %p47 = por %p45, %p46
    %s49 = sadd.s32 %s48, 1
    %p52 = scmp.eq.s32.totalorder %s14, 1
    %p53 = scmp.ne.s32.totalorder %s48, %s50
    %p54 = scmp.eq.s32.totalorder %s14, 0
    %p55 = por %p53, %p54
    %p56 = scmp.ne.s32.totalorder %s48, %s50
    %p57 = scmp.eq.s32.totalorder %s19, 1
    %p58 = por %p56, %p57
    %p59 = scmp.ne.s32.totalorder %s50, %s51
    %p60 = scmp.eq.s32.totalorder %s19, 0
    %p61 = por %p59, %p60
    %p62 = scmp.ne.s32.totalorder %s50, %s51
    %p63 = scmp.eq.s32.totalorder %s20, 1
    %p64 = por %p62, %p63
    %p66 = scmp.ne.s32.totalorder %s51, %s65
    %p67 = scmp.eq.s32.totalorder %s20, 0
    %p68 = por %p66, %p67
    %s70 = sadd.s32 %s69, 1
    %p73 = scmp.eq.s32.totalorder %s14, 1
    %p74 = scmp.ne.s32.totalorder %s69, %s71
    %p75 = scmp.eq.s32.totalorder %s14, 0
    %p76 = por %p74, %p75
    %p77 = scmp.ne.s32.totalorder %s69, %s71
    %p78 = scmp.eq.s32.totalorder %s19, 1
    %p79 = por %p77, %p78
    %p80 = scmp.ne.s32.totalorder %s71, %s72
    %p81 = scmp.eq.s32.totalorder %s19, 0
    %p82 = por %p80, %p81
    %p83 = scmp.ne.s32.totalorder %s71, %s72
    %p84 = scmp.eq.s32.totalorder %s20, 1
    %p85 = por %p83, %p84
    %p87 = scmp.ne.s32.totalorder %s72, %s86
    %p88 = scmp.eq.s32.totalorder %s20, 0
    %p89 = por %p87, %p88
    %s91 = sadd.s32 %s90, 1
    %p94 = scmp.eq.s32.totalorder %s14, 1
    %p95 = scmp.ne.s32.totalorder %s90, %s92
    %p96 = scmp.eq.s32.totalorder %s14, 0
    %p97 = por %p95, %p96
    %p98 = scmp.ne.s32.totalorder %s90, %s92
    %p99 = scmp.eq.s32.totalorder %s19, 1
    %p100 = por %p98, %p99
    %p101 = scmp.ne.s32.totalorder %s92, %s93
    %p102 = scmp.eq.s32.totalorder %s19, 0
    %p103 = por %p101, %p102
    %p104 = scmp.ne.s32.totalorder %s92, %s93
    %p105 = scmp.eq.s32.totalorder %s20, 1
    %p106 = por %p104, %p105
    %p108 = scmp.ne.s32.totalorder %s93, %s107
    %p109 = scmp.eq.s32.totalorder %s20, 0
    %p110 = por %p108, %p109
    %s112 = sadd.s32 %s111, 1
    %p115 = scmp.eq.s32.totalorder %s14, 1
    %p116 = scmp.ne.s32.totalorder %s111, %s113
    %p117 = scmp.eq.s32.totalorder %s14, 0
    %p118 = por %p116, %p117
    %p119 = scmp.ne.s32.totalorder %s111, %s113
    %p120 = scmp.eq.s32.totalorder %s19, 1
    %p121 = por %p119, %p120
    %p122 = scmp.ne.s32.totalorder %s113, %s114
    %p123 = scmp.eq.s32.totalorder %s19, 0
    %p124 = por %p122, %p123
    %p125 = scmp.ne.s32.totalorder %s113, %s114
    %p126 = scmp.eq.s32.totalorder %s20, 1
    %p127 = por %p125, %p126
    %p129 = scmp.ne.s32.totalorder %s114, %s128
    %p130 = scmp.eq.s32.totalorder %s20, 0
    %p131 = por %p129, %p130
    %s133 = sadd.s32 %s132, 1
    %p136 = scmp.eq.s32.totalorder %s14, 1
    %p137 = scmp.ne.s32.totalorder %s132, %s134
    %p138 = scmp.eq.s32.totalorder %s14, 0
    %p139 = por %p137, %p138
    %p140 = scmp.ne.s32.totalorder %s132, %s134
    %p141 = scmp.eq.s32.totalorder %s19, 1
    %p142 = por %p140, %p141
    %p143 = scmp.ne.s32.totalorder %s134, %s135
    %p144 = scmp.eq.s32.totalorder %s19, 0
    %p145 = por %p143, %p144
    %p146 = scmp.ne.s32.totalorder %s134, %s135
    %p147 = scmp.eq.s32.totalorder %s20, 1
    %p148 = por %p146, %p147
    %p150 = scmp.ne.s32.totalorder %s135, %s149
    %p151 = scmp.eq.s32.totalorder %s20, 0
    %p152 = por %p150, %p151
    %s154 = sadd.s32 %s153, 1
    %p157 = scmp.eq.s32.totalorder %s14, 1
    %p158 = scmp.ne.s32.totalorder %s153, %s155
    %p159 = scmp.eq.s32.totalorder %s14, 0
    %p160 = por %p158, %p159
    %p161 = scmp.ne.s32.totalorder %s153, %s155
    %p162 = scmp.eq.s32.totalorder %s19, 1
    %p163 = por %p161, %p162
    %p164 = scmp.ne.s32.totalorder %s155, %s156
    %p165 = scmp.eq.s32.totalorder %s19, 0
    %p166 = por %p164, %p165
    %p167 = scmp.ne.s32.totalorder %s155, %s156
    %p168 = scmp.eq.s32.totalorder %s20, 1
    %p169 = por %p167, %p168
    %p171 = scmp.ne.s32.totalorder %s156, %s170
    %p172 = scmp.eq.s32.totalorder %s20, 0
    %p173 = por %p171, %p172
    %s175 = sadd.s32 %s174, 1
    %p178 = scmp.eq.s32.totalorder %s14, 1
    %p179 = scmp.ne.s32.totalorder %s174, %s176
    %p180 = scmp.eq.s32.totalorder %s14, 0
    %p181 = por %p179, %p180
    %p182 = scmp.ne.s32.totalorder %s174, %s176
    %p183 = scmp.eq.s32.totalorder %s19, 1
    %p184 = por %p182, %p183
    %p185 = scmp.ne.s32.totalorder %s176, %s177
    %p186 = scmp.eq.s32.totalorder %s19, 0
    %p187 = por %p185, %p186
    %p188 = scmp.ne.s32.totalorder %s176, %s177
    %p189 = scmp.eq.s32.totalorder %s20, 1
    %p190 = por %p188, %p189
    %p192 = scmp.ne.s32.totalorder %s177, %s191
    %p193 = scmp.eq.s32.totalorder %s20, 0
    %p194 = por %p192, %p193
    %s195 = ssub.s32 %s14, %s21
    %p196 = scmp.eq.s32.totalorder %s195, 0
    %s198 = sadd.s32 %s197, 1
    %s199 = scalar_select %p196, %s197, %s198
    %p202 = pneg %p196
    %p203 = scmp.eq.s32.totalorder %s14, 1
    %p204 = por %p202, %p203
    %p205 = scmp.ne.s32.totalorder %s197, %s200
    %p206 = scmp.eq.s32.totalorder %s14, 0
    %p207 = por %p205, %p206
    %p208 = scmp.ne.s32.totalorder %s197, %s200
    %p209 = scmp.eq.s32.totalorder %s19, 1
    %p210 = por %p208, %p209
    %p211 = scmp.ne.s32.totalorder %s200, %s201
    %p212 = scmp.eq.s32.totalorder %s19, 0
    %p213 = por %p211, %p212
    %p214 = scmp.ne.s32.totalorder %s200, %s201
    %p215 = scmp.eq.s32.totalorder %s20, 1
    %p216 = por %p214, %p215
    %p218 = scmp.ne.s32.totalorder %s201, %s217
    %p219 = scmp.eq.s32.totalorder %s20, 0
    %p220 = por %p218, %p219
    %p221 = scmp.le.s32.totalorder 1, %s14
    %p222 = scmp.lt.s32.totalorder %s14, 3
    %p223 = pnand %p221, %p222
    %p224 = pneg %p223
    // Predicated region
    $region9: #{flan_xl_vqa_forward.6} parent=5 // pred_check
      _
    $region10: #{flan_xl_vqa_forward.6} parent=5 // pred_check_branch
      %226 = sbr.rel (%p223) target = $region12
    $region11: #{flan_xl_vqa_forward.6} parent=5 // pred_region
      %s227 = ssub.s32 %s14, 1
      // Predicated region
      $region13: #{flan_xl_vqa_forward.6} parent=11 // pred_check
        %p228 = pneg %p61
      $region14: #{flan_xl_vqa_forward.6} parent=11 // pred_check_branch
        %230 = sbr.rel (%p228) target = $region16
      $region15: #{flan_xl_vqa_forward.6} parent=11 // pred_region
        _
      $region16: #{flan_xl_vqa_forward.6} parent=11 // pred_fallthru
        _
      // Predicated region
      $region17: #{flan_xl_vqa_forward.6} parent=11 // pred_check
        %p231 = pneg %p82
      $region18: #{flan_xl_vqa_forward.6} parent=11 // pred_check_branch
        %233 = sbr.rel (%p231) target = $region20
      $region19: #{flan_xl_vqa_forward.6} parent=11 // pred_region
        _
      $region20: #{flan_xl_vqa_forward.6} parent=11 // pred_fallthru
        _
      // Predicated region
      $region21: #{flan_xl_vqa_forward.6} parent=11 // pred_check
        %p234 = pneg %p103
      $region22: #{flan_xl_vqa_forward.6} parent=11 // pred_check_branch
        %236 = sbr.rel (%p234) target = $region24
      $region23: #{flan_xl_vqa_forward.6} parent=11 // pred_region
        _
      $region24: #{flan_xl_vqa_forward.6} parent=11 // pred_fallthru
        _
      // Predicated region
      $region25: #{flan_xl_vqa_forward.6} parent=11 // pred_check
        %p237 = pneg %p124
      $region26: #{flan_xl_vqa_forward.6} parent=11 // pred_check_branch
        %239 = sbr.rel (%p237) target = $region28
      $region27: #{flan_xl_vqa_forward.6} parent=11 // pred_region
        _
      $region28: #{flan_xl_vqa_forward.6} parent=11 // pred_fallthru
        _
      // Predicated region
      $region29: #{flan_xl_vqa_forward.6} parent=11 // pred_check
        %p240 = pneg %p145
      $region30: #{flan_xl_vqa_forward.6} parent=11 // pred_check_branch
        %242 = sbr.rel (%p240) target = $region32
      $region31: #{flan_xl_vqa_forward.6} parent=11 // pred_region
        _
      $region32: #{flan_xl_vqa_forward.6} parent=11 // pred_fallthru
        _
      // Predicated region
      $region33: #{flan_xl_vqa_forward.6} parent=11 // pred_check
        %p243 = pneg %p166
      $region34: #{flan_xl_vqa_forward.6} parent=11 // pred_check_branch
        %245 = sbr.rel (%p243) target = $region36
      $region35: #{flan_xl_vqa_forward.6} parent=11 // pred_region
        _
      $region36: #{flan_xl_vqa_forward.6} parent=11 // pred_fallthru
        _
      // Predicated region
      $region37: #{flan_xl_vqa_forward.6} parent=11 // pred_check
        %p246 = pneg %p187
      $region38: #{flan_xl_vqa_forward.6} parent=11 // pred_check_branch
        %248 = sbr.rel (%p246) target = $region40
      $region39: #{flan_xl_vqa_forward.6} parent=11 // pred_region
        _
      $region40: #{flan_xl_vqa_forward.6} parent=11 // pred_fallthru
        _
    $region12: #{flan_xl_vqa_forward.6} parent=5 // pred_fallthru
      _
    %p249 = scmp.lt.s32.totalorder %s14, 2
    // Predicated region
    $region41: #{flan_xl_vqa_forward.6} parent=5 // pred_check
      %p250 = pneg %p249
    $region42: #{flan_xl_vqa_forward.6} parent=5 // pred_check_branch
      %252 = sbr.rel (%p250) target = $region44
    $region43: #{flan_xl_vqa_forward.6} parent=5 // pred_region
      // Predicated region
      $region45: #{flan_xl_vqa_forward.6} parent=43 // pred_check
        %p253 = pneg %p34
      $region46: #{flan_xl_vqa_forward.6} parent=43 // pred_check_branch
        %255 = sbr.rel (%p253) target = $region48
      $region47: #{flan_xl_vqa_forward.6} parent=43 // pred_region
        %p256 = scmp.lt.s32.totalorder %s14, 1
        %s257 = scalar_select %p256, %s14, 1
        %s258 = smul.addr %s257, 2
        %s259 = smul.addr %s258, 4
        %s260 = scalar_lea.vmem %s0, %s259
      $region48: #{flan_xl_vqa_forward.6} parent=43 // pred_fallthru
        _
    $region44: #{flan_xl_vqa_forward.6} parent=5 // pred_fallthru
      _
    %p261 = scmp.le.s32.totalorder 1, %s14
    %p262 = scmp.lt.s32.totalorder %s14, 3
    %p263 = pnand %p261, %p262
    %p264 = pneg %p263
    // Predicated region
    $region49: #{flan_xl_vqa_forward.6} parent=5 // pred_check
      _
    $region50: #{flan_xl_vqa_forward.6} parent=5 // pred_check_branch
      %266 = sbr.rel (%p263) target = $region52
    $region51: #{flan_xl_vqa_forward.6} parent=5 // pred_region
      %s267 = ssub.s32 %s14, 1
      %p268 = scmp.lt.s32.totalorder %s19, 1
      %s269 = scalar_select %p268, %s19, 1
      %s270 = smul.addr %s269, 2
      %s271 = smul.addr %s270, 4
      %s272 = scalar_lea.vmem %s0, %s271
      %p273 = pneg %p40
      %p274 = pneg %p37
      %p275 = pneg %p61
      %p276 = pneg %p58
      %p277 = pneg %p82
      %p278 = pneg %p79
      %p279 = pneg %p103
      %p280 = pneg %p100
      %p281 = pneg %p124
      %p282 = pneg %p121
      %p283 = pneg %p145
      %p284 = pneg %p142
      %p285 = pneg %p166
      %p286 = pneg %p163
      %p287 = pneg %p187
      %p288 = pneg %p184
      %p289 = pneg %p213
      %p290 = pneg %p210
      %p291 = scmp.lt.s32.totalorder %s19, 1
      %s292 = scalar_select %p291, %s19, 1
      %s293 = smul.addr %s292, 2
      %s294 = smul.addr %s293, 4
      %s295 = scalar_lea.vmem %s8, %s294
      %p296 = scmp.lt.s32.totalorder %s19, 1
      %s297 = scalar_select %p296, %s19, 1
      %s298 = smul.addr %s297, 2
      %s299 = smul.addr %s298, 4
      %s300 = scalar_lea.vmem %s0, %s299
      %p301 = scmp.lt.s32.totalorder %s19, 1
      %s302 = scalar_select %p301, %s19, 1
      %s303 = smul.addr %s302, 2
      %s304 = smul.addr %s303, 4
      %s305 = scalar_lea.vmem %s8, %s304
      %v307 = vld [vmem:[%s6] sm:$0x3f]
      %v308 = vld [vmem:[%s7] sm:$0x1f]
      %v309 = vld [vmem:[%s300] sm:$0xf]
      %v310 = vld [vmem:[%s300 + $0x4] sm:$0xf]
      %v311 = vunpack.c.l.bf16 %v309
      %v312 = vunpack.c.l.bf16 %v310
      %v313 = vld [vmem:[%s1] sm:$0xf]
      %v314 = vld [vmem:[%s1 + $0x4] sm:$0xf]
      %v315 = vld [vmem:[%s1 + $0x8] sm:$0xf]
      %v316 = vld [vmem:[%s1 + $0xc] sm:$0xf]
      %v317 = vld [vmem:[%s2] sm:$0xf]
      %v318 = vld [vmem:[%s2 + $0x4] sm:$0xf]
      %v319 = vld [vmem:[%s2 + $0x8] sm:$0xf]
      %v320 = vld [vmem:[%s2 + $0xc] sm:$0xf]
      %v321 = vld [vmem:[%s3] sm:$0xf]
      %v322 = vld [vmem:[%s3 + $0x4] sm:$0xf]
      %v323 = vld [vmem:[%s3 + $0x8] sm:$0xf]
      %v324 = vld [vmem:[%s3 + $0xc] sm:$0xf]
      %v325 = vld [vmem:[%s4] sm:$0xf]
      %v326 = vld [vmem:[%s4 + $0x4] sm:$0xf]
      %v327 = vld [vmem:[%s4 + $0x8] sm:$0xf]
      %v328 = vld [vmem:[%s4 + $0xc] sm:$0xf]
      %v329 = vld [vmem:[%s4 + $0x10] sm:$0xf]
      %v330 = vld [vmem:[%s4 + $0x14] sm:$0xf]
      %v331 = vld [vmem:[%s4 + $0x18] sm:$0xf]
      %v332 = vld [vmem:[%s4 + $0x1c] sm:$0xf]
      %vm333 = vcmask 261120
      %v334 = vsel %vm333, %v311, 0.0
      %335 = vadd.xlane.f32.xlu0 %v334
      %v336 = vpop.xlane.xlu0 %335
      %v337 = vsel %vm333, %v312, 0.0
      %338 = vadd.xlane.f32.xlu0 %v337
      %v339 = vpop.xlane.xlu0 %338
      %v340 = vrcp.pop 32.0
      %v341 = vmul.f32 %v336, %v340
      %v342 = vmul.f32 %v339, %v340
      %v343 = vsub.f32 %v311, %v341
      %v344 = vsub.f32 %v312, %v342
      %v345 = vmul.f32 %v343, %v343
      %v346 = vmul.f32 %v344, %v344
      %v347 = vsel %vm333, %v345, 0.0
      %348 = vadd.xlane.f32.xlu0 %v347
      %v349 = vpop.xlane.xlu0 %348
      %v350 = vsel %vm333, %v346, 0.0
      %351 = vadd.xlane.f32.xlu0 %v350
      %v352 = vpop.xlane.xlu0 %351
      %v353 = vmul.f32 %v349, %v340
      %v354 = vmul.f32 %v352, %v340
      %v355 = vadd.f32 %v353, 1e-06
      %v356 = vadd.f32 %v354, 1e-06
      %v357 = vrsqrt.pop %v355
      %v358 = vrsqrt.pop %v356
      %v359 = vmul.f32 %v343, %v357
      %v360 = vmul.f32 %v344, %v358
      %v361 = vlaneseq
      %v362 = vshrl.u32 %v361, 7
      %v363 = vsub.s32 0, %v362
      %v364 = vrot.slane %v307, %v363
      %v365 = vmul.f32 %v359, %v364
      %v366 = vmul.f32 %v360, %v364
      %v367 = vlaneseq
      %v368 = vshrl.u32 %v367, 7
      %v369 = vsub.s32 1, %v368
      %v370 = vrot.slane %v307, %v369
      %v371 = vadd.f32 %v365, %v370
      %v372 = vadd.f32 %v366, %v370
      %v373 = vpack.c.bf16 %v372, %v371
      %v374 = vlaneseq
      %v375 = vshrl.u32 %v374, 7
      %v376 = vsub.s32 0, %v375
      %v377 = vrot.slane %v308, %v376
      %v382 = vunpack.c.l.b16 %v313
      %v383 = vunpack.c.l.b16 %v314
      %v384 = vunpack.c.l.b16 %v315
      %v385 = vunpack.c.l.b16 %v316
      %v386 = vpack.c.b16 %v383, %v382
      %v387 = vpack.c.b16 %v385, %v384
      %v391 = vsel %vm333, %v373, 0
      %393 = vmatprep.subr.bf16.mxu0 0
      %394 = vmatpush1.bf16.msra.mxu0 %v386
      %395 = vmatprep.subr.bf16.mxu0 0
      %396 = vmatpush1.bf16.msra.mxu0 %v387
      %397 = vmatprep.subr.bf16.mxu0 0
      %398 = vmatpush1.bf16.msra.mxu0 0
      %399 = vmatprep.subr.bf16.mxu0 0
      %400 = vmatpush1.bf16.msra.mxu0 0
      %401 = vmatprep.subr.bf16.mxu0 0
      %402 = vmatpush1.bf16.msra.mxu0 0
      %403 = vmatprep.subr.bf16.mxu0 0
      %404 = vmatpush1.bf16.msra.mxu0 0
      %405 = vmatprep.subr.bf16.mxu0 0
      %406 = vmatpush1.bf16.msra.mxu0 0
      %407 = vmatprep.subr.bf16.mxu0 0
      %408 = vmatpush1.bf16.msra.mxu0 0
      %409 = vmatprep.subr.bf16.mxu0 0
      %410 = vmatpush1.bf16.msra.mxu0 0
      %411 = vmatprep.subr.bf16.mxu0 0
      %412 = vmatpush1.bf16.msra.mxu0 0
      %413 = vmatprep.subr.bf16.mxu0 0
      %414 = vmatpush1.bf16.msra.mxu0 0
      %415 = vmatprep.subr.bf16.mxu0 0
      %416 = vmatpush1.bf16.msra.mxu0 0
      %417 = vmatprep.subr.bf16.mxu0 0
      %418 = vmatpush1.bf16.msra.mxu0 0
      %419 = vmatprep.subr.bf16.mxu0 0
      %420 = vmatpush1.bf16.msra.mxu0 0
      %421 = vmatprep.subr.bf16.mxu0 0
      %422 = vmatpush1.bf16.msra.mxu0 0
      %423 = vmatprep.subr.bf16.mxu0 0
      %424 = vmatpush1.bf16.msra.mxu0 0
      %425 = vmatprep.mubr.bf16.mxu0 0
      %426 = vmatmul.mubr.bf16.gmra.mrb[0].mxu0 %v391
      %v427 = vpop.f32.mrb[0].mxu0
      %v428 = vadd.f32 %v377, %v427
      %v429 = vpop.f32.mrb[0].mxu0
      %v430 = vpop.f32.mrb[0].mxu0
      %v431 = vadd.f32 %v377, %v430
      %v432 = vpop.f32.mrb[0].mxu0
      %433 = vdwg.mxu0
      %v434 = vmul.f32 %v428, 0.35355338
      %v435 = vmul.f32 %v431, 0.35355338
      %438 = vrot.lane.b32.xlu0 %v434, 120
      %v439 = vpop.permute.xlu0 %438
      %440 = vrot.lane.b32.xlu0 %v435, 120
      %v441 = vpop.permute.xlu0 %440
      %444 = vrot.lane.b32.xlu0 %v434, 112
      %v445 = vpop.permute.xlu0 %444
      %446 = vrot.lane.b32.xlu0 %v435, 112
      %v447 = vpop.permute.xlu0 %446
      %450 = vrot.lane.b32.xlu0 %v434, 104
      %v451 = vpop.permute.xlu0 %450
      %452 = vrot.lane.b32.xlu0 %v435, 104
      %v453 = vpop.permute.xlu0 %452
      %v456 = vpack.c.bf16 %v435, %v434
      %v457 = vpack.c.bf16 %v441, %v439
      %v458 = vpack.c.bf16 %v447, %v445
      %v459 = vpack.c.bf16 %v453, %v451
      %462 = vrot.lane.b32.xlu0 %v428, 120
      %v463 = vpop.permute.xlu0 %462
      %464 = vrot.lane.b32.xlu0 %v431, 120
      %v465 = vpop.permute.xlu0 %464
      %468 = vrot.lane.b32.xlu0 %v428, 112
      %v469 = vpop.permute.xlu0 %468
      %470 = vrot.lane.b32.xlu0 %v431, 112
      %v471 = vpop.permute.xlu0 %470
      %474 = vrot.lane.b32.xlu0 %v428, 104
      %v475 = vpop.permute.xlu0 %474
      %476 = vrot.lane.b32.xlu0 %v431, 104
      %v477 = vpop.permute.xlu0 %476
      %v480 = vpack.c.bf16 %v431, %v428
      %v481 = vpack.c.bf16 %v465, %v463
      %v482 = vpack.c.bf16 %v471, %v469
      %v483 = vpack.c.bf16 %v477, %v475
      %485 = vrot.lane.b32.xlu0 %v480, 96
      %v486 = vpop.permute.xlu0 %485
      %vm487 = vcmask 64512
      %v489 = vsel %vm487, %v456, 0
      %v492 = vsel %vm487, %v486, 0
      %494 = vmatprep.subr.bf16.mxu0 0
      %495 = vmatpush1.bf16.xpose.msra.mxu0 %v492
      %496 = vmatprep.subr.bf16.mxu0 0
      %497 = vmatpush1.bf16.xpose.msra.mxu0 0
      %498 = vmatprep.subr.bf16.mxu0 0
      %499 = vmatpush1.bf16.xpose.msra.mxu0 0
      %500 = vmatprep.subr.bf16.mxu0 0
      %501 = vmatpush1.bf16.xpose.msra.mxu0 0
      %502 = vmatprep.subr.bf16.mxu0 0
      %503 = vmatpush1.bf16.xpose.msra.mxu0 0
      %504 = vmatprep.subr.bf16.mxu0 0
      %505 = vmatpush1.bf16.xpose.msra.mxu0 0
      %506 = vmatprep.subr.bf16.mxu0 0
      %507 = vmatpush1.bf16.xpose.msra.mxu0 0
      %508 = vmatprep.subr.bf16.mxu0 0
      %509 = vmatpush1.bf16.xpose.msra.mxu0 0
      %510 = vmatprep.subr.bf16.mxu0 0
      %511 = vmatpush1.bf16.xpose.msra.mxu0 0
      %512 = vmatprep.subr.bf16.mxu0 0
      %513 = vmatpush1.bf16.xpose.msra.mxu0 0
      %514 = vmatprep.subr.bf16.mxu0 0
      %515 = vmatpush1.bf16.xpose.msra.mxu0 0
      %516 = vmatprep.subr.bf16.mxu0 0
      %517 = vmatpush1.bf16.xpose.msra.mxu0 0
      %518 = vmatprep.subr.bf16.mxu0 0
      %519 = vmatpush1.bf16.xpose.msra.mxu0 0
      %520 = vmatprep.subr.bf16.mxu0 0
      %521 = vmatpush1.bf16.xpose.msra.mxu0 0
      %522 = vmatprep.subr.bf16.mxu0 0
      %523 = vmatpush1.bf16.xpose.msra.mxu0 0
      %524 = vmatprep.subr.bf16.mxu0 0
      %525 = vmatpush1.bf16.xpose.msra.mxu0 0
      %526 = vmatprep.mubr.bf16.mxu0 0
      %527 = vmatmul.mubr.bf16.gmra.mrb[0].mxu0 %v489
      %v528 = vpop.f32.mrb[0].mxu0
      %v529 = vadd.f32 0.0, %v528
      %v530 = vpop.f32.mrb[0].mxu0
      %v531 = vpop.f32.mrb[0].mxu0
      %v532 = vadd.f32 0.0, %v531
      %v533 = vpop.f32.mrb[0].mxu0
      %534 = vdwg.mxu0
      %536 = vrot.lane.b32.xlu0 %v481, 96
      %v537 = vpop.permute.xlu0 %536
      %v539 = vsel %vm487, %v457, 0
      %v542 = vsel %vm487, %v537, 0
      %544 = vmatprep.subr.bf16.mxu0 0
      %545 = vmatpush1.bf16.xpose.msra.mxu0 %v542
      %546 = vmatprep.subr.bf16.mxu0 0
      %547 = vmatpush1.bf16.xpose.msra.mxu0 0
      %548 = vmatprep.subr.bf16.mxu0 0
      %549 = vmatpush1.bf16.xpose.msra.mxu0 0
      %550 = vmatprep.subr.bf16.mxu0 0
      %551 = vmatpush1.bf16.xpose.msra.mxu0 0
      %552 = vmatprep.subr.bf16.mxu0 0
      %553 = vmatpush1.bf16.xpose.msra.mxu0 0
      %554 = vmatprep.subr.bf16.mxu0 0
      %555 = vmatpush1.bf16.xpose.msra.mxu0 0
      %556 = vmatprep.subr.bf16.mxu0 0
      %557 = vmatpush1.bf16.xpose.msra.mxu0 0
      %558 = vmatprep.subr.bf16.mxu0 0
      %559 = vmatpush1.bf16.xpose.msra.mxu0 0
      %560 = vmatprep.subr.bf16.mxu0 0
      %561 = vmatpush1.bf16.xpose.msra.mxu0 0
      %562 = vmatprep.subr.bf16.mxu0 0
      %563 = vmatpush1.bf16.xpose.msra.mxu0 0
      %564 = vmatprep.subr.bf16.mxu0 0
      %565 = vmatpush1.bf16.xpose.msra.mxu0 0
      %566 = vmatprep.subr.bf16.mxu0 0
      %567 = vmatpush1.bf16.xpose.msra.mxu0 0
      %568 = vmatprep.subr.bf16.mxu0 0
      %569 = vmatpush1.bf16.xpose.msra.mxu0 0
      %570 = vmatprep.subr.bf16.mxu0 0
      %571 = vmatpush1.bf16.xpose.msra.mxu0 0
      %572 = vmatprep.subr.bf16.mxu0 0
      %573 = vmatpush1.bf16.xpose.msra.mxu0 0
      %574 = vmatprep.subr.bf16.mxu0 0
      %575 = vmatpush1.bf16.xpose.msra.mxu0 0
      %576 = vmatprep.mubr.bf16.mxu0 0
      %577 = vmatmul.mubr.bf16.gmra.mrb[0].mxu0 %v539
      %v578 = vpop.f32.mrb[0].mxu0
      %v579 = vadd.f32 0.0, %v578
      %v580 = vpop.f32.mrb[0].mxu0
      %v581 = vpop.f32.mrb[0].mxu0
      %v582 = vadd.f32 0.0, %v581
      %v583 = vpop.f32.mrb[0].mxu0
      %584 = vdwg.mxu0
      %586 = vrot.lane.b32.xlu0 %v482, 96
      %v587 = vpop.permute.xlu0 %586
      %v589 = vsel %vm487, %v458, 0
      %v592 = vsel %vm487, %v587, 0
      %594 = vmatprep.subr.bf16.mxu0 0
      %595 = vmatpush1.bf16.xpose.msra.mxu0 %v592
      %596 = vmatprep.subr.bf16.mxu0 0
      %597 = vmatpush1.bf16.xpose.msra.mxu0 0
      %598 = vmatprep.subr.bf16.mxu0 0
      %599 = vmatpush1.bf16.xpose.msra.mxu0 0
      %600 = vmatprep.subr.bf16.mxu0 0
      %601 = vmatpush1.bf16.xpose.msra.mxu0 0
      %602 = vmatprep.subr.bf16.mxu0 0
      %603 = vmatpush1.bf16.xpose.msra.mxu0 0
      %604 = vmatprep.subr.bf16.mxu0 0
      %605 = vmatpush1.bf16.xpose.msra.mxu0 0
      %606 = vmatprep.subr.bf16.mxu0 0
      %607 = vmatpush1.bf16.xpose.msra.mxu0 0
      %608 = vmatprep.subr.bf16.mxu0 0
      %609 = vmatpush1.bf16.xpose.msra.mxu0 0
      %610 = vmatprep.subr.bf16.mxu0 0
      %611 = vmatpush1.bf16.xpose.msra.mxu0 0
      %612 = vmatprep.subr.bf16.mxu0 0
      %613 = vmatpush1.bf16.xpose.msra.mxu0 0
      %614 = vmatprep.subr.bf16.mxu0 0
      %615 = vmatpush1.bf16.xpose.msra.mxu0 0
      %616 = vmatprep.subr.bf16.mxu0 0
      %617 = vmatpush1.bf16.xpose.msra.mxu0 0
      %618 = vmatprep.subr.bf16.mxu0 0
      %619 = vmatpush1.bf16.xpose.msra.mxu0 0
      %620 = vmatprep.subr.bf16.mxu0 0
      %621 = vmatpush1.bf16.xpose.msra.mxu0 0
      %622 = vmatprep.subr.bf16.mxu0 0
      %623 = vmatpush1.bf16.xpose.msra.mxu0 0
      %624 = vmatprep.subr.bf16.mxu0 0
      %625 = vmatpush1.bf16.xpose.msra.mxu0 0
      %626 = vmatprep.mubr.bf16.mxu0 0
      %627 = vmatmul.mubr.bf16.gmra.mrb[0].mxu0 %v589
      %v628 = vpop.f32.mrb[0].mxu0
      %v629 = vadd.f32 0.0, %v628
      %v630 = vpop.f32.mrb[0].mxu0
      %v631 = vpop.f32.mrb[0].mxu0
      %v632 = vadd.f32 0.0, %v631
      %v633 = vpop.f32.mrb[0].mxu0
      %634 = vdwg.mxu0
      %636 = vrot.lane.b32.xlu0 %v483, 96
      %v637 = vpop.permute.xlu0 %636
      %v639 = vsel %vm487, %v459, 0
      %v642 = vsel %vm487, %v637, 0
      %644 = vmatprep.subr.bf16.mxu0 0
      %645 = vmatpush1.bf16.xpose.msra.mxu0 %v642
      %646 = vmatprep.subr.bf16.mxu0 0
      %647 = vmatpush1.bf16.xpose.msra.mxu0 0
      %648 = vmatprep.subr.bf16.mxu0 0
      %649 = vmatpush1.bf16.xpose.msra.mxu0 0
      %650 = vmatprep.subr.bf16.mxu0 0
      %651 = vmatpush1.bf16.xpose.msra.mxu0 0
      %652 = vmatprep.subr.bf16.mxu0 0
      %653 = vmatpush1.bf16.xpose.msra.mxu0 0
      %654 = vmatprep.subr.bf16.mxu0 0
      %655 = vmatpush1.bf16.xpose.msra.mxu0 0
      %656 = vmatprep.subr.bf16.mxu0 0
      %657 = vmatpush1.bf16.xpose.msra.mxu0 0
      %658 = vmatprep.subr.bf16.mxu0 0
      %659 = vmatpush1.bf16.xpose.msra.mxu0 0
      %660 = vmatprep.subr.bf16.mxu0 0
      %661 = vmatpush1.bf16.xpose.msra.mxu0 0
      %662 = vmatprep.subr.bf16.mxu0 0
      %663 = vmatpush1.bf16.xpose.msra.mxu0 0
      %664 = vmatprep.subr.bf16.mxu0 0
      %665 = vmatpush1.bf16.xpose.msra.mxu0 0
      %666 = vmatprep.subr.bf16.mxu0 0
      %667 = vmatpush1.bf16.xpose.msra.mxu0 0
      %668 = vmatprep.subr.bf16.mxu0 0
      %669 = vmatpush1.bf16.xpose.msra.mxu0 0
      %670 = vmatprep.subr.bf16.mxu0 0
      %671 = vmatpush1.bf16.xpose.msra.mxu0 0
      %672 = vmatprep.subr.bf16.mxu0 0
      %673 = vmatpush1.bf16.xpose.msra.mxu0 0
      %674 = vmatprep.subr.bf16.mxu0 0
      %675 = vmatpush1.bf16.xpose.msra.mxu0 0
      %676 = vmatprep.mubr.bf16.mxu0 0
      %677 = vmatmul.mubr.bf16.gmra.mrb[0].mxu0 %v639
      %v678 = vpop.f32.mrb[0].mxu0
      %v679 = vadd.f32 0.0, %v678
      %v680 = vpop.f32.mrb[0].mxu0
      %v681 = vpop.f32.mrb[0].mxu0
      %v682 = vadd.f32 0.0, %v681
      %v683 = vpop.f32.mrb[0].mxu0
      %684 = vdwg.mxu0
      %vm685 = vcmask 130048
      %v686 = vsel %vm685, %v529, -inf
      %687 = vmax.xlane.f32.xlu0 %v686
      %v688 = vpop.xlane.xlu0 %687
      %v689 = vsel %vm685, %v532, -inf
      %690 = vmax.xlane.f32.xlu0 %v689
      %v691 = vpop.xlane.xlu0 %690
      %v692 = vsel %vm685, %v579, -inf
      %693 = vmax.xlane.f32.xlu0 %v692
      %v694 = vpop.xlane.xlu0 %693
      %v695 = vsel %vm685, %v582, -inf
      %696 = vmax.xlane.f32.xlu0 %v695
      %v697 = vpop.xlane.xlu0 %696
      %v698 = vsel %vm685, %v629, -inf
      %699 = vmax.xlane.f32.xlu0 %v698
      %v700 = vpop.xlane.xlu0 %699
      %v701 = vsel %vm685, %v632, -inf
      %702 = vmax.xlane.f32.xlu0 %v701
      %v703 = vpop.xlane.xlu0 %702
      %v704 = vsel %vm685, %v679, -inf
      %705 = vmax.xlane.f32.xlu0 %v704
      %v706 = vpop.xlane.xlu0 %705
      %v707 = vsel %vm685, %v682, -inf
      %708 = vmax.xlane.f32.xlu0 %v707
      %v709 = vpop.xlane.xlu0 %708
      %v710 = vsub.f32 %v529, %v688
      %v711 = vsub.f32 %v532, %v691
      %v712 = vsub.f32 %v579, %v694
      %v713 = vsub.f32 %v582, %v697
      %v714 = vsub.f32 %v629, %v700
      %v715 = vsub.f32 %v632, %v703
      %v716 = vsub.f32 %v679, %v706
      %v717 = vsub.f32 %v682, %v709
      %v718 = vmul.f32 %v710, 1.442695
      %v719 = vpow.pop %v718
      %v720 = vmul.f32 %v711, 1.442695
      %v721 = vpow.pop %v720
      %v722 = vmul.f32 %v712, 1.442695
      %v723 = vpow.pop %v722
      %v724 = vmul.f32 %v713, 1.442695
      %v725 = vpow.pop %v724
      %v726 = vmul.f32 %v714, 1.442695
      %v727 = vpow.pop %v726
      %v728 = vmul.f32 %v715, 1.442695
      %v729 = vpow.pop %v728
      %v730 = vmul.f32 %v716, 1.442695
      %v731 = vpow.pop %v730
      %v732 = vmul.f32 %v717, 1.442695
      %v733 = vpow.pop %v732
      %v734 = vsel %vm685, %v719, 0.0
      %735 = vadd.xlane.f32.xlu0 %v734
      %v736 = vpop.xlane.xlu0 %735
      %v737 = vsel %vm685, %v721, 0.0
      %738 = vadd.xlane.f32.xlu0 %v737
      %v739 = vpop.xlane.xlu0 %738
      %v740 = vsel %vm685, %v723, 0.0
      %741 = vadd.xlane.f32.xlu0 %v740
      %v742 = vpop.xlane.xlu0 %741
      %v743 = vsel %vm685, %v725, 0.0
      %744 = vadd.xlane.f32.xlu0 %v743
      %v745 = vpop.xlane.xlu0 %744
      %v746 = vsel %vm685, %v727, 0.0
      %747 = vadd.xlane.f32.xlu0 %v746
      %v748 = vpop.xlane.xlu0 %747
      %v749 = vsel %vm685, %v729, 0.0
      %750 = vadd.xlane.f32.xlu0 %v749
      %v751 = vpop.xlane.xlu0 %750
      %v752 = vsel %vm685, %v731, 0.0
      %753 = vadd.xlane.f32.xlu0 %v752
      %v754 = vpop.xlane.xlu0 %753
      %v755 = vsel %vm685, %v733, 0.0
      %756 = vadd.xlane.f32.xlu0 %v755
      %v757 = vpop.xlane.xlu0 %756
      %v758 = vpack.c.bf16 %v721, %v719
      %v759 = vpack.c.bf16 %v725, %v723
      %v760 = vpack.c.bf16 %v729, %v727
      %v761 = vpack.c.bf16 %v733, %v731
      %762 = vrot.lane.b32.xlu0 %v480, 64
      %v763 = vpop.permute.xlu0 %762
      %v766 = vsel %vm685, %v758, 0
      %768 = vmatprep.subr.bf16.mxu0 0
      %769 = vmatpush1.bf16.msra.mxu0 %v763
      %770 = vmatprep.subr.bf16.mxu0 0
      %771 = vmatpush1.bf16.msra.mxu0 0
      %772 = vmatprep.subr.bf16.mxu0 0
      %773 = vmatpush1.bf16.msra.mxu0 0
      %774 = vmatprep.subr.bf16.mxu0 0
      %775 = vmatpush1.bf16.msra.mxu0 0
      %776 = vmatprep.subr.bf16.mxu0 0
      %777 = vmatpush1.bf16.msra.mxu0 0
      %778 = vmatprep.subr.bf16.mxu0 0
      %779 = vmatpush1.bf16.msra.mxu0 0
      %780 = vmatprep.subr.bf16.mxu0 0
      %781 = vmatpush1.bf16.msra.mxu0 0
      %782 = vmatprep.subr.bf16.mxu0 0
      %783 = vmatpush1.bf16.msra.mxu0 0
      %784 = vmatprep.subr.bf16.mxu0 0
      %785 = vmatpush1.bf16.msra.mxu0 0
      %786 = vmatprep.subr.bf16.mxu0 0
      %787 = vmatpush1.bf16.msra.mxu0 0
      %788 = vmatprep.subr.bf16.mxu0 0
      %789 = vmatpush1.bf16.msra.mxu0 0
      %790 = vmatprep.subr.bf16.mxu0 0
      %791 = vmatpush1.bf16.msra.mxu0 0
      %792 = vmatprep.subr.bf16.mxu0 0
      %793 = vmatpush1.bf16.msra.mxu0 0
      %794 = vmatprep.subr.bf16.mxu0 0
      %795 = vmatpush1.bf16.msra.mxu0 0
      %796 = vmatprep.subr.bf16.mxu0 0
      %797 = vmatpush1.bf16.msra.mxu0 0
      %798 = vmatprep.subr.bf16.mxu0 0
      %799 = vmatpush1.bf16.msra.mxu0 0
      %800 = vmatprep.mubr.bf16.mxu0 0
      %801 = vmatmul.mubr.bf16.gmra.mrb[0].mxu0 %v766
      %v802 = vpop.f32.mrb[0].mxu0
      %v803 = vadd.f32 0.0, %v802
      %v804 = vpop.f32.mrb[0].mxu0
      %v805 = vpop.f32.mrb[0].mxu0
      %v806 = vadd.f32 0.0, %v805
      %v807 = vpop.f32.mrb[0].mxu0
      %808 = vdwg.mxu0
      %809 = vrot.lane.b32.xlu0 %v481, 64
      %v810 = vpop.permute.xlu0 %809
      %v813 = vsel %vm685, %v759, 0
      %815 = vmatprep.subr.bf16.mxu0 0
      %816 = vmatpush1.bf16.msra.mxu0 %v810
      %817 = vmatprep.subr.bf16.mxu0 0
      %818 = vmatpush1.bf16.msra.mxu0 0
      %819 = vmatprep.subr.bf16.mxu0 0
      %820 = vmatpush1.bf16.msra.mxu0 0
      %821 = vmatprep.subr.bf16.mxu0 0
      %822 = vmatpush1.bf16.msra.mxu0 0
      %823 = vmatprep.subr.bf16.mxu0 0
      %824 = vmatpush1.bf16.msra.mxu0 0
      %825 = vmatprep.subr.bf16.mxu0 0
      %826 = vmatpush1.bf16.msra.mxu0 0
      %827 = vmatprep.subr.bf16.mxu0 0
      %828 = vmatpush1.bf16.msra.mxu0 0
      %829 = vmatprep.subr.bf16.mxu0 0
      %830 = vmatpush1.bf16.msra.mxu0 0
      %831 = vmatprep.subr.bf16.mxu0 0
      %832 = vmatpush1.bf16.msra.mxu0 0
      %833 = vmatprep.subr.bf16.mxu0 0
      %834 = vmatpush1.bf16.msra.mxu0 0
      %835 = vmatprep.subr.bf16.mxu0 0
      %836 = vmatpush1.bf16.msra.mxu0 0
      %837 = vmatprep.subr.bf16.mxu0 0
      %838 = vmatpush1.bf16.msra.mxu0 0
      %839 = vmatprep.subr.bf16.mxu0 0
      %840 = vmatpush1.bf16.msra.mxu0 0
      %841 = vmatprep.subr.bf16.mxu0 0
      %842 = vmatpush1.bf16.msra.mxu0 0
      %843 = vmatprep.subr.bf16.mxu0 0
      %844 = vmatpush1.bf16.msra.mxu0 0
      %845 = vmatprep.subr.bf16.mxu0 0
      %846 = vmatpush1.bf16.msra.mxu0 0
      %847 = vmatprep.mubr.bf16.mxu0 0
      %848 = vmatmul.mubr.bf16.gmra.mrb[0].mxu0 %v813
      %v849 = vpop.f32.mrb[0].mxu0
      %v850 = vadd.f32 0.0, %v849
      %v851 = vpop.f32.mrb[0].mxu0
      %v852 = vpop.f32.mrb[0].mxu0
      %v853 = vadd.f32 0.0, %v852
      %v854 = vpop.f32.mrb[0].mxu0
      %855 = vdwg.mxu0
      %856 = vrot.lane.b32.xlu0 %v482, 64
      %v857 = vpop.permute.xlu0 %856
      %v860 = vsel %vm685, %v760, 0
      %862 = vmatprep.subr.bf16.mxu0 0
      %863 = vmatpush1.bf16.msra.mxu0 %v857
      %864 = vmatprep.subr.bf16.mxu0 0
      %865 = vmatpush1.bf16.msra.mxu0 0
      %866 = vmatprep.subr.bf16.mxu0 0
      %867 = vmatpush1.bf16.msra.mxu0 0
      %868 = vmatprep.subr.bf16.mxu0 0
      %869 = vmatpush1.bf16.msra.mxu0 0
      %870 = vmatprep.subr.bf16.mxu0 0
      %871 = vmatpush1.bf16.msra.mxu0 0
      %872 = vmatprep.subr.bf16.mxu0 0
      %873 = vmatpush1.bf16.msra.mxu0 0
      %874 = vmatprep.subr.bf16.mxu0 0
      %875 = vmatpush1.bf16.msra.mxu0 0
      %876 = vmatprep.subr.bf16.mxu0 0
      %877 = vmatpush1.bf16.msra.mxu0 0
      %878 = vmatprep.subr.bf16.mxu0 0
      %879 = vmatpush1.bf16.msra.mxu0 0
      %880 = vmatprep.subr.bf16.mxu0 0
      %881 = vmatpush1.bf16.msra.mxu0 0
      %882 = vmatprep.subr.bf16.mxu0 0
      %883 = vmatpush1.bf16.msra.mxu0 0
      %884 = vmatprep.subr.bf16.mxu0 0
      %885 = vmatpush1.bf16.msra.mxu0 0
      %886 = vmatprep.subr.bf16.mxu0 0
      %887 = vmatpush1.bf16.msra.mxu0 0
      %888 = vmatprep.subr.bf16.mxu0 0
      %889 = vmatpush1.bf16.msra.mxu0 0
      %890 = vmatprep.subr.bf16.mxu0 0
      %891 = vmatpush1.bf16.msra.mxu0 0
      %892 = vmatprep.subr.bf16.mxu0 0
      %893 = vmatpush1.bf16.msra.mxu0 0
      %894 = vmatprep.mubr.bf16.mxu0 0
      %895 = vmatmul.mubr.bf16.gmra.mrb[0].mxu0 %v860
      %v896 = vpop.f32.mrb[0].mxu0
      %v897 = vadd.f32 0.0, %v896
      %v898 = vpop.f32.mrb[0].mxu0
      %v899 = vpop.f32.mrb[0].mxu0
      %v900 = vadd.f32 0.0, %v899
      %v901 = vpop.f32.mrb[0].mxu0
      %902 = vdwg.mxu0
      %903 = vrot.lane.b32.xlu0 %v483, 64
      %v904 = vpop.permute.xlu0 %903
      %v907 = vsel %vm685, %v761, 0
      %909 = vmatprep.subr.bf16.mxu0 0
      %910 = vmatpush1.bf16.msra.mxu0 %v904
      %911 = vmatprep.subr.bf16.mxu0 0
      %912 = vmatpush1.bf16.msra.mxu0 0
      %913 = vmatprep.subr.bf16.mxu0 0
      %914 = vmatpush1.bf16.msra.mxu0 0
      %915 = vmatprep.subr.bf16.mxu0 0
      %916 = vmatpush1.bf16.msra.mxu0 0
      %917 = vmatprep.subr.bf16.mxu0 0
      %918 = vmatpush1.bf16.msra.mxu0 0
      %919 = vmatprep.subr.bf16.mxu0 0
      %920 = vmatpush1.bf16.msra.mxu0 0
      %921 = vmatprep.subr.bf16.mxu0 0
      %922 = vmatpush1.bf16.msra.mxu0 0
      %923 = vmatprep.subr.bf16.mxu0 0
      %924 = vmatpush1.bf16.msra.mxu0 0
      %925 = vmatprep.subr.bf16.mxu0 0
      %926 = vmatpush1.bf16.msra.mxu0 0
      %927 = vmatprep.subr.bf16.mxu0 0
      %928 = vmatpush1.bf16.msra.mxu0 0
      %929 = vmatprep.subr.bf16.mxu0 0
      %930 = vmatpush1.bf16.msra.mxu0 0
      %931 = vmatprep.subr.bf16.mxu0 0
      %932 = vmatpush1.bf16.msra.mxu0 0
      %933 = vmatprep.subr.bf16.mxu0 0
      %934 = vmatpush1.bf16.msra.mxu0 0
      %935 = vmatprep.subr.bf16.mxu0 0
      %936 = vmatpush1.bf16.msra.mxu0 0
      %937 = vmatprep.subr.bf16.mxu0 0
      %938 = vmatpush1.bf16.msra.mxu0 0
      %939 = vmatprep.subr.bf16.mxu0 0
      %940 = vmatpush1.bf16.msra.mxu0 0
      %941 = vmatprep.mubr.bf16.mxu0 0
      %942 = vmatmul.mubr.bf16.gmra.mrb[0].mxu0 %v907
      %v943 = vpop.f32.mrb[0].mxu0
      %v944 = vadd.f32 0.0, %v943
      %v945 = vpop.f32.mrb[0].mxu0
      %v946 = vpop.f32.mrb[0].mxu0
      %v947 = vadd.f32 0.0, %v946
      %v948 = vpop.f32.mrb[0].mxu0
      %949 = vdwg.mxu0
      %v950 = vrcp.pop %v736
      %v951 = vrcp.pop %v739
      %v952 = vrcp.pop %v742
      %v953 = vrcp.pop %v745
      %v954 = vrcp.pop %v748
      %v955 = vrcp.pop %v751
      %v956 = vrcp.pop %v754
      %v957 = vrcp.pop %v757
      %v958 = vmul.f32 %v803, %v950
      %v959 = vmul.f32 %v806, %v951
      %v960 = vmul.f32 %v850, %v952
      %v961 = vmul.f32 %v853, %v953
      %v962 = vmul.f32 %v897, %v954
      %v963 = vmul.f32 %v900, %v955
      %v964 = vmul.f32 %v944, %v956
      %v965 = vmul.f32 %v947, %v957
      %968 = vrot.lane.b32.xlu0 %v960, 8
      %v969 = vpop.permute.xlu0 %968
      %970 = vrot.lane.b32.xlu0 %v961, 8
      %v971 = vpop.permute.xlu0 %970
      %976 = vrot.lane.b32.xlu0 %v962, 16
      %v977 = vpop.permute.xlu0 %976
      %978 = vrot.lane.b32.xlu0 %v963, 16
      %v979 = vpop.permute.xlu0 %978
      %984 = vrot.lane.b32.xlu0 %v964, 24
      %v985 = vpop.permute.xlu0 %984
      %986 = vrot.lane.b32.xlu0 %v965, 24
      %v987 = vpop.permute.xlu0 %986
      %v990 = vsel %vm487, %v958, %v969
      %v991 = vsel %vm487, %v959, %v971
      %v992 = vsel %vm685, %v990, %v977
      %v993 = vsel %vm685, %v991, %v979
      %vm994 = vcmask 195584
      %v995 = vsel %vm994, %v992, %v985
      %v996 = vsel %vm994, %v993, %v987
      %v997 = vpack.c.bf16 %v996, %v995
      %v998 = vlaneseq
      %v999 = vshrl.u32 %v998, 7
      %v1000 = vsub.s32 1, %v999
      %v1001 = vrot.slane %v308, %v1000
      %v1006 = vunpack.c.l.b16 %v317
      %v1007 = vunpack.c.l.b16 %v318
      %v1008 = vunpack.c.l.b16 %v319
      %v1009 = vunpack.c.l.b16 %v320
      %v1010 = vpack.c.b16 %v1007, %v1006
      %v1011 = vpack.c.b16 %v1009, %v1008
      %v1015 = vsel %vm333, %v997, 0
      %1017 = vmatprep.subr.bf16.mxu0 0
      %1018 = vmatpush1.bf16.msra.mxu0 %v1010
      %1019 = vmatprep.subr.bf16.mxu0 0
      %1020 = vmatpush1.bf16.msra.mxu0 %v1011
      %1021 = vmatprep.subr.bf16.mxu0 0
      %1022 = vmatpush1.bf16.msra.mxu0 0
      %1023 = vmatprep.subr.bf16.mxu0 0
      %1024 = vmatpush1.bf16.msra.mxu0 0
      %1025 = vmatprep.subr.bf16.mxu0 0
      %1026 = vmatpush1.bf16.msra.mxu0 0
      %1027 = vmatprep.subr.bf16.mxu0 0
      %1028 = vmatpush1.bf16.msra.mxu0 0
      %1029 = vmatprep.subr.bf16.mxu0 0
      %1030 = vmatpush1.bf16.msra.mxu0 0
      %1031 = vmatprep.subr.bf16.mxu0 0
      %1032 = vmatpush1.bf16.msra.mxu0 0
      %1033 = vmatprep.subr.bf16.mxu0 0
      %1034 = vmatpush1.bf16.msra.mxu0 0
      %1035 = vmatprep.subr.bf16.mxu0 0
      %1036 = vmatpush1.bf16.msra.mxu0 0
      %1037 = vmatprep.subr.bf16.mxu0 0
      %1038 = vmatpush1.bf16.msra.mxu0 0
      %1039 = vmatprep.subr.bf16.mxu0 0
      %1040 = vmatpush1.bf16.msra.mxu0 0
      %1041 = vmatprep.subr.bf16.mxu0 0
      %1042 = vmatpush1.bf16.msra.mxu0 0
      %1043 = vmatprep.subr.bf16.mxu0 0
      %1044 = vmatpush1.bf16.msra.mxu0 0
      %1045 = vmatprep.subr.bf16.mxu0 0
      %1046 = vmatpush1.bf16.msra.mxu0 0
      %1047 = vmatprep.subr.bf16.mxu0 0
      %1048 = vmatpush1.bf16.msra.mxu0 0
      %1049 = vmatprep.mubr.bf16.mxu0 0
      %1050 = vmatmul.mubr.bf16.gmra.mrb[0].mxu0 %v1015
      %v1051 = vpop.f32.mrb[0].mxu0
      %v1052 = vadd.f32 %v1001, %v1051
      %v1053 = vpop.f32.mrb[0].mxu0
      %v1054 = vpop.f32.mrb[0].mxu0
      %v1055 = vadd.f32 %v1001, %v1054
      %v1056 = vpop.f32.mrb[0].mxu0
      %1057 = vdwg.mxu0
      %v1058 = vadd.f32 %v311, %v1052
      %v1059 = vadd.f32 %v312, %v1055
      %v1060 = vsel %vm333, %v1058, 0.0
      %1061 = vadd.xlane.f32.xlu0 %v1060
      %v1062 = vpop.xlane.xlu0 %1061
      %v1063 = vsel %vm333, %v1059, 0.0
      %1064 = vadd.xlane.f32.xlu0 %v1063
      %v1065 = vpop.xlane.xlu0 %1064
      %v1066 = vmul.f32 %v1062, %v340
      %v1067 = vmul.f32 %v1065, %v340
      %v1068 = vsub.f32 %v1058, %v1066
      %v1069 = vsub.f32 %v1059, %v1067
      %v1070 = vmul.f32 %v1068, %v1068
      %v1071 = vmul.f32 %v1069, %v1069
      %v1072 = vsel %vm333, %v1070, 0.0
      %1073 = vadd.xlane.f32.xlu0 %v1072
      %v1074 = vpop.xlane.xlu0 %1073
      %v1075 = vsel %vm333, %v1071, 0.0
      %1076 = vadd.xlane.f32.xlu0 %v1075
      %v1077 = vpop.xlane.xlu0 %1076
      %v1078 = vmul.f32 %v1074, %v340
      %v1079 = vmul.f32 %v1077, %v340
      %v1080 = vadd.f32 %v1078, 1e-06
      %v1081 = vadd.f32 %v1079, 1e-06
      %v1082 = vrsqrt.pop %v1080
      %v1083 = vrsqrt.pop %v1081
      %v1084 = vmul.f32 %v1068, %v1082
      %v1085 = vmul.f32 %v1069, %v1083
      %v1086 = vlaneseq
      %v1087 = vshrl.u32 %v1086, 7
      %v1088 = vsub.s32 2, %v1087
      %v1089 = vrot.slane %v307, %v1088
      %v1090 = vmul.f32 %v1084, %v1089
      %v1091 = vmul.f32 %v1085, %v1089
      %v1092 = vlaneseq
      %v1093 = vshrl.u32 %v1092, 7
      %v1094 = vsub.s32 3, %v1093
      %v1095 = vrot.slane %v307, %v1094
      %v1096 = vadd.f32 %v1090, %v1095
      %v1097 = vadd.f32 %v1091, %v1095
      %v1098 = vpack.c.bf16 %v1097, %v1096
      %v1099 = vlaneseq
      %v1100 = vshrl.u32 %v1099, 7
      %v1101 = vsub.s32 2, %v1100
      %v1102 = vrot.slane %v308, %v1101
      %v1107 = vunpack.c.l.b16 %v321
      %v1108 = vunpack.c.l.b16 %v322
      %v1109 = vunpack.c.l.b16 %v323
      %v1110 = vunpack.c.l.b16 %v324
      %v1111 = vpack.c.b16 %v1108, %v1107
      %v1112 = vpack.c.b16 %v1110, %v1109
      %v1116 = vsel %vm333, %v1098, 0
      %1118 = vmatprep.subr.bf16.mxu0 0
      %1119 = vmatpush1.bf16.msra.mxu0 %v1111
      %1120 = vmatprep.subr.bf16.mxu0 0
      %1121 = vmatpush1.bf16.msra.mxu0 %v1112
      %1122 = vmatprep.subr.bf16.mxu0 0
      %1123 = vmatpush1.bf16.msra.mxu0 0
      %1124 = vmatprep.subr.bf16.mxu0 0
      %1125 = vmatpush1.bf16.msra.mxu0 0
      %1126 = vmatprep.subr.bf16.mxu0 0
      %1127 = vmatpush1.bf16.msra.mxu0 0
      %1128 = vmatprep.subr.bf16.mxu0 0
      %1129 = vmatpush1.bf16.msra.mxu0 0
      %1130 = vmatprep.subr.bf16.mxu0 0
      %1131 = vmatpush1.bf16.msra.mxu0 0
      %1132 = vmatprep.subr.bf16.mxu0 0
      %1133 = vmatpush1.bf16.msra.mxu0 0
      %1134 = vmatprep.subr.bf16.mxu0 0
      %1135 = vmatpush1.bf16.msra.mxu0 0
      %1136 = vmatprep.subr.bf16.mxu0 0
      %1137 = vmatpush1.bf16.msra.mxu0 0
      %1138 = vmatprep.subr.bf16.mxu0 0
      %1139 = vmatpush1.bf16.msra.mxu0 0
      %1140 = vmatprep.subr.bf16.mxu0 0
      %1141 = vmatpush1.bf16.msra.mxu0 0
      %1142 = vmatprep.subr.bf16.mxu0 0
      %1143 = vmatpush1.bf16.msra.mxu0 0
      %1144 = vmatprep.subr.bf16.mxu0 0
      %1145 = vmatpush1.bf16.msra.mxu0 0
      %1146 = vmatprep.subr.bf16.mxu0 0
      %1147 = vmatpush1.bf16.msra.mxu0 0
      %1148 = vmatprep.subr.bf16.mxu0 0
      %1149 = vmatpush1.bf16.msra.mxu0 0
      %1150 = vmatprep.mubr.bf16.mxu0 0
      %1151 = vmatmul.mubr.bf16.gmra.mrb[0].mxu0 %v1116
      %v1152 = vpop.f32.mrb[0].mxu0
      %v1153 = vadd.f32 %v1102, %v1152
      %v1154 = vpop.f32.mrb[0].mxu0
      %v1155 = vpop.f32.mrb[0].mxu0
      %v1156 = vadd.f32 %v1102, %v1155
      %v1157 = vpop.f32.mrb[0].mxu0
      %1158 = vdwg.mxu0
      %v1159 = vmul.f32 %v1153, %v1153
      %v1160 = vmul.f32 %v1156, %v1156
      %v1161 = vmul.f32 %v1153, %v1159
      %v1162 = vmul.f32 %v1156, %v1160
      %v1163 = vmul.f32 %v1161, 0.044715
      %v1164 = vmul.f32 %v1162, 0.044715
      %v1165 = vadd.f32 %v1153, %v1163
      %v1166 = vadd.f32 %v1156, %v1164
      %v1167 = vmul.f32 %v1165, 0.7978846
      %v1168 = vmul.f32 %v1166, 0.7978846
      %v1169 = vtanh.pop %v1167
      %v1170 = vtanh.pop %v1168
      %v1171 = vadd.f32 %v1169, 1.0
      %v1172 = vadd.f32 %v1170, 1.0
      %v1173 = vmul.f32 %v1171, 0.5
      %v1174 = vmul.f32 %v1172, 0.5
      %v1175 = vmul.f32 %v1153, %v1173
      %v1176 = vmul.f32 %v1156, %v1174
      %v1177 = vpack.c.bf16 %v1176, %v1175
      %v1178 = vlaneseq
      %v1179 = vshrl.u32 %v1178, 7
      %v1180 = vsub.s32 3, %v1179
      %v1181 = vrot.slane %v308, %v1180
      %v1190 = vunpack.c.l.b16 %v325
      %v1191 = vunpack.c.l.b16 %v326
      %v1192 = vunpack.c.l.b16 %v327
      %v1193 = vunpack.c.l.b16 %v328
      %v1194 = vunpack.c.l.b16 %v329
      %v1195 = vunpack.c.l.b16 %v330
      %v1196 = vunpack.c.l.b16 %v331
      %v1197 = vunpack.c.l.b16 %v332
      %v1198 = vpack.c.b16 %v1191, %v1190
      %v1199 = vpack.c.b16 %v1193, %v1192
      %v1200 = vpack.c.b16 %v1195, %v1194
      %v1201 = vpack.c.b16 %v1197, %v1196
      %vm1206 = vcmask 523264
      %v1208 = vsel %vm1206, %v1177, 0
      %1210 = vmatprep.subr.bf16.mxu0 0
      %1211 = vmatpush1.bf16.msra.mxu0 %v1198
      %1212 = vmatprep.subr.bf16.mxu0 0
      %1213 = vmatpush1.bf16.msra.mxu0 %v1199
      %1214 = vmatprep.subr.bf16.mxu0 0
      %1215 = vmatpush1.bf16.msra.mxu0 %v1200
      %1216 = vmatprep.subr.bf16.mxu0 0
      %1217 = vmatpush1.bf16.msra.mxu0 %v1201
      %1218 = vmatprep.subr.bf16.mxu0 0
      %1219 = vmatpush1.bf16.msra.mxu0 0
      %1220 = vmatprep.subr.bf16.mxu0 0
      %1221 = vmatpush1.bf16.msra.mxu0 0
      %1222 = vmatprep.subr.bf16.mxu0 0
      %1223 = vmatpush1.bf16.msra.mxu0 0
      %1224 = vmatprep.subr.bf16.mxu0 0
      %1225 = vmatpush1.bf16.msra.mxu0 0
      %1226 = vmatprep.subr.bf16.mxu0 0
      %1227 = vmatpush1.bf16.msra.mxu0 0
      %1228 = vmatprep.subr.bf16.mxu0 0
      %1229 = vmatpush1.bf16.msra.mxu0 0
      %1230 = vmatprep.subr.bf16.mxu0 0
      %1231 = vmatpush1.bf16.msra.mxu0 0
      %1232 = vmatprep.subr.bf16.mxu0 0
      %1233 = vmatpush1.bf16.msra.mxu0 0
      %1234 = vmatprep.subr.bf16.mxu0 0
      %1235 = vmatpush1.bf16.msra.mxu0 0
      %1236 = vmatprep.subr.bf16.mxu0 0
      %1237 = vmatpush1.bf16.msra.mxu0 0
      %1238 = vmatprep.subr.bf16.mxu0 0
      %1239 = vmatpush1.bf16.msra.mxu0 0
      %1240 = vmatprep.subr.bf16.mxu0 0
      %1241 = vmatpush1.bf16.msra.mxu0 0
      %1242 = vmatprep.mubr.bf16.mxu0 0
      %1243 = vmatmul.mubr.bf16.gmra.mrb[0].mxu0 %v1208
      %v1244 = vpop.f32.mrb[0].mxu0
      %v1245 = vadd.f32 %v1181, %v1244
      %v1246 = vpop.f32.mrb[0].mxu0
      %v1247 = vpop.f32.mrb[0].mxu0
      %v1248 = vadd.f32 %v1181, %v1247
      %v1249 = vpop.f32.mrb[0].mxu0
      %1250 = vdwg.mxu0
      %v1251 = vadd.f32 %v1058, %v1245
      %v1252 = vadd.f32 %v1059, %v1248
      %v1253 = vsel %vm333, %v1251, 0.0
      %1254 = vadd.xlane.f32.xlu0 %v1253
      %v1255 = vpop.xlane.xlu0 %1254
      %v1256 = vsel %vm333, %v1252, 0.0
      %1257 = vadd.xlane.f32.xlu0 %v1256
      %v1258 = vpop.xlane.xlu0 %1257
      %v1259 = vmul.f32 %v1255, %v340
      %v1260 = vmul.f32 %v1258, %v340
      %v1261 = vsub.f32 %v1251, %v1259
      %v1262 = vsub.f32 %v1252, %v1260
      %v1263 = vmul.f32 %v1261, %v1261
      %v1264 = vmul.f32 %v1262, %v1262
      %v1265 = vsel %vm333, %v1263, 0.0
      %1266 = vadd.xlane.f32.xlu0 %v1265
      %v1267 = vpop.xlane.xlu0 %1266
      %v1268 = vsel %vm333, %v1264, 0.0
      %1269 = vadd.xlane.f32.xlu0 %v1268
      %v1270 = vpop.xlane.xlu0 %1269
      %v1271 = vmul.f32 %v1267, %v340
      %v1272 = vmul.f32 %v1270, %v340
      %v1273 = vadd.f32 %v1271, 1e-06
      %v1274 = vadd.f32 %v1272, 1e-06
      %v1275 = vrsqrt.pop %v1273
      %v1276 = vrsqrt.pop %v1274
      %v1277 = vmul.f32 %v1261, %v1275
      %v1278 = vmul.f32 %v1262, %v1276
      %v1279 = vlaneseq
      %v1280 = vshrl.u32 %v1279, 7
      %v1281 = vsub.s32 4, %v1280
      %v1282 = vrot.slane %v307, %v1281
      %v1283 = vmul.f32 %v1277, %v1282
      %v1284 = vmul.f32 %v1278, %v1282
      %v1285 = vlaneseq
      %v1286 = vshrl.u32 %v1285, 7
      %v1287 = vsub.s32 5, %v1286
      %v1288 = vrot.slane %v307, %v1287
      %v1289 = vadd.f32 %v1283, %v1288
      %v1290 = vadd.f32 %v1284, %v1288
      %v1291 = vpack.c.bf16 %v1290, %v1289
      %v1292 = vld [vmem:[%s5] sm:$0xf]
      %v1293 = vld [vmem:[%s5 + $0x4] sm:$0xf]
      %v1294 = vld [vmem:[%s5 + $0x8] sm:$0xf]
      %v1295 = vld [vmem:[%s5 + $0xc] sm:$0xf]
      %v1296 = vlaneseq
      %v1297 = vshrl.u32 %v1296, 7
      %v1298 = vsub.s32 4, %v1297
      %v1299 = vrot.slane %v308, %v1298
      %v1304 = vunpack.c.l.b16 %v1292
      %v1305 = vunpack.c.l.b16 %v1293
      %v1306 = vunpack.c.l.b16 %v1294
      %v1307 = vunpack.c.l.b16 %v1295
      %v1308 = vpack.c.b16 %v1305, %v1304
      %v1309 = vpack.c.b16 %v1307, %v1306
      %v1313 = vsel %vm333, %v1291, 0
      %1315 = vmatprep.subr.bf16.mxu0 0
      %1316 = vmatpush1.bf16.msra.mxu0 %v1308
      %1317 = vmatprep.subr.bf16.mxu0 0
      %1318 = vmatpush1.bf16.msra.mxu0 %v1309
      %1319 = vmatprep.subr.bf16.mxu0 0
      %1320 = vmatpush1.bf16.msra.mxu0 0
      %1321 = vmatprep.subr.bf16.mxu0 0
      %1322 = vmatpush1.bf16.msra.mxu0 0
      %1323 = vmatprep.subr.bf16.mxu0 0
      %1324 = vmatpush1.bf16.msra.mxu0 0
      %1325 = vmatprep.subr.bf16.mxu0 0
      %1326 = vmatpush1.bf16.msra.mxu0 0
      %1327 = vmatprep.subr.bf16.mxu0 0
      %1328 = vmatpush1.bf16.msra.mxu0 0
      %1329 = vmatprep.subr.bf16.mxu0 0
      %1330 = vmatpush1.bf16.msra.mxu0 0
      %1331 = vmatprep.subr.bf16.mxu0 0
      %1332 = vmatpush1.bf16.msra.mxu0 0
      %1333 = vmatprep.subr.bf16.mxu0 0
      %1334 = vmatpush1.bf16.msra.mxu0 0
      %1335 = vmatprep.subr.bf16.mxu0 0
      %1336 = vmatpush1.bf16.msra.mxu0 0
      %1337 = vmatprep.subr.bf16.mxu0 0
      %1338 = vmatpush1.bf16.msra.mxu0 0
      %1339 = vmatprep.subr.bf16.mxu0 0
      %1340 = vmatpush1.bf16.msra.mxu0 0
      %1341 = vmatprep.subr.bf16.mxu0 0
      %1342 = vmatpush1.bf16.msra.mxu0 0
      %1343 = vmatprep.subr.bf16.mxu0 0
      %1344 = vmatpush1.bf16.msra.mxu0 0
      %1345 = vmatprep.subr.bf16.mxu0 0
      %1346 = vmatpush1.bf16.msra.mxu0 0
      %1347 = vmatprep.mubr.bf16.mxu0 0
      %1348 = vmatmul.mubr.bf16.gmra.mrb[0].mxu0 %v1313
      %v1349 = vpop.f32.mrb[0].mxu0
      %v1350 = vadd.f32 %v1299, %v1349
      %v1351 = vpop.f32.mrb[0].mxu0
      %v1352 = vpop.f32.mrb[0].mxu0
      %v1353 = vadd.f32 %v1299, %v1352
      %v1354 = vpop.f32.mrb[0].mxu0
      %1355 = vdwg.mxu0
      %v1356 = vpack.c.bf16 %v1353, %v1350
      %v1358 = vunpack.c.l.b16 %v1356
      %v1359 = vunpack.c.h.b16 %v1356
      %v1360 = vpack.c.b16 %v1358, %v1358
      %v1361 = vpack.c.b16 %v1359, %v1359
      %vm1364 = vcmask 519168
      %1365 = vst.msk [vmem:[%s305] sm:$0xf] %vm1364, %v1360
      %1366 = vst.msk [vmem:[%s305 + $0x4] sm:$0xf] %vm1364, %v1361
      %p1367 = scmp.lt.s32.totalorder %s19, 1
      %s1368 = scalar_select %p1367, %s19, 1
      %s1369 = smul.addr %s1368, 2
      %s1370 = smul.addr %s1369, 4
      %s1371 = scalar_lea.vmem %s8, %s1370
      // Predicated region
      $region53: #{flan_xl_vqa_forward.6} parent=51 // pred_check
        %p1372 = pneg %p210
      $region54: #{flan_xl_vqa_forward.6} parent=51 // pred_check_branch
        %1374 = sbr.rel (%p1372) target = $region56
      $region55: #{flan_xl_vqa_forward.6} parent=51 // pred_region
        _
      $region56: #{flan_xl_vqa_forward.6} parent=51 // pred_fallthru
        _
    $region52: #{flan_xl_vqa_forward.6} parent=5 // pred_fallthru
      _
    %p1375 = scmp.le.s32.totalorder 2, %s14
    // Predicated region
    $region57: #{flan_xl_vqa_forward.6} parent=5 // pred_check
      %p1376 = pneg %p1375
    $region58: #{flan_xl_vqa_forward.6} parent=5 // pred_check_branch
      %1378 = sbr.rel (%p1376) target = $region60
    $region59: #{flan_xl_vqa_forward.6} parent=5 // pred_region
      %s1379 = ssub.s32 %s14, 2
      // Predicated region
      $region61: #{flan_xl_vqa_forward.6} parent=59 // pred_check
        %p1380 = pneg %p216
      $region62: #{flan_xl_vqa_forward.6} parent=59 // pred_check_branch
        %1382 = sbr.rel (%p1380) target = $region64
      $region63: #{flan_xl_vqa_forward.6} parent=59 // pred_region
        %p1383 = scmp.lt.s32.totalorder %s20, 1
        %s1384 = scalar_select %p1383, %s20, 1
        %s1385 = smul.addr %s1384, 2
        %s1386 = smul.addr %s1385, 4
        %s1387 = scalar_lea.vmem %s8, %s1386
      $region64: #{flan_xl_vqa_forward.6} parent=59 // pred_fallthru
        _
    $region60: #{flan_xl_vqa_forward.6} parent=5 // pred_fallthru
      _
  $region6: #{flan_xl_vqa_forward.6} parent=0 // loop_footer
    %s18 = sadd.s32 1, %s14
  $region7: #{flan_xl_vqa_forward.6} parent=0 // loop_footer_branch
    %13 = sbr.rel target = $region3
  $region8: #{flan_xl_vqa_forward.6} parent=0 // loop_exit
    _

// kernel: flan_xl_vqa_forward.4
$region0: #{flan_xl_vqa_forward.4}
  #allocation0 [shape = 'u32[]', space=smem, size = 0x4, offset = 0x4, fixed_abs, tag = 'smem constant byte address 0x4 - core index']
  #allocation1 [shape = 'u32[144,128]{1,0:T(1,128)}', space=vmem, size = 0x12000, scoped, tag = 'internal scratch']
  %s0 = inlined_call_operand.vmem [shape: f32[2,16,48], index: 0, kind: input, shape index: {}]
  %s1 = inlined_call_operand.vmem [shape: f32[1,16,32], index: 1, kind: input, shape index: {}]
  %s2 = inlined_call_operand.vmem [shape: bf16[48,32], index: 2, kind: input, shape index: {}]
  %s3 = inlined_call_operand.vmem [shape: bf16[32,96], index: 3, kind: input, shape index: {}]
  %s4 = inlined_call_operand.vmem [shape: bf16[32,32], index: 4, kind: input, shape index: {}]
  %s5 = inlined_call_operand.vmem [shape: bf16[32,64], index: 5, kind: input, shape index: {}]
  %s6 = inlined_call_operand.vmem [shape: bf16[64,32], index: 6, kind: input, shape index: {}]
  %s7 = inlined_call_operand.vmem [shape: f32[4,32], index: 7, kind: input, shape index: {}]
  %s8 = inlined_call_operand.vmem [shape: f32[5,96], index: 8, kind: input, shape index: {}]
  %s9 = inlined_call_operand.vmem [shape: bf16[2,16,32], index: 9, kind: output, shape index: {}]
  %s10 = sld [smem:[#allocation0]]
  $region69: #{flan_xl_vqa_forward.4} parent=0
    _
  %s12 = ssub.s32 1, %s10
  %s13 = scalar_select 0, %s12, %s10
  loop: start=0, step=1, limit=4
  $region2: #{flan_xl_vqa_forward.4} parent=0 // loop_pre_header
    _
  $region3: #{flan_xl_vqa_forward.4} parent=0 // loop_header
    %s15 = sphi 0, %s19
    %p16 = scmp.ge.s32.totalorder %s15, 4
    %s25 = sphi 0, %s27
    %s28 = sphi 0, %s25
    %s29 = sphi 0, %s28
    %s45 = sphi 0, %s29
    %s49 = sphi 0, %s49
    %s51 = sphi 0, %s49
    %s52 = sphi 0, %s51
    %s66 = sphi 0, %s52
    %s70 = sphi 0, %s70
    %s72 = sphi 0, %s70
    %s73 = sphi 0, %s72
    %s87 = sphi 0, %s73
    %s91 = sphi 0, %s91
    %s93 = sphi 0, %s91
    %s94 = sphi 0, %s93
    %s108 = sphi 0, %s94
    %s112 = sphi 0, %s112
    %s114 = sphi 0, %s112
    %s115 = sphi 0, %s114
    %s129 = sphi 0, %s115
    %s133 = sphi 0, %s133
    %s135 = sphi 0, %s133
    %s136 = sphi 0, %s135
    %s150 = sphi 0, %s136
    %s154 = sphi 0, %s154
    %s156 = sphi 0, %s154
    %s157 = sphi 0, %s156
    %s171 = sphi 0, %s157
    %s175 = sphi 0, %s175
    %s177 = sphi 0, %s175
    %s178 = sphi 0, %s177
    %s192 = sphi 0, %s178
    %s196 = sphi 0, %s196
    %s198 = sphi 0, %s196
    %s199 = sphi 0, %s198
    %s213 = sphi 0, %s199
    %s219 = sphi 0, %s221
    %s222 = sphi 0, %s219
    %s223 = sphi 0, %s222
    %s239 = sphi 0, %s223
  $region4: #{flan_xl_vqa_forward.4} parent=0 // loop_header_branch
    %18 = sbr.rel (%p16) target = $region8
  $region5: #{flan_xl_vqa_forward.4} parent=0 // loop_body
    %s20 = ssub.s32 %s15, 1
    %s21 = ssub.s32 %s15, 2
    %s22 = sadd.s32 %s15, 1
    %s23 = ssub.s32 %s15, %s22
    %p24 = scmp.eq.s32.totalorder %s23, 0
    %s26 = sadd.s32 %s25, 1
    %s27 = scalar_select %p24, %s25, %s26
    %p30 = pneg %p24
    %p31 = scmp.eq.s32.totalorder %s15, 1
    %p32 = por %p30, %p31
    %p33 = scmp.ne.s32.totalorder %s25, %s28
    %p34 = scmp.eq.s32.totalorder %s15, 0
    %p35 = por %p33, %p34
    %p36 = scmp.ne.s32.totalorder %s25, %s28
    %p37 = scmp.eq.s32.totalorder %s20, 1
    %p38 = por %p36, %p37
    %p39 = scmp.ne.s32.totalorder %s28, %s29
    %p40 = scmp.eq.s32.totalorder %s20, 0
    %p41 = por %p39, %p40
    %p42 = scmp.ne.s32.totalorder %s28, %s29
    %p43 = scmp.eq.s32.totalorder %s21, 1
    %p44 = por %p42, %p43
    %p46 = scmp.ne.s32.totalorder %s29, %s45
    %p47 = scmp.eq.s32.totalorder %s21, 0
    %p48 = por %p46, %p47
    %s50 = sadd.s32 %s49, 1
    %p53 = scmp.eq.s32.totalorder %s15, 1
    %p54 = scmp.ne.s32.totalorder %s49, %s51
    %p55 = scmp.eq.s32.totalorder %s15, 0
    %p56 = por %p54, %p55
    %p57 = scmp.ne.s32.totalorder %s49, %s51
    %p58 = scmp.eq.s32.totalorder %s20, 1
    %p59 = por %p57, %p58
    %p60 = scmp.ne.s32.totalorder %s51, %s52
    %p61 = scmp.eq.s32.totalorder %s20, 0
    %p62 = por %p60, %p61
    %p63 = scmp.ne.s32.totalorder %s51, %s52
    %p64 = scmp.eq.s32.totalorder %s21, 1
    %p65 = por %p63, %p64
    %p67 = scmp.ne.s32.totalorder %s52, %s66
    %p68 = scmp.eq.s32.totalorder %s21, 0
    %p69 = por %p67, %p68
    %s71 = sadd.s32 %s70, 1
    %p74 = scmp.eq.s32.totalorder %s15, 1
    %p75 = scmp.ne.s32.totalorder %s70, %s72
    %p76 = scmp.eq.s32.totalorder %s15, 0
    %p77 = por %p75, %p76
    %p78 = scmp.ne.s32.totalorder %s70, %s72
    %p79 = scmp.eq.s32.totalorder %s20, 1
    %p80 = por %p78, %p79
    %p81 = scmp.ne.s32.totalorder %s72, %s73
    %p82 = scmp.eq.s32.totalorder %s20, 0
    %p83 = por %p81, %p82
    %p84 = scmp.ne.s32.totalorder %s72, %s73
    %p85 = scmp.eq.s32.totalorder %s21, 1
    %p86 = por %p84, %p85
    %p88 = scmp.ne.s32.totalorder %s73, %s87
    %p89 = scmp.eq.s32.totalorder %s21, 0
    %p90 = por %p88, %p89
    %s92 = sadd.s32 %s91, 1
    %p95 = scmp.eq.s32.totalorder %s15, 1
    %p96 = scmp.ne.s32.totalorder %s91, %s93
    %p97 = scmp.eq.s32.totalorder %s15, 0
    %p98 = por %p96, %p97
    %p99 = scmp.ne.s32.totalorder %s91, %s93
    %p100 = scmp.eq.s32.totalorder %s20, 1
    %p101 = por %p99, %p100
    %p102 = scmp.ne.s32.totalorder %s93, %s94
    %p103 = scmp.eq.s32.totalorder %s20, 0
    %p104 = por %p102, %p103
    %p105 = scmp.ne.s32.totalorder %s93, %s94
    %p106 = scmp.eq.s32.totalorder %s21, 1
    %p107 = por %p105, %p106
    %p109 = scmp.ne.s32.totalorder %s94, %s108
    %p110 = scmp.eq.s32.totalorder %s21, 0
    %p111 = por %p109, %p110
    %s113 = sadd.s32 %s112, 1
    %p116 = scmp.eq.s32.totalorder %s15, 1
    %p117 = scmp.ne.s32.totalorder %s112, %s114
    %p118 = scmp.eq.s32.totalorder %s15, 0
    %p119 = por %p117, %p118
    %p120 = scmp.ne.s32.totalorder %s112, %s114
    %p121 = scmp.eq.s32.totalorder %s20, 1
    %p122 = por %p120, %p121
    %p123 = scmp.ne.s32.totalorder %s114, %s115
    %p124 = scmp.eq.s32.totalorder %s20, 0
    %p125 = por %p123, %p124
    %p126 = scmp.ne.s32.totalorder %s114, %s115
    %p127 = scmp.eq.s32.totalorder %s21, 1
    %p128 = por %p126, %p127
    %p130 = scmp.ne.s32.totalorder %s115, %s129
    %p131 = scmp.eq.s32.totalorder %s21, 0
    %p132 = por %p130, %p131
    %s134 = sadd.s32 %s133, 1
    %p137 = scmp.eq.s32.totalorder %s15, 1
    %p138 = scmp.ne.s32.totalorder %s133, %s135
    %p139 = scmp.eq.s32.totalorder %s15, 0
    %p140 = por %p138, %p139
    %p141 = scmp.ne.s32.totalorder %s133, %s135
    %p142 = scmp.eq.s32.totalorder %s20, 1
    %p143 = por %p141, %p142
    %p144 = scmp.ne.s32.totalorder %s135, %s136
    %p145 = scmp.eq.s32.totalorder %s20, 0
    %p146 = por %p144, %p145
    %p147 = scmp.ne.s32.totalorder %s135, %s136
    %p148 = scmp.eq.s32.totalorder %s21, 1
    %p149 = por %p147, %p148
    %p151 = scmp.ne.s32.totalorder %s136, %s150
    %p152 = scmp.eq.s32.totalorder %s21, 0
    %p153 = por %p151, %p152
    %s155 = sadd.s32 %s154, 1
    %p158 = scmp.eq.s32.totalorder %s15, 1
    %p159 = scmp.ne.s32.totalorder %s154, %s156
    %p160 = scmp.eq.s32.totalorder %s15, 0
    %p161 = por %p159, %p160
    %p162 = scmp.ne.s32.totalorder %s154, %s156
    %p163 = scmp.eq.s32.totalorder %s20, 1
    %p164 = por %p162, %p163
    %p165 = scmp.ne.s32.totalorder %s156, %s157
    %p166 = scmp.eq.s32.totalorder %s20, 0
    %p167 = por %p165, %p166
    %p168 = scmp.ne.s32.totalorder %s156, %s157
    %p169 = scmp.eq.s32.totalorder %s21, 1
    %p170 = por %p168, %p169
    %p172 = scmp.ne.s32.totalorder %s157, %s171
    %p173 = scmp.eq.s32.totalorder %s21, 0
    %p174 = por %p172, %p173
    %s176 = sadd.s32 %s175, 1
    %p179 = scmp.eq.s32.totalorder %s15, 1
    %p180 = scmp.ne.s32.totalorder %s175, %s177
    %p181 = scmp.eq.s32.totalorder %s15, 0
    %p182 = por %p180, %p181
    %p183 = scmp.ne.s32.totalorder %s175, %s177
    %p184 = scmp.eq.s32.totalorder %s20, 1
    %p185 = por %p183, %p184
    %p186 = scmp.ne.s32.totalorder %s177, %s178
    %p187 = scmp.eq.s32.totalorder %s20, 0
    %p188 = por %p186, %p187
    %p189 = scmp.ne.s32.totalorder %s177, %s178
    %p190 = scmp.eq.s32.totalorder %s21, 1
    %p191 = por %p189, %p190
    %p193 = scmp.ne.s32.totalorder %s178, %s192
    %p194 = scmp.eq.s32.totalorder %s21, 0
    %p195 = por %p193, %p194
    %s197 = sadd.s32 %s196, 1
    %p200 = scmp.eq.s32.totalorder %s15, 1
    %p201 = scmp.ne.s32.totalorder %s196, %s198
    %p202 = scmp.eq.s32.totalorder %s15, 0
    %p203 = por %p201, %p202
    %p204 = scmp.ne.s32.totalorder %s196, %s198
    %p205 = scmp.eq.s32.totalorder %s20, 1
    %p206 = por %p204, %p205
    %p207 = scmp.ne.s32.totalorder %s198, %s199
    %p208 = scmp.eq.s32.totalorder %s20, 0
    %p209 = por %p207, %p208
    %p210 = scmp.ne.s32.totalorder %s198, %s199
    %p211 = scmp.eq.s32.totalorder %s21, 1
    %p212 = por %p210, %p211
    %p214 = scmp.ne.s32.totalorder %s199, %s213
    %p215 = scmp.eq.s32.totalorder %s21, 0
    %p216 = por %p214, %p215
    %s217 = ssub.s32 %s15, %s22
    %p218 = scmp.eq.s32.totalorder %s217, 0
    %s220 = sadd.s32 %s219, 1
    %s221 = scalar_select %p218, %s219, %s220
    %p224 = pneg %p218
    %p225 = scmp.eq.s32.totalorder %s15, 1
    %p226 = por %p224, %p225
    %p227 = scmp.ne.s32.totalorder %s219, %s222
    %p228 = scmp.eq.s32.totalorder %s15, 0
    %p229 = por %p227, %p228
    %p230 = scmp.ne.s32.totalorder %s219, %s222
    %p231 = scmp.eq.s32.totalorder %s20, 1
    %p232 = por %p230, %p231
    %p233 = scmp.ne.s32.totalorder %s222, %s223
    %p234 = scmp.eq.s32.totalorder %s20, 0
    %p235 = por %p233, %p234
    %p236 = scmp.ne.s32.totalorder %s222, %s223
    %p237 = scmp.eq.s32.totalorder %s21, 1
    %p238 = por %p236, %p237
    %p240 = scmp.ne.s32.totalorder %s223, %s239
    %p241 = scmp.eq.s32.totalorder %s21, 0
    %p242 = por %p240, %p241
    %p243 = scmp.le.s32.totalorder 1, %s15
    %p244 = scmp.lt.s32.totalorder %s15, 3
    %p245 = pnand %p243, %p244
    %p246 = pneg %p245
    // Predicated region
    $region9: #{flan_xl_vqa_forward.4} parent=5 // pred_check
      _
    $region10: #{flan_xl_vqa_forward.4} parent=5 // pred_check_branch
      %248 = sbr.rel (%p245) target = $region12
    $region11: #{flan_xl_vqa_forward.4} parent=5 // pred_region
      %s249 = ssub.s32 %s15, 1
      // Predicated region
      $region13: #{flan_xl_vqa_forward.4} parent=11 // pred_check
        %p250 = pneg %p62
      $region14: #{flan_xl_vqa_forward.4} parent=11 // pred_check_branch
        %252 = sbr.rel (%p250) target = $region16
      $region15: #{flan_xl_vqa_forward.4} parent=11 // pred_region
        _
      $region16: #{flan_xl_vqa_forward.4} parent=11 // pred_fallthru
        _
      // Predicated region
      $region17: #{flan_xl_vqa_forward.4} parent=11 // pred_check
        %p253 = pneg %p83
      $region18: #{flan_xl_vqa_forward.4} parent=11 // pred_check_branch
        %255 = sbr.rel (%p253) target = $region20
      $region19: #{flan_xl_vqa_forward.4} parent=11 // pred_region
        _
      $region20: #{flan_xl_vqa_forward.4} parent=11 // pred_fallthru
        _
      // Predicated region
      $region21: #{flan_xl_vqa_forward.4} parent=11 // pred_check
        %p256 = pneg %p104
      $region22: #{flan_xl_vqa_forward.4} parent=11 // pred_check_branch
        %258 = sbr.rel (%p256) target = $region24
      $region23: #{flan_xl_vqa_forward.4} parent=11 // pred_region
        _
      $region24: #{flan_xl_vqa_forward.4} parent=11 // pred_fallthru
        _
      // Predicated region
      $region25: #{flan_xl_vqa_forward.4} parent=11 // pred_check
        %p259 = pneg %p125
      $region26: #{flan_xl_vqa_forward.4} parent=11 // pred_check_branch
        %261 = sbr.rel (%p259) target = $region28
      $region27: #{flan_xl_vqa_forward.4} parent=11 // pred_region
        _
      $region28: #{flan_xl_vqa_forward.4} parent=11 // pred_fallthru
        _
      // Predicated region
      $region29: #{flan_xl_vqa_forward.4} parent=11 // pred_check
        %p262 = pneg %p146
      $region30: #{flan_xl_vqa_forward.4} parent=11 // pred_check_branch
        %264 = sbr.rel (%p262) target = $region32
      $region31: #{flan_xl_vqa_forward.4} parent=11 // pred_region
        _
      $region32: #{flan_xl_vqa_forward.4} parent=11 // pred_fallthru
        _
      // Predicated region
      $region33: #{flan_xl_vqa_forward.4} parent=11 // pred_check
        %p265 = pneg %p167
      $region34: #{flan_xl_vqa_forward.4} parent=11 // pred_check_branch
        %267 = sbr.rel (%p265) target = $region36
      $region35: #{flan_xl_vqa_forward.4} parent=11 // pred_region
        _
      $region36: #{flan_xl_vqa_forward.4} parent=11 // pred_fallthru
        _
      // Predicated region
      $region37: #{flan_xl_vqa_forward.4} parent=11 // pred_check
        %p268 = pneg %p188
      $region38: #{flan_xl_vqa_forward.4} parent=11 // pred_check_branch
        %270 = sbr.rel (%p268) target = $region40
      $region39: #{flan_xl_vqa_forward.4} parent=11 // pred_region
        _
      $region40: #{flan_xl_vqa_forward.4} parent=11 // pred_fallthru
        _
      // Predicated region
      $region41: #{flan_xl_vqa_forward.4} parent=11 // pred_check
        %p271 = pneg %p209
      $region42: #{flan_xl_vqa_forward.4} parent=11 // pred_check_branch
        %273 = sbr.rel (%p271) target = $region44
      $region43: #{flan_xl_vqa_forward.4} parent=11 // pred_region
        _
      $region44: #{flan_xl_vqa_forward.4} parent=11 // pred_fallthru
        _
    $region12: #{flan_xl_vqa_forward.4} parent=5 // pred_fallthru
      _
    %p274 = scmp.lt.s32.totalorder %s15, 2
    // Predicated region
    $region45: #{flan_xl_vqa_forward.4} parent=5 // pred_check
      %p275 = pneg %p274
    $region46: #{flan_xl_vqa_forward.4} parent=5 // pred_check_branch
      %277 = sbr.rel (%p275) target = $region48
    $region47: #{flan_xl_vqa_forward.4} parent=5 // pred_region
      // Predicated region
      $region49: #{flan_xl_vqa_forward.4} parent=47 // pred_check
        %p278 = pneg %p35
      $region50: #{flan_xl_vqa_forward.4} parent=47 // pred_check_branch
        %280 = sbr.rel (%p278) target = $region52
      $region51: #{flan_xl_vqa_forward.4} parent=47 // pred_region
        %p281 = scmp.lt.s32.totalorder %s15, 1
        %s282 = scalar_select %p281, %s15, 1
        %s283 = smul.addr %s282, 2
        %s284 = smul.addr %s283, 8
        %s285 = scalar_lea.vmem %s0, %s284
      $region52: #{flan_xl_vqa_forward.4} parent=47 // pred_fallthru
        _
    $region48: #{flan_xl_vqa_forward.4} parent=5 // pred_fallthru
      _
    %p286 = scmp.le.s32.totalorder 1, %s15
    %p287 = scmp.lt.s32.totalorder %s15, 3
    %p288 = pnand %p286, %p287
    %p289 = pneg %p288
    // Predicated region
    $region53: #{flan_xl_vqa_forward.4} parent=5 // pred_check
      _
    $region54: #{flan_xl_vqa_forward.4} parent=5 // pred_check_branch
      %291 = sbr.rel (%p288) target = $region56
    $region55: #{flan_xl_vqa_forward.4} parent=5 // pred_region
      %s292 = ssub.s32 %s15, 1
      %p293 = scmp.lt.s32.totalorder %s20, 1
      %s294 = scalar_select %p293, %s20, 1
      %s295 = smul.addr %s294, 2
      %s296 = smul.addr %s295, 8
      %s297 = scalar_lea.vmem %s0, %s296
      %p298 = pneg %p41
      %p299 = pneg %p38
      %p300 = pneg %p62
      %p301 = pneg %p59
      %p302 = pneg %p83
      %p303 = pneg %p80
      %p304 = pneg %p104
      %p305 = pneg %p101
      %p306 = pneg %p125
      %p307 = pneg %p122
      %p308 = pneg %p146
      %p309 = pneg %p143
      %p310 = pneg %p167
      %p311 = pneg %p164
      %p312 = pneg %p188
      %p313 = pneg %p185
      %p314 = pneg %p209
      %p315 = pneg %p206
      %p316 = pneg %p235
      %p317 = pneg %p232
      %p318 = scmp.lt.s32.totalorder %s20, 1
      %s319 = scalar_select %p318, %s20, 1
      %s320 = smul.addr %s319, 2
      %s321 = smul.addr %s320, 4
      %s322 = scalar_lea.vmem %s9, %s321
      %p323 = scmp.lt.s32.totalorder %s20, 1
      %s324 = scalar_select %p323, %s20, 1
      %s325 = smul.addr %s324, 2
      %s326 = smul.addr %s325, 8
      %s327 = scalar_lea.vmem %s0, %s326
      %p328 = scmp.lt.s32.totalorder %s20, 1
      %s329 = scalar_select %p328, %s20, 1
      %s330 = smul.addr %s329, 2
      %s331 = smul.addr %s330, 4
      %s332 = scalar_lea.vmem %s9, %s331
      %v334 = vld [vmem:[%s7] sm:$0xf]
      %v335 = vld [vmem:[%s8] sm:$0x1f]
      %v336 = vld [vmem:[%s327] sm:$0xff]
      %v337 = vld [vmem:[%s327 + $0x8] sm:$0xff]
      %v338 = vpack.c.bf16 %v337, %v336
      %v339 = vld [vmem:[%s2] sm:$0xf]
      %v340 = vld [vmem:[%s2 + $0x4] sm:$0xf]
      %v341 = vld [vmem:[%s2 + $0x8] sm:$0xf]
      %v342 = vld [vmem:[%s2 + $0xc] sm:$0xf]
      %v343 = vld [vmem:[%s2 + $0x10] sm:$0xf]
      %v344 = vld [vmem:[%s2 + $0x14] sm:$0xf]
      %v345 = vlaneseq
      %v346 = vshrl.u32 %v345, 7
      %v347 = vsub.s32 0, %v346
      %v348 = vrot.slane %v335, %v347
      %v355 = vunpack.c.l.b16 %v339
      %v356 = vunpack.c.l.b16 %v340
      %v357 = vunpack.c.l.b16 %v341
      %v358 = vunpack.c.l.b16 %v342
      %v359 = vunpack.c.l.b16 %v343
      %v360 = vunpack.c.l.b16 %v344
      %v361 = vpack.c.b16 %v356, %v355
      %v362 = vpack.c.b16 %v358, %v357
      %v363 = vpack.c.b16 %v360, %v359
      %vm367 = vcmask 392192
      %v369 = vsel %vm367, %v338, 0
      %371 = vmatprep.subr.bf16.mxu0 0
      %372 = vmatpush1.bf16.msra.mxu0 %v361
      %373 = vmatprep.subr.bf16.mxu0 0
      %374 = vmatpush1.bf16.msra.mxu0 %v362
      %375 = vmatprep.subr.bf16.mxu0 0
      %376 = vmatpush1.bf16.msra.mxu0 %v363
      %377 = vmatprep.subr.bf16.mxu0 0
      %378 = vmatpush1.bf16.msra.mxu0 0
      %379 = vmatprep.subr.bf16.mxu0 0
      %380 = vmatpush1.bf16.msra.mxu0 0
      %381 = vmatprep.subr.bf16.mxu0 0
      %382 = vmatpush1.bf16.msra.mxu0 0
      %383 = vmatprep.subr.bf16.mxu0 0
      %384 = vmatpush1.bf16.msra.mxu0 0
      %385 = vmatprep.subr.bf16.mxu0 0
      %386 = vmatpush1.bf16.msra.mxu0 0
      %387 = vmatprep.subr.bf16.mxu0 0
      %388 = vmatpush1.bf16.msra.mxu0 0
      %389 = vmatprep.subr.bf16.mxu0 0
      %390 = vmatpush1.bf16.msra.mxu0 0
      %391 = vmatprep.subr.bf16.mxu0 0
      %392 = vmatpush1.bf16.msra.mxu0 0
      %393 = vmatprep.subr.bf16.mxu0 0
      %394 = vmatpush1.bf16.msra.mxu0 0
      %395 = vmatprep.subr.bf16.mxu0 0
      %396 = vmatpush1.bf16.msra.mxu0 0
      %397 = vmatprep.subr.bf16.mxu0 0
      %398 = vmatpush1.bf16.msra.mxu0 0
      %399 = vmatprep.subr.bf16.mxu0 0
      %400 = vmatpush1.bf16.msra.mxu0 0
      %401 = vmatprep.subr.bf16.mxu0 0
      %402 = vmatpush1.bf16.msra.mxu0 0
      %403 = vmatprep.mubr.bf16.mxu0 0
      %404 = vmatmul.mubr.bf16.gmra.mrb[0].mxu0 %v369
      %v405 = vpop.f32.mrb[0].mxu0
      %v406 = vadd.f32 %v348, %v405
      %v407 = vpop.f32.mrb[0].mxu0
      %v408 = vpop.f32.mrb[0].mxu0
      %v409 = vadd.f32 %v348, %v408
      %v410 = vpop.f32.mrb[0].mxu0
      %411 = vdwg.mxu0
      %v412 = vld [vmem:[%s1] sm:$0xff]
      %v413 = vld [vmem:[%s1 + $0x8] sm:$0xff]
      %v414 = vadd.f32 %v406, %v412
      %v415 = vadd.f32 %v409, %v413
      %v416 = vld [vmem:[%s3] sm:$0xf]
      %v417 = vld [vmem:[%s3 + $0x4] sm:$0xf]
      %v418 = vld [vmem:[%s3 + $0x8] sm:$0xf]
      %v419 = vld [vmem:[%s3 + $0xc] sm:$0xf]
      %v420 = vld [vmem:[%s4] sm:$0xf]
      %v421 = vld [vmem:[%s4 + $0x4] sm:$0xf]
      %v422 = vld [vmem:[%s4 + $0x8] sm:$0xf]
      %v423 = vld [vmem:[%s4 + $0xc] sm:$0xf]
      %v424 = vld [vmem:[%s5] sm:$0xf]
      %v425 = vld [vmem:[%s5 + $0x4] sm:$0xf]
      %v426 = vld [vmem:[%s5 + $0x8] sm:$0xf]
      %v427 = vld [vmem:[%s5 + $0xc] sm:$0xf]
      %v428 = vld [vmem:[%s6] sm:$0xf]
      %v429 = vld [vmem:[%s6 + $0x4] sm:$0xf]
      %v430 = vld [vmem:[%s6 + $0x8] sm:$0xf]
      %v431 = vld [vmem:[%s6 + $0xc] sm:$0xf]
      %v432 = vld [vmem:[%s6 + $0x10] sm:$0xf]
      %v433 = vld [vmem:[%s6 + $0x14] sm:$0xf]
      %v434 = vld [vmem:[%s6 + $0x18] sm:$0xf]
      %v435 = vld [vmem:[%s6 + $0x1c] sm:$0xf]
      %vm436 = vcmask 261120
      %v437 = vsel %vm436, %v414, 0.0
      %438 = vadd.xlane.f32.xlu0 %v437
      %v439 = vpop.xlane.xlu0 %438
      %v440 = vsel %vm436, %v415, 0.0
      %441 = vadd.xlane.f32.xlu0 %v440
      %v442 = vpop.xlane.xlu0 %441
      %v443 = vrcp.pop 32.0
      %v444 = vmul.f32 %v439, %v443
      %v445 = vmul.f32 %v442, %v443
      %v446 = vsub.f32 %v414, %v444
      %v447 = vsub.f32 %v415, %v445
      %v448 = vmul.f32 %v446, %v446
      %v449 = vmul.f32 %v447, %v447
      %v450 = vsel %vm436, %v448, 0.0
      %451 = vadd.xlane.f32.xlu0 %v450
      %v452 = vpop.xlane.xlu0 %451
      %v453 = vsel %vm436, %v449, 0.0
      %454 = vadd.xlane.f32.xlu0 %v453
      %v455 = vpop.xlane.xlu0 %454
      %v456 = vmul.f32 %v452, %v443
      %v457 = vmul.f32 %v455, %v443
      %v458 = vadd.f32 %v456, 1e-06
      %v459 = vadd.f32 %v457, 1e-06
      %v460 = vrsqrt.pop %v458
      %v461 = vrsqrt.pop %v459
      %v462 = vmul.f32 %v446, %v460
      %v463 = vmul.f32 %v447, %v461
      %v464 = vlaneseq
      %v465 = vshrl.u32 %v464, 7
      %v466 = vsub.s32 0, %v465
      %v467 = vrot.slane %v334, %v466
      %v468 = vmul.f32 %v462, %v467
      %v469 = vmul.f32 %v463, %v467
      %v470 = vlaneseq
      %v471 = vshrl.u32 %v470, 7
      %v472 = vsub.s32 1, %v471
      %v473 = vrot.slane %v334, %v472
      %v474 = vadd.f32 %v468, %v473
      %v475 = vadd.f32 %v469, %v473
      %v476 = vpack.c.bf16 %v475, %v474
      %v477 = vlaneseq
      %v478 = vshrl.u32 %v477, 7
      %v479 = vsub.s32 1, %v478
      %v480 = vrot.slane %v335, %v479
      %v485 = vunpack.c.l.b16 %v416
      %v486 = vunpack.c.l.b16 %v417
      %v487 = vunpack.c.l.b16 %v418
      %v488 = vunpack.c.l.b16 %v419
      %v489 = vpack.c.b16 %v486, %v485
      %v490 = vpack.c.b16 %v488, %v487
      %v494 = vsel %vm436, %v476, 0
      %496 = vmatprep.subr.bf16.mxu0 0
      %497 = vmatpush1.bf16.msra.mxu0 %v489
      %498 = vmatprep.subr.bf16.mxu0 0
      %499 = vmatpush1.bf16.msra.mxu0 %v490
      %500 = vmatprep.subr.bf16.mxu0 0
      %501 = vmatpush1.bf16.msra.mxu0 0
      %502 = vmatprep.subr.bf16.mxu0 0
      %503 = vmatpush1.bf16.msra.mxu0 0
      %504 = vmatprep.subr.bf16.mxu0 0
      %505 = vmatpush1.bf16.msra.mxu0 0
      %506 = vmatprep.subr.bf16.mxu0 0
      %507 = vmatpush1.bf16.msra.mxu0 0
      %508 = vmatprep.subr.bf16.mxu0 0
      %509 = vmatpush1.bf16.msra.mxu0 0
      %510 = vmatprep.subr.bf16.mxu0 0
      %511 = vmatpush1.bf16.msra.mxu0 0
      %512 = vmatprep.subr.bf16.mxu0 0
      %513 = vmatpush1.bf16.msra.mxu0 0
      %514 = vmatprep.subr.bf16.mxu0 0
      %515 = vmatpush1.bf16.msra.mxu0 0
      %516 = vmatprep.subr.bf16.mxu0 0
      %517 = vmatpush1.bf16.msra.mxu0 0
      %518 = vmatprep.subr.bf16.mxu0 0
      %519 = vmatpush1.bf16.msra.mxu0 0
      %520 = vmatprep.subr.bf16.mxu0 0
      %521 = vmatpush1.bf16.msra.mxu0 0
      %522 = vmatprep.subr.bf16.mxu0 0
      %523 = vmatpush1.bf16.msra.mxu0 0
      %524 = vmatprep.subr.bf16.mxu0 0
      %525 = vmatpush1.bf16.msra.mxu0 0
      %526 = vmatprep.subr.bf16.mxu0 0
      %527 = vmatpush1.bf16.msra.mxu0 0
      %528 = vmatprep.mubr.bf16.mxu0 0
      %529 = vmatmul.mubr.bf16.gmra.mrb[0].mxu0 %v494
      %v530 = vpop.f32.mrb[0].mxu0
      %v531 = vadd.f32 %v480, %v530
      %v532 = vpop.f32.mrb[0].mxu0
      %v533 = vpop.f32.mrb[0].mxu0
      %v534 = vadd.f32 %v480, %v533
      %v535 = vpop.f32.mrb[0].mxu0
      %536 = vdwg.mxu0
      %v537 = vmul.f32 %v531, 0.35355338
      %v538 = vmul.f32 %v534, 0.35355338
      %541 = vrot.lane.b32.xlu0 %v537, 120
      %v542 = vpop.permute.xlu0 %541
      %543 = vrot.lane.b32.xlu0 %v538, 120
      %v544 = vpop.permute.xlu0 %543
      %547 = vrot.lane.b32.xlu0 %v537, 112
      %v548 = vpop.permute.xlu0 %547
      %549 = vrot.lane.b32.xlu0 %v538, 112
      %v550 = vpop.permute.xlu0 %549
      %553 = vrot.lane.b32.xlu0 %v537, 104
      %v554 = vpop.permute.xlu0 %553
      %555 = vrot.lane.b32.xlu0 %v538, 104
      %v556 = vpop.permute.xlu0 %555
      %v559 = vpack.c.bf16 %v538, %v537
      %v560 = vpack.c.bf16 %v544, %v542
      %v561 = vpack.c.bf16 %v550, %v548
      %v562 = vpack.c.bf16 %v556, %v554
      %565 = vrot.lane.b32.xlu0 %v531, 120
      %v566 = vpop.permute.xlu0 %565
      %567 = vrot.lane.b32.xlu0 %v534, 120
      %v568 = vpop.permute.xlu0 %567
      %571 = vrot.lane.b32.xlu0 %v531, 112
      %v572 = vpop.permute.xlu0 %571
      %573 = vrot.lane.b32.xlu0 %v534, 112
      %v574 = vpop.permute.xlu0 %573
      %577 = vrot.lane.b32.xlu0 %v531, 104
      %v578 = vpop.permute.xlu0 %577
      %579 = vrot.lane.b32.xlu0 %v534, 104
      %v580 = vpop.permute.xlu0 %579
      %v583 = vpack.c.bf16 %v534, %v531
      %v584 = vpack.c.bf16 %v568, %v566
      %v585 = vpack.c.bf16 %v574, %v572
      %v586 = vpack.c.bf16 %v580, %v578
      %588 = vrot.lane.b32.xlu0 %v583, 96
      %v589 = vpop.permute.xlu0 %588
      %vm590 = vcmask 64512
      %v592 = vsel %vm590, %v559, 0
      %v595 = vsel %vm590, %v589, 0
      %597 = vmatprep.subr.bf16.mxu0 0
      %598 = vmatpush1.bf16.xpose.msra.mxu0 %v595
      %599 = vmatprep.subr.bf16.mxu0 0
      %600 = vmatpush1.bf16.xpose.msra.mxu0 0
      %601 = vmatprep.subr.bf16.mxu0 0
      %602 = vmatpush1.bf16.xpose.msra.mxu0 0
      %603 = vmatprep.subr.bf16.mxu0 0
      %604 = vmatpush1.bf16.xpose.msra.mxu0 0
      %605 = vmatprep.subr.bf16.mxu0 0
      %606 = vmatpush1.bf16.xpose.msra.mxu0 0
      %607 = vmatprep.subr.bf16.mxu0 0
      %608 = vmatpush1.bf16.xpose.msra.mxu0 0
      %609 = vmatprep.subr.bf16.mxu0 0
      %610 = vmatpush1.bf16.xpose.msra.mxu0 0
      %611 = vmatprep.subr.bf16.mxu0 0
      %612 = vmatpush1.bf16.xpose.msra.mxu0 0
      %613 = vmatprep.subr.bf16.mxu0 0
      %614 = vmatpush1.bf16.xpose.msra.mxu0 0
      %615 = vmatprep.subr.bf16.mxu0 0
      %616 = vmatpush1.bf16.xpose.msra.mxu0 0
      %617 = vmatprep.subr.bf16.mxu0 0
      %618 = vmatpush1.bf16.xpose.msra.mxu0 0
      %619 = vmatprep.subr.bf16.mxu0 0
      %620 = vmatpush1.bf16.xpose.msra.mxu0 0
      %621 = vmatprep.subr.bf16.mxu0 0
      %622 = vmatpush1.bf16.xpose.msra.mxu0 0
      %623 = vmatprep.subr.bf16.mxu0 0
      %624 = vmatpush1.bf16.xpose.msra.mxu0 0
      %625 = vmatprep.subr.bf16.mxu0 0
      %626 = vmatpush1.bf16.xpose.msra.mxu0 0
      %627 = vmatprep.subr.bf16.mxu0 0
      %628 = vmatpush1.bf16.xpose.msra.mxu0 0
      %629 = vmatprep.mubr.bf16.mxu0 0
      %630 = vmatmul.mubr.bf16.gmra.mrb[0].mxu0 %v592
      %v631 = vpop.f32.mrb[0].mxu0
      %v632 = vadd.f32 0.0, %v631
      %v633 = vpop.f32.mrb[0].mxu0
      %v634 = vpop.f32.mrb[0].mxu0
      %v635 = vadd.f32 0.0, %v634
      %v636 = vpop.f32.mrb[0].mxu0
      %637 = vdwg.mxu0
      %639 = vrot.lane.b32.xlu0 %v584, 96
      %v640 = vpop.permute.xlu0 %639
      %v642 = vsel %vm590, %v560, 0
      %v645 = vsel %vm590, %v640, 0
      %647 = vmatprep.subr.bf16.mxu0 0
      %648 = vmatpush1.bf16.xpose.msra.mxu0 %v645
      %649 = vmatprep.subr.bf16.mxu0 0
      %650 = vmatpush1.bf16.xpose.msra.mxu0 0
      %651 = vmatprep.subr.bf16.mxu0 0
      %652 = vmatpush1.bf16.xpose.msra.mxu0 0
      %653 = vmatprep.subr.bf16.mxu0 0
      %654 = vmatpush1.bf16.xpose.msra.mxu0 0
      %655 = vmatprep.subr.bf16.mxu0 0
      %656 = vmatpush1.bf16.xpose.msra.mxu0 0
      %657 = vmatprep.subr.bf16.mxu0 0
      %658 = vmatpush1.bf16.xpose.msra.mxu0 0
      %659 = vmatprep.subr.bf16.mxu0 0
      %660 = vmatpush1.bf16.xpose.msra.mxu0 0
      %661 = vmatprep.subr.bf16.mxu0 0
      %662 = vmatpush1.bf16.xpose.msra.mxu0 0
      %663 = vmatprep.subr.bf16.mxu0 0
      %664 = vmatpush1.bf16.xpose.msra.mxu0 0
      %665 = vmatprep.subr.bf16.mxu0 0
      %666 = vmatpush1.bf16.xpose.msra.mxu0 0
      %667 = vmatprep.subr.bf16.mxu0 0
      %668 = vmatpush1.bf16.xpose.msra.mxu0 0
      %669 = vmatprep.subr.bf16.mxu0 0
      %670 = vmatpush1.bf16.xpose.msra.mxu0 0
      %671 = vmatprep.subr.bf16.mxu0 0
      %672 = vmatpush1.bf16.xpose.msra.mxu0 0
      %673 = vmatprep.subr.bf16.mxu0 0
      %674 = vmatpush1.bf16.xpose.msra.mxu0 0
      %675 = vmatprep.subr.bf16.mxu0 0
      %676 = vmatpush1.bf16.xpose.msra.mxu0 0
      %677 = vmatprep.subr.bf16.mxu0 0
      %678 = vmatpush1.bf16.xpose.msra.mxu0 0
      %679 = vmatprep.mubr.bf16.mxu0 0
      %680 = vmatmul.mubr.bf16.gmra.mrb[0].mxu0 %v642
      %v681 = vpop.f32.mrb[0].mxu0
      %v682 = vadd.f32 0.0, %v681
      %v683 = vpop.f32.mrb[0].mxu0
      %v684 = vpop.f32.mrb[0].mxu0
      %v685 = vadd.f32 0.0, %v684
      %v686 = vpop.f32.mrb[0].mxu0
      %687 = vdwg.mxu0
      %689 = vrot.lane.b32.xlu0 %v585, 96
      %v690 = vpop.permute.xlu0 %689
      %v692 = vsel %vm590, %v561, 0
      %v695 = vsel %vm590, %v690, 0
      %697 = vmatprep.subr.bf16.mxu0 0
      %698 = vmatpush1.bf16.xpose.msra.mxu0 %v695
      %699 = vmatprep.subr.bf16.mxu0 0
      %700 = vmatpush1.bf16.xpose.msra.mxu0 0
      %701 = vmatprep.subr.bf16.mxu0 0
      %702 = vmatpush1.bf16.xpose.msra.mxu0 0
      %703 = vmatprep.subr.bf16.mxu0 0
      %704 = vmatpush1.bf16.xpose.msra.mxu0 0
      %705 = vmatprep.subr.bf16.mxu0 0
      %706 = vmatpush1.bf16.xpose.msra.mxu0 0
      %707 = vmatprep.subr.bf16.mxu0 0
      %708 = vmatpush1.bf16.xpose.msra.mxu0 0
      %709 = vmatprep.subr.bf16.mxu0 0
      %710 = vmatpush1.bf16.xpose.msra.mxu0 0
      %711 = vmatprep.subr.bf16.mxu0 0
      %712 = vmatpush1.bf16.xpose.msra.mxu0 0
      %713 = vmatprep.subr.bf16.mxu0 0
      %714 = vmatpush1.bf16.xpose.msra.mxu0 0
      %715 = vmatprep.subr.bf16.mxu0 0
      %716 = vmatpush1.bf16.xpose.msra.mxu0 0
      %717 = vmatprep.subr.bf16.mxu0 0
      %718 = vmatpush1.bf16.xpose.msra.mxu0 0
      %719 = vmatprep.subr.bf16.mxu0 0
      %720 = vmatpush1.bf16.xpose.msra.mxu0 0
      %721 = vmatprep.subr.bf16.mxu0 0
      %722 = vmatpush1.bf16.xpose.msra.mxu0 0
      %723 = vmatprep.subr.bf16.mxu0 0
      %724 = vmatpush1.bf16.xpose.msra.mxu0 0
      %725 = vmatprep.subr.bf16.mxu0 0
      %726 = vmatpush1.bf16.xpose.msra.mxu0 0
      %727 = vmatprep.subr.bf16.mxu0 0
      %728 = vmatpush1.bf16.xpose.msra.mxu0 0
      %729 = vmatprep.mubr.bf16.mxu0 0
      %730 = vmatmul.mubr.bf16.gmra.mrb[0].mxu0 %v692
      %v731 = vpop.f32.mrb[0].mxu0
      %v732 = vadd.f32 0.0, %v731
      %v733 = vpop.f32.mrb[0].mxu0
      %v734 = vpop.f32.mrb[0].mxu0
      %v735 = vadd.f32 0.0, %v734
      %v736 = vpop.f32.mrb[0].mxu0
      %737 = vdwg.mxu0
      %739 = vrot.lane.b32.xlu0 %v586, 96
      %v740 = vpop.permute.xlu0 %739
      %v742 = vsel %vm590, %v562, 0
      %v745 = vsel %vm590, %v740, 0
      %747 = vmatprep.subr.bf16.mxu0 0
      %748 = vmatpush1.bf16.xpose.msra.mxu0 %v745
      %749 = vmatprep.subr.bf16.mxu0 0
      %750 = vmatpush1.bf16.xpose.msra.mxu0 0
      %751 = vmatprep.subr.bf16.mxu0 0
      %752 = vmatpush1.bf16.xpose.msra.mxu0 0
      %753 = vmatprep.subr.bf16.mxu0 0
      %754 = vmatpush1.bf16.xpose.msra.mxu0 0
      %755 = vmatprep.subr.bf16.mxu0 0
      %756 = vmatpush1.bf16.xpose.msra.mxu0 0
      %757 = vmatprep.subr.bf16.mxu0 0
      %758 = vmatpush1.bf16.xpose.msra.mxu0 0
      %759 = vmatprep.subr.bf16.mxu0 0
      %760 = vmatpush1.bf16.xpose.msra.mxu0 0
      %761 = vmatprep.subr.bf16.mxu0 0
      %762 = vmatpush1.bf16.xpose.msra.mxu0 0
      %763 = vmatprep.subr.bf16.mxu0 0
      %764 = vmatpush1.bf16.xpose.msra.mxu0 0
      %765 = vmatprep.subr.bf16.mxu0 0
      %766 = vmatpush1.bf16.xpose.msra.mxu0 0
      %767 = vmatprep.subr.bf16.mxu0 0
      %768 = vmatpush1.bf16.xpose.msra.mxu0 0
      %769 = vmatprep.subr.bf16.mxu0 0
      %770 = vmatpush1.bf16.xpose.msra.mxu0 0
      %771 = vmatprep.subr.bf16.mxu0 0
      %772 = vmatpush1.bf16.xpose.msra.mxu0 0
      %773 = vmatprep.subr.bf16.mxu0 0
      %774 = vmatpush1.bf16.xpose.msra.mxu0 0
      %775 = vmatprep.subr.bf16.mxu0 0
      %776 = vmatpush1.bf16.xpose.msra.mxu0 0
      %777 = vmatprep.subr.bf16.mxu0 0
      %778 = vmatpush1.bf16.xpose.msra.mxu0 0
      %779 = vmatprep.mubr.bf16.mxu0 0
      %780 = vmatmul.mubr.bf16.gmra.mrb[0].mxu0 %v742
      %v781 = vpop.f32.mrb[0].mxu0
      %v782 = vadd.f32 0.0, %v781
      %v783 = vpop.f32.mrb[0].mxu0
      %v784 = vpop.f32.mrb[0].mxu0
      %v785 = vadd.f32 0.0, %v784
      %v786 = vpop.f32.mrb[0].mxu0
      %787 = vdwg.mxu0
      %vm788 = vcmask 130048
      %v789 = vsel %vm788, %v632, -inf
      %790 = vmax.xlane.f32.xlu0 %v789
      %v791 = vpop.xlane.xlu0 %790
      %v792 = vsel %vm788, %v635, -inf
      %793 = vmax.xlane.f32.xlu0 %v792
      %v794 = vpop.xlane.xlu0 %793
      %v795 = vsel %vm788, %v682, -inf
      %796 = vmax.xlane.f32.xlu0 %v795
      %v797 = vpop.xlane.xlu0 %796
      %v798 = vsel %vm788, %v685, -inf
      %799 = vmax.xlane.f32.xlu0 %v798
      %v800 = vpop.xlane.xlu0 %799
      %v801 = vsel %vm788, %v732, -inf
      %802 = vmax.xlane.f32.xlu0 %v801
      %v803 = vpop.xlane.xlu0 %802
      %v804 = vsel %vm788, %v735, -inf
      %805 = vmax.xlane.f32.xlu0 %v804
      %v806 = vpop.xlane.xlu0 %805
      %v807 = vsel %vm788, %v782, -inf
      %808 = vmax.xlane.f32.xlu0 %v807
      %v809 = vpop.xlane.xlu0 %808
      %v810 = vsel %vm788, %v785, -inf
      %811 = vmax.xlane.f32.xlu0 %v810
      %v812 = vpop.xlane.xlu0 %811
      %v813 = vsub.f32 %v632, %v791
      %v814 = vsub.f32 %v635, %v794
      %v815 = vsub.f32 %v682, %v797
      %v816 = vsub.f32 %v685, %v800
      %v817 = vsub.f32 %v732, %v803
      %v818 = vsub.f32 %v735, %v806
      %v819 = vsub.f32 %v782, %v809
      %v820 = vsub.f32 %v785, %v812
      %v821 = vmul.f32 %v813, 1.442695
      %v822 = vpow.pop %v821
      %v823 = vmul.f32 %v814, 1.442695
      %v824 = vpow.pop %v823
      %v825 = vmul.f32 %v815, 1.442695
      %v826 = vpow.pop %v825
      %v827 = vmul.f32 %v816, 1.442695
      %v828 = vpow.pop %v827
      %v829 = vmul.f32 %v817, 1.442695
      %v830 = vpow.pop %v829
      %v831 = vmul.f32 %v818, 1.442695
      %v832 = vpow.pop %v831
      %v833 = vmul.f32 %v819, 1.442695
      %v834 = vpow.pop %v833
      %v835 = vmul.f32 %v820, 1.442695
      %v836 = vpow.pop %v835
      %v837 = vsel %vm788, %v822, 0.0
      %838 = vadd.xlane.f32.xlu0 %v837
      %v839 = vpop.xlane.xlu0 %838
      %v840 = vsel %vm788, %v824, 0.0
      %841 = vadd.xlane.f32.xlu0 %v840
      %v842 = vpop.xlane.xlu0 %841
      %v843 = vsel %vm788, %v826, 0.0
      %844 = vadd.xlane.f32.xlu0 %v843
      %v845 = vpop.xlane.xlu0 %844
      %v846 = vsel %vm788, %v828, 0.0
      %847 = vadd.xlane.f32.xlu0 %v846
      %v848 = vpop.xlane.xlu0 %847
      %v849 = vsel %vm788, %v830, 0.0
      %850 = vadd.xlane.f32.xlu0 %v849
      %v851 = vpop.xlane.xlu0 %850
      %v852 = vsel %vm788, %v832, 0.0
      %853 = vadd.xlane.f32.xlu0 %v852
      %v854 = vpop.xlane.xlu0 %853
      %v855 = vsel %vm788, %v834, 0.0
      %856 = vadd.xlane.f32.xlu0 %v855
      %v857 = vpop.xlane.xlu0 %856
      %v858 = vsel %vm788, %v836, 0.0
      %859 = vadd.xlane.f32.xlu0 %v858
      %v860 = vpop.xlane.xlu0 %859
      %v861 = vpack.c.bf16 %v824, %v822
      %v862 = vpack.c.bf16 %v828, %v826
      %v863 = vpack.c.bf16 %v832, %v830
      %v864 = vpack.c.bf16 %v836, %v834
      %865 = vrot.lane.b32.xlu0 %v583, 64
      %v866 = vpop.permute.xlu0 %865
      %v869 = vsel %vm788, %v861, 0
      %871 = vmatprep.subr.bf16.mxu0 0
      %872 = vmatpush1.bf16.msra.mxu0 %v866
      %873 = vmatprep.subr.bf16.mxu0 0
      %874 = vmatpush1.bf16.msra.mxu0 0
      %875 = vmatprep.subr.bf16.mxu0 0
      %876 = vmatpush1.bf16.msra.mxu0 0
      %877 = vmatprep.subr.bf16.mxu0 0
      %878 = vmatpush1.bf16.msra.mxu0 0
      %879 = vmatprep.subr.bf16.mxu0 0
      %880 = vmatpush1.bf16.msra.mxu0 0
      %881 = vmatprep.subr.bf16.mxu0 0
      %882 = vmatpush1.bf16.msra.mxu0 0
      %883 = vmatprep.subr.bf16.mxu0 0
      %884 = vmatpush1.bf16.msra.mxu0 0
      %885 = vmatprep.subr.bf16.mxu0 0
      %886 = vmatpush1.bf16.msra.mxu0 0
      %887 = vmatprep.subr.bf16.mxu0 0
      %888 = vmatpush1.bf16.msra.mxu0 0
      %889 = vmatprep.subr.bf16.mxu0 0
      %890 = vmatpush1.bf16.msra.mxu0 0
      %891 = vmatprep.subr.bf16.mxu0 0
      %892 = vmatpush1.bf16.msra.mxu0 0
      %893 = vmatprep.subr.bf16.mxu0 0
      %894 = vmatpush1.bf16.msra.mxu0 0
      %895 = vmatprep.subr.bf16.mxu0 0
      %896 = vmatpush1.bf16.msra.mxu0 0
      %897 = vmatprep.subr.bf16.mxu0 0
      %898 = vmatpush1.bf16.msra.mxu0 0
      %899 = vmatprep.subr.bf16.mxu0 0
      %900 = vmatpush1.bf16.msra.mxu0 0
      %901 = vmatprep.subr.bf16.mxu0 0
      %902 = vmatpush1.bf16.msra.mxu0 0
      %903 = vmatprep.mubr.bf16.mxu0 0
      %904 = vmatmul.mubr.bf16.gmra.mrb[0].mxu0 %v869
      %v905 = vpop.f32.mrb[0].mxu0
      %v906 = vadd.f32 0.0, %v905
      %v907 = vpop.f32.mrb[0].mxu0
      %v908 = vpop.f32.mrb[0].mxu0
      %v909 = vadd.f32 0.0, %v908
      %v910 = vpop.f32.mrb[0].mxu0
      %911 = vdwg.mxu0
      %912 = vrot.lane.b32.xlu0 %v584, 64
      %v913 = vpop.permute.xlu0 %912
      %v916 = vsel %vm788, %v862, 0
      %918 = vmatprep.subr.bf16.mxu0 0
      %919 = vmatpush1.bf16.msra.mxu0 %v913
      %920 = vmatprep.subr.bf16.mxu0 0
      %921 = vmatpush1.bf16.msra.mxu0 0
      %922 = vmatprep.subr.bf16.mxu0 0
      %923 = vmatpush1.bf16.msra.mxu0 0
      %924 = vmatprep.subr.bf16.mxu0 0
      %925 = vmatpush1.bf16.msra.mxu0 0
      %926 = vmatprep.subr.bf16.mxu0 0
      %927 = vmatpush1.bf16.msra.mxu0 0
      %928 = vmatprep.subr.bf16.mxu0 0
      %929 = vmatpush1.bf16.msra.mxu0 0
      %930 = vmatprep.subr.bf16.mxu0 0
      %931 = vmatpush1.bf16.msra.mxu0 0
      %932 = vmatprep.subr.bf16.mxu0 0
      %933 = vmatpush1.bf16.msra.mxu0 0
      %934 = vmatprep.subr.bf16.mxu0 0
      %935 = vmatpush1.bf16.msra.mxu0 0
      %936 = vmatprep.subr.bf16.mxu0 0
      %937 = vmatpush1.bf16.msra.mxu0 0
      %938 = vmatprep.subr.bf16.mxu0 0
      %939 = vmatpush1.bf16.msra.mxu0 0
      %940 = vmatprep.subr.bf16.mxu0 0
      %941 = vmatpush1.bf16.msra.mxu0 0
      %942 = vmatprep.subr.bf16.mxu0 0
      %943 = vmatpush1.bf16.msra.mxu0 0
      %944 = vmatprep.subr.bf16.mxu0 0
      %945 = vmatpush1.bf16.msra.mxu0 0
      %946 = vmatprep.subr.bf16.mxu0 0
      %947 = vmatpush1.bf16.msra.mxu0 0
      %948 = vmatprep.subr.bf16.mxu0 0
      %949 = vmatpush1.bf16.msra.mxu0 0
      %950 = vmatprep.mubr.bf16.mxu0 0
      %951 = vmatmul.mubr.bf16.gmra.mrb[0].mxu0 %v916
      %v952 = vpop.f32.mrb[0].mxu0
      %v953 = vadd.f32 0.0, %v952
      %v954 = vpop.f32.mrb[0].mxu0
      %v955 = vpop.f32.mrb[0].mxu0
      %v956 = vadd.f32 0.0, %v955
      %v957 = vpop.f32.mrb[0].mxu0
      %958 = vdwg.mxu0
      %959 = vrot.lane.b32.xlu0 %v585, 64
      %v960 = vpop.permute.xlu0 %959
      %v963 = vsel %vm788, %v863, 0
      %965 = vmatprep.subr.bf16.mxu0 0
      %966 = vmatpush1.bf16.msra.mxu0 %v960
      %967 = vmatprep.subr.bf16.mxu0 0
      %968 = vmatpush1.bf16.msra.mxu0 0
      %969 = vmatprep.subr.bf16.mxu0 0
      %970 = vmatpush1.bf16.msra.mxu0 0
      %971 = vmatprep.subr.bf16.mxu0 0
      %972 = vmatpush1.bf16.msra.mxu0 0
      %973 = vmatprep.subr.bf16.mxu0 0
      %974 = vmatpush1.bf16.msra.mxu0 0
      %975 = vmatprep.subr.bf16.mxu0 0
      %976 = vmatpush1.bf16.msra.mxu0 0
      %977 = vmatprep.subr.bf16.mxu0 0
      %978 = vmatpush1.bf16.msra.mxu0 0
      %979 = vmatprep.subr.bf16.mxu0 0
      %980 = vmatpush1.bf16.msra.mxu0 0
      %981 = vmatprep.subr.bf16.mxu0 0
      %982 = vmatpush1.bf16.msra.mxu0 0
      %983 = vmatprep.subr.bf16.mxu0 0
      %984 = vmatpush1.bf16.msra.mxu0 0
      %985 = vmatprep.subr.bf16.mxu0 0
      %986 = vmatpush1.bf16.msra.mxu0 0
      %987 = vmatprep.subr.bf16.mxu0 0
      %988 = vmatpush1.bf16.msra.mxu0 0
      %989 = vmatprep.subr.bf16.mxu0 0
      %990 = vmatpush1.bf16.msra.mxu0 0
      %991 = vmatprep.subr.bf16.mxu0 0
      %992 = vmatpush1.bf16.msra.mxu0 0
      %993 = vmatprep.subr.bf16.mxu0 0
      %994 = vmatpush1.bf16.msra.mxu0 0
      %995 = vmatprep.subr.bf16.mxu0 0
      %996 = vmatpush1.bf16.msra.mxu0 0
      %997 = vmatprep.mubr.bf16.mxu0 0
      %998 = vmatmul.mubr.bf16.gmra.mrb[0].mxu0 %v963
      %v999 = vpop.f32.mrb[0].mxu0
      %v1000 = vadd.f32 0.0, %v999
      %v1001 = vpop.f32.mrb[0].mxu0
      %v1002 = vpop.f32.mrb[0].mxu0
      %v1003 = vadd.f32 0.0, %v1002
      %v1004 = vpop.f32.mrb[0].mxu0
      %1005 = vdwg.mxu0
      %1006 = vrot.lane.b32.xlu0 %v586, 64
      %v1007 = vpop.permute.xlu0 %1006
      %v1010 = vsel %vm788, %v864, 0
      %1012 = vmatprep.subr.bf16.mxu0 0
      %1013 = vmatpush1.bf16.msra.mxu0 %v1007
      %1014 = vmatprep.subr.bf16.mxu0 0
      %1015 = vmatpush1.bf16.msra.mxu0 0
      %1016 = vmatprep.subr.bf16.mxu0 0
      %1017 = vmatpush1.bf16.msra.mxu0 0
      %1018 = vmatprep.subr.bf16.mxu0 0
      %1019 = vmatpush1.bf16.msra.mxu0 0
      %1020 = vmatprep.subr.bf16.mxu0 0
      %1021 = vmatpush1.bf16.msra.mxu0 0
      %1022 = vmatprep.subr.bf16.mxu0 0
      %1023 = vmatpush1.bf16.msra.mxu0 0
      %1024 = vmatprep.subr.bf16.mxu0 0
      %1025 = vmatpush1.bf16.msra.mxu0 0
      %1026 = vmatprep.subr.bf16.mxu0 0
      %1027 = vmatpush1.bf16.msra.mxu0 0
      %1028 = vmatprep.subr.bf16.mxu0 0
      %1029 = vmatpush1.bf16.msra.mxu0 0
      %1030 = vmatprep.subr.bf16.mxu0 0
      %1031 = vmatpush1.bf16.msra.mxu0 0
      %1032 = vmatprep.subr.bf16.mxu0 0
      %1033 = vmatpush1.bf16.msra.mxu0 0
      %1034 = vmatprep.subr.bf16.mxu0 0
      %1035 = vmatpush1.bf16.msra.mxu0 0
      %1036 = vmatprep.subr.bf16.mxu0 0
      %1037 = vmatpush1.bf16.msra.mxu0 0
      %1038 = vmatprep.subr.bf16.mxu0 0
      %1039 = vmatpush1.bf16.msra.mxu0 0
      %1040 = vmatprep.subr.bf16.mxu0 0
      %1041 = vmatpush1.bf16.msra.mxu0 0
      %1042 = vmatprep.subr.bf16.mxu0 0
      %1043 = vmatpush1.bf16.msra.mxu0 0
      %1044 = vmatprep.mubr.bf16.mxu0 0
      %1045 = vmatmul.mubr.bf16.gmra.mrb[0].mxu0 %v1010
      %v1046 = vpop.f32.mrb[0].mxu0
      %v1047 = vadd.f32 0.0, %v1046
      %v1048 = vpop.f32.mrb[0].mxu0
      %v1049 = vpop.f32.mrb[0].mxu0
      %v1050 = vadd.f32 0.0, %v1049
      %v1051 = vpop.f32.mrb[0].mxu0
      %1052 = vdwg.mxu0
      %v1053 = vrcp.pop %v839
      %v1054 = vrcp.pop %v842
      %v1055 = vrcp.pop %v845
      %v1056 = vrcp.pop %v848
      %v1057 = vrcp.pop %v851
      %v1058 = vrcp.pop %v854
      %v1059 = vrcp.pop %v857
      %v1060 = vrcp.pop %v860
      %v1061 = vmul.f32 %v906, %v1053
      %v1062 = vmul.f32 %v909, %v1054
      %v1063 = vmul.f32 %v953, %v1055
      %v1064 = vmul.f32 %v956, %v1056
      %v1065 = vmul.f32 %v1000, %v1057
      %v1066 = vmul.f32 %v1003, %v1058
      %v1067 = vmul.f32 %v1047, %v1059
      %v1068 = vmul.f32 %v1050, %v1060
      %1071 = vrot.lane.b32.xlu0 %v1063, 8
      %v1072 = vpop.permute.xlu0 %1071
      %1073 = vrot.lane.b32.xlu0 %v1064, 8
      %v1074 = vpop.permute.xlu0 %1073
      %1079 = vrot.lane.b32.xlu0 %v1065, 16
      %v1080 = vpop.permute.xlu0 %1079
      %1081 = vrot.lane.b32.xlu0 %v1066, 16
      %v1082 = vpop.permute.xlu0 %1081
      %1087 = vrot.lane.b32.xlu0 %v1067, 24
      %v1088 = vpop.permute.xlu0 %1087
      %1089 = vrot.lane.b32.xlu0 %v1068, 24
      %v1090 = vpop.permute.xlu0 %1089
      %v1093 = vsel %vm590, %v1061, %v1072
      %v1094 = vsel %vm590, %v1062, %v1074
      %v1095 = vsel %vm788, %v1093, %v1080
      %v1096 = vsel %vm788, %v1094, %v1082
      %vm1097 = vcmask 195584
      %v1098 = vsel %vm1097, %v1095, %v1088
      %v1099 = vsel %vm1097, %v1096, %v1090
      %v1100 = vpack.c.bf16 %v1099, %v1098
      %v1101 = vlaneseq
      %v1102 = vshrl.u32 %v1101, 7
      %v1103 = vsub.s32 2, %v1102
      %v1104 = vrot.slane %v335, %v1103
      %v1109 = vunpack.c.l.b16 %v420
      %v1110 = vunpack.c.l.b16 %v421
      %v1111 = vunpack.c.l.b16 %v422
      %v1112 = vunpack.c.l.b16 %v423
      %v1113 = vpack.c.b16 %v1110, %v1109
      %v1114 = vpack.c.b16 %v1112, %v1111
      %v1118 = vsel %vm436, %v1100, 0
      %1120 = vmatprep.subr.bf16.mxu0 0
      %1121 = vmatpush1.bf16.msra.mxu0 %v1113
      %1122 = vmatprep.subr.bf16.mxu0 0
      %1123 = vmatpush1.bf16.msra.mxu0 %v1114
      %1124 = vmatprep.subr.bf16.mxu0 0
      %1125 = vmatpush1.bf16.msra.mxu0 0
      %1126 = vmatprep.subr.bf16.mxu0 0
      %1127 = vmatpush1.bf16.msra.mxu0 0
      %1128 = vmatprep.subr.bf16.mxu0 0
      %1129 = vmatpush1.bf16.msra.mxu0 0
      %1130 = vmatprep.subr.bf16.mxu0 0
      %1131 = vmatpush1.bf16.msra.mxu0 0
      %1132 = vmatprep.subr.bf16.mxu0 0
      %1133 = vmatpush1.bf16.msra.mxu0 0
      %1134 = vmatprep.subr.bf16.mxu0 0
      %1135 = vmatpush1.bf16.msra.mxu0 0
      %1136 = vmatprep.subr.bf16.mxu0 0
      %1137 = vmatpush1.bf16.msra.mxu0 0
      %1138 = vmatprep.subr.bf16.mxu0 0
      %1139 = vmatpush1.bf16.msra.mxu0 0
      %1140 = vmatprep.subr.bf16.mxu0 0
      %1141 = vmatpush1.bf16.msra.mxu0 0
      %1142 = vmatprep.subr.bf16.mxu0 0
      %1143 = vmatpush1.bf16.msra.mxu0 0
      %1144 = vmatprep.subr.bf16.mxu0 0
      %1145 = vmatpush1.bf16.msra.mxu0 0
      %1146 = vmatprep.subr.bf16.mxu0 0
      %1147 = vmatpush1.bf16.msra.mxu0 0
      %1148 = vmatprep.subr.bf16.mxu0 0
      %1149 = vmatpush1.bf16.msra.mxu0 0
      %1150 = vmatprep.subr.bf16.mxu0 0
      %1151 = vmatpush1.bf16.msra.mxu0 0
      %1152 = vmatprep.mubr.bf16.mxu0 0
      %1153 = vmatmul.mubr.bf16.gmra.mrb[0].mxu0 %v1118
      %v1154 = vpop.f32.mrb[0].mxu0
      %v1155 = vadd.f32 %v1104, %v1154
      %v1156 = vpop.f32.mrb[0].mxu0
      %v1157 = vpop.f32.mrb[0].mxu0
      %v1158 = vadd.f32 %v1104, %v1157
      %v1159 = vpop.f32.mrb[0].mxu0
      %1160 = vdwg.mxu0
      %v1161 = vadd.f32 %v414, %v1155
      %v1162 = vadd.f32 %v415, %v1158
      %v1163 = vsel %vm436, %v1161, 0.0
      %1164 = vadd.xlane.f32.xlu0 %v1163
      %v1165 = vpop.xlane.xlu0 %1164
      %v1166 = vsel %vm436, %v1162, 0.0
      %1167 = vadd.xlane.f32.xlu0 %v1166
      %v1168 = vpop.xlane.xlu0 %1167
      %v1169 = vmul.f32 %v1165, %v443
      %v1170 = vmul.f32 %v1168, %v443
      %v1171 = vsub.f32 %v1161, %v1169
      %v1172 = vsub.f32 %v1162, %v1170
      %v1173 = vmul.f32 %v1171, %v1171
      %v1174 = vmul.f32 %v1172, %v1172
      %v1175 = vsel %vm436, %v1173, 0.0
      %1176 = vadd.xlane.f32.xlu0 %v1175
      %v1177 = vpop.xlane.xlu0 %1176
      %v1178 = vsel %vm436, %v1174, 0.0
      %1179 = vadd.xlane.f32.xlu0 %v1178
      %v1180 = vpop.xlane.xlu0 %1179
      %v1181 = vmul.f32 %v1177, %v443
      %v1182 = vmul.f32 %v1180, %v443
      %v1183 = vadd.f32 %v1181, 1e-06
      %v1184 = vadd.f32 %v1182, 1e-06
      %v1185 = vrsqrt.pop %v1183
      %v1186 = vrsqrt.pop %v1184
      %v1187 = vmul.f32 %v1171, %v1185
      %v1188 = vmul.f32 %v1172, %v1186
      %v1189 = vlaneseq
      %v1190 = vshrl.u32 %v1189, 7
      %v1191 = vsub.s32 2, %v1190
      %v1192 = vrot.slane %v334, %v1191
      %v1193 = vmul.f32 %v1187, %v1192
      %v1194 = vmul.f32 %v1188, %v1192
      %v1195 = vlaneseq
      %v1196 = vshrl.u32 %v1195, 7
      %v1197 = vsub.s32 3, %v1196
      %v1198 = vrot.slane %v334, %v1197
      %v1199 = vadd.f32 %v1193, %v1198
      %v1200 = vadd.f32 %v1194, %v1198
      %v1201 = vpack.c.bf16 %v1200, %v1199
      %v1202 = vlaneseq
      %v1203 = vshrl.u32 %v1202, 7
      %v1204 = vsub.s32 3, %v1203
      %v1205 = vrot.slane %v335, %v1204
      %v1210 = vunpack.c.l.b16 %v424
      %v1211 = vunpack.c.l.b16 %v425
      %v1212 = vunpack.c.l.b16 %v426
      %v1213 = vunpack.c.l.b16 %v427
      %v1214 = vpack.c.b16 %v1211, %v1210
      %v1215 = vpack.c.b16 %v1213, %v1212
      %v1219 = vsel %vm436, %v1201, 0
      %1221 = vmatprep.subr.bf16.mxu0 0
      %1222 = vmatpush1.bf16.msra.mxu0 %v1214
      %1223 = vmatprep.subr.bf16.mxu0 0
      %1224 = vmatpush1.bf16.msra.mxu0 %v1215
      %1225 = vmatprep.subr.bf16.mxu0 0
      %1226 = vmatpush1.bf16.msra.mxu0 0
      %1227 = vmatprep.subr.bf16.mxu0 0
      %1228 = vmatpush1.bf16.msra.mxu0 0
      %1229 = vmatprep.subr.bf16.mxu0 0
      %1230 = vmatpush1.bf16.msra.mxu0 0
      %1231 = vmatprep.subr.bf16.mxu0 0
      %1232 = vmatpush1.bf16.msra.mxu0 0
      %1233 = vmatprep.subr.bf16.mxu0 0
      %1234 = vmatpush1.bf16.msra.mxu0 0
      %1235 = vmatprep.subr.bf16.mxu0 0
      %1236 = vmatpush1.bf16.msra.mxu0 0
      %1237 = vmatprep.subr.bf16.mxu0 0
      %1238 = vmatpush1.bf16.msra.mxu0 0
      %1239 = vmatprep.subr.bf16.mxu0 0
      %1240 = vmatpush1.bf16.msra.mxu0 0
      %1241 = vmatprep.subr.bf16.mxu0 0
      %1242 = vmatpush1.bf16.msra.mxu0 0
      %1243 = vmatprep.subr.bf16.mxu0 0
      %1244 = vmatpush1.bf16.msra.mxu0 0
      %1245 = vmatprep.subr.bf16.mxu0 0
      %1246 = vmatpush1.bf16.msra.mxu0 0
      %1247 = vmatprep.subr.bf16.mxu0 0
      %1248 = vmatpush1.bf16.msra.mxu0 0
      %1249 = vmatprep.subr.bf16.mxu0 0
      %1250 = vmatpush1.bf16.msra.mxu0 0
      %1251 = vmatprep.subr.bf16.mxu0 0
      %1252 = vmatpush1.bf16.msra.mxu0 0
      %1253 = vmatprep.mubr.bf16.mxu0 0
      %1254 = vmatmul.mubr.bf16.gmra.mrb[0].mxu0 %v1219
      %v1255 = vpop.f32.mrb[0].mxu0
      %v1256 = vadd.f32 %v1205, %v1255
      %v1257 = vpop.f32.mrb[0].mxu0
      %v1258 = vpop.f32.mrb[0].mxu0
      %v1259 = vadd.f32 %v1205, %v1258
      %v1260 = vpop.f32.mrb[0].mxu0
      %1261 = vdwg.mxu0
      %v1262 = vmul.f32 %v1256, %v1256
      %v1263 = vmul.f32 %v1259, %v1259
      %v1264 = vmul.f32 %v1256, %v1262
      %v1265 = vmul.f32 %v1259, %v1263
      %v1266 = vmul.f32 %v1264, 0.044715
      %v1267 = vmul.f32 %v1265, 0.044715
      %v1268 = vadd.f32 %v1256, %v1266
      %v1269 = vadd.f32 %v1259, %v1267
      %v1270 = vmul.f32 %v1268, 0.7978846
      %v1271 = vmul.f32 %v1269, 0.7978846
      %v1272 = vtanh.pop %v1270
      %v1273 = vtanh.pop %v1271
      %v1274 = vadd.f32 %v1272, 1.0
      %v1275 = vadd.f32 %v1273, 1.0
      %v1276 = vmul.f32 %v1274, 0.5
      %v1277 = vmul.f32 %v1275, 0.5
      %v1278 = vmul.f32 %v1256, %v1276
      %v1279 = vmul.f32 %v1259, %v1277
      %v1280 = vpack.c.bf16 %v1279, %v1278
      %v1281 = vlaneseq
      %v1282 = vshrl.u32 %v1281, 7
      %v1283 = vsub.s32 4, %v1282
      %v1284 = vrot.slane %v335, %v1283
      %v1293 = vunpack.c.l.b16 %v428
      %v1294 = vunpack.c.l.b16 %v429
      %v1295 = vunpack.c.l.b16 %v430
      %v1296 = vunpack.c.l.b16 %v431
      %v1297 = vunpack.c.l.b16 %v432
      %v1298 = vunpack.c.l.b16 %v433
      %v1299 = vunpack.c.l.b16 %v434
      %v1300 = vunpack.c.l.b16 %v435
      %v1301 = vpack.c.b16 %v1294, %v1293
      %v1302 = vpack.c.b16 %v1296, %v1295
      %v1303 = vpack.c.b16 %v1298, %v1297
      %v1304 = vpack.c.b16 %v1300, %v1299
      %vm1309 = vcmask 523264
      %v1311 = vsel %vm1309, %v1280, 0
      %1313 = vmatprep.subr.bf16.mxu0 0
      %1314 = vmatpush1.bf16.msra.mxu0 %v1301
      %1315 = vmatprep.subr.bf16.mxu0 0
      %1316 = vmatpush1.bf16.msra.mxu0 %v1302
      %1317 = vmatprep.subr.bf16.mxu0 0
      %1318 = vmatpush1.bf16.msra.mxu0 %v1303
      %1319 = vmatprep.subr.bf16.mxu0 0
      %1320 = vmatpush1.bf16.msra.mxu0 %v1304
      %1321 = vmatprep.subr.bf16.mxu0 0
      %1322 = vmatpush1.bf16.msra.mxu0 0
      %1323 = vmatprep.subr.bf16.mxu0 0
      %1324 = vmatpush1.bf16.msra.mxu0 0
      %1325 = vmatprep.subr.bf16.mxu0 0
      %1326 = vmatpush1.bf16.msra.mxu0 0
      %1327 = vmatprep.subr.bf16.mxu0 0
      %1328 = vmatpush1.bf16.msra.mxu0 0
      %1329 = vmatprep.subr.bf16.mxu0 0
      %1330 = vmatpush1.bf16.msra.mxu0 0
      %1331 = vmatprep.subr.bf16.mxu0 0
      %1332 = vmatpush1.bf16.msra.mxu0 0
      %1333 = vmatprep.subr.bf16.mxu0 0
      %1334 = vmatpush1.bf16.msra.mxu0 0
      %1335 = vmatprep.subr.bf16.mxu0 0
      %1336 = vmatpush1.bf16.msra.mxu0 0
      %1337 = vmatprep.subr.bf16.mxu0 0
      %1338 = vmatpush1.bf16.msra.mxu0 0
      %1339 = vmatprep.subr.bf16.mxu0 0
      %1340 = vmatpush1.bf16.msra.mxu0 0
      %1341 = vmatprep.subr.bf16.mxu0 0
      %1342 = vmatpush1.bf16.msra.mxu0 0
      %1343 = vmatprep.subr.bf16.mxu0 0
      %1344 = vmatpush1.bf16.msra.mxu0 0
      %1345 = vmatprep.mubr.bf16.mxu0 0
      %1346 = vmatmul.mubr.bf16.gmra.mrb[0].mxu0 %v1311
      %v1347 = vpop.f32.mrb[0].mxu0
      %v1348 = vadd.f32 %v1284, %v1347
      %v1349 = vpop.f32.mrb[0].mxu0
      %v1350 = vpop.f32.mrb[0].mxu0
      %v1351 = vadd.f32 %v1284, %v1350
      %v1352 = vpop.f32.mrb[0].mxu0
      %1353 = vdwg.mxu0
      %v1354 = vadd.f32 %v1161, %v1348
      %v1355 = vadd.f32 %v1162, %v1351
      %v1356 = vpack.c.bf16 %v1355, %v1354
      %v1358 = vunpack.c.l.b16 %v1356
      %v1359 = vunpack.c.h.b16 %v1356
      %v1360 = vpack.c.b16 %v1358, %v1358
      %v1361 = vpack.c.b16 %v1359, %v1359
      %vm1364 = vcmask 257024
      %1365 = vst.msk [vmem:[%s332] sm:$0xf] %vm1364, %v1360
      %1366 = vst.msk [vmem:[%s332 + $0x4] sm:$0xf] %vm1364, %v1361
      %p1367 = scmp.lt.s32.totalorder %s20, 1
      %s1368 = scalar_select %p1367, %s20, 1
      %s1369 = smul.addr %s1368, 2
      %s1370 = smul.addr %s1369, 4
      %s1371 = scalar_lea.vmem %s9, %s1370
      // Predicated region
      $region57: #{flan_xl_vqa_forward.4} parent=55 // pred_check
        %p1372 = pneg %p232
      $region58: #{flan_xl_vqa_forward.4} parent=55 // pred_check_branch
        %1374 = sbr.rel (%p1372) target = $region60
      $region59: #{flan_xl_vqa_forward.4} parent=55 // pred_region
        _
      $region60: #{flan_xl_vqa_forward.4} parent=55 // pred_fallthru
        _
    $region56: #{flan_xl_vqa_forward.4} parent=5 // pred_fallthru
      _
    %p1375 = scmp.le.s32.totalorder 2, %s15
    // Predicated region
    $region61: #{flan_xl_vqa_forward.4} parent=5 // pred_check
      %p1376 = pneg %p1375
    $region62: #{flan_xl_vqa_forward.4} parent=5 // pred_check_branch
      %1378 = sbr.rel (%p1376) target = $region64
    $region63: #{flan_xl_vqa_forward.4} parent=5 // pred_region
      %s1379 = ssub.s32 %s15, 2
      // Predicated region
      $region65: #{flan_xl_vqa_forward.4} parent=63 // pred_check
        %p1380 = pneg %p238
      $region66: #{flan_xl_vqa_forward.4} parent=63 // pred_check_branch
        %1382 = sbr.rel (%p1380) target = $region68
      $region67: #{flan_xl_vqa_forward.4} parent=63 // pred_region
        %p1383 = scmp.lt.s32.totalorder %s21, 1
        %s1384 = scalar_select %p1383, %s21, 1
        %s1385 = smul.addr %s1384, 2
        %s1386 = smul.addr %s1385, 4
        %s1387 = scalar_lea.vmem %s9, %s1386
      $region68: #{flan_xl_vqa_forward.4} parent=63 // pred_fallthru
        _
    $region64: #{flan_xl_vqa_forward.4} parent=5 // pred_fallthru
      _
  $region6: #{flan_xl_vqa_forward.4} parent=0 // loop_footer
    %s19 = sadd.s32 1, %s15
  $region7: #{flan_xl_vqa_forward.4} parent=0 // loop_footer_branch
    %14 = sbr.rel target = $region3
  $region8: #{flan_xl_vqa_forward.4} parent=0 // loop_exit
    _

// kernel: flan_xl_vqa_forward.5
$region0: #{flan_xl_vqa_forward.5}
  #allocation0 [shape = 'u32[]', space=smem, size = 0x4, offset = 0x4, fixed_abs, tag = 'smem constant byte address 0x4 - core index']
  #allocation1 [shape = 'u32[144,128]{1,0:T(1,128)}', space=vmem, size = 0x12000, scoped, tag = 'internal scratch']
  %s0 = inlined_call_operand.vmem [shape: f32[1,8,32], index: 0, kind: input, shape index: {}]
  %s1 = inlined_call_operand.vmem [shape: bf16[2,16,32], index: 1, kind: input, shape index: {}]
  %s2 = inlined_call_operand.vmem [shape: bf16[32,96], index: 2, kind: input, shape index: {}]
  %s3 = inlined_call_operand.vmem [shape: bf16[32,32], index: 3, kind: input, shape index: {}]
  %s4 = inlined_call_operand.vmem [shape: bf16[32,32], index: 4, kind: input, shape index: {}]
  %s5 = inlined_call_operand.vmem [shape: bf16[32,64], index: 5, kind: input, shape index: {}]
  %s6 = inlined_call_operand.vmem [shape: bf16[32,32], index: 6, kind: input, shape index: {}]
  %s7 = inlined_call_operand.vmem [shape: bf16[32,64], index: 7, kind: input, shape index: {}]
  %s8 = inlined_call_operand.vmem [shape: bf16[64,32], index: 8, kind: input, shape index: {}]
  %s9 = inlined_call_operand.vmem [shape: bf16[32,32], index: 9, kind: input, shape index: {}]
  %s10 = inlined_call_operand.vmem [shape: f32[8,32], index: 10, kind: input, shape index: {}]
  %s11 = inlined_call_operand.vmem [shape: f32[8,96], index: 11, kind: input, shape index: {}]
  %s12 = inlined_call_operand.vmem [shape: bf16[2,8,32], index: 12, kind: output, shape index: {}]
  %s13 = sld [smem:[#allocation0]]
  $region81: #{flan_xl_vqa_forward.5} parent=0
    _
  %s15 = ssub.s32 1, %s13
  %s16 = scalar_select 0, %s15, %s13
  loop: start=0, step=1, limit=4
  $region2: #{flan_xl_vqa_forward.5} parent=0 // loop_pre_header
    _
  $region3: #{flan_xl_vqa_forward.5} parent=0 // loop_header
    %s18 = sphi 0, %s22
    %p19 = scmp.ge.s32.totalorder %s18, 4
    %s26 = sphi 0, %s26
    %s28 = sphi 0, %s26
    %s29 = sphi 0, %s28
    %s43 = sphi 0, %s29
    %s49 = sphi 0, %s51
    %s52 = sphi 0, %s49
    %s53 = sphi 0, %s52
    %s69 = sphi 0, %s53
    %s73 = sphi 0, %s73
    %s75 = sphi 0, %s73
    %s76 = sphi 0, %s75
    %s90 = sphi 0, %s76
    %s94 = sphi 0, %s94
    %s96 = sphi 0, %s94
    %s97 = sphi 0, %s96
    %s111 = sphi 0, %s97
    %s115 = sphi 0, %s115
    %s117 = sphi 0, %s115
    %s118 = sphi 0, %s117
    %s132 = sphi 0, %s118
    %s136 = sphi 0, %s136
    %s138 = sphi 0, %s136
    %s139 = sphi 0, %s138
    %s153 = sphi 0, %s139
    %s157 = sphi 0, %s157
    %s159 = sphi 0, %s157
    %s160 = sphi 0, %s159
    %s174 = sphi 0, %s160
    %s178 = sphi 0, %s178
    %s180 = sphi 0, %s178
    %s181 = sphi 0, %s180
    %s195 = sphi 0, %s181
    %s199 = sphi 0, %s199
    %s201 = sphi 0, %s199
    %s202 = sphi 0, %s201
    %s216 = sphi 0, %s202
    %s220 = sphi 0, %s220
    %s222 = sphi 0, %s220
    %s223 = sphi 0, %s222
    %s237 = sphi 0, %s223
    %s241 = sphi 0, %s241
    %s243 = sphi 0, %s241
    %s244 = sphi 0, %s243
    %s258 = sphi 0, %s244
    %s262 = sphi 0, %s262
    %s264 = sphi 0, %s262
    %s265 = sphi 0, %s264
    %s279 = sphi 0, %s265
    %s285 = sphi 0, %s287
    %s288 = sphi 0, %s285
    %s289 = sphi 0, %s288
    %s305 = sphi 0, %s289
  $region4: #{flan_xl_vqa_forward.5} parent=0 // loop_header_branch
    %21 = sbr.rel (%p19) target = $region8
  $region5: #{flan_xl_vqa_forward.5} parent=0 // loop_body
    %s23 = ssub.s32 %s18, 1
    %s24 = ssub.s32 %s18, 2
    %s25 = sadd.s32 %s18, 1
    %s27 = sadd.s32 %s26, 1
    %p30 = scmp.eq.s32.totalorder %s18, 1
    %p31 = scmp.ne.s32.totalorder %s26, %s28
    %p32 = scmp.eq.s32.totalorder %s18, 0
    %p33 = por %p31, %p32
    %p34 = scmp.ne.s32.totalorder %s26, %s28
    %p35 = scmp.eq.s32.totalorder %s23, 1
    %p36 = por %p34, %p35
    %p37 = scmp.ne.s32.totalorder %s28, %s29
    %p38 = scmp.eq.s32.totalorder %s23, 0
    %p39 = por %p37, %p38
    %p40 = scmp.ne.s32.totalorder %s28, %s29
    %p41 = scmp.eq.s32.totalorder %s24, 1
    %p42 = por %p40, %p41
    %p44 = scmp.ne.s32.totalorder %s29, %s43
    %p45 = scmp.eq.s32.totalorder %s24, 0
    %p46 = por %p44, %p45
    %s47 = ssub.s32 %s18, %s25
    %p48 = scmp.eq.s32.totalorder %s47, 0
    %s50 = sadd.s32 %s49, 1
    %s51 = scalar_select %p48, %s49, %s50
    %p54 = pneg %p48
    %p55 = scmp.eq.s32.totalorder %s18, 1
    %p56 = por %p54, %p55
    %p57 = scmp.ne.s32.totalorder %s49, %s52
    %p58 = scmp.eq.s32.totalorder %s18, 0
    %p59 = por %p57, %p58
    %p60 = scmp.ne.s32.totalorder %s49, %s52
    %p61 = scmp.eq.s32.totalorder %s23, 1
    %p62 = por %p60, %p61
    %p63 = scmp.ne.s32.totalorder %s52, %s53
    %p64 = scmp.eq.s32.totalorder %s23, 0
    %p65 = por %p63, %p64
    %p66 = scmp.ne.s32.totalorder %s52, %s53
    %p67 = scmp.eq.s32.totalorder %s24, 1
    %p68 = por %p66, %p67
    %p70 = scmp.ne.s32.totalorder %s53, %s69
    %p71 = scmp.eq.s32.totalorder %s24, 0
    %p72 = por %p70, %p71
    %s74 = sadd.s32 %s73, 1
    %p77 = scmp.eq.s32.totalorder %s18, 1
    %p78 = scmp.ne.s32.totalorder %s73, %s75
    %p79 = scmp.eq.s32.totalorder %s18, 0
    %p80 = por %p78, %p79
    %p81 = scmp.ne.s32.totalorder %s73, %s75
    %p82 = scmp.eq.s32.totalorder %s23, 1
    %p83 = por %p81, %p82
    %p84 = scmp.ne.s32.totalorder %s75, %s76
    %p85 = scmp.eq.s32.totalorder %s23, 0
    %p86 = por %p84, %p85
    %p87 = scmp.ne.s32.totalorder %s75, %s76
    %p88 = scmp.eq.s32.totalorder %s24, 1
    %p89 = por %p87, %p88
    %p91 = scmp.ne.s32.totalorder %s76, %s90
    %p92 = scmp.eq.s32.totalorder %s24, 0
    %p93 = por %p91, %p92
    %s95 = sadd.s32 %s94, 1
    %p98 = scmp.eq.s32.totalorder %s18, 1
    %p99 = scmp.ne.s32.totalorder %s94, %s96
    %p100 = scmp.eq.s32.totalorder %s18, 0
    %p101 = por %p99, %p100
    %p102 = scmp.ne.s32.totalorder %s94, %s96
    %p103 = scmp.eq.s32.totalorder %s23, 1
    %p104 = por %p102, %p103
    %p105 = scmp.ne.s32.totalorder %s96, %s97
    %p106 = scmp.eq.s32.totalorder %s23, 0
    %p107 = por %p105, %p106
    %p108 = scmp.ne.s32.totalorder %s96, %s97
    %p109 = scmp.eq.s32.totalorder %s24, 1
    %p110 = por %p108, %p109
    %p112 = scmp.ne.s32.totalorder %s97, %s111
    %p113 = scmp.eq.s32.totalorder %s24, 0
    %p114 = por %p112, %p113
    %s116 = sadd.s32 %s115, 1
    %p119 = scmp.eq.s32.totalorder %s18, 1
    %p120 = scmp.ne.s32.totalorder %s115, %s117
    %p121 = scmp.eq.s32.totalorder %s18, 0
    %p122 = por %p120, %p121
    %p123 = scmp.ne.s32.totalorder %s115, %s117
    %p124 = scmp.eq.s32.totalorder %s23, 1
    %p125 = por %p123, %p124
    %p126 = scmp.ne.s32.totalorder %s117, %s118
    %p127 = scmp.eq.s32.totalorder %s23, 0
    %p128 = por %p126, %p127
    %p129 = scmp.ne.s32.totalorder %s117, %s118
    %p130 = scmp.eq.s32.totalorder %s24, 1
    %p131 = por %p129, %p130
    %p133 = scmp.ne.s32.totalorder %s118, %s132
    %p134 = scmp.eq.s32.totalorder %s24, 0
    %p135 = por %p133, %p134
    %s137 = sadd.s32 %s136, 1
    %p140 = scmp.eq.s32.totalorder %s18, 1
    %p141 = scmp.ne.s32.totalorder %s136, %s138
    %p142 = scmp.eq.s32.totalorder %s18, 0
    %p143 = por %p141, %p142
    %p144 = scmp.ne.s32.totalorder %s136, %s138
    %p145 = scmp.eq.s32.totalorder %s23, 1
    %p146 = por %p144, %p145
    %p147 = scmp.ne.s32.totalorder %s138, %s139
    %p148 = scmp.eq.s32.totalorder %s23, 0
    %p149 = por %p147, %p148
    %p150 = scmp.ne.s32.totalorder %s138, %s139
    %p151 = scmp.eq.s32.totalorder %s24, 1
    %p152 = por %p150, %p151
    %p154 = scmp.ne.s32.totalorder %s139, %s153
    %p155 = scmp.eq.s32.totalorder %s24, 0
    %p156 = por %p154, %p155
    %s158 = sadd.s32 %s157, 1
    %p161 = scmp.eq.s32.totalorder %s18, 1
    %p162 = scmp.ne.s32.totalorder %s157, %s159
    %p163 = scmp.eq.s32.totalorder %s18, 0
    %p164 = por %p162, %p163
    %p165 = scmp.ne.s32.totalorder %s157, %s159
    %p166 = scmp.eq.s32.totalorder %s23, 1
    %p167 = por %p165, %p166
    %p168 = scmp.ne.s32.totalorder %s159, %s160
    %p169 = scmp.eq.s32.totalorder %s23, 0
    %p170 = por %p168, %p169
    %p171 = scmp.ne.s32.totalorder %s159, %s160
    %p172 = scmp.eq.s32.totalorder %s24, 1
    %p173 = por %p171, %p172
    %p175 = scmp.ne.s32.totalorder %s160, %s174
    %p176 = scmp.eq.s32.totalorder %s24, 0
    %p177 = por %p175, %p176
    %s179 = sadd.s32 %s178, 1
    %p182 = scmp.eq.s32.totalorder %s18, 1
    %p183 = scmp.ne.s32.totalorder %s178, %s180
    %p184 = scmp.eq.s32.totalorder %s18, 0
    %p185 = por %p183, %p184
    %p186 = scmp.ne.s32.totalorder %s178, %s180
    %p187 = scmp.eq.s32.totalorder %s23, 1
    %p188 = por %p186, %p187
    %p189 = scmp.ne.s32.totalorder %s180, %s181
    %p190 = scmp.eq.s32.totalorder %s23, 0
    %p191 = por %p189, %p190
    %p192 = scmp.ne.s32.totalorder %s180, %s181
    %p193 = scmp.eq.s32.totalorder %s24, 1
    %p194 = por %p192, %p193
    %p196 = scmp.ne.s32.totalorder %s181, %s195
    %p197 = scmp.eq.s32.totalorder %s24, 0
    %p198 = por %p196, %p197
    %s200 = sadd.s32 %s199, 1
    %p203 = scmp.eq.s32.totalorder %s18, 1
    %p204 = scmp.ne.s32.totalorder %s199, %s201
    %p205 = scmp.eq.s32.totalorder %s18, 0
    %p206 = por %p204, %p205
    %p207 = scmp.ne.s32.totalorder %s199, %s201
    %p208 = scmp.eq.s32.totalorder %s23, 1
    %p209 = por %p207, %p208
    %p210 = scmp.ne.s32.totalorder %s201, %s202
    %p211 = scmp.eq.s32.totalorder %s23, 0
    %p212 = por %p210, %p211
    %p213 = scmp.ne.s32.totalorder %s201, %s202
    %p214 = scmp.eq.s32.totalorder %s24, 1
    %p215 = por %p213, %p214
    %p217 = scmp.ne.s32.totalorder %s202, %s216
    %p218 = scmp.eq.s32.totalorder %s24, 0
    %p219 = por %p217, %p218
    %s221 = sadd.s32 %s220, 1
    %p224 = scmp.eq.s32.totalorder %s18, 1
    %p225 = scmp.ne.s32.totalorder %s220, %s222
    %p226 = scmp.eq.s32.totalorder %s18, 0
    %p227 = por %p225, %p226
    %p228 = scmp.ne.s32.totalorder %s220, %s222
    %p229 = scmp.eq.s32.totalorder %s23, 1
    %p230 = por %p228, %p229
    %p231 = scmp.ne.s32.totalorder %s222, %s223
    %p232 = scmp.eq.s32.totalorder %s23, 0
    %p233 = por %p231, %p232
    %p234 = scmp.ne.s32.totalorder %s222, %s223
    %p235 = scmp.eq.s32.totalorder %s24, 1
    %p236 = por %p234, %p235
    %p238 = scmp.ne.s32.totalorder %s223, %s237
    %p239 = scmp.eq.s32.totalorder %s24, 0
    %p240 = por %p238, %p239
    %s242 = sadd.s32 %s241, 1
    %p245 = scmp.eq.s32.totalorder %s18, 1
    %p246 = scmp.ne.s32.totalorder %s241, %s243
    %p247 = scmp.eq.s32.totalorder %s18, 0
    %p248 = por %p246, %p247
    %p249 = scmp.ne.s32.totalorder %s241, %s243
    %p250 = scmp.eq.s32.totalorder %s23, 1
    %p251 = por %p249, %p250
    %p252 = scmp.ne.s32.totalorder %s243, %s244
    %p253 = scmp.eq.s32.totalorder %s23, 0
    %p254 = por %p252, %p253
    %p255 = scmp.ne.s32.totalorder %s243, %s244
    %p256 = scmp.eq.s32.totalorder %s24, 1
    %p257 = por %p255, %p256
    %p259 = scmp.ne.s32.totalorder %s244, %s258
    %p260 = scmp.eq.s32.totalorder %s24, 0
    %p261 = por %p259, %p260
    %s263 = sadd.s32 %s262, 1
    %p266 = scmp.eq.s32.totalorder %s18, 1
    %p267 = scmp.ne.s32.totalorder %s262, %s264
    %p268 = scmp.eq.s32.totalorder %s18, 0
    %p269 = por %p267, %p268
    %p270 = scmp.ne.s32.totalorder %s262, %s264
    %p271 = scmp.eq.s32.totalorder %s23, 1
    %p272 = por %p270, %p271
    %p273 = scmp.ne.s32.totalorder %s264, %s265
    %p274 = scmp.eq.s32.totalorder %s23, 0
    %p275 = por %p273, %p274
    %p276 = scmp.ne.s32.totalorder %s264, %s265
    %p277 = scmp.eq.s32.totalorder %s24, 1
    %p278 = por %p276, %p277
    %p280 = scmp.ne.s32.totalorder %s265, %s279
    %p281 = scmp.eq.s32.totalorder %s24, 0
    %p282 = por %p280, %p281
    %s283 = ssub.s32 %s18, %s25
    %p284 = scmp.eq.s32.totalorder %s283, 0
    %s286 = sadd.s32 %s285, 1
    %s287 = scalar_select %p284, %s285, %s286
    %p290 = pneg %p284
    %p291 = scmp.eq.s32.totalorder %s18, 1
    %p292 = por %p290, %p291
    %p293 = scmp.ne.s32.totalorder %s285, %s288
    %p294 = scmp.eq.s32.totalorder %s18, 0
    %p295 = por %p293, %p294
    %p296 = scmp.ne.s32.totalorder %s285, %s288
    %p297 = scmp.eq.s32.totalorder %s23, 1
    %p298 = por %p296, %p297
    %p299 = scmp.ne.s32.totalorder %s288, %s289
    %p300 = scmp.eq.s32.totalorder %s23, 0
    %p301 = por %p299, %p300
    %p302 = scmp.ne.s32.totalorder %s288, %s289
    %p303 = scmp.eq.s32.totalorder %s24, 1
    %p304 = por %p302, %p303
    %p306 = scmp.ne.s32.totalorder %s289, %s305
    %p307 = scmp.eq.s32.totalorder %s24, 0
    %p308 = por %p306, %p307
    %p309 = scmp.le.s32.totalorder 1, %s18
    %p310 = scmp.lt.s32.totalorder %s18, 3
    %p311 = pnand %p309, %p310
    %p312 = pneg %p311
    // Predicated region
    $region9: #{flan_xl_vqa_forward.5} parent=5 // pred_check
      _
    $region10: #{flan_xl_vqa_forward.5} parent=5 // pred_check_branch
      %314 = sbr.rel (%p311) target = $region12
    $region11: #{flan_xl_vqa_forward.5} parent=5 // pred_region
      %s315 = ssub.s32 %s18, 1
      // Predicated region
      $region13: #{flan_xl_vqa_forward.5} parent=11 // pred_check
        %p316 = pneg %p39
      $region14: #{flan_xl_vqa_forward.5} parent=11 // pred_check_branch
        %318 = sbr.rel (%p316) target = $region16
      $region15: #{flan_xl_vqa_forward.5} parent=11 // pred_region
        _
      $region16: #{flan_xl_vqa_forward.5} parent=11 // pred_fallthru
        _
      // Predicated region
      $region17: #{flan_xl_vqa_forward.5} parent=11 // pred_check
        %p319 = pneg %p86
      $region18: #{flan_xl_vqa_forward.5} parent=11 // pred_check_branch
        %321 = sbr.rel (%p319) target = $region20
      $region19: #{flan_xl_vqa_forward.5} parent=11 // pred_region
        _
      $region20: #{flan_xl_vqa_forward.5} parent=11 // pred_fallthru
        _
      // Predicated region
      $region21: #{flan_xl_vqa_forward.5} parent=11 // pred_check
        %p322 = pneg %p107
      $region22: #{flan_xl_vqa_forward.5} parent=11 // pred_check_branch
        %324 = sbr.rel (%p322) target = $region24
      $region23: #{flan_xl_vqa_forward.5} parent=11 // pred_region
        _
      $region24: #{flan_xl_vqa_forward.5} parent=11 // pred_fallthru
        _
      // Predicated region
      $region25: #{flan_xl_vqa_forward.5} parent=11 // pred_check
        %p325 = pneg %p128
      $region26: #{flan_xl_vqa_forward.5} parent=11 // pred_check_branch
        %327 = sbr.rel (%p325) target = $region28
      $region27: #{flan_xl_vqa_forward.5} parent=11 // pred_region
        _
      $region28: #{flan_xl_vqa_forward.5} parent=11 // pred_fallthru
        _
      // Predicated region
      $region29: #{flan_xl_vqa_forward.5} parent=11 // pred_check
        %p328 = pneg %p149
      $region30: #{flan_xl_vqa_forward.5} parent=11 // pred_check_branch
        %330 = sbr.rel (%p328) target = $region32
      $region31: #{flan_xl_vqa_forward.5} parent=11 // pred_region
        _
      $region32: #{flan_xl_vqa_forward.5} parent=11 // pred_fallthru
        _
      // Predicated region
      $region33: #{flan_xl_vqa_forward.5} parent=11 // pred_check
        %p331 = pneg %p170
      $region34: #{flan_xl_vqa_forward.5} parent=11 // pred_check_branch
        %333 = sbr.rel (%p331) target = $region36
      $region35: #{flan_xl_vqa_forward.5} parent=11 // pred_region
        _
      $region36: #{flan_xl_vqa_forward.5} parent=11 // pred_fallthru
        _
      // Predicated region
      $region37: #{flan_xl_vqa_forward.5} parent=11 // pred_check
        %p334 = pneg %p191
      $region38: #{flan_xl_vqa_forward.5} parent=11 // pred_check_branch
        %336 = sbr.rel (%p334) target = $region40
      $region39: #{flan_xl_vqa_forward.5} parent=11 // pred_region
        _
      $region40: #{flan_xl_vqa_forward.5} parent=11 // pred_fallthru
        _
      // Predicated region
      $region41: #{flan_xl_vqa_forward.5} parent=11 // pred_check
        %p337 = pneg %p212
      $region42: #{flan_xl_vqa_forward.5} parent=11 // pred_check_branch
        %339 = sbr.rel (%p337) target = $region44
      $region43: #{flan_xl_vqa_forward.5} parent=11 // pred_region
        _
      $region44: #{flan_xl_vqa_forward.5} parent=11 // pred_fallthru
        _
      // Predicated region
      $region45: #{flan_xl_vqa_forward.5} parent=11 // pred_check
        %p340 = pneg %p233
      $region46: #{flan_xl_vqa_forward.5} parent=11 // pred_check_branch
        %342 = sbr.rel (%p340) target = $region48
      $region47: #{flan_xl_vqa_forward.5} parent=11 // pred_region
        _
      $region48: #{flan_xl_vqa_forward.5} parent=11 // pred_fallthru
        _
      // Predicated region
      $region49: #{flan_xl_vqa_forward.5} parent=11 // pred_check
        %p343 = pneg %p254
      $region50: #{flan_xl_vqa_forward.5} parent=11 // pred_check_branch
        %345 = sbr.rel (%p343) target = $region52
      $region51: #{flan_xl_vqa_forward.5} parent=11 // pred_region
        _
      $region52: #{flan_xl_vqa_forward.5} parent=11 // pred_fallthru
        _
      // Predicated region
      $region53: #{flan_xl_vqa_forward.5} parent=11 // pred_check
        %p346 = pneg %p275
      $region54: #{flan_xl_vqa_forward.5} parent=11 // pred_check_branch
        %348 = sbr.rel (%p346) target = $region56
      $region55: #{flan_xl_vqa_forward.5} parent=11 // pred_region
        _
      $region56: #{flan_xl_vqa_forward.5} parent=11 // pred_fallthru
        _
    $region12: #{flan_xl_vqa_forward.5} parent=5 // pred_fallthru
      _
    %p349 = scmp.lt.s32.totalorder %s18, 2
    // Predicated region
    $region57: #{flan_xl_vqa_forward.5} parent=5 // pred_check
      %p350 = pneg %p349
    $region58: #{flan_xl_vqa_forward.5} parent=5 // pred_check_branch
      %352 = sbr.rel (%p350) target = $region60
    $region59: #{flan_xl_vqa_forward.5} parent=5 // pred_region
      // Predicated region
      $region61: #{flan_xl_vqa_forward.5} parent=59 // pred_check
        %p353 = pneg %p59
      $region62: #{flan_xl_vqa_forward.5} parent=59 // pred_check_branch
        %355 = sbr.rel (%p353) target = $region64
      $region63: #{flan_xl_vqa_forward.5} parent=59 // pred_region
        %p356 = scmp.lt.s32.totalorder %s18, 1
        %s357 = scalar_select %p356, %s18, 1
        %s358 = smul.addr %s357, 2
        %s359 = smul.addr %s358, 4
        %s360 = scalar_lea.vmem %s1, %s359
      $region64: #{flan_xl_vqa_forward.5} parent=59 // pred_fallthru
        _
    $region60: #{flan_xl_vqa_forward.5} parent=5 // pred_fallthru
      _
    %p361 = scmp.le.s32.totalorder 1, %s18
    %p362 = scmp.lt.s32.totalorder %s18, 3
    %p363 = pnand %p361, %p362
    %p364 = pneg %p363
    // Predicated region
    $region65: #{flan_xl_vqa_forward.5} parent=5 // pred_check
      _
    $region66: #{flan_xl_vqa_forward.5} parent=5 // pred_check_branch
      %366 = sbr.rel (%p363) target = $region68
    $region67: #{flan_xl_vqa_forward.5} parent=5 // pred_region
      %s367 = ssub.s32 %s18, 1
      %p368 = pneg %p39
      %p369 = pneg %p36
      %p370 = scmp.lt.s32.totalorder %s23, 1
      %s371 = scalar_select %p370, %s23, 1
      %s372 = smul.addr %s371, 2
      %s373 = smul.addr %s372, 4
      %s374 = scalar_lea.vmem %s1, %s373
      %p375 = pneg %p65
      %p376 = pneg %p62
      %p377 = pneg %p86
      %p378 = pneg %p83
      %p379 = pneg %p107
      %p380 = pneg %p104
      %p381 = pneg %p128
      %p382 = pneg %p125
      %p383 = pneg %p149
      %p384 = pneg %p146
      %p385 = pneg %p170
      %p386 = pneg %p167
      %p387 = pneg %p191
      %p388 = pneg %p188
      %p389 = pneg %p212
      %p390 = pneg %p209
      %p391 = pneg %p233
      %p392 = pneg %p230
      %p393 = pneg %p254
      %p394 = pneg %p251
      %p395 = pneg %p275
      %p396 = pneg %p272
      %p397 = pneg %p301
      %p398 = pneg %p298
      %p399 = scmp.lt.s32.totalorder %s23, 1
      %s400 = scalar_select %p399, %s23, 1
      %s401 = smul.addr %s400, 4
      %s402 = scalar_lea.vmem %s12, %s401
      %p403 = scmp.lt.s32.totalorder %s23, 1
      %s404 = scalar_select %p403, %s23, 1
      %s405 = smul.addr %s404, 2
      %s406 = smul.addr %s405, 4
      %s407 = scalar_lea.vmem %s1, %s406
      %p408 = scmp.lt.s32.totalorder %s23, 1
      %s409 = scalar_select %p408, %s23, 1
      %s410 = smul.addr %s409, 4
      %s411 = scalar_lea.vmem %s12, %s410
      %v413 = vld [vmem:[%s10] sm:$0xff]
      %v414 = vld [vmem:[%s11] sm:$0xff]
      %v415 = vld [vmem:[%s0] sm:$0xff]
      %vm416 = vcmask 261120
      %v417 = vsel %vm416, %v415, 0.0
      %418 = vadd.xlane.f32.xlu0 %v417
      %v419 = vpop.xlane.xlu0 %418
      %v420 = vrcp.pop 32.0
      %v421 = vmul.f32 %v419, %v420
      %v422 = vsub.f32 %v415, %v421
      %v423 = vmul.f32 %v422, %v422
      %v424 = vsel %vm416, %v423, 0.0
      %425 = vadd.xlane.f32.xlu0 %v424
      %v426 = vpop.xlane.xlu0 %425
      %v427 = vmul.f32 %v426, %v420
      %v428 = vadd.f32 %v427, 1e-06
      %v429 = vrsqrt.pop %v428
      %v430 = vmul.f32 %v422, %v429
      %v431 = vlaneseq
      %v432 = vshrl.u32 %v431, 7
      %v433 = vsub.s32 2, %v432
      %v434 = vrot.slane %v413, %v433
      %v435 = vmul.f32 %v430, %v434
      %v436 = vlaneseq
      %v437 = vshrl.u32 %v436, 7
      %v438 = vsub.s32 3, %v437
      %v439 = vrot.slane %v413, %v438
      %v440 = vadd.f32 %v435, %v439
      %v441 = vpack.c.bf16 %v440, %v440
      %v442 = vld [vmem:[%s2] sm:$0xf]
      %v443 = vld [vmem:[%s2 + $0x4] sm:$0xf]
      %v444 = vld [vmem:[%s2 + $0x8] sm:$0xf]
      %v445 = vld [vmem:[%s2 + $0xc] sm:$0xf]
      %v446 = vlaneseq
      %v447 = vshrl.u32 %v446, 7
      %v448 = vsub.s32 0, %v447
      %v449 = vrot.slane %v414, %v448
      %v454 = vunpack.c.l.b16 %v442
      %v455 = vunpack.c.l.b16 %v443
      %v456 = vunpack.c.l.b16 %v444
      %v457 = vunpack.c.l.b16 %v445
      %v458 = vpack.c.b16 %v455, %v454
      %v459 = vpack.c.b16 %v457, %v456
      %v463 = vsel %vm416, %v441, 0
      %465 = vmatprep.subr.bf16.mxu0 0
      %466 = vmatpush1.bf16.msra.mxu0 %v458
      %467 = vmatprep.subr.bf16.mxu0 0
      %468 = vmatpush1.bf16.msra.mxu0 %v459
      %469 = vmatprep.subr.bf16.mxu0 0
      %470 = vmatpush1.bf16.msra.mxu0 0
      %471 = vmatprep.subr.bf16.mxu0 0
      %472 = vmatpush1.bf16.msra.mxu0 0
      %473 = vmatprep.subr.bf16.mxu0 0
      %474 = vmatpush1.bf16.msra.mxu0 0
      %475 = vmatprep.subr.bf16.mxu0 0
      %476 = vmatpush1.bf16.msra.mxu0 0
      %477 = vmatprep.subr.bf16.mxu0 0
      %478 = vmatpush1.bf16.msra.mxu0 0
      %479 = vmatprep.subr.bf16.mxu0 0
      %480 = vmatpush1.bf16.msra.mxu0 0
      %481 = vmatprep.subr.bf16.mxu0 0
      %482 = vmatpush1.bf16.msra.mxu0 0
      %483 = vmatprep.subr.bf16.mxu0 0
      %484 = vmatpush1.bf16.msra.mxu0 0
      %485 = vmatprep.subr.bf16.mxu0 0
      %486 = vmatpush1.bf16.msra.mxu0 0
      %487 = vmatprep.subr.bf16.mxu0 0
      %488 = vmatpush1.bf16.msra.mxu0 0
      %489 = vmatprep.subr.bf16.mxu0 0
      %490 = vmatpush1.bf16.msra.mxu0 0
      %491 = vmatprep.subr.bf16.mxu0 0
      %492 = vmatpush1.bf16.msra.mxu0 0
      %493 = vmatprep.subr.bf16.mxu0 0
      %494 = vmatpush1.bf16.msra.mxu0 0
      %495 = vmatprep.subr.bf16.mxu0 0
      %496 = vmatpush1.bf16.msra.mxu0 0
      %497 = vmatprep.mubr.bf16.mxu0 0
      %498 = vmatmul.mubr.bf16.gmra.mrb[0].mxu0 %v463
      %v499 = vpop.f32.mrb[0].mxu0
      %v500 = vadd.f32 %v449, %v499
      %v501 = vpop.f32.mrb[0].mxu0
      %v502 = vpop.f32.mrb[0].mxu0
      %v503 = vpop.f32.mrb[0].mxu0
      %504 = vdwg.mxu0
      %v505 = vld [vmem:[%s3] sm:$0xf]
      %v506 = vld [vmem:[%s3 + $0x4] sm:$0xf]
      %v507 = vld [vmem:[%s3 + $0x8] sm:$0xf]
      %v508 = vld [vmem:[%s3 + $0xc] sm:$0xf]
      %v509 = vmul.f32 %v500, 0.35355338
      %511 = vrot.lane.b32.xlu0 %v509, 120
      %v512 = vpop.permute.xlu0 %511
      %514 = vrot.lane.b32.xlu0 %v509, 112
      %v515 = vpop.permute.xlu0 %514
      %517 = vrot.lane.b32.xlu0 %v509, 104
      %v518 = vpop.permute.xlu0 %517
      %v520 = vpack.c.bf16 %v509, %v509
      %v521 = vpack.c.bf16 %v512, %v512
      %v522 = vpack.c.bf16 %v515, %v515
      %v523 = vpack.c.bf16 %v518, %v518
      %525 = vrot.lane.b32.xlu0 %v500, 120
      %v526 = vpop.permute.xlu0 %525
      %528 = vrot.lane.b32.xlu0 %v500, 112
      %v529 = vpop.permute.xlu0 %528
      %531 = vrot.lane.b32.xlu0 %v500, 104
      %v532 = vpop.permute.xlu0 %531
      %v534 = vpack.c.bf16 %v500, %v500
      %v535 = vpack.c.bf16 %v526, %v526
      %v536 = vpack.c.bf16 %v529, %v529
      %v537 = vpack.c.bf16 %v532, %v532
      %539 = vrot.lane.b32.xlu0 %v534, 96
      %v540 = vpop.permute.xlu0 %539
      %vm541 = vcmask 64512
      %v543 = vsel %vm541, %v520, 0
      %v546 = vsel %vm541, %v540, 0
      %548 = vmatprep.subr.bf16.mxu0 0
      %549 = vmatpush1.bf16.xpose.msra.mxu0 %v546
      %550 = vmatprep.subr.bf16.mxu0 0
      %551 = vmatpush1.bf16.xpose.msra.mxu0 0
      %552 = vmatprep.subr.bf16.mxu0 0
      %553 = vmatpush1.bf16.xpose.msra.mxu0 0
      %554 = vmatprep.subr.bf16.mxu0 0
      %555 = vmatpush1.bf16.xpose.msra.mxu0 0
      %556 = vmatprep.subr.bf16.mxu0 0
      %557 = vmatpush1.bf16.xpose.msra.mxu0 0
      %558 = vmatprep.subr.bf16.mxu0 0
      %559 = vmatpush1.bf16.xpose.msra.mxu0 0
      %560 = vmatprep.subr.bf16.mxu0 0
      %561 = vmatpush1.bf16.xpose.msra.mxu0 0
      %562 = vmatprep.subr.bf16.mxu0 0
      %563 = vmatpush1.bf16.xpose.msra.mxu0 0
      %564 = vmatprep.subr.bf16.mxu0 0
      %565 = vmatpush1.bf16.xpose.msra.mxu0 0
      %566 = vmatprep.subr.bf16.mxu0 0
      %567 = vmatpush1.bf16.xpose.msra.mxu0 0
      %568 = vmatprep.subr.bf16.mxu0 0
      %569 = vmatpush1.bf16.xpose.msra.mxu0 0
      %570 = vmatprep.subr.bf16.mxu0 0
      %571 = vmatpush1.bf16.xpose.msra.mxu0 0
      %572 = vmatprep.subr.bf16.mxu0 0
      %573 = vmatpush1.bf16.xpose.msra.mxu0 0
      %574 = vmatprep.subr.bf16.mxu0 0
      %575 = vmatpush1.bf16.xpose.msra.mxu0 0
      %576 = vmatprep.subr.bf16.mxu0 0
      %577 = vmatpush1.bf16.xpose.msra.mxu0 0
      %578 = vmatprep.subr.bf16.mxu0 0
      %579 = vmatpush1.bf16.xpose.msra.mxu0 0
      %580 = vmatprep.mubr.bf16.mxu0 0
      %581 = vmatmul.mubr.bf16.gmra.mrb[0].mxu0 %v543
      %v582 = vpop.f32.mrb[0].mxu0
      %v583 = vadd.f32 0.0, %v582
      %v584 = vpop.f32.mrb[0].mxu0
      %v585 = vpop.f32.mrb[0].mxu0
      %v586 = vpop.f32.mrb[0].mxu0
      %587 = vdwg.mxu0
      %589 = vrot.lane.b32.xlu0 %v535, 96
      %v590 = vpop.permute.xlu0 %589
      %v592 = vsel %vm541, %v521, 0
      %v595 = vsel %vm541, %v590, 0
      %597 = vmatprep.subr.bf16.mxu0 0
      %598 = vmatpush1.bf16.xpose.msra.mxu0 %v595
      %599 = vmatprep.subr.bf16.mxu0 0
      %600 = vmatpush1.bf16.xpose.msra.mxu0 0
      %601 = vmatprep.subr.bf16.mxu0 0
      %602 = vmatpush1.bf16.xpose.msra.mxu0 0
      %603 = vmatprep.subr.bf16.mxu0 0
      %604 = vmatpush1.bf16.xpose.msra.mxu0 0
      %605 = vmatprep.subr.bf16.mxu0 0
      %606 = vmatpush1.bf16.xpose.msra.mxu0 0
      %607 = vmatprep.subr.bf16.mxu0 0
      %608 = vmatpush1.bf16.xpose.msra.mxu0 0
      %609 = vmatprep.subr.bf16.mxu0 0
      %610 = vmatpush1.bf16.xpose.msra.mxu0 0
      %611 = vmatprep.subr.bf16.mxu0 0
      %612 = vmatpush1.bf16.xpose.msra.mxu0 0
      %613 = vmatprep.subr.bf16.mxu0 0
      %614 = vmatpush1.bf16.xpose.msra.mxu0 0
      %615 = vmatprep.subr.bf16.mxu0 0
      %616 = vmatpush1.bf16.xpose.msra.mxu0 0
      %617 = vmatprep.subr.bf16.mxu0 0
      %618 = vmatpush1.bf16.xpose.msra.mxu0 0
      %619 = vmatprep.subr.bf16.mxu0 0
      %620 = vmatpush1.bf16.xpose.msra.mxu0 0
      %621 = vmatprep.subr.bf16.mxu0 0
      %622 = vmatpush1.bf16.xpose.msra.mxu0 0
      %623 = vmatprep.subr.bf16.mxu0 0
      %624 = vmatpush1.bf16.xpose.msra.mxu0 0
      %625 = vmatprep.subr.bf16.mxu0 0
      %626 = vmatpush1.bf16.xpose.msra.mxu0 0
      %627 = vmatprep.subr.bf16.mxu0 0
      %628 = vmatpush1.bf16.xpose.msra.mxu0 0
      %629 = vmatprep.mubr.bf16.mxu0 0
      %630 = vmatmul.mubr.bf16.gmra.mrb[0].mxu0 %v592
      %v631 = vpop.f32.mrb[0].mxu0
      %v632 = vadd.f32 0.0, %v631
      %v633 = vpop.f32.mrb[0].mxu0
      %v634 = vpop.f32.mrb[0].mxu0
      %v635 = vpop.f32.mrb[0].mxu0
      %636 = vdwg.mxu0
      %638 = vrot.lane.b32.xlu0 %v536, 96
      %v639 = vpop.permute.xlu0 %638
      %v641 = vsel %vm541, %v522, 0
      %v644 = vsel %vm541, %v639, 0
      %646 = vmatprep.subr.bf16.mxu0 0
      %647 = vmatpush1.bf16.xpose.msra.mxu0 %v644
      %648 = vmatprep.subr.bf16.mxu0 0
      %649 = vmatpush1.bf16.xpose.msra.mxu0 0
      %650 = vmatprep.subr.bf16.mxu0 0
      %651 = vmatpush1.bf16.xpose.msra.mxu0 0
      %652 = vmatprep.subr.bf16.mxu0 0
      %653 = vmatpush1.bf16.xpose.msra.mxu0 0
      %654 = vmatprep.subr.bf16.mxu0 0
      %655 = vmatpush1.bf16.xpose.msra.mxu0 0
      %656 = vmatprep.subr.bf16.mxu0 0
      %657 = vmatpush1.bf16.xpose.msra.mxu0 0
      %658 = vmatprep.subr.bf16.mxu0 0
      %659 = vmatpush1.bf16.xpose.msra.mxu0 0
      %660 = vmatprep.subr.bf16.mxu0 0
      %661 = vmatpush1.bf16.xpose.msra.mxu0 0
      %662 = vmatprep.subr.bf16.mxu0 0
      %663 = vmatpush1.bf16.xpose.msra.mxu0 0
      %664 = vmatprep.subr.bf16.mxu0 0
      %665 = vmatpush1.bf16.xpose.msra.mxu0 0
      %666 = vmatprep.subr.bf16.mxu0 0
      %667 = vmatpush1.bf16.xpose.msra.mxu0 0
      %668 = vmatprep.subr.bf16.mxu0 0
      %669 = vmatpush1.bf16.xpose.msra.mxu0 0
      %670 = vmatprep.subr.bf16.mxu0 0
      %671 = vmatpush1.bf16.xpose.msra.mxu0 0
      %672 = vmatprep.subr.bf16.mxu0 0
      %673 = vmatpush1.bf16.xpose.msra.mxu0 0
      %674 = vmatprep.subr.bf16.mxu0 0
      %675 = vmatpush1.bf16.xpose.msra.mxu0 0
      %676 = vmatprep.subr.bf16.mxu0 0
      %677 = vmatpush1.bf16.xpose.msra.mxu0 0
      %678 = vmatprep.mubr.bf16.mxu0 0
      %679 = vmatmul.mubr.bf16.gmra.mrb[0].mxu0 %v641
      %v680 = vpop.f32.mrb[0].mxu0
      %v681 = vadd.f32 0.0, %v680
      %v682 = vpop.f32.mrb[0].mxu0
      %v683 = vpop.f32.mrb[0].mxu0
      %v684 = vpop.f32.mrb[0].mxu0
      %685 = vdwg.mxu0
      %687 = vrot.lane.b32.xlu0 %v537, 96
      %v688 = vpop.permute.xlu0 %687
      %v690 = vsel %vm541, %v523, 0
      %v693 = vsel %vm541, %v688, 0
      %695 = vmatprep.subr.bf16.mxu0 0
      %696 = vmatpush1.bf16.xpose.msra.mxu0 %v693
      %697 = vmatprep.subr.bf16.mxu0 0
      %698 = vmatpush1.bf16.xpose.msra.mxu0 0
      %699 = vmatprep.subr.bf16.mxu0 0
      %700 = vmatpush1.bf16.xpose.msra.mxu0 0
      %701 = vmatprep.subr.bf16.mxu0 0
      %702 = vmatpush1.bf16.xpose.msra.mxu0 0
      %703 = vmatprep.subr.bf16.mxu0 0
      %704 = vmatpush1.bf16.xpose.msra.mxu0 0
      %705 = vmatprep.subr.bf16.mxu0 0
      %706 = vmatpush1.bf16.xpose.msra.mxu0 0
      %707 = vmatprep.subr.bf16.mxu0 0
      %708 = vmatpush1.bf16.xpose.msra.mxu0 0
      %709 = vmatprep.subr.bf16.mxu0 0
      %710 = vmatpush1.bf16.xpose.msra.mxu0 0
      %711 = vmatprep.subr.bf16.mxu0 0
      %712 = vmatpush1.bf16.xpose.msra.mxu0 0
      %713 = vmatprep.subr.bf16.mxu0 0
      %714 = vmatpush1.bf16.xpose.msra.mxu0 0
      %715 = vmatprep.subr.bf16.mxu0 0
      %716 = vmatpush1.bf16.xpose.msra.mxu0 0
      %717 = vmatprep.subr.bf16.mxu0 0
      %718 = vmatpush1.bf16.xpose.msra.mxu0 0
      %719 = vmatprep.subr.bf16.mxu0 0
      %720 = vmatpush1.bf16.xpose.msra.mxu0 0
      %721 = vmatprep.subr.bf16.mxu0 0
      %722 = vmatpush1.bf16.xpose.msra.mxu0 0
      %723 = vmatprep.subr.bf16.mxu0 0
      %724 = vmatpush1.bf16.xpose.msra.mxu0 0
      %725 = vmatprep.subr.bf16.mxu0 0
      %726 = vmatpush1.bf16.xpose.msra.mxu0 0
      %727 = vmatprep.mubr.bf16.mxu0 0
      %728 = vmatmul.mubr.bf16.gmra.mrb[0].mxu0 %v690
      %v729 = vpop.f32.mrb[0].mxu0
      %v730 = vadd.f32 0.0, %v729
      %v731 = vpop.f32.mrb[0].mxu0
      %v732 = vpop.f32.mrb[0].mxu0
      %v733 = vpop.f32.mrb[0].mxu0
      %734 = vdwg.mxu0
      %v735 = vsel %vm541, %v583, -inf
      %736 = vmax.xlane.f32.xlu0 %v735
      %v737 = vpop.xlane.xlu0 %736
      %v738 = vsel %vm541, %v632, -inf
      %739 = vmax.xlane.f32.xlu0 %v738
      %v740 = vpop.xlane.xlu0 %739
      %v741 = vsel %vm541, %v681, -inf
      %742 = vmax.xlane.f32.xlu0 %v741
      %v743 = vpop.xlane.xlu0 %742
      %v744 = vsel %vm541, %v730, -inf
      %745 = vmax.xlane.f32.xlu0 %v744
      %v746 = vpop.xlane.xlu0 %745
      %v747 = vsub.f32 %v583, %v737
      %v748 = vsub.f32 %v632, %v740
      %v749 = vsub.f32 %v681, %v743
      %v750 = vsub.f32 %v730, %v746
      %v751 = vmul.f32 %v747, 1.442695
      %v752 = vpow.pop %v751
      %v753 = vmul.f32 %v748, 1.442695
      %v754 = vpow.pop %v753
      %v755 = vmul.f32 %v749, 1.442695
      %v756 = vpow.pop %v755
      %v757 = vmul.f32 %v750, 1.442695
      %v758 = vpow.pop %v757
      %v759 = vsel %vm541, %v752, 0.0
      %760 = vadd.xlane.f32.xlu0 %v759
      %v761 = vpop.xlane.xlu0 %760
      %v762 = vsel %vm541, %v754, 0.0
      %763 = vadd.xlane.f32.xlu0 %v762
      %v764 = vpop.xlane.xlu0 %763
      %v765 = vsel %vm541, %v756, 0.0
      %766 = vadd.xlane.f32.xlu0 %v765
      %v767 = vpop.xlane.xlu0 %766
      %v768 = vsel %vm541, %v758, 0.0
      %769 = vadd.xlane.f32.xlu0 %v768
      %v770 = vpop.xlane.xlu0 %769
      %v771 = vpack.c.bf16 %v752, %v752
      %v772 = vpack.c.bf16 %v754, %v754
      %v773 = vpack.c.bf16 %v756, %v756
      %v774 = vpack.c.bf16 %v758, %v758
      %775 = vrot.lane.b32.xlu0 %v534, 64
      %v776 = vpop.permute.xlu0 %775
      %v778 = vsel %vm541, %v771, 0
      %vm780 = vcmask 1043456
      %v782 = vsel %vm780, %v776, 0
      %784 = vmatprep.subr.bf16.mxu0 0
      %785 = vmatpush1.bf16.msra.mxu0 %v782
      %786 = vmatprep.subr.bf16.mxu0 0
      %787 = vmatpush1.bf16.msra.mxu0 0
      %788 = vmatprep.subr.bf16.mxu0 0
      %789 = vmatpush1.bf16.msra.mxu0 0
      %790 = vmatprep.subr.bf16.mxu0 0
      %791 = vmatpush1.bf16.msra.mxu0 0
      %792 = vmatprep.subr.bf16.mxu0 0
      %793 = vmatpush1.bf16.msra.mxu0 0
      %794 = vmatprep.subr.bf16.mxu0 0
      %795 = vmatpush1.bf16.msra.mxu0 0
      %796 = vmatprep.subr.bf16.mxu0 0
      %797 = vmatpush1.bf16.msra.mxu0 0
      %798 = vmatprep.subr.bf16.mxu0 0
      %799 = vmatpush1.bf16.msra.mxu0 0
      %800 = vmatprep.subr.bf16.mxu0 0
      %801 = vmatpush1.bf16.msra.mxu0 0
      %802 = vmatprep.subr.bf16.mxu0 0
      %803 = vmatpush1.bf16.msra.mxu0 0
      %804 = vmatprep.subr.bf16.mxu0 0
      %805 = vmatpush1.bf16.msra.mxu0 0
      %806 = vmatprep.subr.bf16.mxu0 0
      %807 = vmatpush1.bf16.msra.mxu0 0
      %808 = vmatprep.subr.bf16.mxu0 0
      %809 = vmatpush1.bf16.msra.mxu0 0
      %810 = vmatprep.subr.bf16.mxu0 0
      %811 = vmatpush1.bf16.msra.mxu0 0
      %812 = vmatprep.subr.bf16.mxu0 0
      %813 = vmatpush1.bf16.msra.mxu0 0
      %814 = vmatprep.subr.bf16.mxu0 0
      %815 = vmatpush1.bf16.msra.mxu0 0
      %816 = vmatprep.mubr.bf16.mxu0 0
      %817 = vmatmul.mubr.bf16.gmra.mrb[0].mxu0 %v778
      %v818 = vpop.f32.mrb[0].mxu0
      %v819 = vadd.f32 0.0, %v818
      %v820 = vpop.f32.mrb[0].mxu0
      %v821 = vpop.f32.mrb[0].mxu0
      %v822 = vpop.f32.mrb[0].mxu0
      %823 = vdwg.mxu0
      %824 = vrot.lane.b32.xlu0 %v535, 64
      %v825 = vpop.permute.xlu0 %824
      %v827 = vsel %vm541, %v772, 0
      %v830 = vsel %vm780, %v825, 0
      %832 = vmatprep.subr.bf16.mxu0 0
      %833 = vmatpush1.bf16.msra.mxu0 %v830
      %834 = vmatprep.subr.bf16.mxu0 0
      %835 = vmatpush1.bf16.msra.mxu0 0
      %836 = vmatprep.subr.bf16.mxu0 0
      %837 = vmatpush1.bf16.msra.mxu0 0
      %838 = vmatprep.subr.bf16.mxu0 0
      %839 = vmatpush1.bf16.msra.mxu0 0
      %840 = vmatprep.subr.bf16.mxu0 0
      %841 = vmatpush1.bf16.msra.mxu0 0
      %842 = vmatprep.subr.bf16.mxu0 0
      %843 = vmatpush1.bf16.msra.mxu0 0
      %844 = vmatprep.subr.bf16.mxu0 0
      %845 = vmatpush1.bf16.msra.mxu0 0
      %846 = vmatprep.subr.bf16.mxu0 0
      %847 = vmatpush1.bf16.msra.mxu0 0
      %848 = vmatprep.subr.bf16.mxu0 0
      %849 = vmatpush1.bf16.msra.mxu0 0
      %850 = vmatprep.subr.bf16.mxu0 0
      %851 = vmatpush1.bf16.msra.mxu0 0
      %852 = vmatprep.subr.bf16.mxu0 0
      %853 = vmatpush1.bf16.msra.mxu0 0
      %854 = vmatprep.subr.bf16.mxu0 0
      %855 = vmatpush1.bf16.msra.mxu0 0
      %856 = vmatprep.subr.bf16.mxu0 0
      %857 = vmatpush1.bf16.msra.mxu0 0
      %858 = vmatprep.subr.bf16.mxu0 0
      %859 = vmatpush1.bf16.msra.mxu0 0
      %860 = vmatprep.subr.bf16.mxu0 0
      %861 = vmatpush1.bf16.msra.mxu0 0
      %862 = vmatprep.subr.bf16.mxu0 0
      %863 = vmatpush1.bf16.msra.mxu0 0
      %864 = vmatprep.mubr.bf16.mxu0 0
      %865 = vmatmul.mubr.bf16.gmra.mrb[0].mxu0 %v827
      %v866 = vpop.f32.mrb[0].mxu0
      %v867 = vadd.f32 0.0, %v866
      %v868 = vpop.f32.mrb[0].mxu0
      %v869 = vpop.f32.mrb[0].mxu0
      %v870 = vpop.f32.mrb[0].mxu0
      %871 = vdwg.mxu0
      %872 = vrot.lane.b32.xlu0 %v536, 64
      %v873 = vpop.permute.xlu0 %872
      %v875 = vsel %vm541, %v773, 0
      %v878 = vsel %vm780, %v873, 0
      %880 = vmatprep.subr.bf16.mxu0 0
      %881 = vmatpush1.bf16.msra.mxu0 %v878
      %882 = vmatprep.subr.bf16.mxu0 0
      %883 = vmatpush1.bf16.msra.mxu0 0
      %884 = vmatprep.subr.bf16.mxu0 0
      %885 = vmatpush1.bf16.msra.mxu0 0
      %886 = vmatprep.subr.bf16.mxu0 0
      %887 = vmatpush1.bf16.msra.mxu0 0
      %888 = vmatprep.subr.bf16.mxu0 0
      %889 = vmatpush1.bf16.msra.mxu0 0
      %890 = vmatprep.subr.bf16.mxu0 0
      %891 = vmatpush1.bf16.msra.mxu0 0
      %892 = vmatprep.subr.bf16.mxu0 0
      %893 = vmatpush1.bf16.msra.mxu0 0
      %894 = vmatprep.subr.bf16.mxu0 0
      %895 = vmatpush1.bf16.msra.mxu0 0
      %896 = vmatprep.subr.bf16.mxu0 0
      %897 = vmatpush1.bf16.msra.mxu0 0
      %898 = vmatprep.subr.bf16.mxu0 0
      %899 = vmatpush1.bf16.msra.mxu0 0
      %900 = vmatprep.subr.bf16.mxu0 0
      %901 = vmatpush1.bf16.msra.mxu0 0
      %902 = vmatprep.subr.bf16.mxu0 0
      %903 = vmatpush1.bf16.msra.mxu0 0
      %904 = vmatprep.subr.bf16.mxu0 0
      %905 = vmatpush1.bf16.msra.mxu0 0
      %906 = vmatprep.subr.bf16.mxu0 0
      %907 = vmatpush1.bf16.msra.mxu0 0
      %908 = vmatprep.subr.bf16.mxu0 0
      %909 = vmatpush1.bf16.msra.mxu0 0
      %910 = vmatprep.subr.bf16.mxu0 0
      %911 = vmatpush1.bf16.msra.mxu0 0
      %912 = vmatprep.mubr.bf16.mxu0 0
      %913 = vmatmul.mubr.bf16.gmra.mrb[0].mxu0 %v875
      %v914 = vpop.f32.mrb[0].mxu0
      %v915 = vadd.f32 0.0, %v914
      %v916 = vpop.f32.mrb[0].mxu0
      %v917 = vpop.f32.mrb[0].mxu0
      %v918 = vpop.f32.mrb[0].mxu0
      %919 = vdwg.mxu0
      %920 = vrot.lane.b32.xlu0 %v537, 64
      %v921 = vpop.permute.xlu0 %920
      %v923 = vsel %vm541, %v774, 0
      %v926 = vsel %vm780, %v921, 0
      %928 = vmatprep.subr.bf16.mxu0 0
      %929 = vmatpush1.bf16.msra.mxu0 %v926
      %930 = vmatprep.subr.bf16.mxu0 0
      %931 = vmatpush1.bf16.msra.mxu0 0
      %932 = vmatprep.subr.bf16.mxu0 0
      %933 = vmatpush1.bf16.msra.mxu0 0
      %934 = vmatprep.subr.bf16.mxu0 0
      %935 = vmatpush1.bf16.msra.mxu0 0
      %936 = vmatprep.subr.bf16.mxu0 0
      %937 = vmatpush1.bf16.msra.mxu0 0
      %938 = vmatprep.subr.bf16.mxu0 0
      %939 = vmatpush1.bf16.msra.mxu0 0
      %940 = vmatprep.subr.bf16.mxu0 0
      %941 = vmatpush1.bf16.msra.mxu0 0
      %942 = vmatprep.subr.bf16.mxu0 0
      %943 = vmatpush1.bf16.msra.mxu0 0
      %944 = vmatprep.subr.bf16.mxu0 0
      %945 = vmatpush1.bf16.msra.mxu0 0
      %946 = vmatprep.subr.bf16.mxu0 0
      %947 = vmatpush1.bf16.msra.mxu0 0
      %948 = vmatprep.subr.bf16.mxu0 0
      %949 = vmatpush1.bf16.msra.mxu0 0
      %950 = vmatprep.subr.bf16.mxu0 0
      %951 = vmatpush1.bf16.msra.mxu0 0
      %952 = vmatprep.subr.bf16.mxu0 0
      %953 = vmatpush1.bf16.msra.mxu0 0
      %954 = vmatprep.subr.bf16.mxu0 0
      %955 = vmatpush1.bf16.msra.mxu0 0
      %956 = vmatprep.subr.bf16.mxu0 0
      %957 = vmatpush1.bf16.msra.mxu0 0
      %958 = vmatprep.subr.bf16.mxu0 0
      %959 = vmatpush1.bf16.msra.mxu0 0
      %960 = vmatprep.mubr.bf16.mxu0 0
      %961 = vmatmul.mubr.bf16.gmra.mrb[0].mxu0 %v923
      %v962 = vpop.f32.mrb[0].mxu0
      %v963 = vadd.f32 0.0, %v962
      %v964 = vpop.f32.mrb[0].mxu0
      %v965 = vpop.f32.mrb[0].mxu0
      %v966 = vpop.f32.mrb[0].mxu0
      %967 = vdwg.mxu0
      %v968 = vrcp.pop %v761
      %v969 = vrcp.pop %v764
      %v970 = vrcp.pop %v767
      %v971 = vrcp.pop %v770
      %v972 = vmul.f32 %v819, %v968
      %v973 = vmul.f32 %v867, %v969
      %v974 = vmul.f32 %v915, %v970
      %v975 = vmul.f32 %v963, %v971
      %977 = vrot.lane.b32.xlu0 %v973, 8
      %v978 = vpop.permute.xlu0 %977
      %981 = vrot.lane.b32.xlu0 %v974, 16
      %v982 = vpop.permute.xlu0 %981
      %985 = vrot.lane.b32.xlu0 %v975, 24
      %v986 = vpop.permute.xlu0 %985
      %v988 = vsel %vm541, %v972, %v978
      %vm989 = vcmask 130048
      %v990 = vsel %vm989, %v988, %v982
      %vm991 = vcmask 195584
      %v992 = vsel %vm991, %v990, %v986
      %v993 = vpack.c.bf16 %v992, %v992
      %v994 = vlaneseq
      %v995 = vshrl.u32 %v994, 7
      %v996 = vsub.s32 1, %v995
      %v997 = vrot.slane %v414, %v996
      %v1002 = vunpack.c.l.b16 %v505
      %v1003 = vunpack.c.l.b16 %v506
      %v1004 = vunpack.c.l.b16 %v507
      %v1005 = vunpack.c.l.b16 %v508
      %v1006 = vpack.c.b16 %v1003, %v1002
      %v1007 = vpack.c.b16 %v1005, %v1004
      %v1011 = vsel %vm416, %v993, 0
      %1013 = vmatprep.subr.bf16.mxu0 0
      %1014 = vmatpush1.bf16.msra.mxu0 %v1006
      %1015 = vmatprep.subr.bf16.mxu0 0
      %1016 = vmatpush1.bf16.msra.mxu0 %v1007
      %1017 = vmatprep.subr.bf16.mxu0 0
      %1018 = vmatpush1.bf16.msra.mxu0 0
      %1019 = vmatprep.subr.bf16.mxu0 0
      %1020 = vmatpush1.bf16.msra.mxu0 0
      %1021 = vmatprep.subr.bf16.mxu0 0
      %1022 = vmatpush1.bf16.msra.mxu0 0
      %1023 = vmatprep.subr.bf16.mxu0 0
      %1024 = vmatpush1.bf16.msra.mxu0 0
      %1025 = vmatprep.subr.bf16.mxu0 0
      %1026 = vmatpush1.bf16.msra.mxu0 0
      %1027 = vmatprep.subr.bf16.mxu0 0
      %1028 = vmatpush1.bf16.msra.mxu0 0
      %1029 = vmatprep.subr.bf16.mxu0 0
      %1030 = vmatpush1.bf16.msra.mxu0 0
      %1031 = vmatprep.subr.bf16.mxu0 0
      %1032 = vmatpush1.bf16.msra.mxu0 0
      %1033 = vmatprep.subr.bf16.mxu0 0
      %1034 = vmatpush1.bf16.msra.mxu0 0
      %1035 = vmatprep.subr.bf16.mxu0 0
      %1036 = vmatpush1.bf16.msra.mxu0 0
      %1037 = vmatprep.subr.bf16.mxu0 0
      %1038 = vmatpush1.bf16.msra.mxu0 0
      %1039 = vmatprep.subr.bf16.mxu0 0
      %1040 = vmatpush1.bf16.msra.mxu0 0
      %1041 = vmatprep.subr.bf16.mxu0 0
      %1042 = vmatpush1.bf16.msra.mxu0 0
      %1043 = vmatprep.subr.bf16.mxu0 0
      %1044 = vmatpush1.bf16.msra.mxu0 0
      %1045 = vmatprep.mubr.bf16.mxu0 0
      %1046 = vmatmul.mubr.bf16.gmra.mrb[0].mxu0 %v1011
      %v1047 = vpop.f32.mrb[0].mxu0
      %v1048 = vadd.f32 %v997, %v1047
      %v1049 = vpop.f32.mrb[0].mxu0
      %v1050 = vpop.f32.mrb[0].mxu0
      %v1051 = vpop.f32.mrb[0].mxu0
      %1052 = vdwg.mxu0
      %v1053 = vadd.f32 %v415, %v1048
      %v1054 = vld [vmem:[%s407] sm:$0xf]
      %v1055 = vld [vmem:[%s407 + $0x4] sm:$0xf]
      %v1056 = vunpack.c.l.bf16 %v1054
      %v1057 = vunpack.c.l.bf16 %v1055
      %v1058 = vsel %vm416, %v1056, 0.0
      %1059 = vadd.xlane.f32.xlu0 %v1058
      %v1060 = vpop.xlane.xlu0 %1059
      %v1061 = vsel %vm416, %v1057, 0.0
      %1062 = vadd.xlane.f32.xlu0 %v1061
      %v1063 = vpop.xlane.xlu0 %1062
      %v1064 = vmul.f32 %v1060, %v420
      %v1065 = vmul.f32 %v1063, %v420
      %v1066 = vsub.f32 %v1056, %v1064
      %v1067 = vsub.f32 %v1057, %v1065
      %v1068 = vmul.f32 %v1066, %v1066
      %v1069 = vmul.f32 %v1067, %v1067
      %v1070 = vsel %vm416, %v1068, 0.0
      %1071 = vadd.xlane.f32.xlu0 %v1070
      %v1072 = vpop.xlane.xlu0 %1071
      %v1073 = vsel %vm416, %v1069, 0.0
      %1074 = vadd.xlane.f32.xlu0 %v1073
      %v1075 = vpop.xlane.xlu0 %1074
      %v1076 = vmul.f32 %v1072, %v420
      %v1077 = vmul.f32 %v1075, %v420
      %v1078 = vadd.f32 %v1076, 1e-06
      %v1079 = vadd.f32 %v1077, 1e-06
      %v1080 = vrsqrt.pop %v1078
      %v1081 = vrsqrt.pop %v1079
      %v1082 = vmul.f32 %v1066, %v1080
      %v1083 = vmul.f32 %v1067, %v1081
      %v1084 = vlaneseq
      %v1085 = vshrl.u32 %v1084, 7
      %v1086 = vsub.s32 0, %v1085
      %v1087 = vrot.slane %v413, %v1086
      %v1088 = vmul.f32 %v1082, %v1087
      %v1089 = vmul.f32 %v1083, %v1087
      %v1090 = vlaneseq
      %v1091 = vshrl.u32 %v1090, 7
      %v1092 = vsub.s32 1, %v1091
      %v1093 = vrot.slane %v413, %v1092
      %v1094 = vadd.f32 %v1088, %v1093
      %v1095 = vadd.f32 %v1089, %v1093
      %v1096 = vsel %vm416, %v1053, 0.0
      %1097 = vadd.xlane.f32.xlu0 %v1096
      %v1098 = vpop.xlane.xlu0 %1097
      %v1099 = vmul.f32 %v1098, %v420
      %v1100 = vsub.f32 %v1053, %v1099
      %v1101 = vmul.f32 %v1100, %v1100
      %v1102 = vsel %vm416, %v1101, 0.0
      %1103 = vadd.xlane.f32.xlu0 %v1102
      %v1104 = vpop.xlane.xlu0 %1103
      %v1105 = vmul.f32 %v1104, %v420
      %v1106 = vadd.f32 %v1105, 1e-06
      %v1107 = vrsqrt.pop %v1106
      %v1108 = vmul.f32 %v1100, %v1107
      %v1109 = vlaneseq
      %v1110 = vshrl.u32 %v1109, 7
      %v1111 = vsub.s32 4, %v1110
      %v1112 = vrot.slane %v413, %v1111
      %v1113 = vmul.f32 %v1108, %v1112
      %v1114 = vlaneseq
      %v1115 = vshrl.u32 %v1114, 7
      %v1116 = vsub.s32 5, %v1115
      %v1117 = vrot.slane %v413, %v1116
      %v1118 = vadd.f32 %v1113, %v1117
      %v1119 = vpack.c.bf16 %v1118, %v1118
      %v1120 = vld [vmem:[%s4] sm:$0xf]
      %v1121 = vld [vmem:[%s4 + $0x4] sm:$0xf]
      %v1122 = vld [vmem:[%s4 + $0x8] sm:$0xf]
      %v1123 = vld [vmem:[%s4 + $0xc] sm:$0xf]
      %v1124 = vlaneseq
      %v1125 = vshrl.u32 %v1124, 7
      %v1126 = vsub.s32 2, %v1125
      %v1127 = vrot.slane %v414, %v1126
      %v1132 = vunpack.c.l.b16 %v1120
      %v1133 = vunpack.c.l.b16 %v1121
      %v1134 = vunpack.c.l.b16 %v1122
      %v1135 = vunpack.c.l.b16 %v1123
      %v1136 = vpack.c.b16 %v1133, %v1132
      %v1137 = vpack.c.b16 %v1135, %v1134
      %v1141 = vsel %vm416, %v1119, 0
      %1143 = vmatprep.subr.bf16.mxu0 0
      %1144 = vmatpush1.bf16.msra.mxu0 %v1136
      %1145 = vmatprep.subr.bf16.mxu0 0
      %1146 = vmatpush1.bf16.msra.mxu0 %v1137
      %1147 = vmatprep.subr.bf16.mxu0 0
      %1148 = vmatpush1.bf16.msra.mxu0 0
      %1149 = vmatprep.subr.bf16.mxu0 0
      %1150 = vmatpush1.bf16.msra.mxu0 0
      %1151 = vmatprep.subr.bf16.mxu0 0
      %1152 = vmatpush1.bf16.msra.mxu0 0
      %1153 = vmatprep.subr.bf16.mxu0 0
      %1154 = vmatpush1.bf16.msra.mxu0 0
      %1155 = vmatprep.subr.bf16.mxu0 0
      %1156 = vmatpush1.bf16.msra.mxu0 0
      %1157 = vmatprep.subr.bf16.mxu0 0
      %1158 = vmatpush1.bf16.msra.mxu0 0
      %1159 = vmatprep.subr.bf16.mxu0 0
      %1160 = vmatpush1.bf16.msra.mxu0 0
      %1161 = vmatprep.subr.bf16.mxu0 0
      %1162 = vmatpush1.bf16.msra.mxu0 0
      %1163 = vmatprep.subr.bf16.mxu0 0
      %1164 = vmatpush1.bf16.msra.mxu0 0
      %1165 = vmatprep.subr.bf16.mxu0 0
      %1166 = vmatpush1.bf16.msra.mxu0 0
      %1167 = vmatprep.subr.bf16.mxu0 0
      %1168 = vmatpush1.bf16.msra.mxu0 0
      %1169 = vmatprep.subr.bf16.mxu0 0
      %1170 = vmatpush1.bf16.msra.mxu0 0
      %1171 = vmatprep.subr.bf16.mxu0 0
      %1172 = vmatpush1.bf16.msra.mxu0 0
      %1173 = vmatprep.subr.bf16.mxu0 0
      %1174 = vmatpush1.bf16.msra.mxu0 0
      %1175 = vmatprep.mubr.bf16.mxu0 0
      %1176 = vmatmul.mubr.bf16.gmra.mrb[0].mxu0 %v1141
      %v1177 = vpop.f32.mrb[0].mxu0
      %v1178 = vadd.f32 %v1127, %v1177
      %v1179 = vpop.f32.mrb[0].mxu0
      %v1180 = vpop.f32.mrb[0].mxu0
      %v1181 = vpop.f32.mrb[0].mxu0
      %1182 = vdwg.mxu0
      %v1183 = vpack.c.bf16 %v1095, %v1094
      %v1184 = vld [vmem:[%s5] sm:$0xf]
      %v1185 = vld [vmem:[%s5 + $0x4] sm:$0xf]
      %v1186 = vld [vmem:[%s5 + $0x8] sm:$0xf]
      %v1187 = vld [vmem:[%s5 + $0xc] sm:$0xf]
      %v1188 = vlaneseq
      %v1189 = vshrl.u32 %v1188, 7
      %v1190 = vsub.s32 3, %v1189
      %v1191 = vrot.slane %v414, %v1190
      %v1196 = vunpack.c.l.b16 %v1184
      %v1197 = vunpack.c.l.b16 %v1185
      %v1198 = vunpack.c.l.b16 %v1186
      %v1199 = vunpack.c.l.b16 %v1187
      %v1200 = vpack.c.b16 %v1197, %v1196
      %v1201 = vpack.c.b16 %v1199, %v1198
      %v1205 = vsel %vm416, %v1183, 0
      %1207 = vmatprep.subr.bf16.mxu0 0
      %1208 = vmatpush1.bf16.msra.mxu0 %v1200
      %1209 = vmatprep.subr.bf16.mxu0 0
      %1210 = vmatpush1.bf16.msra.mxu0 %v1201
      %1211 = vmatprep.subr.bf16.mxu0 0
      %1212 = vmatpush1.bf16.msra.mxu0 0
      %1213 = vmatprep.subr.bf16.mxu0 0
      %1214 = vmatpush1.bf16.msra.mxu0 0
      %1215 = vmatprep.subr.bf16.mxu0 0
      %1216 = vmatpush1.bf16.msra.mxu0 0
      %1217 = vmatprep.subr.bf16.mxu0 0
      %1218 = vmatpush1.bf16.msra.mxu0 0
      %1219 = vmatprep.subr.bf16.mxu0 0
      %1220 = vmatpush1.bf16.msra.mxu0 0
      %1221 = vmatprep.subr.bf16.mxu0 0
      %1222 = vmatpush1.bf16.msra.mxu0 0
      %1223 = vmatprep.subr.bf16.mxu0 0
      %1224 = vmatpush1.bf16.msra.mxu0 0
      %1225 = vmatprep.subr.bf16.mxu0 0
      %1226 = vmatpush1.bf16.msra.mxu0 0
      %1227 = vmatprep.subr.bf16.mxu0 0
      %1228 = vmatpush1.bf16.msra.mxu0 0
      %1229 = vmatprep.subr.bf16.mxu0 0
      %1230 = vmatpush1.bf16.msra.mxu0 0
      %1231 = vmatprep.subr.bf16.mxu0 0
      %1232 = vmatpush1.bf16.msra.mxu0 0
      %1233 = vmatprep.subr.bf16.mxu0 0
      %1234 = vmatpush1.bf16.msra.mxu0 0
      %1235 = vmatprep.subr.bf16.mxu0 0
      %1236 = vmatpush1.bf16.msra.mxu0 0
      %1237 = vmatprep.subr.bf16.mxu0 0
      %1238 = vmatpush1.bf16.msra.mxu0 0
      %1239 = vmatprep.mubr.bf16.mxu0 0
      %1240 = vmatmul.mubr.bf16.gmra.mrb[0].mxu0 %v1205
      %v1241 = vpop.f32.mrb[0].mxu0
      %v1242 = vadd.f32 %v1191, %v1241
      %v1243 = vpop.f32.mrb[0].mxu0
      %v1244 = vpop.f32.mrb[0].mxu0
      %v1245 = vadd.f32 %v1191, %v1244
      %v1246 = vpop.f32.mrb[0].mxu0
      %1247 = vdwg.mxu0
      %v1248 = vld [vmem:[%s6] sm:$0xf]
      %v1249 = vld [vmem:[%s6 + $0x4] sm:$0xf]
      %v1250 = vld [vmem:[%s6 + $0x8] sm:$0xf]
      %v1251 = vld [vmem:[%s6 + $0xc] sm:$0xf]
      %v1252 = vmul.f32 %v1178, 0.35355338
      %1254 = vrot.lane.b32.xlu0 %v1252, 120
      %v1255 = vpop.permute.xlu0 %1254
      %1257 = vrot.lane.b32.xlu0 %v1252, 112
      %v1258 = vpop.permute.xlu0 %1257
      %1260 = vrot.lane.b32.xlu0 %v1252, 104
      %v1261 = vpop.permute.xlu0 %1260
      %v1263 = vpack.c.bf16 %v1252, %v1252
      %v1264 = vpack.c.bf16 %v1255, %v1255
      %v1265 = vpack.c.bf16 %v1258, %v1258
      %v1266 = vpack.c.bf16 %v1261, %v1261
      %1269 = vrot.lane.b32.xlu0 %v1242, 120
      %v1270 = vpop.permute.xlu0 %1269
      %1271 = vrot.lane.b32.xlu0 %v1245, 120
      %v1272 = vpop.permute.xlu0 %1271
      %1275 = vrot.lane.b32.xlu0 %v1242, 112
      %v1276 = vpop.permute.xlu0 %1275
      %1277 = vrot.lane.b32.xlu0 %v1245, 112
      %v1278 = vpop.permute.xlu0 %1277
      %1281 = vrot.lane.b32.xlu0 %v1242, 104
      %v1282 = vpop.permute.xlu0 %1281
      %1283 = vrot.lane.b32.xlu0 %v1245, 104
      %v1284 = vpop.permute.xlu0 %1283
      %v1287 = vpack.c.bf16 %v1245, %v1242
      %v1288 = vpack.c.bf16 %v1272, %v1270
      %v1289 = vpack.c.bf16 %v1278, %v1276
      %v1290 = vpack.c.bf16 %v1284, %v1282
      %v1292 = vsel %vm541, %v1263, 0
      %v1295 = vsel %vm541, %v1287, 0
      %1297 = vmatprep.subr.bf16.mxu0 0
      %1298 = vmatpush1.bf16.xpose.msra.mxu0 %v1295
      %1299 = vmatprep.subr.bf16.mxu0 0
      %1300 = vmatpush1.bf16.xpose.msra.mxu0 0
      %1301 = vmatprep.subr.bf16.mxu0 0
      %1302 = vmatpush1.bf16.xpose.msra.mxu0 0
      %1303 = vmatprep.subr.bf16.mxu0 0
      %1304 = vmatpush1.bf16.xpose.msra.mxu0 0
      %1305 = vmatprep.subr.bf16.mxu0 0
      %1306 = vmatpush1.bf16.xpose.msra.mxu0 0
      %1307 = vmatprep.subr.bf16.mxu0 0
      %1308 = vmatpush1.bf16.xpose.msra.mxu0 0
      %1309 = vmatprep.subr.bf16.mxu0 0
      %1310 = vmatpush1.bf16.xpose.msra.mxu0 0
      %1311 = vmatprep.subr.bf16.mxu0 0
      %1312 = vmatpush1.bf16.xpose.msra.mxu0 0
      %1313 = vmatprep.subr.bf16.mxu0 0
      %1314 = vmatpush1.bf16.xpose.msra.mxu0 0
      %1315 = vmatprep.subr.bf16.mxu0 0
      %1316 = vmatpush1.bf16.xpose.msra.mxu0 0
      %1317 = vmatprep.subr.bf16.mxu0 0
      %1318 = vmatpush1.bf16.xpose.msra.mxu0 0
      %1319 = vmatprep.subr.bf16.mxu0 0
      %1320 = vmatpush1.bf16.xpose.msra.mxu0 0
      %1321 = vmatprep.subr.bf16.mxu0 0
      %1322 = vmatpush1.bf16.xpose.msra.mxu0 0
      %1323 = vmatprep.subr.bf16.mxu0 0
      %1324 = vmatpush1.bf16.xpose.msra.mxu0 0
      %1325 = vmatprep.subr.bf16.mxu0 0
      %1326 = vmatpush1.bf16.xpose.msra.mxu0 0
      %1327 = vmatprep.subr.bf16.mxu0 0
      %1328 = vmatpush1.bf16.xpose.msra.mxu0 0
      %1329 = vmatprep.mubr.bf16.mxu0 0
      %1330 = vmatmul.mubr.bf16.gmra.mrb[0].mxu0 %v1292
      %v1331 = vpop.f32.mrb[0].mxu0
      %v1332 = vadd.f32 0.0, %v1331
      %v1333 = vpop.f32.mrb[0].mxu0
      %v1334 = vpop.f32.mrb[0].mxu0
      %v1335 = vpop.f32.mrb[0].mxu0
      %1336 = vdwg.mxu0
      %v1338 = vsel %vm541, %v1264, 0
      %v1341 = vsel %vm541, %v1288, 0
      %1343 = vmatprep.subr.bf16.mxu0 0
      %1344 = vmatpush1.bf16.xpose.msra.mxu0 %v1341
      %1345 = vmatprep.subr.bf16.mxu0 0
      %1346 = vmatpush1.bf16.xpose.msra.mxu0 0
      %1347 = vmatprep.subr.bf16.mxu0 0
      %1348 = vmatpush1.bf16.xpose.msra.mxu0 0
      %1349 = vmatprep.subr.bf16.mxu0 0
      %1350 = vmatpush1.bf16.xpose.msra.mxu0 0
      %1351 = vmatprep.subr.bf16.mxu0 0
      %1352 = vmatpush1.bf16.xpose.msra.mxu0 0
      %1353 = vmatprep.subr.bf16.mxu0 0
      %1354 = vmatpush1.bf16.xpose.msra.mxu0 0
      %1355 = vmatprep.subr.bf16.mxu0 0
      %1356 = vmatpush1.bf16.xpose.msra.mxu0 0
      %1357 = vmatprep.subr.bf16.mxu0 0
      %1358 = vmatpush1.bf16.xpose.msra.mxu0 0
      %1359 = vmatprep.subr.bf16.mxu0 0
      %1360 = vmatpush1.bf16.xpose.msra.mxu0 0
      %1361 = vmatprep.subr.bf16.mxu0 0
      %1362 = vmatpush1.bf16.xpose.msra.mxu0 0
      %1363 = vmatprep.subr.bf16.mxu0 0
      %1364 = vmatpush1.bf16.xpose.msra.mxu0 0
      %1365 = vmatprep.subr.bf16.mxu0 0
      %1366 = vmatpush1.bf16.xpose.msra.mxu0 0
      %1367 = vmatprep.subr.bf16.mxu0 0
      %1368 = vmatpush1.bf16.xpose.msra.mxu0 0
      %1369 = vmatprep.subr.bf16.mxu0 0
      %1370 = vmatpush1.bf16.xpose.msra.mxu0 0
      %1371 = vmatprep.subr.bf16.mxu0 0
      %1372 = vmatpush1.bf16.xpose.msra.mxu0 0
      %1373 = vmatprep.subr.bf16.mxu0 0
      %1374 = vmatpush1.bf16.xpose.msra.mxu0 0
      %1375 = vmatprep.mubr.bf16.mxu0 0
      %1376 = vmatmul.mubr.bf16.gmra.mrb[0].mxu0 %v1338
      %v1377 = vpop.f32.mrb[0].mxu0
      %v1378 = vadd.f32 0.0, %v1377
      %v1379 = vpop.f32.mrb[0].mxu0
      %v1380 = vpop.f32.mrb[0].mxu0
      %v1381 = vpop.f32.mrb[0].mxu0
      %1382 = vdwg.mxu0
      %v1384 = vsel %vm541, %v1265, 0
      %v1387 = vsel %vm541, %v1289, 0
      %1389 = vmatprep.subr.bf16.mxu0 0
      %1390 = vmatpush1.bf16.xpose.msra.mxu0 %v1387
      %1391 = vmatprep.subr.bf16.mxu0 0
      %1392 = vmatpush1.bf16.xpose.msra.mxu0 0
      %1393 = vmatprep.subr.bf16.mxu0 0
      %1394 = vmatpush1.bf16.xpose.msra.mxu0 0
      %1395 = vmatprep.subr.bf16.mxu0 0
      %1396 = vmatpush1.bf16.xpose.msra.mxu0 0
      %1397 = vmatprep.subr.bf16.mxu0 0
      %1398 = vmatpush1.bf16.xpose.msra.mxu0 0
      %1399 = vmatprep.subr.bf16.mxu0 0
      %1400 = vmatpush1.bf16.xpose.msra.mxu0 0
      %1401 = vmatprep.subr.bf16.mxu0 0
      %1402 = vmatpush1.bf16.xpose.msra.mxu0 0
      %1403 = vmatprep.subr.bf16.mxu0 0
      %1404 = vmatpush1.bf16.xpose.msra.mxu0 0
      %1405 = vmatprep.subr.bf16.mxu0 0
      %1406 = vmatpush1.bf16.xpose.msra.mxu0 0
      %1407 = vmatprep.subr.bf16.mxu0 0
      %1408 = vmatpush1.bf16.xpose.msra.mxu0 0
      %1409 = vmatprep.subr.bf16.mxu0 0
      %1410 = vmatpush1.bf16.xpose.msra.mxu0 0
      %1411 = vmatprep.subr.bf16.mxu0 0
      %1412 = vmatpush1.bf16.xpose.msra.mxu0 0
      %1413 = vmatprep.subr.bf16.mxu0 0
      %1414 = vmatpush1.bf16.xpose.msra.mxu0 0
      %1415 = vmatprep.subr.bf16.mxu0 0
      %1416 = vmatpush1.bf16.xpose.msra.mxu0 0
      %1417 = vmatprep.subr.bf16.mxu0 0
      %1418 = vmatpush1.bf16.xpose.msra.mxu0 0
      %1419 = vmatprep.subr.bf16.mxu0 0
      %1420 = vmatpush1.bf16.xpose.msra.mxu0 0
      %1421 = vmatprep.mubr.bf16.mxu0 0
      %1422 = vmatmul.mubr.bf16.gmra.mrb[0].mxu0 %v1384
      %v1423 = vpop.f32.mrb[0].mxu0
      %v1424 = vadd.f32 0.0, %v1423
      %v1425 = vpop.f32.mrb[0].mxu0
      %v1426 = vpop.f32.mrb[0].mxu0
      %v1427 = vpop.f32.mrb[0].mxu0
      %1428 = vdwg.mxu0
      %v1430 = vsel %vm541, %v1266, 0
      %v1433 = vsel %vm541, %v1290, 0
      %1435 = vmatprep.subr.bf16.mxu0 0
      %1436 = vmatpush1.bf16.xpose.msra.mxu0 %v1433
      %1437 = vmatprep.subr.bf16.mxu0 0
      %1438 = vmatpush1.bf16.xpose.msra.mxu0 0
      %1439 = vmatprep.subr.bf16.mxu0 0
      %1440 = vmatpush1.bf16.xpose.msra.mxu0 0
      %1441 = vmatprep.subr.bf16.mxu0 0
      %1442 = vmatpush1.bf16.xpose.msra.mxu0 0
      %1443 = vmatprep.subr.bf16.mxu0 0
      %1444 = vmatpush1.bf16.xpose.msra.mxu0 0
      %1445 = vmatprep.subr.bf16.mxu0 0
      %1446 = vmatpush1.bf16.xpose.msra.mxu0 0
      %1447 = vmatprep.subr.bf16.mxu0 0
      %1448 = vmatpush1.bf16.xpose.msra.mxu0 0
      %1449 = vmatprep.subr.bf16.mxu0 0
      %1450 = vmatpush1.bf16.xpose.msra.mxu0 0
      %1451 = vmatprep.subr.bf16.mxu0 0
      %1452 = vmatpush1.bf16.xpose.msra.mxu0 0
      %1453 = vmatprep.subr.bf16.mxu0 0
      %1454 = vmatpush1.bf16.xpose.msra.mxu0 0
      %1455 = vmatprep.subr.bf16.mxu0 0
      %1456 = vmatpush1.bf16.xpose.msra.mxu0 0
      %1457 = vmatprep.subr.bf16.mxu0 0
      %1458 = vmatpush1.bf16.xpose.msra.mxu0 0
      %1459 = vmatprep.subr.bf16.mxu0 0
      %1460 = vmatpush1.bf16.xpose.msra.mxu0 0
      %1461 = vmatprep.subr.bf16.mxu0 0
      %1462 = vmatpush1.bf16.xpose.msra.mxu0 0
      %1463 = vmatprep.subr.bf16.mxu0 0
      %1464 = vmatpush1.bf16.xpose.msra.mxu0 0
      %1465 = vmatprep.subr.bf16.mxu0 0
      %1466 = vmatpush1.bf16.xpose.msra.mxu0 0
      %1467 = vmatprep.mubr.bf16.mxu0 0
      %1468 = vmatmul.mubr.bf16.gmra.mrb[0].mxu0 %v1430
      %v1469 = vpop.f32.mrb[0].mxu0
      %v1470 = vadd.f32 0.0, %v1469
      %v1471 = vpop.f32.mrb[0].mxu0
      %v1472 = vpop.f32.mrb[0].mxu0
      %v1473 = vpop.f32.mrb[0].mxu0
      %1474 = vdwg.mxu0
      %v1475 = vsel %vm989, %v1332, -inf
      %1476 = vmax.xlane.f32.xlu0 %v1475
      %v1477 = vpop.xlane.xlu0 %1476
      %v1478 = vsel %vm989, %v1378, -inf
      %1479 = vmax.xlane.f32.xlu0 %v1478
      %v1480 = vpop.xlane.xlu0 %1479
      %v1481 = vsel %vm989, %v1424, -inf
      %1482 = vmax.xlane.f32.xlu0 %v1481
      %v1483 = vpop.xlane.xlu0 %1482
      %v1484 = vsel %vm989, %v1470, -inf
      %1485 = vmax.xlane.f32.xlu0 %v1484
      %v1486 = vpop.xlane.xlu0 %1485
      %v1487 = vsub.f32 %v1332, %v1477
      %v1488 = vsub.f32 %v1378, %v1480
      %v1489 = vsub.f32 %v1424, %v1483
      %v1490 = vsub.f32 %v1470, %v1486
      %v1491 = vmul.f32 %v1487, 1.442695
      %v1492 = vpow.pop %v1491
      %v1493 = vmul.f32 %v1488, 1.442695
      %v1494 = vpow.pop %v1493
      %v1495 = vmul.f32 %v1489, 1.442695
      %v1496 = vpow.pop %v1495
      %v1497 = vmul.f32 %v1490, 1.442695
      %v1498 = vpow.pop %v1497
      %v1499 = vsel %vm989, %v1492, 0.0
      %1500 = vadd.xlane.f32.xlu0 %v1499
      %v1501 = vpop.xlane.xlu0 %1500
      %v1502 = vsel %vm989, %v1494, 0.0
      %1503 = vadd.xlane.f32.xlu0 %v1502
      %v1504 = vpop.xlane.xlu0 %1503
      %v1505 = vsel %vm989, %v1496, 0.0
      %1506 = vadd.xlane.f32.xlu0 %v1505
      %v1507 = vpop.xlane.xlu0 %1506
      %v1508 = vsel %vm989, %v1498, 0.0
      %1509 = vadd.xlane.f32.xlu0 %v1508
      %v1510 = vpop.xlane.xlu0 %1509
      %v1511 = vpack.c.bf16 %v1492, %v1492
      %v1512 = vpack.c.bf16 %v1494, %v1494
      %v1513 = vpack.c.bf16 %v1496, %v1496
      %v1514 = vpack.c.bf16 %v1498, %v1498
      %1516 = vrot.lane.b32.xlu0 %v1287, 96
      %v1517 = vpop.permute.xlu0 %1516
      %v1520 = vsel %vm989, %v1511, 0
      %1522 = vmatprep.subr.bf16.mxu0 0
      %1523 = vmatpush1.bf16.msra.mxu0 %v1517
      %1524 = vmatprep.subr.bf16.mxu0 0
      %1525 = vmatpush1.bf16.msra.mxu0 0
      %1526 = vmatprep.subr.bf16.mxu0 0
      %1527 = vmatpush1.bf16.msra.mxu0 0
      %1528 = vmatprep.subr.bf16.mxu0 0
      %1529 = vmatpush1.bf16.msra.mxu0 0
      %1530 = vmatprep.subr.bf16.mxu0 0
      %1531 = vmatpush1.bf16.msra.mxu0 0
      %1532 = vmatprep.subr.bf16.mxu0 0
      %1533 = vmatpush1.bf16.msra.mxu0 0
      %1534 = vmatprep.subr.bf16.mxu0 0
      %1535 = vmatpush1.bf16.msra.mxu0 0
      %1536 = vmatprep.subr.bf16.mxu0 0
      %1537 = vmatpush1.bf16.msra.mxu0 0
      %1538 = vmatprep.subr.bf16.mxu0 0
      %1539 = vmatpush1.bf16.msra.mxu0 0
      %1540 = vmatprep.subr.bf16.mxu0 0
      %1541 = vmatpush1.bf16.msra.mxu0 0
      %1542 = vmatprep.subr.bf16.mxu0 0
      %1543 = vmatpush1.bf16.msra.mxu0 0
      %1544 = vmatprep.subr.bf16.mxu0 0
      %1545 = vmatpush1.bf16.msra.mxu0 0
      %1546 = vmatprep.subr.bf16.mxu0 0
      %1547 = vmatpush1.bf16.msra.mxu0 0
      %1548 = vmatprep.subr.bf16.mxu0 0
      %1549 = vmatpush1.bf16.msra.mxu0 0
      %1550 = vmatprep.subr.bf16.mxu0 0
      %1551 = vmatpush1.bf16.msra.mxu0 0
      %1552 = vmatprep.subr.bf16.mxu0 0
      %1553 = vmatpush1.bf16.msra.mxu0 0
      %1554 = vmatprep.mubr.bf16.mxu0 0
      %1555 = vmatmul.mubr.bf16.gmra.mrb[0].mxu0 %v1520
      %v1556 = vpop.f32.mrb[0].mxu0
      %v1557 = vadd.f32 0.0, %v1556
      %v1558 = vpop.f32.mrb[0].mxu0
      %v1559 = vpop.f32.mrb[0].mxu0
      %v1560 = vpop.f32.mrb[0].mxu0
      %1561 = vdwg.mxu0
      %1563 = vrot.lane.b32.xlu0 %v1288, 96
      %v1564 = vpop.permute.xlu0 %1563
      %v1567 = vsel %vm989, %v1512, 0
      %1569 = vmatprep.subr.bf16.mxu0 0
      %1570 = vmatpush1.bf16.msra.mxu0 %v1564
      %1571 = vmatprep.subr.bf16.mxu0 0
      %1572 = vmatpush1.bf16.msra.mxu0 0
      %1573 = vmatprep.subr.bf16.mxu0 0
      %1574 = vmatpush1.bf16.msra.mxu0 0
      %1575 = vmatprep.subr.bf16.mxu0 0
      %1576 = vmatpush1.bf16.msra.mxu0 0
      %1577 = vmatprep.subr.bf16.mxu0 0
      %1578 = vmatpush1.bf16.msra.mxu0 0
      %1579 = vmatprep.subr.bf16.mxu0 0
      %1580 = vmatpush1.bf16.msra.mxu0 0
      %1581 = vmatprep.subr.bf16.mxu0 0
      %1582 = vmatpush1.bf16.msra.mxu0 0
      %1583 = vmatprep.subr.bf16.mxu0 0
      %1584 = vmatpush1.bf16.msra.mxu0 0
      %1585 = vmatprep.subr.bf16.mxu0 0
      %1586 = vmatpush1.bf16.msra.mxu0 0
      %1587 = vmatprep.subr.bf16.mxu0 0
      %1588 = vmatpush1.bf16.msra.mxu0 0
      %1589 = vmatprep.subr.bf16.mxu0 0
      %1590 = vmatpush1.bf16.msra.mxu0 0
      %1591 = vmatprep.subr.bf16.mxu0 0
      %1592 = vmatpush1.bf16.msra.mxu0 0
      %1593 = vmatprep.subr.bf16.mxu0 0
      %1594 = vmatpush1.bf16.msra.mxu0 0
      %1595 = vmatprep.subr.bf16.mxu0 0
      %1596 = vmatpush1.bf16.msra.mxu0 0
      %1597 = vmatprep.subr.bf16.mxu0 0
      %1598 = vmatpush1.bf16.msra.mxu0 0
      %1599 = vmatprep.subr.bf16.mxu0 0
      %1600 = vmatpush1.bf16.msra.mxu0 0
      %1601 = vmatprep.mubr.bf16.mxu0 0
      %1602 = vmatmul.mubr.bf16.gmra.mrb[0].mxu0 %v1567
      %v1603 = vpop.f32.mrb[0].mxu0
      %v1604 = vadd.f32 0.0, %v1603
      %v1605 = vpop.f32.mrb[0].mxu0
      %v1606 = vpop.f32.mrb[0].mxu0
      %v1607 = vpop.f32.mrb[0].mxu0
      %1608 = vdwg.mxu0
      %1610 = vrot.lane.b32.xlu0 %v1289, 96
      %v1611 = vpop.permute.xlu0 %1610
      %v1614 = vsel %vm989, %v1513, 0
      %1616 = vmatprep.subr.bf16.mxu0 0
      %1617 = vmatpush1.bf16.msra.mxu0 %v1611
      %1618 = vmatprep.subr.bf16.mxu0 0
      %1619 = vmatpush1.bf16.msra.mxu0 0
      %1620 = vmatprep.subr.bf16.mxu0 0
      %1621 = vmatpush1.bf16.msra.mxu0 0
      %1622 = vmatprep.subr.bf16.mxu0 0
      %1623 = vmatpush1.bf16.msra.mxu0 0
      %1624 = vmatprep.subr.bf16.mxu0 0
      %1625 = vmatpush1.bf16.msra.mxu0 0
      %1626 = vmatprep.subr.bf16.mxu0 0
      %1627 = vmatpush1.bf16.msra.mxu0 0
      %1628 = vmatprep.subr.bf16.mxu0 0
      %1629 = vmatpush1.bf16.msra.mxu0 0
      %1630 = vmatprep.subr.bf16.mxu0 0
      %1631 = vmatpush1.bf16.msra.mxu0 0
      %1632 = vmatprep.subr.bf16.mxu0 0
      %1633 = vmatpush1.bf16.msra.mxu0 0
      %1634 = vmatprep.subr.bf16.mxu0 0
      %1635 = vmatpush1.bf16.msra.mxu0 0
      %1636 = vmatprep.subr.bf16.mxu0 0
      %1637 = vmatpush1.bf16.msra.mxu0 0
      %1638 = vmatprep.subr.bf16.mxu0 0
      %1639 = vmatpush1.bf16.msra.mxu0 0
      %1640 = vmatprep.subr.bf16.mxu0 0
      %1641 = vmatpush1.bf16.msra.mxu0 0
      %1642 = vmatprep.subr.bf16.mxu0 0
      %1643 = vmatpush1.bf16.msra.mxu0 0
      %1644 = vmatprep.subr.bf16.mxu0 0
      %1645 = vmatpush1.bf16.msra.mxu0 0
      %1646 = vmatprep.subr.bf16.mxu0 0
      %1647 = vmatpush1.bf16.msra.mxu0 0
      %1648 = vmatprep.mubr.bf16.mxu0 0
      %1649 = vmatmul.mubr.bf16.gmra.mrb[0].mxu0 %v1614
      %v1650 = vpop.f32.mrb[0].mxu0
      %v1651 = vadd.f32 0.0, %v1650
      %v1652 = vpop.f32.mrb[0].mxu0
      %v1653 = vpop.f32.mrb[0].mxu0
      %v1654 = vpop.f32.mrb[0].mxu0
      %1655 = vdwg.mxu0
      %1657 = vrot.lane.b32.xlu0 %v1290, 96
      %v1658 = vpop.permute.xlu0 %1657
      %v1661 = vsel %vm989, %v1514, 0
      %1663 = vmatprep.subr.bf16.mxu0 0
      %1664 = vmatpush1.bf16.msra.mxu0 %v1658
      %1665 = vmatprep.subr.bf16.mxu0 0
      %1666 = vmatpush1.bf16.msra.mxu0 0
      %1667 = vmatprep.subr.bf16.mxu0 0
      %1668 = vmatpush1.bf16.msra.mxu0 0
      %1669 = vmatprep.subr.bf16.mxu0 0
      %1670 = vmatpush1.bf16.msra.mxu0 0
      %1671 = vmatprep.subr.bf16.mxu0 0
      %1672 = vmatpush1.bf16.msra.mxu0 0
      %1673 = vmatprep.subr.bf16.mxu0 0
      %1674 = vmatpush1.bf16.msra.mxu0 0
      %1675 = vmatprep.subr.bf16.mxu0 0
      %1676 = vmatpush1.bf16.msra.mxu0 0
      %1677 = vmatprep.subr.bf16.mxu0 0
      %1678 = vmatpush1.bf16.msra.mxu0 0
      %1679 = vmatprep.subr.bf16.mxu0 0
      %1680 = vmatpush1.bf16.msra.mxu0 0
      %1681 = vmatprep.subr.bf16.mxu0 0
      %1682 = vmatpush1.bf16.msra.mxu0 0
      %1683 = vmatprep.subr.bf16.mxu0 0
      %1684 = vmatpush1.bf16.msra.mxu0 0
      %1685 = vmatprep.subr.bf16.mxu0 0
      %1686 = vmatpush1.bf16.msra.mxu0 0
      %1687 = vmatprep.subr.bf16.mxu0 0
      %1688 = vmatpush1.bf16.msra.mxu0 0
      %1689 = vmatprep.subr.bf16.mxu0 0
      %1690 = vmatpush1.bf16.msra.mxu0 0
      %1691 = vmatprep.subr.bf16.mxu0 0
      %1692 = vmatpush1.bf16.msra.mxu0 0
      %1693 = vmatprep.subr.bf16.mxu0 0
      %1694 = vmatpush1.bf16.msra.mxu0 0
      %1695 = vmatprep.mubr.bf16.mxu0 0
      %1696 = vmatmul.mubr.bf16.gmra.mrb[0].mxu0 %v1661
      %v1697 = vpop.f32.mrb[0].mxu0
      %v1698 = vadd.f32 0.0, %v1697
      %v1699 = vpop.f32.mrb[0].mxu0
      %v1700 = vpop.f32.mrb[0].mxu0
      %v1701 = vpop.f32.mrb[0].mxu0
      %1702 = vdwg.mxu0
      %v1703 = vrcp.pop %v1501
      %v1704 = vrcp.pop %v1504
      %v1705 = vrcp.pop %v1507
      %v1706 = vrcp.pop %v1510
      %v1707 = vmul.f32 %v1557, %v1703
      %v1708 = vmul.f32 %v1604, %v1704
      %v1709 = vmul.f32 %v1651, %v1705
      %v1710 = vmul.f32 %v1698, %v1706
      %1712 = vrot.lane.b32.xlu0 %v1708, 8
      %v1713 = vpop.permute.xlu0 %1712
      %1716 = vrot.lane.b32.xlu0 %v1709, 16
      %v1717 = vpop.permute.xlu0 %1716
      %1720 = vrot.lane.b32.xlu0 %v1710, 24
      %v1721 = vpop.permute.xlu0 %1720
      %v1723 = vsel %vm541, %v1707, %v1713
      %v1724 = vsel %vm989, %v1723, %v1717
      %v1725 = vsel %vm991, %v1724, %v1721
      %v1726 = vpack.c.bf16 %v1725, %v1725
      %v1727 = vlaneseq
      %v1728 = vshrl.u32 %v1727, 7
      %v1729 = vsub.s32 4, %v1728
      %v1730 = vrot.slane %v414, %v1729
      %v1735 = vunpack.c.l.b16 %v1248
      %v1736 = vunpack.c.l.b16 %v1249
      %v1737 = vunpack.c.l.b16 %v1250
      %v1738 = vunpack.c.l.b16 %v1251
      %v1739 = vpack.c.b16 %v1736, %v1735
      %v1740 = vpack.c.b16 %v1738, %v1737
      %v1744 = vsel %vm416, %v1726, 0
      %1746 = vmatprep.subr.bf16.mxu0 0
      %1747 = vmatpush1.bf16.msra.mxu0 %v1739
      %1748 = vmatprep.subr.bf16.mxu0 0
      %1749 = vmatpush1.bf16.msra.mxu0 %v1740
      %1750 = vmatprep.subr.bf16.mxu0 0
      %1751 = vmatpush1.bf16.msra.mxu0 0
      %1752 = vmatprep.subr.bf16.mxu0 0
      %1753 = vmatpush1.bf16.msra.mxu0 0
      %1754 = vmatprep.subr.bf16.mxu0 0
      %1755 = vmatpush1.bf16.msra.mxu0 0
      %1756 = vmatprep.subr.bf16.mxu0 0
      %1757 = vmatpush1.bf16.msra.mxu0 0
      %1758 = vmatprep.subr.bf16.mxu0 0
      %1759 = vmatpush1.bf16.msra.mxu0 0
      %1760 = vmatprep.subr.bf16.mxu0 0
      %1761 = vmatpush1.bf16.msra.mxu0 0
      %1762 = vmatprep.subr.bf16.mxu0 0
      %1763 = vmatpush1.bf16.msra.mxu0 0
      %1764 = vmatprep.subr.bf16.mxu0 0
      %1765 = vmatpush1.bf16.msra.mxu0 0
      %1766 = vmatprep.subr.bf16.mxu0 0
      %1767 = vmatpush1.bf16.msra.mxu0 0
      %1768 = vmatprep.subr.bf16.mxu0 0
      %1769 = vmatpush1.bf16.msra.mxu0 0
      %1770 = vmatprep.subr.bf16.mxu0 0
      %1771 = vmatpush1.bf16.msra.mxu0 0
      %1772 = vmatprep.subr.bf16.mxu0 0
      %1773 = vmatpush1.bf16.msra.mxu0 0
      %1774 = vmatprep.subr.bf16.mxu0 0
      %1775 = vmatpush1.bf16.msra.mxu0 0
      %1776 = vmatprep.subr.bf16.mxu0 0
      %1777 = vmatpush1.bf16.msra.mxu0 0
      %1778 = vmatprep.mubr.bf16.mxu0 0
      %1779 = vmatmul.mubr.bf16.gmra.mrb[0].mxu0 %v1744
      %v1780 = vpop.f32.mrb[0].mxu0
      %v1781 = vadd.f32 %v1730, %v1780
      %v1782 = vpop.f32.mrb[0].mxu0
      %v1783 = vpop.f32.mrb[0].mxu0
      %v1784 = vpop.f32.mrb[0].mxu0
      %1785 = vdwg.mxu0
      %v1786 = vadd.f32 %v1053, %v1781
      %v1787 = vld [vmem:[%s7] sm:$0xf]
      %v1788 = vld [vmem:[%s7 + $0x4] sm:$0xf]
      %v1789 = vld [vmem:[%s7 + $0x8] sm:$0xf]
      %v1790 = vld [vmem:[%s7 + $0xc] sm:$0xf]
      %v1791 = vld [vmem:[%s8] sm:$0xf]
      %v1792 = vld [vmem:[%s8 + $0x4] sm:$0xf]
      %v1793 = vld [vmem:[%s8 + $0x8] sm:$0xf]
      %v1794 = vld [vmem:[%s8 + $0xc] sm:$0xf]
      %v1795 = vld [vmem:[%s8 + $0x10] sm:$0xf]
      %v1796 = vld [vmem:[%s8 + $0x14] sm:$0xf]
      %v1797 = vld [vmem:[%s8 + $0x18] sm:$0xf]
      %v1798 = vld [vmem:[%s8 + $0x1c] sm:$0xf]
      %v1799 = vsel %vm416, %v1786, 0.0
      %1800 = vadd.xlane.f32.xlu0 %v1799
      %v1801 = vpop.xlane.xlu0 %1800
      %v1802 = vmul.f32 %v1801, %v420
      %v1803 = vsub.f32 %v1786, %v1802
      %v1804 = vmul.f32 %v1803, %v1803
      %v1805 = vsel %vm416, %v1804, 0.0
      %1806 = vadd.xlane.f32.xlu0 %v1805
      %v1807 = vpop.xlane.xlu0 %1806
      %v1808 = vmul.f32 %v1807, %v420
      %v1809 = vadd.f32 %v1808, 1e-06
      %v1810 = vrsqrt.pop %v1809
      %v1811 = vmul.f32 %v1803, %v1810
      %v1812 = vlaneseq
      %v1813 = vshrl.u32 %v1812, 7
      %v1814 = vsub.s32 6, %v1813
      %v1815 = vrot.slane %v413, %v1814
      %v1816 = vmul.f32 %v1811, %v1815
      %v1817 = vlaneseq
      %v1818 = vshrl.u32 %v1817, 7
      %v1819 = vsub.s32 7, %v1818
      %v1820 = vrot.slane %v413, %v1819
      %v1821 = vadd.f32 %v1816, %v1820
      %v1822 = vpack.c.bf16 %v1821, %v1821
      %v1823 = vlaneseq
      %v1824 = vshrl.u32 %v1823, 7
      %v1825 = vsub.s32 5, %v1824
      %v1826 = vrot.slane %v414, %v1825
      %v1831 = vunpack.c.l.b16 %v1787
      %v1832 = vunpack.c.l.b16 %v1788
      %v1833 = vunpack.c.l.b16 %v1789
      %v1834 = vunpack.c.l.b16 %v1790
      %v1835 = vpack.c.b16 %v1832, %v1831
      %v1836 = vpack.c.b16 %v1834, %v1833
      %v1840 = vsel %vm416, %v1822, 0
      %1842 = vmatprep.subr.bf16.mxu0 0
      %1843 = vmatpush1.bf16.msra.mxu0 %v1835
      %1844 = vmatprep.subr.bf16.mxu0 0
      %1845 = vmatpush1.bf16.msra.mxu0 %v1836
      %1846 = vmatprep.subr.bf16.mxu0 0
      %1847 = vmatpush1.bf16.msra.mxu0 0
      %1848 = vmatprep.subr.bf16.mxu0 0
      %1849 = vmatpush1.bf16.msra.mxu0 0
      %1850 = vmatprep.subr.bf16.mxu0 0
      %1851 = vmatpush1.bf16.msra.mxu0 0
      %1852 = vmatprep.subr.bf16.mxu0 0
      %1853 = vmatpush1.bf16.msra.mxu0 0
      %1854 = vmatprep.subr.bf16.mxu0 0
      %1855 = vmatpush1.bf16.msra.mxu0 0
      %1856 = vmatprep.subr.bf16.mxu0 0
      %1857 = vmatpush1.bf16.msra.mxu0 0
      %1858 = vmatprep.subr.bf16.mxu0 0
      %1859 = vmatpush1.bf16.msra.mxu0 0
      %1860 = vmatprep.subr.bf16.mxu0 0
      %1861 = vmatpush1.bf16.msra.mxu0 0
      %1862 = vmatprep.subr.bf16.mxu0 0
      %1863 = vmatpush1.bf16.msra.mxu0 0
      %1864 = vmatprep.subr.bf16.mxu0 0
      %1865 = vmatpush1.bf16.msra.mxu0 0
      %1866 = vmatprep.subr.bf16.mxu0 0
      %1867 = vmatpush1.bf16.msra.mxu0 0
      %1868 = vmatprep.subr.bf16.mxu0 0
      %1869 = vmatpush1.bf16.msra.mxu0 0
      %1870 = vmatprep.subr.bf16.mxu0 0
      %1871 = vmatpush1.bf16.msra.mxu0 0
      %1872 = vmatprep.subr.bf16.mxu0 0
      %1873 = vmatpush1.bf16.msra.mxu0 0
      %1874 = vmatprep.mubr.bf16.mxu0 0
      %1875 = vmatmul.mubr.bf16.gmra.mrb[0].mxu0 %v1840
      %v1876 = vpop.f32.mrb[0].mxu0
      %v1877 = vadd.f32 %v1826, %v1876
      %v1878 = vpop.f32.mrb[0].mxu0
      %v1879 = vpop.f32.mrb[0].mxu0
      %v1880 = vpop.f32.mrb[0].mxu0
      %1881 = vdwg.mxu0
      %v1882 = vmul.f32 %v1877, %v1877
      %v1883 = vmul.f32 %v1877, %v1882
      %v1884 = vmul.f32 %v1883, 0.044715
      %v1885 = vadd.f32 %v1877, %v1884
      %v1886 = vmul.f32 %v1885, 0.7978846
      %v1887 = vtanh.pop %v1886
      %v1888 = vadd.f32 %v1887, 1.0
      %v1889 = vmul.f32 %v1888, 0.5
      %v1890 = vmul.f32 %v1877, %v1889
      %v1891 = vpack.c.bf16 %v1890, %v1890
      %v1892 = vlaneseq
      %v1893 = vshrl.u32 %v1892, 7
      %v1894 = vsub.s32 6, %v1893
      %v1895 = vrot.slane %v414, %v1894
      %v1904 = vunpack.c.l.b16 %v1791
      %v1905 = vunpack.c.l.b16 %v1792
      %v1906 = vunpack.c.l.b16 %v1793
      %v1907 = vunpack.c.l.b16 %v1794
      %v1908 = vunpack.c.l.b16 %v1795
      %v1909 = vunpack.c.l.b16 %v1796
      %v1910 = vunpack.c.l.b16 %v1797
      %v1911 = vunpack.c.l.b16 %v1798
      %v1912 = vpack.c.b16 %v1905, %v1904
      %v1913 = vpack.c.b16 %v1907, %v1906
      %v1914 = vpack.c.b16 %v1909, %v1908
      %v1915 = vpack.c.b16 %v1911, %v1910
      %vm1920 = vcmask 523264
      %v1922 = vsel %vm1920, %v1891, 0
      %1924 = vmatprep.subr.bf16.mxu0 0
      %1925 = vmatpush1.bf16.msra.mxu0 %v1912
      %1926 = vmatprep.subr.bf16.mxu0 0
      %1927 = vmatpush1.bf16.msra.mxu0 %v1913
      %1928 = vmatprep.subr.bf16.mxu0 0
      %1929 = vmatpush1.bf16.msra.mxu0 %v1914
      %1930 = vmatprep.subr.bf16.mxu0 0
      %1931 = vmatpush1.bf16.msra.mxu0 %v1915
      %1932 = vmatprep.subr.bf16.mxu0 0
      %1933 = vmatpush1.bf16.msra.mxu0 0
      %1934 = vmatprep.subr.bf16.mxu0 0
      %1935 = vmatpush1.bf16.msra.mxu0 0
      %1936 = vmatprep.subr.bf16.mxu0 0
      %1937 = vmatpush1.bf16.msra.mxu0 0
      %1938 = vmatprep.subr.bf16.mxu0 0
      %1939 = vmatpush1.bf16.msra.mxu0 0
      %1940 = vmatprep.subr.bf16.mxu0 0
      %1941 = vmatpush1.bf16.msra.mxu0 0
      %1942 = vmatprep.subr.bf16.mxu0 0
      %1943 = vmatpush1.bf16.msra.mxu0 0
      %1944 = vmatprep.subr.bf16.mxu0 0
      %1945 = vmatpush1.bf16.msra.mxu0 0
      %1946 = vmatprep.subr.bf16.mxu0 0
      %1947 = vmatpush1.bf16.msra.mxu0 0
      %1948 = vmatprep.subr.bf16.mxu0 0
      %1949 = vmatpush1.bf16.msra.mxu0 0
      %1950 = vmatprep.subr.bf16.mxu0 0
      %1951 = vmatpush1.bf16.msra.mxu0 0
      %1952 = vmatprep.subr.bf16.mxu0 0
      %1953 = vmatpush1.bf16.msra.mxu0 0
      %1954 = vmatprep.subr.bf16.mxu0 0
      %1955 = vmatpush1.bf16.msra.mxu0 0
      %1956 = vmatprep.mubr.bf16.mxu0 0
      %1957 = vmatmul.mubr.bf16.gmra.mrb[0].mxu0 %v1922
      %v1958 = vpop.f32.mrb[0].mxu0
      %v1959 = vadd.f32 %v1895, %v1958
      %v1960 = vpop.f32.mrb[0].mxu0
      %v1961 = vpop.f32.mrb[0].mxu0
      %v1962 = vpop.f32.mrb[0].mxu0
      %1963 = vdwg.mxu0
      %v1964 = vadd.f32 %v1786, %v1959
      %v1965 = vpack.c.bf16 %v1964, %v1964
      %v1966 = vld [vmem:[%s9] sm:$0xf]
      %v1967 = vld [vmem:[%s9 + $0x4] sm:$0xf]
      %v1968 = vld [vmem:[%s9 + $0x8] sm:$0xf]
      %v1969 = vld [vmem:[%s9 + $0xc] sm:$0xf]
      %v1970 = vlaneseq
      %v1971 = vshrl.u32 %v1970, 7
      %v1972 = vsub.s32 7, %v1971
      %v1973 = vrot.slane %v414, %v1972
      %v1978 = vunpack.c.l.b16 %v1966
      %v1979 = vunpack.c.l.b16 %v1967
      %v1980 = vunpack.c.l.b16 %v1968
      %v1981 = vunpack.c.l.b16 %v1969
      %v1982 = vpack.c.b16 %v1979, %v1978
      %v1983 = vpack.c.b16 %v1981, %v1980
      %v1987 = vsel %vm416, %v1965, 0
      %1989 = vmatprep.subr.bf16.mxu0 0
      %1990 = vmatpush1.bf16.msra.mxu0 %v1982
      %1991 = vmatprep.subr.bf16.mxu0 0
      %1992 = vmatpush1.bf16.msra.mxu0 %v1983
      %1993 = vmatprep.subr.bf16.mxu0 0
      %1994 = vmatpush1.bf16.msra.mxu0 0
      %1995 = vmatprep.subr.bf16.mxu0 0
      %1996 = vmatpush1.bf16.msra.mxu0 0
      %1997 = vmatprep.subr.bf16.mxu0 0
      %1998 = vmatpush1.bf16.msra.mxu0 0
      %1999 = vmatprep.subr.bf16.mxu0 0
      %2000 = vmatpush1.bf16.msra.mxu0 0
      %2001 = vmatprep.subr.bf16.mxu0 0
      %2002 = vmatpush1.bf16.msra.mxu0 0
      %2003 = vmatprep.subr.bf16.mxu0 0
      %2004 = vmatpush1.bf16.msra.mxu0 0
      %2005 = vmatprep.subr.bf16.mxu0 0
      %2006 = vmatpush1.bf16.msra.mxu0 0
      %2007 = vmatprep.subr.bf16.mxu0 0
      %2008 = vmatpush1.bf16.msra.mxu0 0
      %2009 = vmatprep.subr.bf16.mxu0 0
      %2010 = vmatpush1.bf16.msra.mxu0 0
      %2011 = vmatprep.subr.bf16.mxu0 0
      %2012 = vmatpush1.bf16.msra.mxu0 0
      %2013 = vmatprep.subr.bf16.mxu0 0
      %2014 = vmatpush1.bf16.msra.mxu0 0
      %2015 = vmatprep.subr.bf16.mxu0 0
      %2016 = vmatpush1.bf16.msra.mxu0 0
      %2017 = vmatprep.subr.bf16.mxu0 0
      %2018 = vmatpush1.bf16.msra.mxu0 0
      %2019 = vmatprep.subr.bf16.mxu0 0
      %2020 = vmatpush1.bf16.msra.mxu0 0
      %2021 = vmatprep.mubr.bf16.mxu0 0
      %2022 = vmatmul.mubr.bf16.gmra.mrb[0].mxu0 %v1987
      %v2023 = vpop.f32.mrb[0].mxu0
      %v2024 = vadd.f32 %v1973, %v2023
      %v2025 = vpop.f32.mrb[0].mxu0
      %v2026 = vpop.f32.mrb[0].mxu0
      %v2027 = vpop.f32.mrb[0].mxu0
      %2028 = vdwg.mxu0
      %v2029 = vpack.c.bf16 %v2024, %v2024
      %vm2030 = vcmask 257024
      %2031 = vst.msk [vmem:[%s411] sm:$0xf] %vm2030, %v2029
      %p2032 = scmp.lt.s32.totalorder %s23, 1
      %s2033 = scalar_select %p2032, %s23, 1
      %s2034 = smul.addr %s2033, 4
      %s2035 = scalar_lea.vmem %s12, %s2034
      // Predicated region
      $region69: #{flan_xl_vqa_forward.5} parent=67 // pred_check
        %p2036 = pneg %p298
      $region70: #{flan_xl_vqa_forward.5} parent=67 // pred_check_branch
        %2038 = sbr.rel (%p2036) target = $region72
      $region71: #{flan_xl_vqa_forward.5} parent=67 // pred_region
        _
      $region72: #{flan_xl_vqa_forward.5} parent=67 // pred_fallthru
        _
    $region68: #{flan_xl_vqa_forward.5} parent=5 // pred_fallthru
      _
    %p2039 = scmp.le.s32.totalorder 2, %s18
    // Predicated region
    $region73: #{flan_xl_vqa_forward.5} parent=5 // pred_check
      %p2040 = pneg %p2039
    $region74: #{flan_xl_vqa_forward.5} parent=5 // pred_check_branch
      %2042 = sbr.rel (%p2040) target = $region76
    $region75: #{flan_xl_vqa_forward.5} parent=5 // pred_region
      %s2043 = ssub.s32 %s18, 2
      // Predicated region
      $region77: #{flan_xl_vqa_forward.5} parent=75 // pred_check
        %p2044 = pneg %p304
      $region78: #{flan_xl_vqa_forward.5} parent=75 // pred_check_branch
        %2046 = sbr.rel (%p2044) target = $region80
      $region79: #{flan_xl_vqa_forward.5} parent=75 // pred_region
        %p2047 = scmp.lt.s32.totalorder %s24, 1
        %s2048 = scalar_select %p2047, %s24, 1
        %s2049 = smul.addr %s2048, 4
        %s2050 = scalar_lea.vmem %s12, %s2049
      $region80: #{flan_xl_vqa_forward.5} parent=75 // pred_fallthru
        _
    $region76: #{flan_xl_vqa_forward.5} parent=5 // pred_fallthru
      _
  $region6: #{flan_xl_vqa_forward.5} parent=0 // loop_footer
    %s22 = sadd.s32 1, %s18
  $region7: #{flan_xl_vqa_forward.5} parent=0 // loop_footer_branch
    %17 = sbr.rel target = $region3
  $region8: #{flan_xl_vqa_forward.5} parent=0 // loop_exit
    _

// kernel: flan_xl_vqa_forward.7
$region0: #{flan_xl_vqa_forward.7}
  #allocation0 [shape = 'u32[]', space=smem, size = 0x4, offset = 0x4, fixed_abs, tag = 'smem constant byte address 0x4 - core index']
  #allocation1 [shape = 'u32[144,128]{1,0:T(1,128)}', space=vmem, size = 0x12000, scoped, tag = 'internal scratch']
  %s0 = inlined_call_operand.vmem [shape: bf16[2,16,64], index: 0, kind: input, shape index: {}]
  %s1 = inlined_call_operand.vmem [shape: f32[128,32], index: 1, kind: input, shape index: {}]
  %s2 = inlined_call_operand.vmem [shape: bf16[32,96], index: 2, kind: input, shape index: {}]
  %s3 = inlined_call_operand.vmem [shape: bf16[32,32], index: 3, kind: input, shape index: {}]
  %s4 = inlined_call_operand.vmem [shape: bf16[32,32], index: 4, kind: input, shape index: {}]
  %s5 = inlined_call_operand.vmem [shape: bf16[32,32], index: 5, kind: input, shape index: {}]
  %s6 = inlined_call_operand.vmem [shape: bf16[32,64], index: 6, kind: input, shape index: {}]
  %s7 = inlined_call_operand.vmem [shape: bf16[64,32], index: 7, kind: input, shape index: {}]
  %s8 = inlined_call_operand.vmem [shape: bf16[32,128], index: 8, kind: input, shape index: {}]
  %s9 = inlined_call_operand.vmem [shape: f32[8,32], index: 9, kind: input, shape index: {}]
  %s10 = inlined_call_operand.vmem [shape: f32[7,128], index: 10, kind: input, shape index: {}]
  %s11 = inlined_call_operand.hbm [shape: s32[2,1,5], index: 11, kind: output, shape index: {}]
  %s12 = sld [smem:[#allocation0]]
  $region84: #{flan_xl_vqa_forward.7} parent=0
    _
  %s14 = ssub.s32 1, %s12
  %s15 = scalar_select 0, %s14, %s12
  $region1: #{flan_xl_vqa_forward.7} parent=0
    #allocation2 [shape = 'u8[1024]{0}', space=vmem, size = 0x400, scoped, tag = 'output window, operand 0']
    #allocation3 [shape = 's32[2]{0}', space=sflag, size = 0x8, scoped, tag = 'scoped memory for flan_xl_vqa_forward.7']
    %16 = vsyncpa [#allocation3], 0
    %s17 = scalar_lea.sflag [#allocation3], 1
    %18 = vsyncpa %s17, 0
    loop: start=0, step=1, limit=4
    $region2: #{flan_xl_vqa_forward.7} parent=1 // loop_pre_header
      _
    $region3: #{flan_xl_vqa_forward.7} parent=1 // loop_header
      %s20 = sphi 0, %s24
      %p21 = scmp.ge.s32.totalorder %s20, 4
      %s30 = sphi 0, %s32
      %s33 = sphi 0, %s30
      %s34 = sphi 0, %s33
      %s50 = sphi 0, %s34
      %s54 = sphi 0, %s54
      %s56 = sphi 0, %s54
      %s57 = sphi 0, %s56
      %s71 = sphi 0, %s57
      %s75 = sphi 0, %s75
      %s77 = sphi 0, %s75
      %s78 = sphi 0, %s77
      %s92 = sphi 0, %s78
      %s96 = sphi 0, %s96
      %s98 = sphi 0, %s96
      %s99 = sphi 0, %s98
      %s113 = sphi 0, %s99
      %s117 = sphi 0, %s117
      %s119 = sphi 0, %s117
      %s120 = sphi 0, %s119
      %s134 = sphi 0, %s120
      %s138 = sphi 0, %s138
      %s140 = sphi 0, %s138
      %s141 = sphi 0, %s140
      %s155 = sphi 0, %s141
      %s159 = sphi 0, %s159
      %s161 = sphi 0, %s159
      %s162 = sphi 0, %s161
      %s176 = sphi 0, %s162
      %s180 = sphi 0, %s180
      %s182 = sphi 0, %s180
      %s183 = sphi 0, %s182
      %s197 = sphi 0, %s183
      %s201 = sphi 0, %s201
      %s203 = sphi 0, %s201
      %s204 = sphi 0, %s203
      %s218 = sphi 0, %s204
      %s222 = sphi 0, %s222
      %s224 = sphi 0, %s222
      %s225 = sphi 0, %s224
      %s239 = sphi 0, %s225
      %s243 = sphi 0, %s243
      %s245 = sphi 0, %s243
      %s246 = sphi 0, %s245
      %s260 = sphi 0, %s246
      %s266 = sphi 0, %s268
      %s269 = sphi 0, %s266
      %s270 = sphi 0, %s269
      %s286 = sphi 0, %s270
    $region4: #{flan_xl_vqa_forward.7} parent=1 // loop_header_branch
      %23 = sbr.rel (%p21) target = $region8
    $region5: #{flan_xl_vqa_forward.7} parent=1 // loop_body
      %s25 = ssub.s32 %s20, 1
      %s26 = ssub.s32 %s20, 2
      %s27 = sadd.s32 %s20, 1
      %s28 = ssub.s32 %s20, %s27
      %p29 = scmp.eq.s32.totalorder %s28, 0
      %s31 = sadd.s32 %s30, 1
      %s32 = scalar_select %p29, %s30, %s31
      %p35 = pneg %p29
      %p36 = scmp.eq.s32.totalorder %s20, 1
      %p37 = por %p35, %p36
      %p38 = scmp.ne.s32.totalorder %s30, %s33
      %p39 = scmp.eq.s32.totalorder %s20, 0
      %p40 = por %p38, %p39
      %p41 = scmp.ne.s32.totalorder %s30, %s33
      %p42 = scmp.eq.s32.totalorder %s25, 1
      %p43 = por %p41, %p42
      %p44 = scmp.ne.s32.totalorder %s33, %s34
      %p45 = scmp.eq.s32.totalorder %s25, 0
      %p46 = por %p44, %p45
      %p47 = scmp.ne.s32.totalorder %s33, %s34
      %p48 = scmp.eq.s32.totalorder %s26, 1
      %p49 = por %p47, %p48
      %p51 = scmp.ne.s32.totalorder %s34, %s50
      %p52 = scmp.eq.s32.totalorder %s26, 0
      %p53 = por %p51, %p52
      %s55 = sadd.s32 %s54, 1
      %p58 = scmp.eq.s32.totalorder %s20, 1
      %p59 = scmp.ne.s32.totalorder %s54, %s56
      %p60 = scmp.eq.s32.totalorder %s20, 0
      %p61 = por %p59, %p60
      %p62 = scmp.ne.s32.totalorder %s54, %s56
      %p63 = scmp.eq.s32.totalorder %s25, 1
      %p64 = por %p62, %p63
      %p65 = scmp.ne.s32.totalorder %s56, %s57
      %p66 = scmp.eq.s32.totalorder %s25, 0
      %p67 = por %p65, %p66
      %p68 = scmp.ne.s32.totalorder %s56, %s57
      %p69 = scmp.eq.s32.totalorder %s26, 1
      %p70 = por %p68, %p69
      %p72 = scmp.ne.s32.totalorder %s57, %s71
      %p73 = scmp.eq.s32.totalorder %s26, 0
      %p74 = por %p72, %p73
      %s76 = sadd.s32 %s75, 1
      %p79 = scmp.eq.s32.totalorder %s20, 1
      %p80 = scmp.ne.s32.totalorder %s75, %s77
      %p81 = scmp.eq.s32.totalorder %s20, 0
      %p82 = por %p80, %p81
      %p83 = scmp.ne.s32.totalorder %s75, %s77
      %p84 = scmp.eq.s32.totalorder %s25, 1
      %p85 = por %p83, %p84
      %p86 = scmp.ne.s32.totalorder %s77, %s78
      %p87 = scmp.eq.s32.totalorder %s25, 0
      %p88 = por %p86, %p87
      %p89 = scmp.ne.s32.totalorder %s77, %s78
      %p90 = scmp.eq.s32.totalorder %s26, 1
      %p91 = por %p89, %p90
      %p93 = scmp.ne.s32.totalorder %s78, %s92
      %p94 = scmp.eq.s32.totalorder %s26, 0
      %p95 = por %p93, %p94
      %s97 = sadd.s32 %s96, 1
      %p100 = scmp.eq.s32.totalorder %s20, 1
      %p101 = scmp.ne.s32.totalorder %s96, %s98
      %p102 = scmp.eq.s32.totalorder %s20, 0
      %p103 = por %p101, %p102
      %p104 = scmp.ne.s32.totalorder %s96, %s98
      %p105 = scmp.eq.s32.totalorder %s25, 1
      %p106 = por %p104, %p105
      %p107 = scmp.ne.s32.totalorder %s98, %s99
      %p108 = scmp.eq.s32.totalorder %s25, 0
      %p109 = por %p107, %p108
      %p110 = scmp.ne.s32.totalorder %s98, %s99
      %p111 = scmp.eq.s32.totalorder %s26, 1
      %p112 = por %p110, %p111
      %p114 = scmp.ne.s32.totalorder %s99, %s113
      %p115 = scmp.eq.s32.totalorder %s26, 0
      %p116 = por %p114, %p115
      %s118 = sadd.s32 %s117, 1
      %p121 = scmp.eq.s32.totalorder %s20, 1
      %p122 = scmp.ne.s32.totalorder %s117, %s119
      %p123 = scmp.eq.s32.totalorder %s20, 0
      %p124 = por %p122, %p123
      %p125 = scmp.ne.s32.totalorder %s117, %s119
      %p126 = scmp.eq.s32.totalorder %s25, 1
      %p127 = por %p125, %p126
      %p128 = scmp.ne.s32.totalorder %s119, %s120
      %p129 = scmp.eq.s32.totalorder %s25, 0
      %p130 = por %p128, %p129
      %p131 = scmp.ne.s32.totalorder %s119, %s120
      %p132 = scmp.eq.s32.totalorder %s26, 1
      %p133 = por %p131, %p132
      %p135 = scmp.ne.s32.totalorder %s120, %s134
      %p136 = scmp.eq.s32.totalorder %s26, 0
      %p137 = por %p135, %p136
      %s139 = sadd.s32 %s138, 1
      %p142 = scmp.eq.s32.totalorder %s20, 1
      %p143 = scmp.ne.s32.totalorder %s138, %s140
      %p144 = scmp.eq.s32.totalorder %s20, 0
      %p145 = por %p143, %p144
      %p146 = scmp.ne.s32.totalorder %s138, %s140
      %p147 = scmp.eq.s32.totalorder %s25, 1
      %p148 = por %p146, %p147
      %p149 = scmp.ne.s32.totalorder %s140, %s141
      %p150 = scmp.eq.s32.totalorder %s25, 0
      %p151 = por %p149, %p150
      %p152 = scmp.ne.s32.totalorder %s140, %s141
      %p153 = scmp.eq.s32.totalorder %s26, 1
      %p154 = por %p152, %p153
      %p156 = scmp.ne.s32.totalorder %s141, %s155
      %p157 = scmp.eq.s32.totalorder %s26, 0
      %p158 = por %p156, %p157
      %s160 = sadd.s32 %s159, 1
      %p163 = scmp.eq.s32.totalorder %s20, 1
      %p164 = scmp.ne.s32.totalorder %s159, %s161
      %p165 = scmp.eq.s32.totalorder %s20, 0
      %p166 = por %p164, %p165
      %p167 = scmp.ne.s32.totalorder %s159, %s161
      %p168 = scmp.eq.s32.totalorder %s25, 1
      %p169 = por %p167, %p168
      %p170 = scmp.ne.s32.totalorder %s161, %s162
      %p171 = scmp.eq.s32.totalorder %s25, 0
      %p172 = por %p170, %p171
      %p173 = scmp.ne.s32.totalorder %s161, %s162
      %p174 = scmp.eq.s32.totalorder %s26, 1
      %p175 = por %p173, %p174
      %p177 = scmp.ne.s32.totalorder %s162, %s176
      %p178 = scmp.eq.s32.totalorder %s26, 0
      %p179 = por %p177, %p178
      %s181 = sadd.s32 %s180, 1
      %p184 = scmp.eq.s32.totalorder %s20, 1
      %p185 = scmp.ne.s32.totalorder %s180, %s182
      %p186 = scmp.eq.s32.totalorder %s20, 0
      %p187 = por %p185, %p186
      %p188 = scmp.ne.s32.totalorder %s180, %s182
      %p189 = scmp.eq.s32.totalorder %s25, 1
      %p190 = por %p188, %p189
      %p191 = scmp.ne.s32.totalorder %s182, %s183
      %p192 = scmp.eq.s32.totalorder %s25, 0
      %p193 = por %p191, %p192
      %p194 = scmp.ne.s32.totalorder %s182, %s183
      %p195 = scmp.eq.s32.totalorder %s26, 1
      %p196 = por %p194, %p195
      %p198 = scmp.ne.s32.totalorder %s183, %s197
      %p199 = scmp.eq.s32.totalorder %s26, 0
      %p200 = por %p198, %p199
      %s202 = sadd.s32 %s201, 1
      %p205 = scmp.eq.s32.totalorder %s20, 1
      %p206 = scmp.ne.s32.totalorder %s201, %s203
      %p207 = scmp.eq.s32.totalorder %s20, 0
      %p208 = por %p206, %p207
      %p209 = scmp.ne.s32.totalorder %s201, %s203
      %p210 = scmp.eq.s32.totalorder %s25, 1
      %p211 = por %p209, %p210
      %p212 = scmp.ne.s32.totalorder %s203, %s204
      %p213 = scmp.eq.s32.totalorder %s25, 0
      %p214 = por %p212, %p213
      %p215 = scmp.ne.s32.totalorder %s203, %s204
      %p216 = scmp.eq.s32.totalorder %s26, 1
      %p217 = por %p215, %p216
      %p219 = scmp.ne.s32.totalorder %s204, %s218
      %p220 = scmp.eq.s32.totalorder %s26, 0
      %p221 = por %p219, %p220
      %s223 = sadd.s32 %s222, 1
      %p226 = scmp.eq.s32.totalorder %s20, 1
      %p227 = scmp.ne.s32.totalorder %s222, %s224
      %p228 = scmp.eq.s32.totalorder %s20, 0
      %p229 = por %p227, %p228
      %p230 = scmp.ne.s32.totalorder %s222, %s224
      %p231 = scmp.eq.s32.totalorder %s25, 1
      %p232 = por %p230, %p231
      %p233 = scmp.ne.s32.totalorder %s224, %s225
      %p234 = scmp.eq.s32.totalorder %s25, 0
      %p235 = por %p233, %p234
      %p236 = scmp.ne.s32.totalorder %s224, %s225
      %p237 = scmp.eq.s32.totalorder %s26, 1
      %p238 = por %p236, %p237
      %p240 = scmp.ne.s32.totalorder %s225, %s239
      %p241 = scmp.eq.s32.totalorder %s26, 0
      %p242 = por %p240, %p241
      %s244 = sadd.s32 %s243, 1
      %p247 = scmp.eq.s32.totalorder %s20, 1
      %p248 = scmp.ne.s32.totalorder %s243, %s245
      %p249 = scmp.eq.s32.totalorder %s20, 0
      %p250 = por %p248, %p249
      %p251 = scmp.ne.s32.totalorder %s243, %s245
      %p252 = scmp.eq.s32.totalorder %s25, 1
      %p253 = por %p251, %p252
      %p254 = scmp.ne.s32.totalorder %s245, %s246
      %p255 = scmp.eq.s32.totalorder %s25, 0
      %p256 = por %p254, %p255
      %p257 = scmp.ne.s32.totalorder %s245, %s246
      %p258 = scmp.eq.s32.totalorder %s26, 1
      %p259 = por %p257, %p258
      %p261 = scmp.ne.s32.totalorder %s246, %s260
      %p262 = scmp.eq.s32.totalorder %s26, 0
      %p263 = por %p261, %p262
      %s264 = ssub.s32 %s20, %s27
      %p265 = scmp.eq.s32.totalorder %s264, 0
      %s267 = sadd.s32 %s266, 1
      %s268 = scalar_select %p265, %s266, %s267
      %p271 = pneg %p265
      %p272 = scmp.eq.s32.totalorder %s20, 1
      %p273 = por %p271, %p272
      %p274 = scmp.ne.s32.totalorder %s266, %s269
      %p275 = scmp.eq.s32.totalorder %s20, 0
      %p276 = por %p274, %p275
      %p277 = scmp.ne.s32.totalorder %s266, %s269
      %p278 = scmp.eq.s32.totalorder %s25, 1
      %p279 = por %p277, %p278
      %p280 = scmp.ne.s32.totalorder %s269, %s270
      %p281 = scmp.eq.s32.totalorder %s25, 0
      %p282 = por %p280, %p281
      %p283 = scmp.ne.s32.totalorder %s269, %s270
      %p284 = scmp.eq.s32.totalorder %s26, 1
      %p285 = por %p283, %p284
      %p287 = scmp.ne.s32.totalorder %s270, %s286
      %p288 = scmp.eq.s32.totalorder %s26, 0
      %p289 = por %p287, %p288
      %p290 = scmp.le.s32.totalorder 1, %s20
      %p291 = scmp.lt.s32.totalorder %s20, 3
      %p292 = pnand %p290, %p291
      %p293 = pneg %p292
      // Predicated region
      $region9: #{flan_xl_vqa_forward.7} parent=5 // pred_check
        _
      $region10: #{flan_xl_vqa_forward.7} parent=5 // pred_check_branch
        %295 = sbr.rel (%p292) target = $region12
      $region11: #{flan_xl_vqa_forward.7} parent=5 // pred_region
        %s296 = ssub.s32 %s20, 1
        // Predicated region
        $region13: #{flan_xl_vqa_forward.7} parent=11 // pred_check
          %p297 = pneg %p67
        $region14: #{flan_xl_vqa_forward.7} parent=11 // pred_check_branch
          %299 = sbr.rel (%p297) target = $region16
        $region15: #{flan_xl_vqa_forward.7} parent=11 // pred_region
          _
        $region16: #{flan_xl_vqa_forward.7} parent=11 // pred_fallthru
          _
        // Predicated region
        $region17: #{flan_xl_vqa_forward.7} parent=11 // pred_check
          %p300 = pneg %p88
        $region18: #{flan_xl_vqa_forward.7} parent=11 // pred_check_branch
          %302 = sbr.rel (%p300) target = $region20
        $region19: #{flan_xl_vqa_forward.7} parent=11 // pred_region
          _
        $region20: #{flan_xl_vqa_forward.7} parent=11 // pred_fallthru
          _
        // Predicated region
        $region21: #{flan_xl_vqa_forward.7} parent=11 // pred_check
          %p303 = pneg %p109
        $region22: #{flan_xl_vqa_forward.7} parent=11 // pred_check_branch
          %305 = sbr.rel (%p303) target = $region24
        $region23: #{flan_xl_vqa_forward.7} parent=11 // pred_region
          _
        $region24: #{flan_xl_vqa_forward.7} parent=11 // pred_fallthru
          _
        // Predicated region
        $region25: #{flan_xl_vqa_forward.7} parent=11 // pred_check
          %p306 = pneg %p130
        $region26: #{flan_xl_vqa_forward.7} parent=11 // pred_check_branch
          %308 = sbr.rel (%p306) target = $region28
        $region27: #{flan_xl_vqa_forward.7} parent=11 // pred_region
          _
        $region28: #{flan_xl_vqa_forward.7} parent=11 // pred_fallthru
          _
        // Predicated region
        $region29: #{flan_xl_vqa_forward.7} parent=11 // pred_check
          %p309 = pneg %p151
        $region30: #{flan_xl_vqa_forward.7} parent=11 // pred_check_branch
          %311 = sbr.rel (%p309) target = $region32
        $region31: #{flan_xl_vqa_forward.7} parent=11 // pred_region
          _
        $region32: #{flan_xl_vqa_forward.7} parent=11 // pred_fallthru
          _
        // Predicated region
        $region33: #{flan_xl_vqa_forward.7} parent=11 // pred_check
          %p312 = pneg %p172
        $region34: #{flan_xl_vqa_forward.7} parent=11 // pred_check_branch
          %314 = sbr.rel (%p312) target = $region36
        $region35: #{flan_xl_vqa_forward.7} parent=11 // pred_region
          _
        $region36: #{flan_xl_vqa_forward.7} parent=11 // pred_fallthru
          _
        // Predicated region
        $region37: #{flan_xl_vqa_forward.7} parent=11 // pred_check
          %p315 = pneg %p193
        $region38: #{flan_xl_vqa_forward.7} parent=11 // pred_check_branch
          %317 = sbr.rel (%p315) target = $region40
        $region39: #{flan_xl_vqa_forward.7} parent=11 // pred_region
          _
        $region40: #{flan_xl_vqa_forward.7} parent=11 // pred_fallthru
          _
        // Predicated region
        $region41: #{flan_xl_vqa_forward.7} parent=11 // pred_check
          %p318 = pneg %p214
        $region42: #{flan_xl_vqa_forward.7} parent=11 // pred_check_branch
          %320 = sbr.rel (%p318) target = $region44
        $region43: #{flan_xl_vqa_forward.7} parent=11 // pred_region
          _
        $region44: #{flan_xl_vqa_forward.7} parent=11 // pred_fallthru
          _
        // Predicated region
        $region45: #{flan_xl_vqa_forward.7} parent=11 // pred_check
          %p321 = pneg %p235
        $region46: #{flan_xl_vqa_forward.7} parent=11 // pred_check_branch
          %323 = sbr.rel (%p321) target = $region48
        $region47: #{flan_xl_vqa_forward.7} parent=11 // pred_region
          _
        $region48: #{flan_xl_vqa_forward.7} parent=11 // pred_fallthru
          _
        // Predicated region
        $region49: #{flan_xl_vqa_forward.7} parent=11 // pred_check
          %p324 = pneg %p256
        $region50: #{flan_xl_vqa_forward.7} parent=11 // pred_check_branch
          %326 = sbr.rel (%p324) target = $region52
        $region51: #{flan_xl_vqa_forward.7} parent=11 // pred_region
          _
        $region52: #{flan_xl_vqa_forward.7} parent=11 // pred_fallthru
          _
      $region12: #{flan_xl_vqa_forward.7} parent=5 // pred_fallthru
        _
      %p327 = scmp.lt.s32.totalorder %s20, 2
      // Predicated region
      $region53: #{flan_xl_vqa_forward.7} parent=5 // pred_check
        %p328 = pneg %p327
      $region54: #{flan_xl_vqa_forward.7} parent=5 // pred_check_branch
        %330 = sbr.rel (%p328) target = $region56
      $region55: #{flan_xl_vqa_forward.7} parent=5 // pred_region
        // Predicated region
        $region57: #{flan_xl_vqa_forward.7} parent=55 // pred_check
          %p331 = pneg %p40
        $region58: #{flan_xl_vqa_forward.7} parent=55 // pred_check_branch
          %333 = sbr.rel (%p331) target = $region60
        $region59: #{flan_xl_vqa_forward.7} parent=55 // pred_region
          %p334 = scmp.lt.s32.totalorder %s20, 1
          %s335 = scalar_select %p334, %s20, 1
          %s336 = smul.addr %s335, 2
          %s337 = smul.addr %s336, 4
          %s338 = scalar_lea.vmem %s0, %s337
        $region60: #{flan_xl_vqa_forward.7} parent=55 // pred_fallthru
          _
      $region56: #{flan_xl_vqa_forward.7} parent=5 // pred_fallthru
        _
      %p339 = scmp.le.s32.totalorder 1, %s20
      %p340 = scmp.lt.s32.totalorder %s20, 3
      %p341 = pnand %p339, %p340
      %p342 = pneg %p341
      // Predicated region
      $region61: #{flan_xl_vqa_forward.7} parent=5 // pred_check
        _
      $region62: #{flan_xl_vqa_forward.7} parent=5 // pred_check_branch
        %344 = sbr.rel (%p341) target = $region64
      $region63: #{flan_xl_vqa_forward.7} parent=5 // pred_region
        %s345 = ssub.s32 %s20, 1
        %p346 = scmp.lt.s32.totalorder %s25, 1
        %s347 = scalar_select %p346, %s25, 1
        %s348 = smul.addr %s347, 2
        %s349 = smul.addr %s348, 4
        %s350 = scalar_lea.vmem %s0, %s349
        %p351 = pneg %p46
        %p352 = pneg %p43
        %p353 = pneg %p67
        %p354 = pneg %p64
        %p355 = pneg %p88
        %p356 = pneg %p85
        %p357 = pneg %p109
        %p358 = pneg %p106
        %p359 = pneg %p130
        %p360 = pneg %p127
        %p361 = pneg %p151
        %p362 = pneg %p148
        %p363 = pneg %p172
        %p364 = pneg %p169
        %p365 = pneg %p193
        %p366 = pneg %p190
        %p367 = pneg %p214
        %p368 = pneg %p211
        %p369 = pneg %p235
        %p370 = pneg %p232
        %p371 = pneg %p256
        %p372 = pneg %p253
        %p373 = pneg %p282
        %p374 = pneg %p279
        %s375 = sand.u32 %s269, 1
        %s376 = scalar_lea.sflag [#allocation3], %s375
        %s377 = sand.u32 %s269, 1
        %s378 = scalar_lea.vmem [#allocation2], %s377
        %p379 = scmp.lt.s32.totalorder %s25, 1
        %s380 = scalar_select %p379, %s25, 1
        %s381 = smul.addr %s380, 2
        %s382 = smul.addr %s381, 4
        %s383 = scalar_lea.vmem %s0, %s382
        %v385 = vld [vmem:[%s9] sm:$0xff]
        %v386 = vld [vmem:[%s10] sm:$0x7f]
        %v387 = vld [vmem:[%s2] sm:$0xf]
        %v388 = vld [vmem:[%s2 + $0x4] sm:$0xf]
        %v389 = vld [vmem:[%s2 + $0x8] sm:$0xf]
        %v390 = vld [vmem:[%s2 + $0xc] sm:$0xf]
        %v391 = vld [vmem:[%s3] sm:$0xf]
        %v392 = vld [vmem:[%s3 + $0x4] sm:$0xf]
        %v393 = vld [vmem:[%s3 + $0x8] sm:$0xf]
        %v394 = vld [vmem:[%s3 + $0xc] sm:$0xf]
        %v395 = vld [vmem:[%s4] sm:$0xf]
        %v396 = vld [vmem:[%s4 + $0x4] sm:$0xf]
        %v397 = vld [vmem:[%s4 + $0x8] sm:$0xf]
        %v398 = vld [vmem:[%s4 + $0xc] sm:$0xf]
        %v399 = vld [vmem:[%s5] sm:$0xf]
        %v400 = vld [vmem:[%s5 + $0x4] sm:$0xf]
        %v401 = vld [vmem:[%s5 + $0x8] sm:$0xf]
        %v402 = vld [vmem:[%s5 + $0xc] sm:$0xf]
        %v403 = vld [vmem:[%s6] sm:$0xf]
        %v404 = vld [vmem:[%s6 + $0x4] sm:$0xf]
        %v405 = vld [vmem:[%s6 + $0x8] sm:$0xf]
        %v406 = vld [vmem:[%s6 + $0xc] sm:$0xf]
        %v407 = vld [vmem:[%s7] sm:$0xf]
        %v408 = vld [vmem:[%s7 + $0x4] sm:$0xf]
        %v409 = vld [vmem:[%s7 + $0x8] sm:$0xf]
        %v410 = vld [vmem:[%s7 + $0xc] sm:$0xf]
        %v411 = vld [vmem:[%s7 + $0x10] sm:$0xf]
        %v412 = vld [vmem:[%s7 + $0x14] sm:$0xf]
        %v413 = vld [vmem:[%s7 + $0x18] sm:$0xf]
        %v414 = vld [vmem:[%s7 + $0x1c] sm:$0xf]
        %v415 = vld [vmem:[%s8] sm:$0xf]
        %v416 = vld [vmem:[%s8 + $0x4] sm:$0xf]
        %v417 = vld [vmem:[%s8 + $0x8] sm:$0xf]
        %v418 = vld [vmem:[%s8 + $0xc] sm:$0xf]
        %v419 = vld [vmem:[%s1] sm:$0xff]
        %v420 = vld [vmem:[%s1 + $0x8] sm:$0xff]
        %v421 = vld [vmem:[%s1 + $0x10] sm:$0xff]
        %v422 = vld [vmem:[%s1 + $0x18] sm:$0xff]
        %v423 = vld [vmem:[%s1 + $0x20] sm:$0xff]
        %v424 = vld [vmem:[%s1 + $0x28] sm:$0xff]
        %v425 = vld [vmem:[%s1 + $0x30] sm:$0xff]
        %v426 = vld [vmem:[%s1 + $0x38] sm:$0xff]
        %v427 = vld [vmem:[%s1 + $0x40] sm:$0xff]
        %v428 = vld [vmem:[%s1 + $0x48] sm:$0xff]
        %v429 = vld [vmem:[%s1 + $0x50] sm:$0xff]
        %v430 = vld [vmem:[%s1 + $0x58] sm:$0xff]
        %v431 = vld [vmem:[%s1 + $0x60] sm:$0xff]
        %v432 = vld [vmem:[%s1 + $0x68] sm:$0xff]
        %v433 = vld [vmem:[%s1 + $0x70] sm:$0xff]
        %v434 = vld [vmem:[%s1 + $0x78] sm:$0xff]
        %v435 = vpack.c.bf16 %v420, %v419
        %v436 = vpack.c.bf16 %v422, %v421
        %v437 = vpack.c.bf16 %v424, %v423
        %v438 = vpack.c.bf16 %v426, %v425
        %v439 = vpack.c.bf16 %v428, %v427
        %v440 = vpack.c.bf16 %v430, %v429
        %v441 = vpack.c.bf16 %v432, %v431
        %v442 = vpack.c.bf16 %v434, %v433
        %v443 = vld [vmem:[%s383] sm:$0xf]
        %v444 = vld [vmem:[%s383 + $0x4] sm:$0xf]
        %v445 = vunpack.c.l.bf16 %v443
        %v446 = vunpack.c.l.bf16 %v444
        %449 = vrot.lane.b32.xlu0 %v445, 120
        %v450 = vpop.permute.xlu0 %449
        %451 = vrot.lane.b32.xlu0 %v446, 120
        %v452 = vpop.permute.xlu0 %451
        %455 = vrot.lane.b32.xlu0 %v445, 112
        %v456 = vpop.permute.xlu0 %455
        %457 = vrot.lane.b32.xlu0 %v446, 112
        %v458 = vpop.permute.xlu0 %457
        %461 = vrot.lane.b32.xlu0 %v445, 104
        %v462 = vpop.permute.xlu0 %461
        %463 = vrot.lane.b32.xlu0 %v446, 104
        %v464 = vpop.permute.xlu0 %463
        %v467 = vpack.c.bf16 %v446, %v445
        %v468 = vpack.c.bf16 %v452, %v450
        %v469 = vpack.c.bf16 %v458, %v456
        %v470 = vpack.c.bf16 %v464, %v462
        %v471 = vlaneseq
        %v472 = vand.u32 %v471, 127
        %v473 = vcvt.s32.f32 %v472
        %v474 = vlaneseq
        %v475 = vshrl.u32 %v474, 7
        loop: start=0, step=1, limit=4
        $region65: #{flan_xl_vqa_forward.7} parent=63 // loop_pre_header
          _
        $region66: #{flan_xl_vqa_forward.7} parent=63 // loop_header
          %s477 = sphi 0, %s481
          %p478 = scmp.ge.s32.totalorder %s477, 4
          %v482 = vphi 0, %v2017
          %v483 = vphi 0, %v2021
          %v484 = vphi 0.0, %v614
          %v485 = vphi 0.0, %v615
        $region67: #{flan_xl_vqa_forward.7} parent=63 // loop_header_branch
          %480 = sbr.rel (%p478) target = $region71
        $region68: #{flan_xl_vqa_forward.7} parent=63 // loop_body
          %vm486 = vcmp.eq.s32.totalorder %v472, %v482
          %v487 = vsel %vm486, 1.0, 0.0
          %v488 = vpack.c.bf16 %v487, %v487
          %489 = vmatprep.subr.bf16.mxu0 0
          %490 = vmatpush1.bf16.msra.mxu0 %v435
          %491 = vmatprep.subr.bf16.mxu0 0
          %492 = vmatpush1.bf16.msra.mxu0 %v436
          %493 = vmatprep.subr.bf16.mxu0 0
          %494 = vmatpush1.bf16.msra.mxu0 %v437
          %495 = vmatprep.subr.bf16.mxu0 0
          %496 = vmatpush1.bf16.msra.mxu0 %v438
          %497 = vmatprep.subr.bf16.mxu0 0
          %498 = vmatpush1.bf16.msra.mxu0 %v439
          %499 = vmatprep.subr.bf16.mxu0 0
          %500 = vmatpush1.bf16.msra.mxu0 %v440
          %501 = vmatprep.subr.bf16.mxu0 0
          %502 = vmatpush1.bf16.msra.mxu0 %v441
          %503 = vmatprep.subr.bf16.mxu0 0
          %504 = vmatpush1.bf16.msra.mxu0 %v442
          %505 = vmatprep.subr.bf16.mxu0 0
          %506 = vmatpush1.bf16.msra.mxu0 0
          %507 = vmatprep.subr.bf16.mxu0 0
          %508 = vmatpush1.bf16.msra.mxu0 0
          %509 = vmatprep.subr.bf16.mxu0 0
          %510 = vmatpush1.bf16.msra.mxu0 0
          %511 = vmatprep.subr.bf16.mxu0 0
          %512 = vmatpush1.bf16.msra.mxu0 0
          %513 = vmatprep.subr.bf16.mxu0 0
          %514 = vmatpush1.bf16.msra.mxu0 0
          %515 = vmatprep.subr.bf16.mxu0 0
          %516 = vmatpush1.bf16.msra.mxu0 0
          %517 = vmatprep.subr.bf16.mxu0 0
          %518 = vmatpush1.bf16.msra.mxu0 0
          %519 = vmatprep.subr.bf16.mxu0 0
          %520 = vmatpush1.bf16.msra.mxu0 0
          %521 = vmatprep.mubr.bf16.mxu0 0
          %522 = vmatmul.mubr.bf16.gmra.mrb[0].mxu0 %v488
          %v523 = vpop.f32.mrb[0].mxu0
          %v524 = vadd.f32 0.0, %v523
          %v525 = vpop.f32.mrb[0].mxu0
          %v526 = vpop.f32.mrb[0].mxu0
          %v527 = vpop.f32.mrb[0].mxu0
          %528 = vdwg.mxu0
          %vm529 = vcmask 253952
          %v530 = vsel %vm529, %v524, 0.0
          %531 = vadd.xlane.f32.xlu0 %v530
          %v532 = vpop.xlane.xlu0 %531
          %v533 = vrcp.pop 32.0
          %v534 = vmul.f32 %v532, %v533
          %v535 = vsub.f32 %v524, %v534
          %v536 = vmul.f32 %v535, %v535
          %v537 = vsel %vm529, %v536, 0.0
          %538 = vadd.xlane.f32.xlu0 %v537
          %v539 = vpop.xlane.xlu0 %538
          %v540 = vmul.f32 %v539, %v533
          %v541 = vadd.f32 %v540, 1e-06
          %v542 = vrsqrt.pop %v541
          %v543 = vmul.f32 %v535, %v542
          %v544 = vmul.f32 %v543, %v385
          %v546 = vrot.slane %v385, 1
          %v548 = vadd.f32 %v544, %v546
          %v549 = vpack.c.bf16 %v548, %v548
          %v554 = vunpack.c.l.b16 %v387
          %v555 = vunpack.c.l.b16 %v388
          %v556 = vunpack.c.l.b16 %v389
          %v557 = vunpack.c.l.b16 %v390
          %v558 = vpack.c.b16 %v555, %v554
          %v559 = vpack.c.b16 %v557, %v556
          %vm562 = vcmask 261120
          %v564 = vsel %vm562, %v549, 0
          %566 = vmatprep.subr.bf16.mxu0 0
          %567 = vmatpush1.bf16.msra.mxu0 %v558
          %568 = vmatprep.subr.bf16.mxu0 0
          %569 = vmatpush1.bf16.msra.mxu0 %v559
          %570 = vmatprep.subr.bf16.mxu0 0
          %571 = vmatpush1.bf16.msra.mxu0 0
          %572 = vmatprep.subr.bf16.mxu0 0
          %573 = vmatpush1.bf16.msra.mxu0 0
          %574 = vmatprep.subr.bf16.mxu0 0
          %575 = vmatpush1.bf16.msra.mxu0 0
          %576 = vmatprep.subr.bf16.mxu0 0
          %577 = vmatpush1.bf16.msra.mxu0 0
          %578 = vmatprep.subr.bf16.mxu0 0
          %579 = vmatpush1.bf16.msra.mxu0 0
          %580 = vmatprep.subr.bf16.mxu0 0
          %581 = vmatpush1.bf16.msra.mxu0 0
          %582 = vmatprep.subr.bf16.mxu0 0
          %583 = vmatpush1.bf16.msra.mxu0 0
          %584 = vmatprep.subr.bf16.mxu0 0
          %585 = vmatpush1.bf16.msra.mxu0 0
          %586 = vmatprep.subr.bf16.mxu0 0
          %587 = vmatpush1.bf16.msra.mxu0 0
          %588 = vmatprep.subr.bf16.mxu0 0
          %589 = vmatpush1.bf16.msra.mxu0 0
          %590 = vmatprep.subr.bf16.mxu0 0
          %591 = vmatpush1.bf16.msra.mxu0 0
          %592 = vmatprep.subr.bf16.mxu0 0
          %593 = vmatpush1.bf16.msra.mxu0 0
          %594 = vmatprep.subr.bf16.mxu0 0
          %595 = vmatpush1.bf16.msra.mxu0 0
          %596 = vmatprep.subr.bf16.mxu0 0
          %597 = vmatpush1.bf16.msra.mxu0 0
          %598 = vmatprep.mubr.bf16.mxu0 0
          %599 = vmatmul.mubr.bf16.gmra.mrb[0].mxu0 %v564
          %v600 = vpop.f32.mrb[0].mxu0
          %v601 = vadd.f32 %v386, %v600
          %v602 = vpop.f32.mrb[0].mxu0
          %v603 = vpop.f32.mrb[0].mxu0
          %v604 = vpop.f32.mrb[0].mxu0
          %605 = vdwg.mxu0
          %v606 = vstv %s477
          %vm607 = vcmp.eq.s32.totalorder %v475, %v606
          %v608 = vsel %vm607, 1, 0
          %vm609 = vcmp.eq.s32.totalorder %v608, 1
          %v610 = vlaneseq
          %v611 = vshrl.u32 %v610, 7
          %v612 = vsub.s32 0, %v611
          %v613 = vrot.slane %v601, %v612
          %v614 = vsel %vm609, %v613, %v484
          %v615 = vsel %vm609, %v613, %v485
          %v616 = vmul.f32 %v601, 0.35355338
          %618 = vrot.lane.b32.xlu0 %v616, 120
          %v619 = vpop.permute.xlu0 %618
          %621 = vrot.lane.b32.xlu0 %v616, 112
          %v622 = vpop.permute.xlu0 %621
          %624 = vrot.lane.b32.xlu0 %v616, 104
          %v625 = vpop.permute.xlu0 %624
          %v627 = vpack.c.bf16 %v616, %v616
          %v628 = vpack.c.bf16 %v619, %v619
          %v629 = vpack.c.bf16 %v622, %v622
          %v630 = vpack.c.bf16 %v625, %v625
          %632 = vrot.lane.b32.xlu0 %v614, 120
          %v633 = vpop.permute.xlu0 %632
          %635 = vrot.lane.b32.xlu0 %v614, 112
          %v636 = vpop.permute.xlu0 %635
          %638 = vrot.lane.b32.xlu0 %v614, 104
          %v639 = vpop.permute.xlu0 %638
          %v641 = vpack.c.bf16 %v614, %v614
          %v642 = vpack.c.bf16 %v633, %v633
          %v643 = vpack.c.bf16 %v636, %v636
          %v644 = vpack.c.bf16 %v639, %v639
          %646 = vrot.lane.b32.xlu0 %v615, 120
          %v647 = vpop.permute.xlu0 %646
          %649 = vrot.lane.b32.xlu0 %v615, 112
          %v650 = vpop.permute.xlu0 %649
          %652 = vrot.lane.b32.xlu0 %v615, 104
          %v653 = vpop.permute.xlu0 %652
          %v655 = vpack.c.bf16 %v615, %v615
          %v656 = vpack.c.bf16 %v647, %v647
          %v657 = vpack.c.bf16 %v650, %v650
          %v658 = vpack.c.bf16 %v653, %v653
          %vm659 = vcmp.le.s32.totalorder %v472, %v606
          %661 = vrot.lane.b32.xlu0 %v641, 96
          %v662 = vpop.permute.xlu0 %661
          %vm663 = vcmask 64512
          %v665 = vsel %vm663, %v627, 0
          %v668 = vsel %vm663, %v662, 0
          %670 = vmatprep.subr.bf16.mxu0 0
          %671 = vmatpush1.bf16.xpose.msra.mxu0 %v668
          %672 = vmatprep.subr.bf16.mxu0 0
          %673 = vmatpush1.bf16.xpose.msra.mxu0 0
          %674 = vmatprep.subr.bf16.mxu0 0
          %675 = vmatpush1.bf16.xpose.msra.mxu0 0
          %676 = vmatprep.subr.bf16.mxu0 0
          %677 = vmatpush1.bf16.xpose.msra.mxu0 0
          %678 = vmatprep.subr.bf16.mxu0 0
          %679 = vmatpush1.bf16.xpose.msra.mxu0 0
          %680 = vmatprep.subr.bf16.mxu0 0
          %681 = vmatpush1.bf16.xpose.msra.mxu0 0
          %682 = vmatprep.subr.bf16.mxu0 0
          %683 = vmatpush1.bf16.xpose.msra.mxu0 0
          %684 = vmatprep.subr.bf16.mxu0 0
          %685 = vmatpush1.bf16.xpose.msra.mxu0 0
          %686 = vmatprep.subr.bf16.mxu0 0
          %687 = vmatpush1.bf16.xpose.msra.mxu0 0
          %688 = vmatprep.subr.bf16.mxu0 0
          %689 = vmatpush1.bf16.xpose.msra.mxu0 0
          %690 = vmatprep.subr.bf16.mxu0 0
          %691 = vmatpush1.bf16.xpose.msra.mxu0 0
          %692 = vmatprep.subr.bf16.mxu0 0
          %693 = vmatpush1.bf16.xpose.msra.mxu0 0
          %694 = vmatprep.subr.bf16.mxu0 0
          %695 = vmatpush1.bf16.xpose.msra.mxu0 0
          %696 = vmatprep.subr.bf16.mxu0 0
          %697 = vmatpush1.bf16.xpose.msra.mxu0 0
          %698 = vmatprep.subr.bf16.mxu0 0
          %699 = vmatpush1.bf16.xpose.msra.mxu0 0
          %700 = vmatprep.subr.bf16.mxu0 0
          %701 = vmatpush1.bf16.xpose.msra.mxu0 0
          %702 = vmatprep.mubr.bf16.mxu0 0
          %703 = vmatmul.mubr.bf16.gmra.mrb[0].mxu0 %v665
          %v704 = vpop.f32.mrb[0].mxu0
          %v705 = vadd.f32 0.0, %v704
          %v706 = vpop.f32.mrb[0].mxu0
          %v707 = vpop.f32.mrb[0].mxu0
          %v708 = vpop.f32.mrb[0].mxu0
          %709 = vdwg.mxu0
          %711 = vrot.lane.b32.xlu0 %v642, 96
          %v712 = vpop.permute.xlu0 %711
          %v714 = vsel %vm663, %v628, 0
          %v717 = vsel %vm663, %v712, 0
          %719 = vmatprep.subr.bf16.mxu0 0
          %720 = vmatpush1.bf16.xpose.msra.mxu0 %v717
          %721 = vmatprep.subr.bf16.mxu0 0
          %722 = vmatpush1.bf16.xpose.msra.mxu0 0
          %723 = vmatprep.subr.bf16.mxu0 0
          %724 = vmatpush1.bf16.xpose.msra.mxu0 0
          %725 = vmatprep.subr.bf16.mxu0 0
          %726 = vmatpush1.bf16.xpose.msra.mxu0 0
          %727 = vmatprep.subr.bf16.mxu0 0
          %728 = vmatpush1.bf16.xpose.msra.mxu0 0
          %729 = vmatprep.subr.bf16.mxu0 0
          %730 = vmatpush1.bf16.xpose.msra.mxu0 0
          %731 = vmatprep.subr.bf16.mxu0 0
          %732 = vmatpush1.bf16.xpose.msra.mxu0 0
          %733 = vmatprep.subr.bf16.mxu0 0
          %734 = vmatpush1.bf16.xpose.msra.mxu0 0
          %735 = vmatprep.subr.bf16.mxu0 0
          %736 = vmatpush1.bf16.xpose.msra.mxu0 0
          %737 = vmatprep.subr.bf16.mxu0 0
          %738 = vmatpush1.bf16.xpose.msra.mxu0 0
          %739 = vmatprep.subr.bf16.mxu0 0
          %740 = vmatpush1.bf16.xpose.msra.mxu0 0
          %741 = vmatprep.subr.bf16.mxu0 0
          %742 = vmatpush1.bf16.xpose.msra.mxu0 0
          %743 = vmatprep.subr.bf16.mxu0 0
          %744 = vmatpush1.bf16.xpose.msra.mxu0 0
          %745 = vmatprep.subr.bf16.mxu0 0
          %746 = vmatpush1.bf16.xpose.msra.mxu0 0
          %747 = vmatprep.subr.bf16.mxu0 0
          %748 = vmatpush1.bf16.xpose.msra.mxu0 0
          %749 = vmatprep.subr.bf16.mxu0 0
          %750 = vmatpush1.bf16.xpose.msra.mxu0 0
          %751 = vmatprep.mubr.bf16.mxu0 0
          %752 = vmatmul.mubr.bf16.gmra.mrb[0].mxu0 %v714
          %v753 = vpop.f32.mrb[0].mxu0
          %v754 = vadd.f32 0.0, %v753
          %v755 = vpop.f32.mrb[0].mxu0
          %v756 = vpop.f32.mrb[0].mxu0
          %v757 = vpop.f32.mrb[0].mxu0
          %758 = vdwg.mxu0
          %760 = vrot.lane.b32.xlu0 %v643, 96
          %v761 = vpop.permute.xlu0 %760
          %v763 = vsel %vm663, %v629, 0
          %v766 = vsel %vm663, %v761, 0
          %768 = vmatprep.subr.bf16.mxu0 0
          %769 = vmatpush1.bf16.xpose.msra.mxu0 %v766
          %770 = vmatprep.subr.bf16.mxu0 0
          %771 = vmatpush1.bf16.xpose.msra.mxu0 0
          %772 = vmatprep.subr.bf16.mxu0 0
          %773 = vmatpush1.bf16.xpose.msra.mxu0 0
          %774 = vmatprep.subr.bf16.mxu0 0
          %775 = vmatpush1.bf16.xpose.msra.mxu0 0
          %776 = vmatprep.subr.bf16.mxu0 0
          %777 = vmatpush1.bf16.xpose.msra.mxu0 0
          %778 = vmatprep.subr.bf16.mxu0 0
          %779 = vmatpush1.bf16.xpose.msra.mxu0 0
          %780 = vmatprep.subr.bf16.mxu0 0
          %781 = vmatpush1.bf16.xpose.msra.mxu0 0
          %782 = vmatprep.subr.bf16.mxu0 0
          %783 = vmatpush1.bf16.xpose.msra.mxu0 0
          %784 = vmatprep.subr.bf16.mxu0 0
          %785 = vmatpush1.bf16.xpose.msra.mxu0 0
          %786 = vmatprep.subr.bf16.mxu0 0
          %787 = vmatpush1.bf16.xpose.msra.mxu0 0
          %788 = vmatprep.subr.bf16.mxu0 0
          %789 = vmatpush1.bf16.xpose.msra.mxu0 0
          %790 = vmatprep.subr.bf16.mxu0 0
          %791 = vmatpush1.bf16.xpose.msra.mxu0 0
          %792 = vmatprep.subr.bf16.mxu0 0
          %793 = vmatpush1.bf16.xpose.msra.mxu0 0
          %794 = vmatprep.subr.bf16.mxu0 0
          %795 = vmatpush1.bf16.xpose.msra.mxu0 0
          %796 = vmatprep.subr.bf16.mxu0 0
          %797 = vmatpush1.bf16.xpose.msra.mxu0 0
          %798 = vmatprep.subr.bf16.mxu0 0
          %799 = vmatpush1.bf16.xpose.msra.mxu0 0
          %800 = vmatprep.mubr.bf16.mxu0 0
          %801 = vmatmul.mubr.bf16.gmra.mrb[0].mxu0 %v763
          %v802 = vpop.f32.mrb[0].mxu0
          %v803 = vadd.f32 0.0, %v802
          %v804 = vpop.f32.mrb[0].mxu0
          %v805 = vpop.f32.mrb[0].mxu0
          %v806 = vpop.f32.mrb[0].mxu0
          %807 = vdwg.mxu0
          %809 = vrot.lane.b32.xlu0 %v644, 96
          %v810 = vpop.permute.xlu0 %809
          %v812 = vsel %vm663, %v630, 0
          %v815 = vsel %vm663, %v810, 0
          %817 = vmatprep.subr.bf16.mxu0 0
          %818 = vmatpush1.bf16.xpose.msra.mxu0 %v815
          %819 = vmatprep.subr.bf16.mxu0 0
          %820 = vmatpush1.bf16.xpose.msra.mxu0 0
          %821 = vmatprep.subr.bf16.mxu0 0
          %822 = vmatpush1.bf16.xpose.msra.mxu0 0
          %823 = vmatprep.subr.bf16.mxu0 0
          %824 = vmatpush1.bf16.xpose.msra.mxu0 0
          %825 = vmatprep.subr.bf16.mxu0 0
          %826 = vmatpush1.bf16.xpose.msra.mxu0 0
          %827 = vmatprep.subr.bf16.mxu0 0
          %828 = vmatpush1.bf16.xpose.msra.mxu0 0
          %829 = vmatprep.subr.bf16.mxu0 0
          %830 = vmatpush1.bf16.xpose.msra.mxu0 0
          %831 = vmatprep.subr.bf16.mxu0 0
          %832 = vmatpush1.bf16.xpose.msra.mxu0 0
          %833 = vmatprep.subr.bf16.mxu0 0
          %834 = vmatpush1.bf16.xpose.msra.mxu0 0
          %835 = vmatprep.subr.bf16.mxu0 0
          %836 = vmatpush1.bf16.xpose.msra.mxu0 0
          %837 = vmatprep.subr.bf16.mxu0 0
          %838 = vmatpush1.bf16.xpose.msra.mxu0 0
          %839 = vmatprep.subr.bf16.mxu0 0
          %840 = vmatpush1.bf16.xpose.msra.mxu0 0
          %841 = vmatprep.subr.bf16.mxu0 0
          %842 = vmatpush1.bf16.xpose.msra.mxu0 0
          %843 = vmatprep.subr.bf16.mxu0 0
          %844 = vmatpush1.bf16.xpose.msra.mxu0 0
          %845 = vmatprep.subr.bf16.mxu0 0
          %846 = vmatpush1.bf16.xpose.msra.mxu0 0
          %847 = vmatprep.subr.bf16.mxu0 0
          %848 = vmatpush1.bf16.xpose.msra.mxu0 0
          %849 = vmatprep.mubr.bf16.mxu0 0
          %850 = vmatmul.mubr.bf16.gmra.mrb[0].mxu0 %v812
          %v851 = vpop.f32.mrb[0].mxu0
          %v852 = vadd.f32 0.0, %v851
          %v853 = vpop.f32.mrb[0].mxu0
          %v854 = vpop.f32.mrb[0].mxu0
          %v855 = vpop.f32.mrb[0].mxu0
          %856 = vdwg.mxu0
          %v857 = vsel %vm659, 1, 0
          %vm858 = vcmp.eq.s32.totalorder %v857, 1
          %v859 = vsel %vm858, %v705, -1e+30
          %v860 = vsel %vm858, %v754, -1e+30
          %v861 = vsel %vm858, %v803, -1e+30
          %v862 = vsel %vm858, %v852, -1e+30
          %vm863 = vcmask 57344
          %v864 = vsel %vm863, %v859, -inf
          %865 = vmax.xlane.f32.xlu0 %v864
          %v866 = vpop.xlane.xlu0 %865
          %v867 = vsel %vm863, %v860, -inf
          %868 = vmax.xlane.f32.xlu0 %v867
          %v869 = vpop.xlane.xlu0 %868
          %v870 = vsel %vm863, %v861, -inf
          %871 = vmax.xlane.f32.xlu0 %v870
          %v872 = vpop.xlane.xlu0 %871
          %v873 = vsel %vm863, %v862, -inf
          %874 = vmax.xlane.f32.xlu0 %v873
          %v875 = vpop.xlane.xlu0 %874
          %v876 = vsub.f32 %v859, %v866
          %v877 = vsub.f32 %v860, %v869
          %v878 = vsub.f32 %v861, %v872
          %v879 = vsub.f32 %v862, %v875
          %v880 = vmul.f32 %v876, 1.442695
          %v881 = vpow.pop %v880
          %v882 = vmul.f32 %v877, 1.442695
          %v883 = vpow.pop %v882
          %v884 = vmul.f32 %v878, 1.442695
          %v885 = vpow.pop %v884
          %v886 = vmul.f32 %v879, 1.442695
          %v887 = vpow.pop %v886
          %v888 = vsel %vm863, %v881, 0.0
          %889 = vadd.xlane.f32.xlu0 %v888
          %v890 = vpop.xlane.xlu0 %889
          %v891 = vsel %vm863, %v883, 0.0
          %892 = vadd.xlane.f32.xlu0 %v891
          %v893 = vpop.xlane.xlu0 %892
          %v894 = vsel %vm863, %v885, 0.0
          %895 = vadd.xlane.f32.xlu0 %v894
          %v896 = vpop.xlane.xlu0 %895
          %v897 = vsel %vm863, %v887, 0.0
          %898 = vadd.xlane.f32.xlu0 %v897
          %v899 = vpop.xlane.xlu0 %898
          %v900 = vpack.c.bf16 %v881, %v881
          %v901 = vpack.c.bf16 %v883, %v883
          %v902 = vpack.c.bf16 %v885, %v885
          %v903 = vpack.c.bf16 %v887, %v887
          %905 = vrot.lane.b32.xlu0 %v655, 64
          %v906 = vpop.permute.xlu0 %905
          %v908 = vsel %vm663, %v900, 0
          %vm910 = vcmask 1043456
          %v912 = vsel %vm910, %v906, 0
          %914 = vmatprep.subr.bf16.mxu0 0
          %915 = vmatpush1.bf16.msra.mxu0 %v912
          %916 = vmatprep.subr.bf16.mxu0 0
          %917 = vmatpush1.bf16.msra.mxu0 0
          %918 = vmatprep.subr.bf16.mxu0 0
          %919 = vmatpush1.bf16.msra.mxu0 0
          %920 = vmatprep.subr.bf16.mxu0 0
          %921 = vmatpush1.bf16.msra.mxu0 0
          %922 = vmatprep.subr.bf16.mxu0 0
          %923 = vmatpush1.bf16.msra.mxu0 0
          %924 = vmatprep.subr.bf16.mxu0 0
          %925 = vmatpush1.bf16.msra.mxu0 0
          %926 = vmatprep.subr.bf16.mxu0 0
          %927 = vmatpush1.bf16.msra.mxu0 0
          %928 = vmatprep.subr.bf16.mxu0 0
          %929 = vmatpush1.bf16.msra.mxu0 0
          %930 = vmatprep.subr.bf16.mxu0 0
          %931 = vmatpush1.bf16.msra.mxu0 0
          %932 = vmatprep.subr.bf16.mxu0 0
          %933 = vmatpush1.bf16.msra.mxu0 0
          %934 = vmatprep.subr.bf16.mxu0 0
          %935 = vmatpush1.bf16.msra.mxu0 0
          %936 = vmatprep.subr.bf16.mxu0 0
          %937 = vmatpush1.bf16.msra.mxu0 0
          %938 = vmatprep.subr.bf16.mxu0 0
          %939 = vmatpush1.bf16.msra.mxu0 0
          %940 = vmatprep.subr.bf16.mxu0 0
          %941 = vmatpush1.bf16.msra.mxu0 0
          %942 = vmatprep.subr.bf16.mxu0 0
          %943 = vmatpush1.bf16.msra.mxu0 0
          %944 = vmatprep.subr.bf16.mxu0 0
          %945 = vmatpush1.bf16.msra.mxu0 0
          %946 = vmatprep.mubr.bf16.mxu0 0
          %947 = vmatmul.mubr.bf16.gmra.mrb[0].mxu0 %v908
          %v948 = vpop.f32.mrb[0].mxu0
          %v949 = vadd.f32 0.0, %v948
          %v950 = vpop.f32.mrb[0].mxu0
          %v951 = vpop.f32.mrb[0].mxu0
          %v952 = vpop.f32.mrb[0].mxu0
          %953 = vdwg.mxu0
          %955 = vrot.lane.b32.xlu0 %v656, 64
          %v956 = vpop.permute.xlu0 %955
          %v958 = vsel %vm663, %v901, 0
          %v961 = vsel %vm910, %v956, 0
          %963 = vmatprep.subr.bf16.mxu0 0
          %964 = vmatpush1.bf16.msra.mxu0 %v961
          %965 = vmatprep.subr.bf16.mxu0 0
          %966 = vmatpush1.bf16.msra.mxu0 0
          %967 = vmatprep.subr.bf16.mxu0 0
          %968 = vmatpush1.bf16.msra.mxu0 0
          %969 = vmatprep.subr.bf16.mxu0 0
          %970 = vmatpush1.bf16.msra.mxu0 0
          %971 = vmatprep.subr.bf16.mxu0 0
          %972 = vmatpush1.bf16.msra.mxu0 0
          %973 = vmatprep.subr.bf16.mxu0 0
          %974 = vmatpush1.bf16.msra.mxu0 0
          %975 = vmatprep.subr.bf16.mxu0 0
          %976 = vmatpush1.bf16.msra.mxu0 0
          %977 = vmatprep.subr.bf16.mxu0 0
          %978 = vmatpush1.bf16.msra.mxu0 0
          %979 = vmatprep.subr.bf16.mxu0 0
          %980 = vmatpush1.bf16.msra.mxu0 0
          %981 = vmatprep.subr.bf16.mxu0 0
          %982 = vmatpush1.bf16.msra.mxu0 0
          %983 = vmatprep.subr.bf16.mxu0 0
          %984 = vmatpush1.bf16.msra.mxu0 0
          %985 = vmatprep.subr.bf16.mxu0 0
          %986 = vmatpush1.bf16.msra.mxu0 0
          %987 = vmatprep.subr.bf16.mxu0 0
          %988 = vmatpush1.bf16.msra.mxu0 0
          %989 = vmatprep.subr.bf16.mxu0 0
          %990 = vmatpush1.bf16.msra.mxu0 0
          %991 = vmatprep.subr.bf16.mxu0 0
          %992 = vmatpush1.bf16.msra.mxu0 0
          %993 = vmatprep.subr.bf16.mxu0 0
          %994 = vmatpush1.bf16.msra.mxu0 0
          %995 = vmatprep.mubr.bf16.mxu0 0
          %996 = vmatmul.mubr.bf16.gmra.mrb[0].mxu0 %v958
          %v997 = vpop.f32.mrb[0].mxu0
          %v998 = vadd.f32 0.0, %v997
          %v999 = vpop.f32.mrb[0].mxu0
          %v1000 = vpop.f32.mrb[0].mxu0
          %v1001 = vpop.f32.mrb[0].mxu0
          %1002 = vdwg.mxu0
          %1004 = vrot.lane.b32.xlu0 %v657, 64
          %v1005 = vpop.permute.xlu0 %1004
          %v1007 = vsel %vm663, %v902, 0
          %v1010 = vsel %vm910, %v1005, 0
          %1012 = vmatprep.subr.bf16.mxu0 0
          %1013 = vmatpush1.bf16.msra.mxu0 %v1010
          %1014 = vmatprep.subr.bf16.mxu0 0
          %1015 = vmatpush1.bf16.msra.mxu0 0
          %1016 = vmatprep.subr.bf16.mxu0 0
          %1017 = vmatpush1.bf16.msra.mxu0 0
          %1018 = vmatprep.subr.bf16.mxu0 0
          %1019 = vmatpush1.bf16.msra.mxu0 0
          %1020 = vmatprep.subr.bf16.mxu0 0
          %1021 = vmatpush1.bf16.msra.mxu0 0
          %1022 = vmatprep.subr.bf16.mxu0 0
          %1023 = vmatpush1.bf16.msra.mxu0 0
          %1024 = vmatprep.subr.bf16.mxu0 0
          %1025 = vmatpush1.bf16.msra.mxu0 0
          %1026 = vmatprep.subr.bf16.mxu0 0
          %1027 = vmatpush1.bf16.msra.mxu0 0
          %1028 = vmatprep.subr.bf16.mxu0 0
          %1029 = vmatpush1.bf16.msra.mxu0 0
          %1030 = vmatprep.subr.bf16.mxu0 0
          %1031 = vmatpush1.bf16.msra.mxu0 0
          %1032 = vmatprep.subr.bf16.mxu0 0
          %1033 = vmatpush1.bf16.msra.mxu0 0
          %1034 = vmatprep.subr.bf16.mxu0 0
          %1035 = vmatpush1.bf16.msra.mxu0 0
          %1036 = vmatprep.subr.bf16.mxu0 0
          %1037 = vmatpush1.bf16.msra.mxu0 0
          %1038 = vmatprep.subr.bf16.mxu0 0
          %1039 = vmatpush1.bf16.msra.mxu0 0
          %1040 = vmatprep.subr.bf16.mxu0 0
          %1041 = vmatpush1.bf16.msra.mxu0 0
          %1042 = vmatprep.subr.bf16.mxu0 0
          %1043 = vmatpush1.bf16.msra.mxu0 0
          %1044 = vmatprep.mubr.bf16.mxu0 0
          %1045 = vmatmul.mubr.bf16.gmra.mrb[0].mxu0 %v1007
          %v1046 = vpop.f32.mrb[0].mxu0
          %v1047 = vadd.f32 0.0, %v1046
          %v1048 = vpop.f32.mrb[0].mxu0
          %v1049 = vpop.f32.mrb[0].mxu0
          %v1050 = vpop.f32.mrb[0].mxu0
          %1051 = vdwg.mxu0
          %1053 = vrot.lane.b32.xlu0 %v658, 64
          %v1054 = vpop.permute.xlu0 %1053
          %v1056 = vsel %vm663, %v903, 0
          %v1059 = vsel %vm910, %v1054, 0
          %1061 = vmatprep.subr.bf16.mxu0 0
          %1062 = vmatpush1.bf16.msra.mxu0 %v1059
          %1063 = vmatprep.subr.bf16.mxu0 0
          %1064 = vmatpush1.bf16.msra.mxu0 0
          %1065 = vmatprep.subr.bf16.mxu0 0
          %1066 = vmatpush1.bf16.msra.mxu0 0
          %1067 = vmatprep.subr.bf16.mxu0 0
          %1068 = vmatpush1.bf16.msra.mxu0 0
          %1069 = vmatprep.subr.bf16.mxu0 0
          %1070 = vmatpush1.bf16.msra.mxu0 0
          %1071 = vmatprep.subr.bf16.mxu0 0
          %1072 = vmatpush1.bf16.msra.mxu0 0
          %1073 = vmatprep.subr.bf16.mxu0 0
          %1074 = vmatpush1.bf16.msra.mxu0 0
          %1075 = vmatprep.subr.bf16.mxu0 0
          %1076 = vmatpush1.bf16.msra.mxu0 0
          %1077 = vmatprep.subr.bf16.mxu0 0
          %1078 = vmatpush1.bf16.msra.mxu0 0
          %1079 = vmatprep.subr.bf16.mxu0 0
          %1080 = vmatpush1.bf16.msra.mxu0 0
          %1081 = vmatprep.subr.bf16.mxu0 0
          %1082 = vmatpush1.bf16.msra.mxu0 0
          %1083 = vmatprep.subr.bf16.mxu0 0
          %1084 = vmatpush1.bf16.msra.mxu0 0
          %1085 = vmatprep.subr.bf16.mxu0 0
          %1086 = vmatpush1.bf16.msra.mxu0 0
          %1087 = vmatprep.subr.bf16.mxu0 0
          %1088 = vmatpush1.bf16.msra.mxu0 0
          %1089 = vmatprep.subr.bf16.mxu0 0
          %1090 = vmatpush1.bf16.msra.mxu0 0
          %1091 = vmatprep.subr.bf16.mxu0 0
          %1092 = vmatpush1.bf16.msra.mxu0 0
          %1093 = vmatprep.mubr.bf16.mxu0 0
          %1094 = vmatmul.mubr.bf16.gmra.mrb[0].mxu0 %v1056
          %v1095 = vpop.f32.mrb[0].mxu0
          %v1096 = vadd.f32 0.0, %v1095
          %v1097 = vpop.f32.mrb[0].mxu0
          %v1098 = vpop.f32.mrb[0].mxu0
          %v1099 = vpop.f32.mrb[0].mxu0
          %1100 = vdwg.mxu0
          %v1101 = vrcp.pop %v890
          %v1102 = vrcp.pop %v893
          %v1103 = vrcp.pop %v896
          %v1104 = vrcp.pop %v899
          %v1105 = vmul.f32 %v949, %v1101
          %v1106 = vmul.f32 %v998, %v1102
          %v1107 = vmul.f32 %v1047, %v1103
          %v1108 = vmul.f32 %v1096, %v1104
          %1110 = vrot.lane.b32.xlu0 %v1106, 8
          %v1111 = vpop.permute.xlu0 %1110
          %1114 = vrot.lane.b32.xlu0 %v1107, 16
          %v1115 = vpop.permute.xlu0 %1114
          %1118 = vrot.lane.b32.xlu0 %v1108, 24
          %v1119 = vpop.permute.xlu0 %1118
          %v1121 = vsel %vm663, %v1105, %v1111
          %vm1122 = vcmask 130048
          %v1123 = vsel %vm1122, %v1121, %v1115
          %vm1124 = vcmask 195584
          %v1125 = vsel %vm1124, %v1123, %v1119
          %v1126 = vpack.c.bf16 %v1125, %v1125
          %v1131 = vunpack.c.l.b16 %v391
          %v1132 = vunpack.c.l.b16 %v392
          %v1133 = vunpack.c.l.b16 %v393
          %v1134 = vunpack.c.l.b16 %v394
          %v1135 = vpack.c.b16 %v1132, %v1131
          %v1136 = vpack.c.b16 %v1134, %v1133
          %v1140 = vrot.slane %v386, 1
          %v1143 = vsel %vm562, %v1126, 0
          %1145 = vmatprep.subr.bf16.mxu0 0
          %1146 = vmatpush1.bf16.msra.mxu0 %v1135
          %1147 = vmatprep.subr.bf16.mxu0 0
          %1148 = vmatpush1.bf16.msra.mxu0 %v1136
          %1149 = vmatprep.subr.bf16.mxu0 0
          %1150 = vmatpush1.bf16.msra.mxu0 0
          %1151 = vmatprep.subr.bf16.mxu0 0
          %1152 = vmatpush1.bf16.msra.mxu0 0
          %1153 = vmatprep.subr.bf16.mxu0 0
          %1154 = vmatpush1.bf16.msra.mxu0 0
          %1155 = vmatprep.subr.bf16.mxu0 0
          %1156 = vmatpush1.bf16.msra.mxu0 0
          %1157 = vmatprep.subr.bf16.mxu0 0
          %1158 = vmatpush1.bf16.msra.mxu0 0
          %1159 = vmatprep.subr.bf16.mxu0 0
          %1160 = vmatpush1.bf16.msra.mxu0 0
          %1161 = vmatprep.subr.bf16.mxu0 0
          %1162 = vmatpush1.bf16.msra.mxu0 0
          %1163 = vmatprep.subr.bf16.mxu0 0
          %1164 = vmatpush1.bf16.msra.mxu0 0
          %1165 = vmatprep.subr.bf16.mxu0 0
          %1166 = vmatpush1.bf16.msra.mxu0 0
          %1167 = vmatprep.subr.bf16.mxu0 0
          %1168 = vmatpush1.bf16.msra.mxu0 0
          %1169 = vmatprep.subr.bf16.mxu0 0
          %1170 = vmatpush1.bf16.msra.mxu0 0
          %1171 = vmatprep.subr.bf16.mxu0 0
          %1172 = vmatpush1.bf16.msra.mxu0 0
          %1173 = vmatprep.subr.bf16.mxu0 0
          %1174 = vmatpush1.bf16.msra.mxu0 0
          %1175 = vmatprep.subr.bf16.mxu0 0
          %1176 = vmatpush1.bf16.msra.mxu0 0
          %1177 = vmatprep.mubr.bf16.mxu0 0
          %1178 = vmatmul.mubr.bf16.gmra.mrb[0].mxu0 %v1143
          %v1179 = vpop.f32.mrb[0].mxu0
          %v1180 = vadd.f32 %v1140, %v1179
          %v1181 = vpop.f32.mrb[0].mxu0
          %v1182 = vpop.f32.mrb[0].mxu0
          %v1183 = vpop.f32.mrb[0].mxu0
          %1184 = vdwg.mxu0
          %v1185 = vadd.f32 %v524, %v1180
          %v1186 = vsel %vm529, %v1185, 0.0
          %1187 = vadd.xlane.f32.xlu0 %v1186
          %v1188 = vpop.xlane.xlu0 %1187
          %v1189 = vmul.f32 %v1188, %v533
          %v1190 = vsub.f32 %v1185, %v1189
          %v1191 = vmul.f32 %v1190, %v1190
          %v1192 = vsel %vm529, %v1191, 0.0
          %1193 = vadd.xlane.f32.xlu0 %v1192
          %v1194 = vpop.xlane.xlu0 %1193
          %v1195 = vmul.f32 %v1194, %v533
          %v1196 = vadd.f32 %v1195, 1e-06
          %v1197 = vrsqrt.pop %v1196
          %v1198 = vmul.f32 %v1190, %v1197
          %v1199 = vrot.slane %v385, 2
          %v1201 = vmul.f32 %v1198, %v1199
          %v1202 = vrot.slane %v385, 3
          %v1204 = vadd.f32 %v1201, %v1202
          %v1205 = vpack.c.bf16 %v1204, %v1204
          %v1210 = vunpack.c.l.b16 %v395
          %v1211 = vunpack.c.l.b16 %v396
          %v1212 = vunpack.c.l.b16 %v397
          %v1213 = vunpack.c.l.b16 %v398
          %v1214 = vpack.c.b16 %v1211, %v1210
          %v1215 = vpack.c.b16 %v1213, %v1212
          %v1218 = vrot.slane %v386, 2
          %v1221 = vsel %vm562, %v1205, 0
          %1223 = vmatprep.subr.bf16.mxu0 0
          %1224 = vmatpush1.bf16.msra.mxu0 %v1214
          %1225 = vmatprep.subr.bf16.mxu0 0
          %1226 = vmatpush1.bf16.msra.mxu0 %v1215
          %1227 = vmatprep.subr.bf16.mxu0 0
          %1228 = vmatpush1.bf16.msra.mxu0 0
          %1229 = vmatprep.subr.bf16.mxu0 0
          %1230 = vmatpush1.bf16.msra.mxu0 0
          %1231 = vmatprep.subr.bf16.mxu0 0
          %1232 = vmatpush1.bf16.msra.mxu0 0
          %1233 = vmatprep.subr.bf16.mxu0 0
          %1234 = vmatpush1.bf16.msra.mxu0 0
          %1235 = vmatprep.subr.bf16.mxu0 0
          %1236 = vmatpush1.bf16.msra.mxu0 0
          %1237 = vmatprep.subr.bf16.mxu0 0
          %1238 = vmatpush1.bf16.msra.mxu0 0
          %1239 = vmatprep.subr.bf16.mxu0 0
          %1240 = vmatpush1.bf16.msra.mxu0 0
          %1241 = vmatprep.subr.bf16.mxu0 0
          %1242 = vmatpush1.bf16.msra.mxu0 0
          %1243 = vmatprep.subr.bf16.mxu0 0
          %1244 = vmatpush1.bf16.msra.mxu0 0
          %1245 = vmatprep.subr.bf16.mxu0 0
          %1246 = vmatpush1.bf16.msra.mxu0 0
          %1247 = vmatprep.subr.bf16.mxu0 0
          %1248 = vmatpush1.bf16.msra.mxu0 0
          %1249 = vmatprep.subr.bf16.mxu0 0
          %1250 = vmatpush1.bf16.msra.mxu0 0
          %1251 = vmatprep.subr.bf16.mxu0 0
          %1252 = vmatpush1.bf16.msra.mxu0 0
          %1253 = vmatprep.subr.bf16.mxu0 0
          %1254 = vmatpush1.bf16.msra.mxu0 0
          %1255 = vmatprep.mubr.bf16.mxu0 0
          %1256 = vmatmul.mubr.bf16.gmra.mrb[0].mxu0 %v1221
          %v1257 = vpop.f32.mrb[0].mxu0
          %v1258 = vadd.f32 %v1218, %v1257
          %v1259 = vpop.f32.mrb[0].mxu0
          %v1260 = vpop.f32.mrb[0].mxu0
          %v1261 = vpop.f32.mrb[0].mxu0
          %1262 = vdwg.mxu0
          %v1263 = vmul.f32 %v1258, 0.35355338
          %1265 = vrot.lane.b32.xlu0 %v1263, 120
          %v1266 = vpop.permute.xlu0 %1265
          %1268 = vrot.lane.b32.xlu0 %v1263, 112
          %v1269 = vpop.permute.xlu0 %1268
          %1271 = vrot.lane.b32.xlu0 %v1263, 104
          %v1272 = vpop.permute.xlu0 %1271
          %v1274 = vpack.c.bf16 %v1263, %v1263
          %v1275 = vpack.c.bf16 %v1266, %v1266
          %v1276 = vpack.c.bf16 %v1269, %v1269
          %v1277 = vpack.c.bf16 %v1272, %v1272
          %v1279 = vsel %vm663, %v1274, 0
          %v1282 = vsel %vm663, %v467, 0
          %1284 = vmatprep.subr.bf16.mxu0 0
          %1285 = vmatpush1.bf16.xpose.msra.mxu0 %v1282
          %1286 = vmatprep.subr.bf16.mxu0 0
          %1287 = vmatpush1.bf16.xpose.msra.mxu0 0
          %1288 = vmatprep.subr.bf16.mxu0 0
          %1289 = vmatpush1.bf16.xpose.msra.mxu0 0
          %1290 = vmatprep.subr.bf16.mxu0 0
          %1291 = vmatpush1.bf16.xpose.msra.mxu0 0
          %1292 = vmatprep.subr.bf16.mxu0 0
          %1293 = vmatpush1.bf16.xpose.msra.mxu0 0
          %1294 = vmatprep.subr.bf16.mxu0 0
          %1295 = vmatpush1.bf16.xpose.msra.mxu0 0
          %1296 = vmatprep.subr.bf16.mxu0 0
          %1297 = vmatpush1.bf16.xpose.msra.mxu0 0
          %1298 = vmatprep.subr.bf16.mxu0 0
          %1299 = vmatpush1.bf16.xpose.msra.mxu0 0
          %1300 = vmatprep.subr.bf16.mxu0 0
          %1301 = vmatpush1.bf16.xpose.msra.mxu0 0
          %1302 = vmatprep.subr.bf16.mxu0 0
          %1303 = vmatpush1.bf16.xpose.msra.mxu0 0
          %1304 = vmatprep.subr.bf16.mxu0 0
          %1305 = vmatpush1.bf16.xpose.msra.mxu0 0
          %1306 = vmatprep.subr.bf16.mxu0 0
          %1307 = vmatpush1.bf16.xpose.msra.mxu0 0
          %1308 = vmatprep.subr.bf16.mxu0 0
          %1309 = vmatpush1.bf16.xpose.msra.mxu0 0
          %1310 = vmatprep.subr.bf16.mxu0 0
          %1311 = vmatpush1.bf16.xpose.msra.mxu0 0
          %1312 = vmatprep.subr.bf16.mxu0 0
          %1313 = vmatpush1.bf16.xpose.msra.mxu0 0
          %1314 = vmatprep.subr.bf16.mxu0 0
          %1315 = vmatpush1.bf16.xpose.msra.mxu0 0
          %1316 = vmatprep.mubr.bf16.mxu0 0
          %1317 = vmatmul.mubr.bf16.gmra.mrb[0].mxu0 %v1279
          %v1318 = vpop.f32.mrb[0].mxu0
          %v1319 = vadd.f32 0.0, %v1318
          %v1320 = vpop.f32.mrb[0].mxu0
          %v1321 = vpop.f32.mrb[0].mxu0
          %v1322 = vpop.f32.mrb[0].mxu0
          %1323 = vdwg.mxu0
          %v1325 = vsel %vm663, %v1275, 0
          %v1328 = vsel %vm663, %v468, 0
          %1330 = vmatprep.subr.bf16.mxu0 0
          %1331 = vmatpush1.bf16.xpose.msra.mxu0 %v1328
          %1332 = vmatprep.subr.bf16.mxu0 0
          %1333 = vmatpush1.bf16.xpose.msra.mxu0 0
          %1334 = vmatprep.subr.bf16.mxu0 0
          %1335 = vmatpush1.bf16.xpose.msra.mxu0 0
          %1336 = vmatprep.subr.bf16.mxu0 0
          %1337 = vmatpush1.bf16.xpose.msra.mxu0 0
          %1338 = vmatprep.subr.bf16.mxu0 0
          %1339 = vmatpush1.bf16.xpose.msra.mxu0 0
          %1340 = vmatprep.subr.bf16.mxu0 0
          %1341 = vmatpush1.bf16.xpose.msra.mxu0 0
          %1342 = vmatprep.subr.bf16.mxu0 0
          %1343 = vmatpush1.bf16.xpose.msra.mxu0 0
          %1344 = vmatprep.subr.bf16.mxu0 0
          %1345 = vmatpush1.bf16.xpose.msra.mxu0 0
          %1346 = vmatprep.subr.bf16.mxu0 0
          %1347 = vmatpush1.bf16.xpose.msra.mxu0 0
          %1348 = vmatprep.subr.bf16.mxu0 0
          %1349 = vmatpush1.bf16.xpose.msra.mxu0 0
          %1350 = vmatprep.subr.bf16.mxu0 0
          %1351 = vmatpush1.bf16.xpose.msra.mxu0 0
          %1352 = vmatprep.subr.bf16.mxu0 0
          %1353 = vmatpush1.bf16.xpose.msra.mxu0 0
          %1354 = vmatprep.subr.bf16.mxu0 0
          %1355 = vmatpush1.bf16.xpose.msra.mxu0 0
          %1356 = vmatprep.subr.bf16.mxu0 0
          %1357 = vmatpush1.bf16.xpose.msra.mxu0 0
          %1358 = vmatprep.subr.bf16.mxu0 0
          %1359 = vmatpush1.bf16.xpose.msra.mxu0 0
          %1360 = vmatprep.subr.bf16.mxu0 0
          %1361 = vmatpush1.bf16.xpose.msra.mxu0 0
          %1362 = vmatprep.mubr.bf16.mxu0 0
          %1363 = vmatmul.mubr.bf16.gmra.mrb[0].mxu0 %v1325
          %v1364 = vpop.f32.mrb[0].mxu0
          %v1365 = vadd.f32 0.0, %v1364
          %v1366 = vpop.f32.mrb[0].mxu0
          %v1367 = vpop.f32.mrb[0].mxu0
          %v1368 = vpop.f32.mrb[0].mxu0
          %1369 = vdwg.mxu0
          %v1371 = vsel %vm663, %v1276, 0
          %v1374 = vsel %vm663, %v469, 0
          %1376 = vmatprep.subr.bf16.mxu0 0
          %1377 = vmatpush1.bf16.xpose.msra.mxu0 %v1374
          %1378 = vmatprep.subr.bf16.mxu0 0
          %1379 = vmatpush1.bf16.xpose.msra.mxu0 0
          %1380 = vmatprep.subr.bf16.mxu0 0
          %1381 = vmatpush1.bf16.xpose.msra.mxu0 0
          %1382 = vmatprep.subr.bf16.mxu0 0
          %1383 = vmatpush1.bf16.xpose.msra.mxu0 0
          %1384 = vmatprep.subr.bf16.mxu0 0
          %1385 = vmatpush1.bf16.xpose.msra.mxu0 0
          %1386 = vmatprep.subr.bf16.mxu0 0
          %1387 = vmatpush1.bf16.xpose.msra.mxu0 0
          %1388 = vmatprep.subr.bf16.mxu0 0
          %1389 = vmatpush1.bf16.xpose.msra.mxu0 0
          %1390 = vmatprep.subr.bf16.mxu0 0
          %1391 = vmatpush1.bf16.xpose.msra.mxu0 0
          %1392 = vmatprep.subr.bf16.mxu0 0
          %1393 = vmatpush1.bf16.xpose.msra.mxu0 0
          %1394 = vmatprep.subr.bf16.mxu0 0
          %1395 = vmatpush1.bf16.xpose.msra.mxu0 0
          %1396 = vmatprep.subr.bf16.mxu0 0
          %1397 = vmatpush1.bf16.xpose.msra.mxu0 0
          %1398 = vmatprep.subr.bf16.mxu0 0
          %1399 = vmatpush1.bf16.xpose.msra.mxu0 0
          %1400 = vmatprep.subr.bf16.mxu0 0
          %1401 = vmatpush1.bf16.xpose.msra.mxu0 0
          %1402 = vmatprep.subr.bf16.mxu0 0
          %1403 = vmatpush1.bf16.xpose.msra.mxu0 0
          %1404 = vmatprep.subr.bf16.mxu0 0
          %1405 = vmatpush1.bf16.xpose.msra.mxu0 0
          %1406 = vmatprep.subr.bf16.mxu0 0
          %1407 = vmatpush1.bf16.xpose.msra.mxu0 0
          %1408 = vmatprep.mubr.bf16.mxu0 0
          %1409 = vmatmul.mubr.bf16.gmra.mrb[0].mxu0 %v1371
          %v1410 = vpop.f32.mrb[0].mxu0
          %v1411 = vadd.f32 0.0, %v1410
          %v1412 = vpop.f32.mrb[0].mxu0
          %v1413 = vpop.f32.mrb[0].mxu0
          %v1414 = vpop.f32.mrb[0].mxu0
          %1415 = vdwg.mxu0
          %v1417 = vsel %vm663, %v1277, 0
          %v1420 = vsel %vm663, %v470, 0
          %1422 = vmatprep.subr.bf16.mxu0 0
          %1423 = vmatpush1.bf16.xpose.msra.mxu0 %v1420
          %1424 = vmatprep.subr.bf16.mxu0 0
          %1425 = vmatpush1.bf16.xpose.msra.mxu0 0
          %1426 = vmatprep.subr.bf16.mxu0 0
          %1427 = vmatpush1.bf16.xpose.msra.mxu0 0
          %1428 = vmatprep.subr.bf16.mxu0 0
          %1429 = vmatpush1.bf16.xpose.msra.mxu0 0
          %1430 = vmatprep.subr.bf16.mxu0 0
          %1431 = vmatpush1.bf16.xpose.msra.mxu0 0
          %1432 = vmatprep.subr.bf16.mxu0 0
          %1433 = vmatpush1.bf16.xpose.msra.mxu0 0
          %1434 = vmatprep.subr.bf16.mxu0 0
          %1435 = vmatpush1.bf16.xpose.msra.mxu0 0
          %1436 = vmatprep.subr.bf16.mxu0 0
          %1437 = vmatpush1.bf16.xpose.msra.mxu0 0
          %1438 = vmatprep.subr.bf16.mxu0 0
          %1439 = vmatpush1.bf16.xpose.msra.mxu0 0
          %1440 = vmatprep.subr.bf16.mxu0 0
          %1441 = vmatpush1.bf16.xpose.msra.mxu0 0
          %1442 = vmatprep.subr.bf16.mxu0 0
          %1443 = vmatpush1.bf16.xpose.msra.mxu0 0
          %1444 = vmatprep.subr.bf16.mxu0 0
          %1445 = vmatpush1.bf16.xpose.msra.mxu0 0
          %1446 = vmatprep.subr.bf16.mxu0 0
          %1447 = vmatpush1.bf16.xpose.msra.mxu0 0
          %1448 = vmatprep.subr.bf16.mxu0 0
          %1449 = vmatpush1.bf16.xpose.msra.mxu0 0
          %1450 = vmatprep.subr.bf16.mxu0 0
          %1451 = vmatpush1.bf16.xpose.msra.mxu0 0
          %1452 = vmatprep.subr.bf16.mxu0 0
          %1453 = vmatpush1.bf16.xpose.msra.mxu0 0
          %1454 = vmatprep.mubr.bf16.mxu0 0
          %1455 = vmatmul.mubr.bf16.gmra.mrb[0].mxu0 %v1417
          %v1456 = vpop.f32.mrb[0].mxu0
          %v1457 = vadd.f32 0.0, %v1456
          %v1458 = vpop.f32.mrb[0].mxu0
          %v1459 = vpop.f32.mrb[0].mxu0
          %v1460 = vpop.f32.mrb[0].mxu0
          %1461 = vdwg.mxu0
          %vm1462 = vcmask 122880
          %v1463 = vsel %vm1462, %v1319, -inf
          %1464 = vmax.xlane.f32.xlu0 %v1463
          %v1465 = vpop.xlane.xlu0 %1464
          %v1466 = vsel %vm1462, %v1365, -inf
          %1467 = vmax.xlane.f32.xlu0 %v1466
          %v1468 = vpop.xlane.xlu0 %1467
          %v1469 = vsel %vm1462, %v1411, -inf
          %1470 = vmax.xlane.f32.xlu0 %v1469
          %v1471 = vpop.xlane.xlu0 %1470
          %v1472 = vsel %vm1462, %v1457, -inf
          %1473 = vmax.xlane.f32.xlu0 %v1472
          %v1474 = vpop.xlane.xlu0 %1473
          %v1475 = vsub.f32 %v1319, %v1465
          %v1476 = vsub.f32 %v1365, %v1468
          %v1477 = vsub.f32 %v1411, %v1471
          %v1478 = vsub.f32 %v1457, %v1474
          %v1479 = vmul.f32 %v1475, 1.442695
          %v1480 = vpow.pop %v1479
          %v1481 = vmul.f32 %v1476, 1.442695
          %v1482 = vpow.pop %v1481
          %v1483 = vmul.f32 %v1477, 1.442695
          %v1484 = vpow.pop %v1483
          %v1485 = vmul.f32 %v1478, 1.442695
          %v1486 = vpow.pop %v1485
          %v1487 = vsel %vm1462, %v1480, 0.0
          %1488 = vadd.xlane.f32.xlu0 %v1487
          %v1489 = vpop.xlane.xlu0 %1488
          %v1490 = vsel %vm1462, %v1482, 0.0
          %1491 = vadd.xlane.f32.xlu0 %v1490
          %v1492 = vpop.xlane.xlu0 %1491
          %v1493 = vsel %vm1462, %v1484, 0.0
          %1494 = vadd.xlane.f32.xlu0 %v1493
          %v1495 = vpop.xlane.xlu0 %1494
          %v1496 = vsel %vm1462, %v1486, 0.0
          %1497 = vadd.xlane.f32.xlu0 %v1496
          %v1498 = vpop.xlane.xlu0 %1497
          %v1499 = vpack.c.bf16 %v1480, %v1480
          %v1500 = vpack.c.bf16 %v1482, %v1482
          %v1501 = vpack.c.bf16 %v1484, %v1484
          %v1502 = vpack.c.bf16 %v1486, %v1486
          %1504 = vrot.lane.b32.xlu0 %v467, 96
          %v1505 = vpop.permute.xlu0 %1504
          %v1508 = vsel %vm1122, %v1499, 0
          %1510 = vmatprep.subr.bf16.mxu0 0
          %1511 = vmatpush1.bf16.msra.mxu0 %v1505
          %1512 = vmatprep.subr.bf16.mxu0 0
          %1513 = vmatpush1.bf16.msra.mxu0 0
          %1514 = vmatprep.subr.bf16.mxu0 0
          %1515 = vmatpush1.bf16.msra.mxu0 0
          %1516 = vmatprep.subr.bf16.mxu0 0
          %1517 = vmatpush1.bf16.msra.mxu0 0
          %1518 = vmatprep.subr.bf16.mxu0 0
          %1519 = vmatpush1.bf16.msra.mxu0 0
          %1520 = vmatprep.subr.bf16.mxu0 0
          %1521 = vmatpush1.bf16.msra.mxu0 0
          %1522 = vmatprep.subr.bf16.mxu0 0
          %1523 = vmatpush1.bf16.msra.mxu0 0
          %1524 = vmatprep.subr.bf16.mxu0 0
          %1525 = vmatpush1.bf16.msra.mxu0 0
          %1526 = vmatprep.subr.bf16.mxu0 0
          %1527 = vmatpush1.bf16.msra.mxu0 0
          %1528 = vmatprep.subr.bf16.mxu0 0
          %1529 = vmatpush1.bf16.msra.mxu0 0
          %1530 = vmatprep.subr.bf16.mxu0 0
          %1531 = vmatpush1.bf16.msra.mxu0 0
          %1532 = vmatprep.subr.bf16.mxu0 0
          %1533 = vmatpush1.bf16.msra.mxu0 0
          %1534 = vmatprep.subr.bf16.mxu0 0
          %1535 = vmatpush1.bf16.msra.mxu0 0
          %1536 = vmatprep.subr.bf16.mxu0 0
          %1537 = vmatpush1.bf16.msra.mxu0 0
          %1538 = vmatprep.subr.bf16.mxu0 0
          %1539 = vmatpush1.bf16.msra.mxu0 0
          %1540 = vmatprep.subr.bf16.mxu0 0
          %1541 = vmatpush1.bf16.msra.mxu0 0
          %1542 = vmatprep.mubr.bf16.mxu0 0
          %1543 = vmatmul.mubr.bf16.gmra.mrb[0].mxu0 %v1508
          %v1544 = vpop.f32.mrb[0].mxu0
          %v1545 = vadd.f32 0.0, %v1544
          %v1546 = vpop.f32.mrb[0].mxu0
          %v1547 = vpop.f32.mrb[0].mxu0
          %v1548 = vpop.f32.mrb[0].mxu0
          %1549 = vdwg.mxu0
          %1551 = vrot.lane.b32.xlu0 %v468, 96
          %v1552 = vpop.permute.xlu0 %1551
          %v1555 = vsel %vm1122, %v1500, 0
          %1557 = vmatprep.subr.bf16.mxu0 0
          %1558 = vmatpush1.bf16.msra.mxu0 %v1552
          %1559 = vmatprep.subr.bf16.mxu0 0
          %1560 = vmatpush1.bf16.msra.mxu0 0
          %1561 = vmatprep.subr.bf16.mxu0 0
          %1562 = vmatpush1.bf16.msra.mxu0 0
          %1563 = vmatprep.subr.bf16.mxu0 0
          %1564 = vmatpush1.bf16.msra.mxu0 0
          %1565 = vmatprep.subr.bf16.mxu0 0
          %1566 = vmatpush1.bf16.msra.mxu0 0
          %1567 = vmatprep.subr.bf16.mxu0 0
          %1568 = vmatpush1.bf16.msra.mxu0 0
          %1569 = vmatprep.subr.bf16.mxu0 0
          %1570 = vmatpush1.bf16.msra.mxu0 0
          %1571 = vmatprep.subr.bf16.mxu0 0
          %1572 = vmatpush1.bf16.msra.mxu0 0
          %1573 = vmatprep.subr.bf16.mxu0 0
          %1574 = vmatpush1.bf16.msra.mxu0 0
          %1575 = vmatprep.subr.bf16.mxu0 0
          %1576 = vmatpush1.bf16.msra.mxu0 0
          %1577 = vmatprep.subr.bf16.mxu0 0
          %1578 = vmatpush1.bf16.msra.mxu0 0
          %1579 = vmatprep.subr.bf16.mxu0 0
          %1580 = vmatpush1.bf16.msra.mxu0 0
          %1581 = vmatprep.subr.bf16.mxu0 0
          %1582 = vmatpush1.bf16.msra.mxu0 0
          %1583 = vmatprep.subr.bf16.mxu0 0
          %1584 = vmatpush1.bf16.msra.mxu0 0
          %1585 = vmatprep.subr.bf16.mxu0 0
          %1586 = vmatpush1.bf16.msra.mxu0 0
          %1587 = vmatprep.subr.bf16.mxu0 0
          %1588 = vmatpush1.bf16.msra.mxu0 0
          %1589 = vmatprep.mubr.bf16.mxu0 0
          %1590 = vmatmul.mubr.bf16.gmra.mrb[0].mxu0 %v1555
          %v1591 = vpop.f32.mrb[0].mxu0
          %v1592 = vadd.f32 0.0, %v1591
          %v1593 = vpop.f32.mrb[0].mxu0
          %v1594 = vpop.f32.mrb[0].mxu0
          %v1595 = vpop.f32.mrb[0].mxu0
          %1596 = vdwg.mxu0
          %1598 = vrot.lane.b32.xlu0 %v469, 96
          %v1599 = vpop.permute.xlu0 %1598
          %v1602 = vsel %vm1122, %v1501, 0
          %1604 = vmatprep.subr.bf16.mxu0 0
          %1605 = vmatpush1.bf16.msra.mxu0 %v1599
          %1606 = vmatprep.subr.bf16.mxu0 0
          %1607 = vmatpush1.bf16.msra.mxu0 0
          %1608 = vmatprep.subr.bf16.mxu0 0
          %1609 = vmatpush1.bf16.msra.mxu0 0
          %1610 = vmatprep.subr.bf16.mxu0 0
          %1611 = vmatpush1.bf16.msra.mxu0 0
          %1612 = vmatprep.subr.bf16.mxu0 0
          %1613 = vmatpush1.bf16.msra.mxu0 0
          %1614 = vmatprep.subr.bf16.mxu0 0
          %1615 = vmatpush1.bf16.msra.mxu0 0
          %1616 = vmatprep.subr.bf16.mxu0 0
          %1617 = vmatpush1.bf16.msra.mxu0 0
          %1618 = vmatprep.subr.bf16.mxu0 0
          %1619 = vmatpush1.bf16.msra.mxu0 0
          %1620 = vmatprep.subr.bf16.mxu0 0
          %1621 = vmatpush1.bf16.msra.mxu0 0
          %1622 = vmatprep.subr.bf16.mxu0 0
          %1623 = vmatpush1.bf16.msra.mxu0 0
          %1624 = vmatprep.subr.bf16.mxu0 0
          %1625 = vmatpush1.bf16.msra.mxu0 0
          %1626 = vmatprep.subr.bf16.mxu0 0
          %1627 = vmatpush1.bf16.msra.mxu0 0
          %1628 = vmatprep.subr.bf16.mxu0 0
          %1629 = vmatpush1.bf16.msra.mxu0 0
          %1630 = vmatprep.subr.bf16.mxu0 0
          %1631 = vmatpush1.bf16.msra.mxu0 0
          %1632 = vmatprep.subr.bf16.mxu0 0
          %1633 = vmatpush1.bf16.msra.mxu0 0
          %1634 = vmatprep.subr.bf16.mxu0 0
          %1635 = vmatpush1.bf16.msra.mxu0 0
          %1636 = vmatprep.mubr.bf16.mxu0 0
          %1637 = vmatmul.mubr.bf16.gmra.mrb[0].mxu0 %v1602
          %v1638 = vpop.f32.mrb[0].mxu0
          %v1639 = vadd.f32 0.0, %v1638
          %v1640 = vpop.f32.mrb[0].mxu0
          %v1641 = vpop.f32.mrb[0].mxu0
          %v1642 = vpop.f32.mrb[0].mxu0
          %1643 = vdwg.mxu0
          %1645 = vrot.lane.b32.xlu0 %v470, 96
          %v1646 = vpop.permute.xlu0 %1645
          %v1649 = vsel %vm1122, %v1502, 0
          %1651 = vmatprep.subr.bf16.mxu0 0
          %1652 = vmatpush1.bf16.msra.mxu0 %v1646
          %1653 = vmatprep.subr.bf16.mxu0 0
          %1654 = vmatpush1.bf16.msra.mxu0 0
          %1655 = vmatprep.subr.bf16.mxu0 0
          %1656 = vmatpush1.bf16.msra.mxu0 0
          %1657 = vmatprep.subr.bf16.mxu0 0
          %1658 = vmatpush1.bf16.msra.mxu0 0
          %1659 = vmatprep.subr.bf16.mxu0 0
          %1660 = vmatpush1.bf16.msra.mxu0 0
          %1661 = vmatprep.subr.bf16.mxu0 0
          %1662 = vmatpush1.bf16.msra.mxu0 0
          %1663 = vmatprep.subr.bf16.mxu0 0
          %1664 = vmatpush1.bf16.msra.mxu0 0
          %1665 = vmatprep.subr.bf16.mxu0 0
          %1666 = vmatpush1.bf16.msra.mxu0 0
          %1667 = vmatprep.subr.bf16.mxu0 0
          %1668 = vmatpush1.bf16.msra.mxu0 0
          %1669 = vmatprep.subr.bf16.mxu0 0
          %1670 = vmatpush1.bf16.msra.mxu0 0
          %1671 = vmatprep.subr.bf16.mxu0 0
          %1672 = vmatpush1.bf16.msra.mxu0 0
          %1673 = vmatprep.subr.bf16.mxu0 0
          %1674 = vmatpush1.bf16.msra.mxu0 0
          %1675 = vmatprep.subr.bf16.mxu0 0
          %1676 = vmatpush1.bf16.msra.mxu0 0
          %1677 = vmatprep.subr.bf16.mxu0 0
          %1678 = vmatpush1.bf16.msra.mxu0 0
          %1679 = vmatprep.subr.bf16.mxu0 0
          %1680 = vmatpush1.bf16.msra.mxu0 0
          %1681 = vmatprep.subr.bf16.mxu0 0
          %1682 = vmatpush1.bf16.msra.mxu0 0
          %1683 = vmatprep.mubr.bf16.mxu0 0
          %1684 = vmatmul.mubr.bf16.gmra.mrb[0].mxu0 %v1649
          %v1685 = vpop.f32.mrb[0].mxu0
          %v1686 = vadd.f32 0.0, %v1685
          %v1687 = vpop.f32.mrb[0].mxu0
          %v1688 = vpop.f32.mrb[0].mxu0
          %v1689 = vpop.f32.mrb[0].mxu0
          %1690 = vdwg.mxu0
          %v1691 = vrcp.pop %v1489
          %v1692 = vrcp.pop %v1492
          %v1693 = vrcp.pop %v1495
          %v1694 = vrcp.pop %v1498
          %v1695 = vmul.f32 %v1545, %v1691
          %v1696 = vmul.f32 %v1592, %v1692
          %v1697 = vmul.f32 %v1639, %v1693
          %v1698 = vmul.f32 %v1686, %v1694
          %1700 = vrot.lane.b32.xlu0 %v1696, 8
          %v1701 = vpop.permute.xlu0 %1700
          %1704 = vrot.lane.b32.xlu0 %v1697, 16
          %v1705 = vpop.permute.xlu0 %1704
          %1708 = vrot.lane.b32.xlu0 %v1698, 24
          %v1709 = vpop.permute.xlu0 %1708
          %v1711 = vsel %vm663, %v1695, %v1701
          %v1712 = vsel %vm1122, %v1711, %v1705
          %v1713 = vsel %vm1124, %v1712, %v1709
          %v1714 = vpack.c.bf16 %v1713, %v1713
          %v1719 = vunpack.c.l.b16 %v399
          %v1720 = vunpack.c.l.b16 %v400
          %v1721 = vunpack.c.l.b16 %v401
          %v1722 = vunpack.c.l.b16 %v402
          %v1723 = vpack.c.b16 %v1720, %v1719
          %v1724 = vpack.c.b16 %v1722, %v1721
          %v1727 = vrot.slane %v386, 3
          %v1730 = vsel %vm562, %v1714, 0
          %1732 = vmatprep.subr.bf16.mxu0 0
          %1733 = vmatpush1.bf16.msra.mxu0 %v1723
          %1734 = vmatprep.subr.bf16.mxu0 0
          %1735 = vmatpush1.bf16.msra.mxu0 %v1724
          %1736 = vmatprep.subr.bf16.mxu0 0
          %1737 = vmatpush1.bf16.msra.mxu0 0
          %1738 = vmatprep.subr.bf16.mxu0 0
          %1739 = vmatpush1.bf16.msra.mxu0 0
          %1740 = vmatprep.subr.bf16.mxu0 0
          %1741 = vmatpush1.bf16.msra.mxu0 0
          %1742 = vmatprep.subr.bf16.mxu0 0
          %1743 = vmatpush1.bf16.msra.mxu0 0
          %1744 = vmatprep.subr.bf16.mxu0 0
          %1745 = vmatpush1.bf16.msra.mxu0 0
          %1746 = vmatprep.subr.bf16.mxu0 0
          %1747 = vmatpush1.bf16.msra.mxu0 0
          %1748 = vmatprep.subr.bf16.mxu0 0
          %1749 = vmatpush1.bf16.msra.mxu0 0
          %1750 = vmatprep.subr.bf16.mxu0 0
          %1751 = vmatpush1.bf16.msra.mxu0 0
          %1752 = vmatprep.subr.bf16.mxu0 0
          %1753 = vmatpush1.bf16.msra.mxu0 0
          %1754 = vmatprep.subr.bf16.mxu0 0
          %1755 = vmatpush1.bf16.msra.mxu0 0
          %1756 = vmatprep.subr.bf16.mxu0 0
          %1757 = vmatpush1.bf16.msra.mxu0 0
          %1758 = vmatprep.subr.bf16.mxu0 0
          %1759 = vmatpush1.bf16.msra.mxu0 0
          %1760 = vmatprep.subr.bf16.mxu0 0
          %1761 = vmatpush1.bf16.msra.mxu0 0
          %1762 = vmatprep.subr.bf16.mxu0 0
          %1763 = vmatpush1.bf16.msra.mxu0 0
          %1764 = vmatprep.mubr.bf16.mxu0 0
          %1765 = vmatmul.mubr.bf16.gmra.mrb[0].mxu0 %v1730
          %v1766 = vpop.f32.mrb[0].mxu0
          %v1767 = vadd.f32 %v1727, %v1766
          %v1768 = vpop.f32.mrb[0].mxu0
          %v1769 = vpop.f32.mrb[0].mxu0
          %v1770 = vpop.f32.mrb[0].mxu0
          %1771 = vdwg.mxu0
          %v1772 = vadd.f32 %v1185, %v1767
          %v1773 = vsel %vm529, %v1772, 0.0
          %1774 = vadd.xlane.f32.xlu0 %v1773
          %v1775 = vpop.xlane.xlu0 %1774
          %v1776 = vmul.f32 %v1775, %v533
          %v1777 = vsub.f32 %v1772, %v1776
          %v1778 = vmul.f32 %v1777, %v1777
          %v1779 = vsel %vm529, %v1778, 0.0
          %1780 = vadd.xlane.f32.xlu0 %v1779
          %v1781 = vpop.xlane.xlu0 %1780
          %v1782 = vmul.f32 %v1781, %v533
          %v1783 = vadd.f32 %v1782, 1e-06
          %v1784 = vrsqrt.pop %v1783
          %v1785 = vmul.f32 %v1777, %v1784
          %v1786 = vrot.slane %v385, 4
          %v1788 = vmul.f32 %v1785, %v1786
          %v1789 = vrot.slane %v385, 5
          %v1791 = vadd.f32 %v1788, %v1789
          %v1792 = vpack.c.bf16 %v1791, %v1791
          %v1797 = vunpack.c.l.b16 %v403
          %v1798 = vunpack.c.l.b16 %v404
          %v1799 = vunpack.c.l.b16 %v405
          %v1800 = vunpack.c.l.b16 %v406
          %v1801 = vpack.c.b16 %v1798, %v1797
          %v1802 = vpack.c.b16 %v1800, %v1799
          %v1805 = vrot.slane %v386, 4
          %v1808 = vsel %vm562, %v1792, 0
          %1810 = vmatprep.subr.bf16.mxu0 0
          %1811 = vmatpush1.bf16.msra.mxu0 %v1801
          %1812 = vmatprep.subr.bf16.mxu0 0
          %1813 = vmatpush1.bf16.msra.mxu0 %v1802
          %1814 = vmatprep.subr.bf16.mxu0 0
          %1815 = vmatpush1.bf16.msra.mxu0 0
          %1816 = vmatprep.subr.bf16.mxu0 0
          %1817 = vmatpush1.bf16.msra.mxu0 0
          %1818 = vmatprep.subr.bf16.mxu0 0
          %1819 = vmatpush1.bf16.msra.mxu0 0
          %1820 = vmatprep.subr.bf16.mxu0 0
          %1821 = vmatpush1.bf16.msra.mxu0 0
          %1822 = vmatprep.subr.bf16.mxu0 0
          %1823 = vmatpush1.bf16.msra.mxu0 0
          %1824 = vmatprep.subr.bf16.mxu0 0
          %1825 = vmatpush1.bf16.msra.mxu0 0
          %1826 = vmatprep.subr.bf16.mxu0 0
          %1827 = vmatpush1.bf16.msra.mxu0 0
          %1828 = vmatprep.subr.bf16.mxu0 0
          %1829 = vmatpush1.bf16.msra.mxu0 0
          %1830 = vmatprep.subr.bf16.mxu0 0
          %1831 = vmatpush1.bf16.msra.mxu0 0
          %1832 = vmatprep.subr.bf16.mxu0 0
          %1833 = vmatpush1.bf16.msra.mxu0 0
          %1834 = vmatprep.subr.bf16.mxu0 0
          %1835 = vmatpush1.bf16.msra.mxu0 0
          %1836 = vmatprep.subr.bf16.mxu0 0
          %1837 = vmatpush1.bf16.msra.mxu0 0
          %1838 = vmatprep.subr.bf16.mxu0 0
          %1839 = vmatpush1.bf16.msra.mxu0 0
          %1840 = vmatprep.subr.bf16.mxu0 0
          %1841 = vmatpush1.bf16.msra.mxu0 0
          %1842 = vmatprep.mubr.bf16.mxu0 0
          %1843 = vmatmul.mubr.bf16.gmra.mrb[0].mxu0 %v1808
          %v1844 = vpop.f32.mrb[0].mxu0
          %v1845 = vadd.f32 %v1805, %v1844
          %v1846 = vpop.f32.mrb[0].mxu0
          %v1847 = vpop.f32.mrb[0].mxu0
          %v1848 = vpop.f32.mrb[0].mxu0
          %1849 = vdwg.mxu0
          %v1850 = vmul.f32 %v1845, %v1845
          %v1851 = vmul.f32 %v1845, %v1850
          %v1852 = vmul.f32 %v1851, 0.044715
          %v1853 = vadd.f32 %v1845, %v1852
          %v1854 = vmul.f32 %v1853, 0.7978846
          %v1855 = vtanh.pop %v1854
          %v1856 = vadd.f32 %v1855, 1.0
          %v1857 = vmul.f32 %v1856, 0.5
          %v1858 = vmul.f32 %v1845, %v1857
          %v1859 = vpack.c.bf16 %v1858, %v1858
          %v1868 = vunpack.c.l.b16 %v407
          %v1869 = vunpack.c.l.b16 %v408
          %v1870 = vunpack.c.l.b16 %v409
          %v1871 = vunpack.c.l.b16 %v410
          %v1872 = vunpack.c.l.b16 %v411
          %v1873 = vunpack.c.l.b16 %v412
          %v1874 = vunpack.c.l.b16 %v413
          %v1875 = vunpack.c.l.b16 %v414
          %v1876 = vpack.c.b16 %v1869, %v1868
          %v1877 = vpack.c.b16 %v1871, %v1870
          %v1878 = vpack.c.b16 %v1873, %v1872
          %v1879 = vpack.c.b16 %v1875, %v1874
          %v1884 = vrot.slane %v386, 5
          %vm1886 = vcmask 523264
          %v1888 = vsel %vm1886, %v1859, 0
          %1890 = vmatprep.subr.bf16.mxu0 0
          %1891 = vmatpush1.bf16.msra.mxu0 %v1876
          %1892 = vmatprep.subr.bf16.mxu0 0
          %1893 = vmatpush1.bf16.msra.mxu0 %v1877
          %1894 = vmatprep.subr.bf16.mxu0 0
          %1895 = vmatpush1.bf16.msra.mxu0 %v1878
          %1896 = vmatprep.subr.bf16.mxu0 0
          %1897 = vmatpush1.bf16.msra.mxu0 %v1879
          %1898 = vmatprep.subr.bf16.mxu0 0
          %1899 = vmatpush1.bf16.msra.mxu0 0
          %1900 = vmatprep.subr.bf16.mxu0 0
          %1901 = vmatpush1.bf16.msra.mxu0 0
          %1902 = vmatprep.subr.bf16.mxu0 0
          %1903 = vmatpush1.bf16.msra.mxu0 0
          %1904 = vmatprep.subr.bf16.mxu0 0
          %1905 = vmatpush1.bf16.msra.mxu0 0
          %1906 = vmatprep.subr.bf16.mxu0 0
          %1907 = vmatpush1.bf16.msra.mxu0 0
          %1908 = vmatprep.subr.bf16.mxu0 0
          %1909 = vmatpush1.bf16.msra.mxu0 0
          %1910 = vmatprep.subr.bf16.mxu0 0
          %1911 = vmatpush1.bf16.msra.mxu0 0
          %1912 = vmatprep.subr.bf16.mxu0 0
          %1913 = vmatpush1.bf16.msra.mxu0 0
          %1914 = vmatprep.subr.bf16.mxu0 0
          %1915 = vmatpush1.bf16.msra.mxu0 0
          %1916 = vmatprep.subr.bf16.mxu0 0
          %1917 = vmatpush1.bf16.msra.mxu0 0
          %1918 = vmatprep.subr.bf16.mxu0 0
          %1919 = vmatpush1.bf16.msra.mxu0 0
          %1920 = vmatprep.subr.bf16.mxu0 0
          %1921 = vmatpush1.bf16.msra.mxu0 0
          %1922 = vmatprep.mubr.bf16.mxu0 0
          %1923 = vmatmul.mubr.bf16.gmra.mrb[0].mxu0 %v1888
          %v1924 = vpop.f32.mrb[0].mxu0
          %v1925 = vadd.f32 %v1884, %v1924
          %v1926 = vpop.f32.mrb[0].mxu0
          %v1927 = vpop.f32.mrb[0].mxu0
          %v1928 = vpop.f32.mrb[0].mxu0
          %1929 = vdwg.mxu0
          %v1930 = vadd.f32 %v1772, %v1925
          %v1931 = vsel %vm529, %v1930, 0.0
          %1932 = vadd.xlane.f32.xlu0 %v1931
          %v1933 = vpop.xlane.xlu0 %1932
          %v1934 = vmul.f32 %v1933, %v533
          %v1935 = vsub.f32 %v1930, %v1934
          %v1936 = vmul.f32 %v1935, %v1935
          %v1937 = vsel %vm529, %v1936, 0.0
          %1938 = vadd.xlane.f32.xlu0 %v1937
          %v1939 = vpop.xlane.xlu0 %1938
          %v1940 = vmul.f32 %v1939, %v533
          %v1941 = vadd.f32 %v1940, 1e-06
          %v1942 = vrsqrt.pop %v1941
          %v1943 = vmul.f32 %v1935, %v1942
          %v1944 = vrot.slane %v385, 6
          %v1946 = vmul.f32 %v1943, %v1944
          %v1947 = vrot.slane %v385, 7
          %v1949 = vadd.f32 %v1946, %v1947
          %v1950 = vpack.c.bf16 %v1949, %v1949
          %v1955 = vunpack.c.l.b16 %v415
          %v1956 = vunpack.c.l.b16 %v416
          %v1957 = vunpack.c.l.b16 %v417
          %v1958 = vunpack.c.l.b16 %v418
          %v1959 = vpack.c.b16 %v1956, %v1955
          %v1960 = vpack.c.b16 %v1958, %v1957
          %v1963 = vrot.slane %v386, 6
          %v1966 = vsel %vm562, %v1950, 0
          %1968 = vmatprep.subr.bf16.mxu0 0
          %1969 = vmatpush1.bf16.msra.mxu0 %v1959
          %1970 = vmatprep.subr.bf16.mxu0 0
          %1971 = vmatpush1.bf16.msra.mxu0 %v1960
          %1972 = vmatprep.subr.bf16.mxu0 0
          %1973 = vmatpush1.bf16.msra.mxu0 0
          %1974 = vmatprep.subr.bf16.mxu0 0
          %1975 = vmatpush1.bf16.msra.mxu0 0
          %1976 = vmatprep.subr.bf16.mxu0 0
          %1977 = vmatpush1.bf16.msra.mxu0 0
          %1978 = vmatprep.subr.bf16.mxu0 0
          %1979 = vmatpush1.bf16.msra.mxu0 0
          %1980 = vmatprep.subr.bf16.mxu0 0
          %1981 = vmatpush1.bf16.msra.mxu0 0
          %1982 = vmatprep.subr.bf16.mxu0 0
          %1983 = vmatpush1.bf16.msra.mxu0 0
          %1984 = vmatprep.subr.bf16.mxu0 0
          %1985 = vmatpush1.bf16.msra.mxu0 0
          %1986 = vmatprep.subr.bf16.mxu0 0
          %1987 = vmatpush1.bf16.msra.mxu0 0
          %1988 = vmatprep.subr.bf16.mxu0 0
          %1989 = vmatpush1.bf16.msra.mxu0 0
          %1990 = vmatprep.subr.bf16.mxu0 0
          %1991 = vmatpush1.bf16.msra.mxu0 0
          %1992 = vmatprep.subr.bf16.mxu0 0
          %1993 = vmatpush1.bf16.msra.mxu0 0
          %1994 = vmatprep.subr.bf16.mxu0 0
          %1995 = vmatpush1.bf16.msra.mxu0 0
          %1996 = vmatprep.subr.bf16.mxu0 0
          %1997 = vmatpush1.bf16.msra.mxu0 0
          %1998 = vmatprep.subr.bf16.mxu0 0
          %1999 = vmatpush1.bf16.msra.mxu0 0
          %2000 = vmatprep.mubr.bf16.mxu0 0
          %2001 = vmatmul.mubr.bf16.gmra.mrb[0].mxu0 %v1966
          %v2002 = vpop.f32.mrb[0].mxu0
          %v2003 = vadd.f32 %v1963, %v2002
          %v2004 = vpop.f32.mrb[0].mxu0
          %v2005 = vpop.f32.mrb[0].mxu0
          %v2006 = vpop.f32.mrb[0].mxu0
          %2007 = vdwg.mxu0
          %vm2008 = vcmask 1040384
          %v2009 = vsel %vm2008, %v2003, -inf
          %2010 = vmax.xlane.f32.xlu0 %v2009
          %v2011 = vpop.xlane.xlu0 %2010
          %vm2012 = vcmp.ge.f32.partialorder %v2003, %v2011
          %v2013 = vsel %vm2012, %v473, 128.0
          %v2014 = vsel %vm2008, %v2013, inf
          %2015 = vmin.xlane.f32.xlu0 %v2014
          %v2016 = vpop.xlane.xlu0 %2015
          %v2017 = vcvt.f32.s32.to.zero.pseudo %v2016
          %s2018 = sadd.s32 %s477, 1
          %v2019 = vstv %s2018
          %vm2020 = vcmp.eq.s32.totalorder %v472, %v2019
          %v2021 = vsel %vm2020, %v2017, %v483
        $region69: #{flan_xl_vqa_forward.7} parent=63 // loop_footer
          %s481 = sadd.s32 1, %s477
        $region70: #{flan_xl_vqa_forward.7} parent=63 // loop_footer_branch
          %476 = sbr.rel target = $region66
        $region71: #{flan_xl_vqa_forward.7} parent=63 // loop_exit
          _
        %vm2022 = vcmask 32768
        %2023 = vst.msk [vmem:[%s378] sm:$0x1] %vm2022, %v483
        %s2024 = sand.u32 %s269, 1
        %s2025 = scalar_lea.sflag [#allocation3], %s2024
        %s2026 = sand.u32 %s269, 1
        %s2027 = scalar_lea.vmem [#allocation2], %s2026
        // Predicated region
        $region72: #{flan_xl_vqa_forward.7} parent=63 // pred_check
          %p2028 = pneg %p279
        $region73: #{flan_xl_vqa_forward.7} parent=63 // pred_check_branch
          %2030 = sbr.rel (%p2028) target = $region75
        $region74: #{flan_xl_vqa_forward.7} parent=63 // pred_region
          %s2032 = ssub.s32 16, 16
          %2033 = vsyncadd %s2025, %s2032
          %s2034 = smul.addr %s25, 16
          %s2035 = scalar_lea.hbm %s11, %s2034
          %s2037 = sshll.u32 %s2027, 4
          %s2038 = int_to_ptr.vmem [resolvable:$true] %s2037
          %2040 = dma.vmem_to_hbm [thread:$0]  %s2038, 16, %s2035, %s2025
        $region75: #{flan_xl_vqa_forward.7} parent=63 // pred_fallthru
          _
      $region64: #{flan_xl_vqa_forward.7} parent=5 // pred_fallthru
        _
      %p2041 = scmp.le.s32.totalorder 2, %s20
      // Predicated region
      $region76: #{flan_xl_vqa_forward.7} parent=5 // pred_check
        %p2042 = pneg %p2041
      $region77: #{flan_xl_vqa_forward.7} parent=5 // pred_check_branch
        %2044 = sbr.rel (%p2042) target = $region79
      $region78: #{flan_xl_vqa_forward.7} parent=5 // pred_region
        %s2045 = ssub.s32 %s20, 2
        // Predicated region
        $region80: #{flan_xl_vqa_forward.7} parent=78 // pred_check
          %p2046 = pneg %p285
        $region81: #{flan_xl_vqa_forward.7} parent=78 // pred_check_branch
          %2048 = sbr.rel (%p2046) target = $region83
        $region82: #{flan_xl_vqa_forward.7} parent=78 // pred_region
          %s2049 = sand.u32 %s270, 1
          %s2050 = scalar_lea.sflag [#allocation3], %s2049
          %s2051 = sand.u32 %s270, 1
          %s2052 = scalar_lea.vmem [#allocation2], %s2051
          %2053 = dma.done %s2050, 16
        $region83: #{flan_xl_vqa_forward.7} parent=78 // pred_fallthru
          _
      $region79: #{flan_xl_vqa_forward.7} parent=5 // pred_fallthru
        _
    $region6: #{flan_xl_vqa_forward.7} parent=1 // loop_footer
      %s24 = sadd.s32 1, %s20
    $region7: #{flan_xl_vqa_forward.7} parent=1 // loop_footer_branch
      %19 = sbr.rel target = $region3
    $region8: #{flan_xl_vqa_forward.7} parent=1 // loop_exit
      _
    %2054 = vsyncpa [#allocation3], 1
    %s2055 = scalar_lea.sflag [#allocation3], 1
    %2056 = vsyncpa %s2055, 1

</llo_original>
